<compile_context>
chip_gen: v7x
topology: tpu7x:2x2x1
jax: 0.10.0
libtpu: 0.0.40
codegen_flags: <defaults>
</compile_context>

<pallas_src>
import jax
import jax.numpy as jnp
from jax import lax
from jax.experimental import pallas as pl
from jax.experimental.pallas import tpu as pltpu

_BN_EPS = 1e-5
_SQRT1_2 = 0.7071067811865476


# ----------------------------------------------------------------------------
# small helpers
# ----------------------------------------------------------------------------
def _vmem_spec():
    return pl.BlockSpec(memory_space=pltpu.MemorySpace.VMEM)


def _recip_eup(d):
    # EUP approx reciprocal + one Newton step (~1e-7 rel. err.): keeps the
    # divide off the VALU slots (v5e has no bf16 VPU and only 4 f32 VALU slots).
    r = pl.reciprocal(d, approx=True)
    return r * (2.0 - d * r)


def _erf_poly(x, recip):
    # Abramowitz & Stegun 7.1.26 polynomial (|err| < 1.5e-7); only exp/mul/add
    # plus one reciprocal, so it lowers cleanly on Mosaic.
    a1, a2, a3, a4, a5 = 0.254829592, -0.284496736, 1.421413741, -1.453152027, 1.061405429
    p = 0.3275911
    sign = jnp.where(x >= 0.0, 1.0, -1.0)
    ax = jnp.abs(x)
    t = recip(1.0 + p * ax)
    poly = ((((a5 * t + a4) * t + a3) * t + a2) * t + a1) * t
    return sign * (1.0 - poly * jnp.exp(-ax * ax))


def _gelu_exact(x, recip):
    # matches torch.nn.GELU() (erf formulation), f32 elementwise
    return 0.5 * x * (1.0 + _erf_poly(x * _SQRT1_2, recip))


# ----------------------------------------------------------------------------
# fused TSTiEncoder Pallas kernel
# ----------------------------------------------------------------------------
def _fused_tsti_encoder(tokens, pos_bias, params, cfg):
    """Whole TSTiEncoder stack in one grid-less, VMEM-resident pallas_call.

    tokens   : (M, patch_len) f32 token rows ordered (batch*n_vars major,
               patch index minor), M = batch * n_vars * patch_num
    pos_bias : (M, d_model)   f32, W_P bias + positional encoding per token row
    returns  : (M, d_model)   f32 encoder output
    """
    M = tokens.shape[0]
    D = cfg["d_model"]
    H = cfg["n_heads"]
    Q = cfg["patch_num"]
    dh = D // H
    BN = M // Q
    enc = params["enc"]
    n_layers = enc["Wqkv"].shape[0]
    scale = float(dh) ** -0.5
    bf16, f32 = jnp.bfloat16, jnp.float32

    def kernel(tok_ref, posb_ref, wp_ref,
               wqkv_ref, bqkv_ref, wo_ref, bo_ref,
               bn1w_ref, bn1b_ref, w1_ref, b1_ref, w2_ref, b2_ref,
               bn2w_ref, bn2b_ref, out_ref, ctx_sc):

        def batchnorm(v, w, b):
            # nn.BatchNorm1d(d_model) applied to (BN, d_model, Q): train-mode
            # batch statistics over all M = BN*Q positions per feature,
            # computed in a single pass (var clamped at 0).
            mu = jnp.mean(v, axis=0, keepdims=True)
            ex2 = jnp.mean(v * v, axis=0, keepdims=True)
            var = jnp.maximum(ex2 - mu * mu, 0.0)
            return (v - mu) * lax.rsqrt(var + _BN_EPS) * w + b

        # ---- patch embedding + positional encoding: x = tok @ W_P + (b_P + W_pos) ----
        x = jnp.dot(tok_ref[...].astype(bf16), wp_ref[...],
                    preferred_element_type=f32) + posb_ref[...]

        # res_attention pre-softmax score carry, per (sequence, head); never
        # leaves vregs/VMEM and the "+ prev" add is skipped on layer 0
        prev = [[None] * H for _ in range(BN)]

        for l in range(n_layers):
            # ---- fused QKV projection: one lane-dense (D -> 3D) matmul ----
            qkv = jnp.dot(x.astype(bf16), wqkv_ref[l],
                          preferred_element_type=f32) + bqkv_ref[l]   # (M, 3D)

            # ---- block-diagonal multi-head attention: (Q, Q) per sequence ----
            for b in range(BN):
                qkv_b = qkv[b * Q:(b + 1) * Q, :].astype(bf16)        # (Q, 3D)
                heads = []
                for h in range(H):
                    q = qkv_b[:, h * dh:(h + 1) * dh]
                    k = qkv_b[:, D + h * dh:D + (h + 1) * dh]
                    v = qkv_b[:, 2 * D + h * dh:2 * D + (h + 1) * dh]
                    s = lax.dot_general(q, k, (((1,), (1,)), ((), ())),
                                        preferred_element_type=f32) * scale
                    if prev[b][h] is not None:     # layer 0: no +0 add
                        s = s + prev[b][h]
                    prev[b][h] = s                 # carried pre-softmax scores
                    mx = jnp.max(s, axis=-1, keepdims=True)
                    e = jnp.exp(s - mx)
                    p = e * pl.reciprocal(jnp.sum(e, axis=-1, keepdims=True),
                                          approx=True)
                    heads.append(jnp.dot(p.astype(bf16), v,
                                         preferred_element_type=f32))
                # lane-dim concat over heads, then ONE full-row bf16 store
                ctx_sc[b * Q:(b + 1) * Q, :] = (
                    jnp.concatenate(heads, axis=1).astype(bf16))

            # ---- output projection + residual + BatchNorm1d ----
            attn_out = jnp.dot(ctx_sc[...], wo_ref[l],
                               preferred_element_type=f32) + bo_ref[l]
            x = batchnorm(x + attn_out, bn1w_ref[l], bn1b_ref[l])

            # ---- FFN: Linear -> GELU(erf) -> Linear, residual + BatchNorm1d ----
            hid = jnp.dot(x.astype(bf16), w1_ref[l],
                          preferred_element_type=f32) + b1_ref[l]
            hid = _gelu_exact(hid, _recip_eup)
            ff = jnp.dot(hid.astype(bf16), w2_ref[l],
                         preferred_element_type=f32) + b2_ref[l]
            x = batchnorm(x + ff, bn2w_ref[l], bn2b_ref[l])

        out_ref[...] = x

    return pl.pallas_call(
        kernel,
        out_shape=jax.ShapeDtypeStruct((M, D), jnp.float32),
        in_specs=[_vmem_spec()] * 15,
        out_specs=_vmem_spec(),
        scratch_shapes=[pltpu.VMEM((M, D), jnp.bfloat16)],   # bf16 context rows
    )(tokens, pos_bias, params["W_P"],
      enc["Wqkv"], enc["bqkv"], enc["Wo"], enc["bo"],
      enc["bn1_w"], enc["bn1_b"], enc["W1"], enc["b1"], enc["W2"], enc["b2"],
      enc["bn2_w"], enc["bn2_b"])


def tsti_encoder(x, params, cfg):
    """TSTiEncoder.forward:
    (bs, n_vars, patch_len, patch_num) -> (bs, n_vars, d_model, patch_num)."""
    B, C, P, Q = x.shape
    D = cfg["d_model"]
    M = B * C * Q

    # x.permute(0,1,3,2) -> (B, C, Q, P), flattened to token rows (bn major, q minor)
    tokens = jnp.transpose(x, (0, 1, 3, 2)).reshape(M, P)
    # W_P bias + positional encoding folded into one per-token-row bias
    # (tiny one-time layout prep; generate in-kernel at production sizes)
    pos_bias = jnp.tile(params["W_pos"] + params["b_P"], (B * C, 1))     # (M, D)

    src = _fused_tsti_encoder(tokens, pos_bias, params, cfg)            # (M, D)
    z = src.reshape(B, C, Q, D)
    return jnp.transpose(z, (0, 1, 3, 2))                               # (B, C, D, Q)


# ----------------------------------------------------------------------------
# pure-JAX reference (same numerics: bf16 MXU operands, f32 accumulation)
# ----------------------------------------------------------------------------
def tsti_encoder_reference(x, params, cfg):
    B, C, P, Q = x.shape
    D, H = cfg["d_model"], cfg["n_heads"]
    dh = D // H
    BN = B * C
    enc = params["enc"]
    L = enc["Wqkv"].shape[0]
    scale = float(dh) ** -0.5
    bf16, f32 = jnp.bfloat16, jnp.float32

    def batchnorm(v, w, b):
        mu = jnp.mean(v, axis=(0, 1), keepdims=True)
        ex2 = jnp.mean(v * v, axis=(0, 1), keepdims=True)
        var = jnp.maximum(ex2 - mu * mu, 0.0)
        return (v - mu) * lax.rsqrt(var + _BN_EPS) * w + b

    xp = jnp.transpose(x, (0, 1, 3, 2)).reshape(BN, Q, P)
    u = jnp.einsum('bqp,pd->bqd', xp.astype(bf16), params["W_P"],
                   preferred_element_type=f32)
    u = u + (params["W_pos"] + params["b_P"])

    prev = None
    for l in range(L):
        qkv = jnp.einsum('bqd,de->bqe', u.astype(bf16), enc["Wqkv"][l],
                         preferred_element_type=f32) + enc["bqkv"][l]
        q = qkv[..., :D].reshape(BN, Q, H, dh).astype(bf16)
        k = qkv[..., D:2 * D].reshape(BN, Q, H, dh).astype(bf16)
        v = qkv[..., 2 * D:].reshape(BN, Q, H, dh).astype(bf16)
        s = jnp.einsum('bqhd,bkhd->bhqk', q, k, preferred_element_type=f32) * scale
        if prev is not None:
            s = s + prev
        prev = s
        p = jax.nn.softmax(s, axis=-1)
        o = jnp.einsum('bhqk,bkhd->bqhd', p.astype(bf16), v,
                       preferred_element_type=f32).reshape(BN, Q, D)
        attn = jnp.einsum('bqd,de->bqe', o.astype(bf16), enc["Wo"][l],
                          preferred_element_type=f32) + enc["bo"][l]
        u = batchnorm(u + attn, enc["bn1_w"][l], enc["bn1_b"][l])
        hid = jnp.einsum('bqd,df->bqf', u.astype(bf16), enc["W1"][l],
                         preferred_element_type=f32) + enc["b1"][l]
        hid = 0.5 * hid * (1.0 + lax.erf(hid * _SQRT1_2))
        ff = jnp.einsum('bqf,fd->bqd', hid.astype(bf16), enc["W2"][l],
                        preferred_element_type=f32) + enc["b2"][l]
        u = batchnorm(u + ff, enc["bn2_w"][l], enc["bn2_b"][l])

    z = u.reshape(B, C, Q, D)
    return jnp.transpose(z, (0, 1, 3, 2))


# ----------------------------------------------------------------------------
# parameter construction (deterministic, synthetic)
# ----------------------------------------------------------------------------
def init_params(key, cfg):
    P, Q, D, F = cfg["patch_len"], cfg["patch_num"], cfg["d_model"], cfg["d_ff"]
    n_layers = cfg["n_layers"]

    def lin(k, din, dout, w_dtype=jnp.float32):
        k1, k2 = jax.random.split(k)
        w = jax.random.normal(k1, (din, dout), jnp.float32) * (din ** -0.5)
        b = jax.random.normal(k2, (1, dout), jnp.float32) * 0.01
        return w.astype(w_dtype), b          # weights used on the MXU -> bf16

    keys = jax.random.split(key, 2 + n_layers)
    params = {
        # positional_encoding('zeros', learn_pe=True): uniform(-0.02, 0.02)
        "W_pos": jax.random.uniform(keys[0], (Q, D), jnp.float32, -0.02, 0.02),
    }
    params["W_P"], params["b_P"] = lin(keys[1], P, D, jnp.bfloat16)

    layers = []
    for li in range(n_layers):
        lk = jax.random.split(keys[2 + li], 4)
        wqkv, bqkv = lin(lk[0], D, 3 * D, jnp.bfloat16)          # fused Q|K|V
        wo, bo = lin(lk[1], D, D, jnp.bfloat16)
        w1, b1 = lin(lk[2], D, F, jnp.bfloat16)
        w2, b2 = lin(lk[3], F, D, jnp.bfloat16)
        layers.append(dict(
            Wqkv=wqkv, bqkv=bqkv, Wo=wo, bo=bo, W1=w1, b1=b1, W2=w2, b2=b2,
            bn1_w=jnp.ones((1, D), jnp.float32), bn1_b=jnp.zeros((1, D), jnp.float32),
            bn2_w=jnp.ones((1, D), jnp.float32), bn2_b=jnp.zeros((1, D), jnp.float32)))
    # stack per-layer params along a leading layer axis so the fused kernel
    # indexes them with ref[l] instead of taking ~12*n_layers separate inputs
    params["enc"] = {k: jnp.stack([lyr[k] for lyr in layers]) for k in layers[0]}
    return params


# ----------------------------------------------------------------------------
if __name__ == "__main__":
    cfg = dict(
        c_in=4,          # n_vars
        patch_len=8,
        patch_num=3,     # q_len
        d_model=32,
        n_heads=4,
        d_ff=64,
        n_layers=2,
    )

    key = jax.random.PRNGKey(0)
    k_x, k_p = jax.random.split(key)
    params = init_params(k_p, cfg)

    # TSTiEncoder input: (bs, n_vars, patch_len, patch_num)
    x = jax.random.normal(
        k_x, (2, cfg["c_in"], cfg["patch_len"], cfg["patch_num"]), jnp.float32)

    z = jax.jit(lambda xx: tsti_encoder(xx, params, cfg))(x)
    jax.block_until_ready(z)
    assert z.shape == (2, cfg["c_in"], cfg["d_model"], cfg["patch_num"]), z.shape

    # correctness check against a pure-JAX reference with matching numerics
    z_ref = jax.jit(lambda xx: tsti_encoder_reference(xx, params, cfg))(x)
    jax.block_until_ready(z_ref)
    err = float(jnp.max(jnp.abs(z - z_ref)))
    assert err < 5e-2, f"max abs err vs reference: {err}"

    print("KERNEL_OK")
</pallas_src>

<mosaic_0001>
module attributes {stable_mosaic.version = 11 : i64} {
  func.func @kernel(%arg0: memref<24x8xf32, #tpu.memory_space<vmem>>, %arg1: memref<24x32xf32, #tpu.memory_space<vmem>>, %arg2: memref<8x32xbf16, #tpu.memory_space<vmem>>, %arg3: memref<2x32x96xbf16, #tpu.memory_space<vmem>>, %arg4: memref<2x1x96xf32, #tpu.memory_space<vmem>>, %arg5: memref<2x32x32xbf16, #tpu.memory_space<vmem>>, %arg6: memref<2x1x32xf32, #tpu.memory_space<vmem>>, %arg7: memref<2x1x32xf32, #tpu.memory_space<vmem>>, %arg8: memref<2x1x32xf32, #tpu.memory_space<vmem>>, %arg9: memref<2x32x64xbf16, #tpu.memory_space<vmem>>, %arg10: memref<2x1x64xf32, #tpu.memory_space<vmem>>, %arg11: memref<2x64x32xbf16, #tpu.memory_space<vmem>>, %arg12: memref<2x1x32xf32, #tpu.memory_space<vmem>>, %arg13: memref<2x1x32xf32, #tpu.memory_space<vmem>>, %arg14: memref<2x1x32xf32, #tpu.memory_space<vmem>>, %arg15: memref<24x32xf32, #tpu.memory_space<vmem>>, %arg16: memref<24x32xbf16, #tpu.memory_space<vmem>>) attributes {dimension_semantics = [], scalar_prefetch = 0 : i64, scratch_operands = 1 : i64, tpu.core_type = #tpu.core_type<tc>} {
    %c0 = arith.constant 0 : index
    %c0_0 = arith.constant 0 : index
    %0 = vector.load %arg0[%c0, %c0_0] : memref<24x8xf32, #tpu.memory_space<vmem>>, vector<24x8xf32>
    %1 = arith.truncf %0 : vector<24x8xf32> to vector<24x8xbf16>
    %c0_1 = arith.constant 0 : index
    %c0_2 = arith.constant 0 : index
    %2 = vector.load %arg2[%c0_1, %c0_2] : memref<8x32xbf16, #tpu.memory_space<vmem>>, vector<8x32xbf16>
    %cst = arith.constant dense<0.000000e+00> : vector<24x32xf32>
    %3 = tpu.matmul %1, %2, %cst {dimension_numbers = #tpu.dot_dimension_numbers<[1], [0], [0], [1], [0, 0, 1, 1], [], []>} : vector<24x8xbf16>, vector<8x32xbf16>, vector<24x32xf32> -> vector<24x32xf32>
    %c0_3 = arith.constant 0 : index
    %c0_4 = arith.constant 0 : index
    %4 = vector.load %arg1[%c0_3, %c0_4] : memref<24x32xf32, #tpu.memory_space<vmem>>, vector<24x32xf32>
    %5 = arith.addf %3, %4 : vector<24x32xf32>
    %6 = arith.truncf %5 : vector<24x32xf32> to vector<24x32xbf16>
    %c0_5 = arith.constant 0 : index
    %c0_6 = arith.constant 0 : index
    %c0_7 = arith.constant 0 : index
    %7 = vector.load %arg3[%c0_5, %c0_6, %c0_7] : memref<2x32x96xbf16, #tpu.memory_space<vmem>>, vector<1x32x96xbf16>
    %8 = vector.shape_cast %7 : vector<1x32x96xbf16> to vector<32x96xbf16>
    %cst_8 = arith.constant dense<0.000000e+00> : vector<24x96xf32>
    %9 = tpu.matmul %6, %8, %cst_8 {dimension_numbers = #tpu.dot_dimension_numbers<[1], [0], [0], [1], [0, 0, 1, 1], [], []>} : vector<24x32xbf16>, vector<32x96xbf16>, vector<24x96xf32> -> vector<24x96xf32>
    %c0_9 = arith.constant 0 : index
    %c0_10 = arith.constant 0 : index
    %c0_11 = arith.constant 0 : index
    %10 = vector.load %arg4[%c0_9, %c0_10, %c0_11] : memref<2x1x96xf32, #tpu.memory_space<vmem>>, vector<1x1x96xf32>
    %11 = vector.shape_cast %10 : vector<1x1x96xf32> to vector<1x96xf32>
    %12 = vector.broadcast %11 : vector<1x96xf32> to vector<24x96xf32>
    %13 = arith.addf %9, %12 : vector<24x96xf32>
    %14 = vector.extract_strided_slice %13 {offsets = [0, 0], sizes = [3, 96], strides = [1, 1]} : vector<24x96xf32> to vector<3x96xf32>
    %15 = arith.truncf %14 : vector<3x96xf32> to vector<3x96xbf16>
    %16 = vector.extract_strided_slice %15 {offsets = [0, 0], sizes = [3, 8], strides = [1, 1]} : vector<3x96xbf16> to vector<3x8xbf16>
    %17 = vector.extract_strided_slice %15 {offsets = [0, 32], sizes = [3, 8], strides = [1, 1]} : vector<3x96xbf16> to vector<3x8xbf16>
    %18 = vector.extract_strided_slice %15 {offsets = [0, 64], sizes = [3, 8], strides = [1, 1]} : vector<3x96xbf16> to vector<3x8xbf16>
    %cst_12 = arith.constant dense<0.000000e+00> : vector<3x3xf32>
    %19 = tpu.matmul %16, %17, %cst_12 {dimension_numbers = #tpu.dot_dimension_numbers<[1], [1], [0], [0], [0, 0, 1, 0], [], []>} : vector<3x8xbf16>, vector<3x8xbf16>, vector<3x3xf32> -> vector<3x3xf32>
    %cst_13 = arith.constant 0.353553385 : f32
    %20 = vector.broadcast %cst_13 : f32 to vector<3x3xf32>
    %21 = arith.mulf %19, %20 : vector<3x3xf32>
    %cst_14 = arith.constant dense<0xFF800000> : vector<3xf32>
    %22 = vector.multi_reduction <maximumf>, %21, %cst_14 [1] : vector<3x3xf32> to vector<3xf32>
    %23 = vector.shape_cast %22 : vector<3xf32> to vector<3x1xf32>
    %24 = vector.broadcast %23 : vector<3x1xf32> to vector<3x3xf32>
    %25 = arith.subf %21, %24 : vector<3x3xf32>
    %26 = math.exp %25 : vector<3x3xf32>
    %cst_15 = arith.constant dense<0.000000e+00> : vector<3xf32>
    %27 = vector.multi_reduction <add>, %26, %cst_15 [1] : vector<3x3xf32> to vector<3xf32>
    %28 = vector.shape_cast %27 : vector<3xf32> to vector<3x1xf32>
    %29 = tpu.reciprocal %28 {approx = true} : vector<3x1xf32> -> vector<3x1xf32>
    %30 = vector.broadcast %29 : vector<3x1xf32> to vector<3x3xf32>
    %31 = arith.mulf %26, %30 : vector<3x3xf32>
    %32 = arith.truncf %31 : vector<3x3xf32> to vector<3x3xbf16>
    %cst_16 = arith.constant dense<0.000000e+00> : vector<3x8xf32>
    %33 = tpu.matmul %32, %18, %cst_16 {dimension_numbers = #tpu.dot_dimension_numbers<[1], [0], [0], [1], [0, 0, 1, 1], [], []>} : vector<3x3xbf16>, vector<3x8xbf16>, vector<3x8xf32> -> vector<3x8xf32>
    %34 = vector.extract_strided_slice %15 {offsets = [0, 8], sizes = [3, 8], strides = [1, 1]} : vector<3x96xbf16> to vector<3x8xbf16>
    %35 = vector.extract_strided_slice %15 {offsets = [0, 40], sizes = [3, 8], strides = [1, 1]} : vector<3x96xbf16> to vector<3x8xbf16>
    %36 = vector.extract_strided_slice %15 {offsets = [0, 72], sizes = [3, 8], strides = [1, 1]} : vector<3x96xbf16> to vector<3x8xbf16>
    %cst_17 = arith.constant dense<0.000000e+00> : vector<3x3xf32>
    %37 = tpu.matmul %34, %35, %cst_17 {dimension_numbers = #tpu.dot_dimension_numbers<[1], [1], [0], [0], [0, 0, 1, 0], [], []>} : vector<3x8xbf16>, vector<3x8xbf16>, vector<3x3xf32> -> vector<3x3xf32>
    %cst_18 = arith.constant 0.353553385 : f32
    %38 = vector.broadcast %cst_18 : f32 to vector<3x3xf32>
    %39 = arith.mulf %37, %38 : vector<3x3xf32>
    %cst_19 = arith.constant dense<0xFF800000> : vector<3xf32>
    %40 = vector.multi_reduction <maximumf>, %39, %cst_19 [1] : vector<3x3xf32> to vector<3xf32>
    %41 = vector.shape_cast %40 : vector<3xf32> to vector<3x1xf32>
    %42 = vector.broadcast %41 : vector<3x1xf32> to vector<3x3xf32>
    %43 = arith.subf %39, %42 : vector<3x3xf32>
    %44 = math.exp %43 : vector<3x3xf32>
    %cst_20 = arith.constant dense<0.000000e+00> : vector<3xf32>
    %45 = vector.multi_reduction <add>, %44, %cst_20 [1] : vector<3x3xf32> to vector<3xf32>
    %46 = vector.shape_cast %45 : vector<3xf32> to vector<3x1xf32>
    %47 = tpu.reciprocal %46 {approx = true} : vector<3x1xf32> -> vector<3x1xf32>
    %48 = vector.broadcast %47 : vector<3x1xf32> to vector<3x3xf32>
    %49 = arith.mulf %44, %48 : vector<3x3xf32>
    %50 = arith.truncf %49 : vector<3x3xf32> to vector<3x3xbf16>
    %cst_21 = arith.constant dense<0.000000e+00> : vector<3x8xf32>
    %51 = tpu.matmul %50, %36, %cst_21 {dimension_numbers = #tpu.dot_dimension_numbers<[1], [0], [0], [1], [0, 0, 1, 1], [], []>} : vector<3x3xbf16>, vector<3x8xbf16>, vector<3x8xf32> -> vector<3x8xf32>
    %52 = vector.extract_strided_slice %15 {offsets = [0, 16], sizes = [3, 8], strides = [1, 1]} : vector<3x96xbf16> to vector<3x8xbf16>
    %53 = vector.extract_strided_slice %15 {offsets = [0, 48], sizes = [3, 8], strides = [1, 1]} : vector<3x96xbf16> to vector<3x8xbf16>
    %54 = vector.extract_strided_slice %15 {offsets = [0, 80], sizes = [3, 8], strides = [1, 1]} : vector<3x96xbf16> to vector<3x8xbf16>
    %cst_22 = arith.constant dense<0.000000e+00> : vector<3x3xf32>
    %55 = tpu.matmul %52, %53, %cst_22 {dimension_numbers = #tpu.dot_dimension_numbers<[1], [1], [0], [0], [0, 0, 1, 0], [], []>} : vector<3x8xbf16>, vector<3x8xbf16>, vector<3x3xf32> -> vector<3x3xf32>
    %cst_23 = arith.constant 0.353553385 : f32
    %56 = vector.broadcast %cst_23 : f32 to vector<3x3xf32>
    %57 = arith.mulf %55, %56 : vector<3x3xf32>
    %cst_24 = arith.constant dense<0xFF800000> : vector<3xf32>
    %58 = vector.multi_reduction <maximumf>, %57, %cst_24 [1] : vector<3x3xf32> to vector<3xf32>
    %59 = vector.shape_cast %58 : vector<3xf32> to vector<3x1xf32>
    %60 = vector.broadcast %59 : vector<3x1xf32> to vector<3x3xf32>
    %61 = arith.subf %57, %60 : vector<3x3xf32>
    %62 = math.exp %61 : vector<3x3xf32>
    %cst_25 = arith.constant dense<0.000000e+00> : vector<3xf32>
    %63 = vector.multi_reduction <add>, %62, %cst_25 [1] : vector<3x3xf32> to vector<3xf32>
    %64 = vector.shape_cast %63 : vector<3xf32> to vector<3x1xf32>
    %65 = tpu.reciprocal %64 {approx = true} : vector<3x1xf32> -> vector<3x1xf32>
    %66 = vector.broadcast %65 : vector<3x1xf32> to vector<3x3xf32>
    %67 = arith.mulf %62, %66 : vector<3x3xf32>
    %68 = arith.truncf %67 : vector<3x3xf32> to vector<3x3xbf16>
    %cst_26 = arith.constant dense<0.000000e+00> : vector<3x8xf32>
    %69 = tpu.matmul %68, %54, %cst_26 {dimension_numbers = #tpu.dot_dimension_numbers<[1], [0], [0], [1], [0, 0, 1, 1], [], []>} : vector<3x3xbf16>, vector<3x8xbf16>, vector<3x8xf32> -> vector<3x8xf32>
    %70 = vector.extract_strided_slice %15 {offsets = [0, 24], sizes = [3, 8], strides = [1, 1]} : vector<3x96xbf16> to vector<3x8xbf16>
    %71 = vector.extract_strided_slice %15 {offsets = [0, 56], sizes = [3, 8], strides = [1, 1]} : vector<3x96xbf16> to vector<3x8xbf16>
    %72 = vector.extract_strided_slice %15 {offsets = [0, 88], sizes = [3, 8], strides = [1, 1]} : vector<3x96xbf16> to vector<3x8xbf16>
    %cst_27 = arith.constant dense<0.000000e+00> : vector<3x3xf32>
    %73 = tpu.matmul %70, %71, %cst_27 {dimension_numbers = #tpu.dot_dimension_numbers<[1], [1], [0], [0], [0, 0, 1, 0], [], []>} : vector<3x8xbf16>, vector<3x8xbf16>, vector<3x3xf32> -> vector<3x3xf32>
    %cst_28 = arith.constant 0.353553385 : f32
    %74 = vector.broadcast %cst_28 : f32 to vector<3x3xf32>
    %75 = arith.mulf %73, %74 : vector<3x3xf32>
    %cst_29 = arith.constant dense<0xFF800000> : vector<3xf32>
    %76 = vector.multi_reduction <maximumf>, %75, %cst_29 [1] : vector<3x3xf32> to vector<3xf32>
    %77 = vector.shape_cast %76 : vector<3xf32> to vector<3x1xf32>
    %78 = vector.broadcast %77 : vector<3x1xf32> to vector<3x3xf32>
    %79 = arith.subf %75, %78 : vector<3x3xf32>
    %80 = math.exp %79 : vector<3x3xf32>
    %cst_30 = arith.constant dense<0.000000e+00> : vector<3xf32>
    %81 = vector.multi_reduction <add>, %80, %cst_30 [1] : vector<3x3xf32> to vector<3xf32>
    %82 = vector.shape_cast %81 : vector<3xf32> to vector<3x1xf32>
    %83 = tpu.reciprocal %82 {approx = true} : vector<3x1xf32> -> vector<3x1xf32>
    %84 = vector.broadcast %83 : vector<3x1xf32> to vector<3x3xf32>
    %85 = arith.mulf %80, %84 : vector<3x3xf32>
    %86 = arith.truncf %85 : vector<3x3xf32> to vector<3x3xbf16>
    %cst_31 = arith.constant dense<0.000000e+00> : vector<3x8xf32>
    %87 = tpu.matmul %86, %72, %cst_31 {dimension_numbers = #tpu.dot_dimension_numbers<[1], [0], [0], [1], [0, 0, 1, 1], [], []>} : vector<3x3xbf16>, vector<3x8xbf16>, vector<3x8xf32> -> vector<3x8xf32>
    %88 = tpu.concatenate %33, %51, %69, %87 in 1 : vector<3x8xf32>, vector<3x8xf32>, vector<3x8xf32>, vector<3x8xf32> -> vector<3x32xf32>
    %89 = arith.truncf %88 : vector<3x32xf32> to vector<3x32xbf16>
    %c0_32 = arith.constant 0 : index
    %c0_33 = arith.constant 0 : index
    %90 = vector.load %arg16[%c0_32, %c0_33] : memref<24x32xbf16, #tpu.memory_space<vmem>>, vector<3x32xbf16>
    tpu.vector_store %arg16[%c0_32, %c0_33], %89 {strides = array<i32>} : memref<24x32xbf16, #tpu.memory_space<vmem>>, vector<3x32xbf16>,
    %91 = vector.extract_strided_slice %13 {offsets = [3, 0], sizes = [3, 96], strides = [1, 1]} : vector<24x96xf32> to vector<3x96xf32>
    %92 = arith.truncf %91 : vector<3x96xf32> to vector<3x96xbf16>
    %93 = vector.extract_strided_slice %92 {offsets = [0, 0], sizes = [3, 8], strides = [1, 1]} : vector<3x96xbf16> to vector<3x8xbf16>
    %94 = vector.extract_strided_slice %92 {offsets = [0, 32], sizes = [3, 8], strides = [1, 1]} : vector<3x96xbf16> to vector<3x8xbf16>
    %95 = vector.extract_strided_slice %92 {offsets = [0, 64], sizes = [3, 8], strides = [1, 1]} : vector<3x96xbf16> to vector<3x8xbf16>
    %cst_34 = arith.constant dense<0.000000e+00> : vector<3x3xf32>
    %96 = tpu.matmul %93, %94, %cst_34 {dimension_numbers = #tpu.dot_dimension_numbers<[1], [1], [0], [0], [0, 0, 1, 0], [], []>} : vector<3x8xbf16>, vector<3x8xbf16>, vector<3x3xf32> -> vector<3x3xf32>
    %cst_35 = arith.constant 0.353553385 : f32
    %97 = vector.broadcast %cst_35 : f32 to vector<3x3xf32>
    %98 = arith.mulf %96, %97 : vector<3x3xf32>
    %cst_36 = arith.constant dense<0xFF800000> : vector<3xf32>
    %99 = vector.multi_reduction <maximumf>, %98, %cst_36 [1] : vector<3x3xf32> to vector<3xf32>
    %100 = vector.shape_cast %99 : vector<3xf32> to vector<3x1xf32>
    %101 = vector.broadcast %100 : vector<3x1xf32> to vector<3x3xf32>
    %102 = arith.subf %98, %101 : vector<3x3xf32>
    %103 = math.exp %102 : vector<3x3xf32>
    %cst_37 = arith.constant dense<0.000000e+00> : vector<3xf32>
    %104 = vector.multi_reduction <add>, %103, %cst_37 [1] : vector<3x3xf32> to vector<3xf32>
    %105 = vector.shape_cast %104 : vector<3xf32> to vector<3x1xf32>
    %106 = tpu.reciprocal %105 {approx = true} : vector<3x1xf32> -> vector<3x1xf32>
    %107 = vector.broadcast %106 : vector<3x1xf32> to vector<3x3xf32>
    %108 = arith.mulf %103, %107 : vector<3x3xf32>
    %109 = arith.truncf %108 : vector<3x3xf32> to vector<3x3xbf16>
    %cst_38 = arith.constant dense<0.000000e+00> : vector<3x8xf32>
    %110 = tpu.matmul %109, %95, %cst_38 {dimension_numbers = #tpu.dot_dimension_numbers<[1], [0], [0], [1], [0, 0, 1, 1], [], []>} : vector<3x3xbf16>, vector<3x8xbf16>, vector<3x8xf32> -> vector<3x8xf32>
    %111 = vector.extract_strided_slice %92 {offsets = [0, 8], sizes = [3, 8], strides = [1, 1]} : vector<3x96xbf16> to vector<3x8xbf16>
    %112 = vector.extract_strided_slice %92 {offsets = [0, 40], sizes = [3, 8], strides = [1, 1]} : vector<3x96xbf16> to vector<3x8xbf16>
    %113 = vector.extract_strided_slice %92 {offsets = [0, 72], sizes = [3, 8], strides = [1, 1]} : vector<3x96xbf16> to vector<3x8xbf16>
    %cst_39 = arith.constant dense<0.000000e+00> : vector<3x3xf32>
    %114 = tpu.matmul %111, %112, %cst_39 {dimension_numbers = #tpu.dot_dimension_numbers<[1], [1], [0], [0], [0, 0, 1, 0], [], []>} : vector<3x8xbf16>, vector<3x8xbf16>, vector<3x3xf32> -> vector<3x3xf32>
    %cst_40 = arith.constant 0.353553385 : f32
    %115 = vector.broadcast %cst_40 : f32 to vector<3x3xf32>
    %116 = arith.mulf %114, %115 : vector<3x3xf32>
    %cst_41 = arith.constant dense<0xFF800000> : vector<3xf32>
    %117 = vector.multi_reduction <maximumf>, %116, %cst_41 [1] : vector<3x3xf32> to vector<3xf32>
    %118 = vector.shape_cast %117 : vector<3xf32> to vector<3x1xf32>
    %119 = vector.broadcast %118 : vector<3x1xf32> to vector<3x3xf32>
    %120 = arith.subf %116, %119 : vector<3x3xf32>
    %121 = math.exp %120 : vector<3x3xf32>
    %cst_42 = arith.constant dense<0.000000e+00> : vector<3xf32>
    %122 = vector.multi_reduction <add>, %121, %cst_42 [1] : vector<3x3xf32> to vector<3xf32>
    %123 = vector.shape_cast %122 : vector<3xf32> to vector<3x1xf32>
    %124 = tpu.reciprocal %123 {approx = true} : vector<3x1xf32> -> vector<3x1xf32>
    %125 = vector.broadcast %124 : vector<3x1xf32> to vector<3x3xf32>
    %126 = arith.mulf %121, %125 : vector<3x3xf32>
    %127 = arith.truncf %126 : vector<3x3xf32> to vector<3x3xbf16>
    %cst_43 = arith.constant dense<0.000000e+00> : vector<3x8xf32>
    %128 = tpu.matmul %127, %113, %cst_43 {dimension_numbers = #tpu.dot_dimension_numbers<[1], [0], [0], [1], [0, 0, 1, 1], [], []>} : vector<3x3xbf16>, vector<3x8xbf16>, vector<3x8xf32> -> vector<3x8xf32>
    %129 = vector.extract_strided_slice %92 {offsets = [0, 16], sizes = [3, 8], strides = [1, 1]} : vector<3x96xbf16> to vector<3x8xbf16>
    %130 = vector.extract_strided_slice %92 {offsets = [0, 48], sizes = [3, 8], strides = [1, 1]} : vector<3x96xbf16> to vector<3x8xbf16>
    %131 = vector.extract_strided_slice %92 {offsets = [0, 80], sizes = [3, 8], strides = [1, 1]} : vector<3x96xbf16> to vector<3x8xbf16>
    %cst_44 = arith.constant dense<0.000000e+00> : vector<3x3xf32>
    %132 = tpu.matmul %129, %130, %cst_44 {dimension_numbers = #tpu.dot_dimension_numbers<[1], [1], [0], [0], [0, 0, 1, 0], [], []>} : vector<3x8xbf16>, vector<3x8xbf16>, vector<3x3xf32> -> vector<3x3xf32>
    %cst_45 = arith.constant 0.353553385 : f32
    %133 = vector.broadcast %cst_45 : f32 to vector<3x3xf32>
    %134 = arith.mulf %132, %133 : vector<3x3xf32>
    %cst_46 = arith.constant dense<0xFF800000> : vector<3xf32>
    %135 = vector.multi_reduction <maximumf>, %134, %cst_46 [1] : vector<3x3xf32> to vector<3xf32>
    %136 = vector.shape_cast %135 : vector<3xf32> to vector<3x1xf32>
    %137 = vector.broadcast %136 : vector<3x1xf32> to vector<3x3xf32>
    %138 = arith.subf %134, %137 : vector<3x3xf32>
    %139 = math.exp %138 : vector<3x3xf32>
    %cst_47 = arith.constant dense<0.000000e+00> : vector<3xf32>
    %140 = vector.multi_reduction <add>, %139, %cst_47 [1] : vector<3x3xf32> to vector<3xf32>
    %141 = vector.shape_cast %140 : vector<3xf32> to vector<3x1xf32>
    %142 = tpu.reciprocal %141 {approx = true} : vector<3x1xf32> -> vector<3x1xf32>
    %143 = vector.broadcast %142 : vector<3x1xf32> to vector<3x3xf32>
    %144 = arith.mulf %139, %143 : vector<3x3xf32>
    %145 = arith.truncf %144 : vector<3x3xf32> to vector<3x3xbf16>
    %cst_48 = arith.constant dense<0.000000e+00> : vector<3x8xf32>
    %146 = tpu.matmul %145, %131, %cst_48 {dimension_numbers = #tpu.dot_dimension_numbers<[1], [0], [0], [1], [0, 0, 1, 1], [], []>} : vector<3x3xbf16>, vector<3x8xbf16>, vector<3x8xf32> -> vector<3x8xf32>
    %147 = vector.extract_strided_slice %92 {offsets = [0, 24], sizes = [3, 8], strides = [1, 1]} : vector<3x96xbf16> to vector<3x8xbf16>
    %148 = vector.extract_strided_slice %92 {offsets = [0, 56], sizes = [3, 8], strides = [1, 1]} : vector<3x96xbf16> to vector<3x8xbf16>
    %149 = vector.extract_strided_slice %92 {offsets = [0, 88], sizes = [3, 8], strides = [1, 1]} : vector<3x96xbf16> to vector<3x8xbf16>
    %cst_49 = arith.constant dense<0.000000e+00> : vector<3x3xf32>
    %150 = tpu.matmul %147, %148, %cst_49 {dimension_numbers = #tpu.dot_dimension_numbers<[1], [1], [0], [0], [0, 0, 1, 0], [], []>} : vector<3x8xbf16>, vector<3x8xbf16>, vector<3x3xf32> -> vector<3x3xf32>
    %cst_50 = arith.constant 0.353553385 : f32
    %151 = vector.broadcast %cst_50 : f32 to vector<3x3xf32>
    %152 = arith.mulf %150, %151 : vector<3x3xf32>
    %cst_51 = arith.constant dense<0xFF800000> : vector<3xf32>
    %153 = vector.multi_reduction <maximumf>, %152, %cst_51 [1] : vector<3x3xf32> to vector<3xf32>
    %154 = vector.shape_cast %153 : vector<3xf32> to vector<3x1xf32>
    %155 = vector.broadcast %154 : vector<3x1xf32> to vector<3x3xf32>
    %156 = arith.subf %152, %155 : vector<3x3xf32>
    %157 = math.exp %156 : vector<3x3xf32>
    %cst_52 = arith.constant dense<0.000000e+00> : vector<3xf32>
    %158 = vector.multi_reduction <add>, %157, %cst_52 [1] : vector<3x3xf32> to vector<3xf32>
    %159 = vector.shape_cast %158 : vector<3xf32> to vector<3x1xf32>
    %160 = tpu.reciprocal %159 {approx = true} : vector<3x1xf32> -> vector<3x1xf32>
    %161 = vector.broadcast %160 : vector<3x1xf32> to vector<3x3xf32>
    %162 = arith.mulf %157, %161 : vector<3x3xf32>
    %163 = arith.truncf %162 : vector<3x3xf32> to vector<3x3xbf16>
    %cst_53 = arith.constant dense<0.000000e+00> : vector<3x8xf32>
    %164 = tpu.matmul %163, %149, %cst_53 {dimension_numbers = #tpu.dot_dimension_numbers<[1], [0], [0], [1], [0, 0, 1, 1], [], []>} : vector<3x3xbf16>, vector<3x8xbf16>, vector<3x8xf32> -> vector<3x8xf32>
    %165 = tpu.concatenate %110, %128, %146, %164 in 1 : vector<3x8xf32>, vector<3x8xf32>, vector<3x8xf32>, vector<3x8xf32> -> vector<3x32xf32>
    %166 = arith.truncf %165 : vector<3x32xf32> to vector<3x32xbf16>
    %c3 = arith.constant 3 : index
    %c0_54 = arith.constant 0 : index
    %167 = vector.load %arg16[%c3, %c0_54] : memref<24x32xbf16, #tpu.memory_space<vmem>>, vector<3x32xbf16>
    tpu.vector_store %arg16[%c3, %c0_54], %166 {strides = array<i32>} : memref<24x32xbf16, #tpu.memory_space<vmem>>, vector<3x32xbf16>,
    %168 = vector.extract_strided_slice %13 {offsets = [6, 0], sizes = [3, 96], strides = [1, 1]} : vector<24x96xf32> to vector<3x96xf32>
    %169 = arith.truncf %168 : vector<3x96xf32> to vector<3x96xbf16>
    %170 = vector.extract_strided_slice %169 {offsets = [0, 0], sizes = [3, 8], strides = [1, 1]} : vector<3x96xbf16> to vector<3x8xbf16>
    %171 = vector.extract_strided_slice %169 {offsets = [0, 32], sizes = [3, 8], strides = [1, 1]} : vector<3x96xbf16> to vector<3x8xbf16>
    %172 = vector.extract_strided_slice %169 {offsets = [0, 64], sizes = [3, 8], strides = [1, 1]} : vector<3x96xbf16> to vector<3x8xbf16>
    %cst_55 = arith.constant dense<0.000000e+00> : vector<3x3xf32>
    %173 = tpu.matmul %170, %171, %cst_55 {dimension_numbers = #tpu.dot_dimension_numbers<[1], [1], [0], [0], [0, 0, 1, 0], [], []>} : vector<3x8xbf16>, vector<3x8xbf16>, vector<3x3xf32> -> vector<3x3xf32>
    %cst_56 = arith.constant 0.353553385 : f32
    %174 = vector.broadcast %cst_56 : f32 to vector<3x3xf32>
    %175 = arith.mulf %173, %174 : vector<3x3xf32>
    %cst_57 = arith.constant dense<0xFF800000> : vector<3xf32>
    %176 = vector.multi_reduction <maximumf>, %175, %cst_57 [1] : vector<3x3xf32> to vector<3xf32>
    %177 = vector.shape_cast %176 : vector<3xf32> to vector<3x1xf32>
    %178 = vector.broadcast %177 : vector<3x1xf32> to vector<3x3xf32>
    %179 = arith.subf %175, %178 : vector<3x3xf32>
    %180 = math.exp %179 : vector<3x3xf32>
    %cst_58 = arith.constant dense<0.000000e+00> : vector<3xf32>
    %181 = vector.multi_reduction <add>, %180, %cst_58 [1] : vector<3x3xf32> to vector<3xf32>
    %182 = vector.shape_cast %181 : vector<3xf32> to vector<3x1xf32>
    %183 = tpu.reciprocal %182 {approx = true} : vector<3x1xf32> -> vector<3x1xf32>
    %184 = vector.broadcast %183 : vector<3x1xf32> to vector<3x3xf32>
    %185 = arith.mulf %180, %184 : vector<3x3xf32>
    %186 = arith.truncf %185 : vector<3x3xf32> to vector<3x3xbf16>
    %cst_59 = arith.constant dense<0.000000e+00> : vector<3x8xf32>
    %187 = tpu.matmul %186, %172, %cst_59 {dimension_numbers = #tpu.dot_dimension_numbers<[1], [0], [0], [1], [0, 0, 1, 1], [], []>} : vector<3x3xbf16>, vector<3x8xbf16>, vector<3x8xf32> -> vector<3x8xf32>
    %188 = vector.extract_strided_slice %169 {offsets = [0, 8], sizes = [3, 8], strides = [1, 1]} : vector<3x96xbf16> to vector<3x8xbf16>
    %189 = vector.extract_strided_slice %169 {offsets = [0, 40], sizes = [3, 8], strides = [1, 1]} : vector<3x96xbf16> to vector<3x8xbf16>
    %190 = vector.extract_strided_slice %169 {offsets = [0, 72], sizes = [3, 8], strides = [1, 1]} : vector<3x96xbf16> to vector<3x8xbf16>
    %cst_60 = arith.constant dense<0.000000e+00> : vector<3x3xf32>
    %191 = tpu.matmul %188, %189, %cst_60 {dimension_numbers = #tpu.dot_dimension_numbers<[1], [1], [0], [0], [0, 0, 1, 0], [], []>} : vector<3x8xbf16>, vector<3x8xbf16>, vector<3x3xf32> -> vector<3x3xf32>
    %cst_61 = arith.constant 0.353553385 : f32
    %192 = vector.broadcast %cst_61 : f32 to vector<3x3xf32>
    %193 = arith.mulf %191, %192 : vector<3x3xf32>
    %cst_62 = arith.constant dense<0xFF800000> : vector<3xf32>
    %194 = vector.multi_reduction <maximumf>, %193, %cst_62 [1] : vector<3x3xf32> to vector<3xf32>
    %195 = vector.shape_cast %194 : vector<3xf32> to vector<3x1xf32>
    %196 = vector.broadcast %195 : vector<3x1xf32> to vector<3x3xf32>
    %197 = arith.subf %193, %196 : vector<3x3xf32>
    %198 = math.exp %197 : vector<3x3xf32>
    %cst_63 = arith.constant dense<0.000000e+00> : vector<3xf32>
    %199 = vector.multi_reduction <add>, %198, %cst_63 [1] : vector<3x3xf32> to vector<3xf32>
    %200 = vector.shape_cast %199 : vector<3xf32> to vector<3x1xf32>
    %201 = tpu.reciprocal %200 {approx = true} : vector<3x1xf32> -> vector<3x1xf32>
    %202 = vector.broadcast %201 : vector<3x1xf32> to vector<3x3xf32>
    %203 = arith.mulf %198, %202 : vector<3x3xf32>
    %204 = arith.truncf %203 : vector<3x3xf32> to vector<3x3xbf16>
    %cst_64 = arith.constant dense<0.000000e+00> : vector<3x8xf32>
    %205 = tpu.matmul %204, %190, %cst_64 {dimension_numbers = #tpu.dot_dimension_numbers<[1], [0], [0], [1], [0, 0, 1, 1], [], []>} : vector<3x3xbf16>, vector<3x8xbf16>, vector<3x8xf32> -> vector<3x8xf32>
    %206 = vector.extract_strided_slice %169 {offsets = [0, 16], sizes = [3, 8], strides = [1, 1]} : vector<3x96xbf16> to vector<3x8xbf16>
    %207 = vector.extract_strided_slice %169 {offsets = [0, 48], sizes = [3, 8], strides = [1, 1]} : vector<3x96xbf16> to vector<3x8xbf16>
    %208 = vector.extract_strided_slice %169 {offsets = [0, 80], sizes = [3, 8], strides = [1, 1]} : vector<3x96xbf16> to vector<3x8xbf16>
    %cst_65 = arith.constant dense<0.000000e+00> : vector<3x3xf32>
    %209 = tpu.matmul %206, %207, %cst_65 {dimension_numbers = #tpu.dot_dimension_numbers<[1], [1], [0], [0], [0, 0, 1, 0], [], []>} : vector<3x8xbf16>, vector<3x8xbf16>, vector<3x3xf32> -> vector<3x3xf32>
    %cst_66 = arith.constant 0.353553385 : f32
    %210 = vector.broadcast %cst_66 : f32 to vector<3x3xf32>
    %211 = arith.mulf %209, %210 : vector<3x3xf32>
    %cst_67 = arith.constant dense<0xFF800000> : vector<3xf32>
    %212 = vector.multi_reduction <maximumf>, %211, %cst_67 [1] : vector<3x3xf32> to vector<3xf32>
    %213 = vector.shape_cast %212 : vector<3xf32> to vector<3x1xf32>
    %214 = vector.broadcast %213 : vector<3x1xf32> to vector<3x3xf32>
    %215 = arith.subf %211, %214 : vector<3x3xf32>
    %216 = math.exp %215 : vector<3x3xf32>
    %cst_68 = arith.constant dense<0.000000e+00> : vector<3xf32>
    %217 = vector.multi_reduction <add>, %216, %cst_68 [1] : vector<3x3xf32> to vector<3xf32>
    %218 = vector.shape_cast %217 : vector<3xf32> to vector<3x1xf32>
    %219 = tpu.reciprocal %218 {approx = true} : vector<3x1xf32> -> vector<3x1xf32>
    %220 = vector.broadcast %219 : vector<3x1xf32> to vector<3x3xf32>
    %221 = arith.mulf %216, %220 : vector<3x3xf32>
    %222 = arith.truncf %221 : vector<3x3xf32> to vector<3x3xbf16>
    %cst_69 = arith.constant dense<0.000000e+00> : vector<3x8xf32>
    %223 = tpu.matmul %222, %208, %cst_69 {dimension_numbers = #tpu.dot_dimension_numbers<[1], [0], [0], [1], [0, 0, 1, 1], [], []>} : vector<3x3xbf16>, vector<3x8xbf16>, vector<3x8xf32> -> vector<3x8xf32>
    %224 = vector.extract_strided_slice %169 {offsets = [0, 24], sizes = [3, 8], strides = [1, 1]} : vector<3x96xbf16> to vector<3x8xbf16>
    %225 = vector.extract_strided_slice %169 {offsets = [0, 56], sizes = [3, 8], strides = [1, 1]} : vector<3x96xbf16> to vector<3x8xbf16>
    %226 = vector.extract_strided_slice %169 {offsets = [0, 88], sizes = [3, 8], strides = [1, 1]} : vector<3x96xbf16> to vector<3x8xbf16>
    %cst_70 = arith.constant dense<0.000000e+00> : vector<3x3xf32>
    %227 = tpu.matmul %224, %225, %cst_70 {dimension_numbers = #tpu.dot_dimension_numbers<[1], [1], [0], [0], [0, 0, 1, 0], [], []>} : vector<3x8xbf16>, vector<3x8xbf16>, vector<3x3xf32> -> vector<3x3xf32>
    %cst_71 = arith.constant 0.353553385 : f32
    %228 = vector.broadcast %cst_71 : f32 to vector<3x3xf32>
    %229 = arith.mulf %227, %228 : vector<3x3xf32>
    %cst_72 = arith.constant dense<0xFF800000> : vector<3xf32>
    %230 = vector.multi_reduction <maximumf>, %229, %cst_72 [1] : vector<3x3xf32> to vector<3xf32>
    %231 = vector.shape_cast %230 : vector<3xf32> to vector<3x1xf32>
    %232 = vector.broadcast %231 : vector<3x1xf32> to vector<3x3xf32>
    %233 = arith.subf %229, %232 : vector<3x3xf32>
    %234 = math.exp %233 : vector<3x3xf32>
    %cst_73 = arith.constant dense<0.000000e+00> : vector<3xf32>
    %235 = vector.multi_reduction <add>, %234, %cst_73 [1] : vector<3x3xf32> to vector<3xf32>
    %236 = vector.shape_cast %235 : vector<3xf32> to vector<3x1xf32>
    %237 = tpu.reciprocal %236 {approx = true} : vector<3x1xf32> -> vector<3x1xf32>
    %238 = vector.broadcast %237 : vector<3x1xf32> to vector<3x3xf32>
    %239 = arith.mulf %234, %238 : vector<3x3xf32>
    %240 = arith.truncf %239 : vector<3x3xf32> to vector<3x3xbf16>
    %cst_74 = arith.constant dense<0.000000e+00> : vector<3x8xf32>
    %241 = tpu.matmul %240, %226, %cst_74 {dimension_numbers = #tpu.dot_dimension_numbers<[1], [0], [0], [1], [0, 0, 1, 1], [], []>} : vector<3x3xbf16>, vector<3x8xbf16>, vector<3x8xf32> -> vector<3x8xf32>
    %242 = tpu.concatenate %187, %205, %223, %241 in 1 : vector<3x8xf32>, vector<3x8xf32>, vector<3x8xf32>, vector<3x8xf32> -> vector<3x32xf32>
    %243 = arith.truncf %242 : vector<3x32xf32> to vector<3x32xbf16>
    %c6 = arith.constant 6 : index
    %c0_75 = arith.constant 0 : index
    %244 = vector.load %arg16[%c6, %c0_75] : memref<24x32xbf16, #tpu.memory_space<vmem>>, vector<3x32xbf16>
    tpu.vector_store %arg16[%c6, %c0_75], %243 {strides = array<i32>} : memref<24x32xbf16, #tpu.memory_space<vmem>>, vector<3x32xbf16>,
    %245 = vector.extract_strided_slice %13 {offsets = [9, 0], sizes = [3, 96], strides = [1, 1]} : vector<24x96xf32> to vector<3x96xf32>
    %246 = arith.truncf %245 : vector<3x96xf32> to vector<3x96xbf16>
    %247 = vector.extract_strided_slice %246 {offsets = [0, 0], sizes = [3, 8], strides = [1, 1]} : vector<3x96xbf16> to vector<3x8xbf16>
    %248 = vector.extract_strided_slice %246 {offsets = [0, 32], sizes = [3, 8], strides = [1, 1]} : vector<3x96xbf16> to vector<3x8xbf16>
    %249 = vector.extract_strided_slice %246 {offsets = [0, 64], sizes = [3, 8], strides = [1, 1]} : vector<3x96xbf16> to vector<3x8xbf16>
    %cst_76 = arith.constant dense<0.000000e+00> : vector<3x3xf32>
    %250 = tpu.matmul %247, %248, %cst_76 {dimension_numbers = #tpu.dot_dimension_numbers<[1], [1], [0], [0], [0, 0, 1, 0], [], []>} : vector<3x8xbf16>, vector<3x8xbf16>, vector<3x3xf32> -> vector<3x3xf32>
    %cst_77 = arith.constant 0.353553385 : f32
    %251 = vector.broadcast %cst_77 : f32 to vector<3x3xf32>
    %252 = arith.mulf %250, %251 : vector<3x3xf32>
    %cst_78 = arith.constant dense<0xFF800000> : vector<3xf32>
    %253 = vector.multi_reduction <maximumf>, %252, %cst_78 [1] : vector<3x3xf32> to vector<3xf32>
    %254 = vector.shape_cast %253 : vector<3xf32> to vector<3x1xf32>
    %255 = vector.broadcast %254 : vector<3x1xf32> to vector<3x3xf32>
    %256 = arith.subf %252, %255 : vector<3x3xf32>
    %257 = math.exp %256 : vector<3x3xf32>
    %cst_79 = arith.constant dense<0.000000e+00> : vector<3xf32>
    %258 = vector.multi_reduction <add>, %257, %cst_79 [1] : vector<3x3xf32> to vector<3xf32>
    %259 = vector.shape_cast %258 : vector<3xf32> to vector<3x1xf32>
    %260 = tpu.reciprocal %259 {approx = true} : vector<3x1xf32> -> vector<3x1xf32>
    %261 = vector.broadcast %260 : vector<3x1xf32> to vector<3x3xf32>
    %262 = arith.mulf %257, %261 : vector<3x3xf32>
    %263 = arith.truncf %262 : vector<3x3xf32> to vector<3x3xbf16>
    %cst_80 = arith.constant dense<0.000000e+00> : vector<3x8xf32>
    %264 = tpu.matmul %263, %249, %cst_80 {dimension_numbers = #tpu.dot_dimension_numbers<[1], [0], [0], [1], [0, 0, 1, 1], [], []>} : vector<3x3xbf16>, vector<3x8xbf16>, vector<3x8xf32> -> vector<3x8xf32>
    %265 = vector.extract_strided_slice %246 {offsets = [0, 8], sizes = [3, 8], strides = [1, 1]} : vector<3x96xbf16> to vector<3x8xbf16>
    %266 = vector.extract_strided_slice %246 {offsets = [0, 40], sizes = [3, 8], strides = [1, 1]} : vector<3x96xbf16> to vector<3x8xbf16>
    %267 = vector.extract_strided_slice %246 {offsets = [0, 72], sizes = [3, 8], strides = [1, 1]} : vector<3x96xbf16> to vector<3x8xbf16>
    %cst_81 = arith.constant dense<0.000000e+00> : vector<3x3xf32>
    %268 = tpu.matmul %265, %266, %cst_81 {dimension_numbers = #tpu.dot_dimension_numbers<[1], [1], [0], [0], [0, 0, 1, 0], [], []>} : vector<3x8xbf16>, vector<3x8xbf16>, vector<3x3xf32> -> vector<3x3xf32>
    %cst_82 = arith.constant 0.353553385 : f32
    %269 = vector.broadcast %cst_82 : f32 to vector<3x3xf32>
    %270 = arith.mulf %268, %269 : vector<3x3xf32>
    %cst_83 = arith.constant dense<0xFF800000> : vector<3xf32>
    %271 = vector.multi_reduction <maximumf>, %270, %cst_83 [1] : vector<3x3xf32> to vector<3xf32>
    %272 = vector.shape_cast %271 : vector<3xf32> to vector<3x1xf32>
    %273 = vector.broadcast %272 : vector<3x1xf32> to vector<3x3xf32>
    %274 = arith.subf %270, %273 : vector<3x3xf32>
    %275 = math.exp %274 : vector<3x3xf32>
    %cst_84 = arith.constant dense<0.000000e+00> : vector<3xf32>
    %276 = vector.multi_reduction <add>, %275, %cst_84 [1] : vector<3x3xf32> to vector<3xf32>
    %277 = vector.shape_cast %276 : vector<3xf32> to vector<3x1xf32>
    %278 = tpu.reciprocal %277 {approx = true} : vector<3x1xf32> -> vector<3x1xf32>
    %279 = vector.broadcast %278 : vector<3x1xf32> to vector<3x3xf32>
    %280 = arith.mulf %275, %279 : vector<3x3xf32>
    %281 = arith.truncf %280 : vector<3x3xf32> to vector<3x3xbf16>
    %cst_85 = arith.constant dense<0.000000e+00> : vector<3x8xf32>
    %282 = tpu.matmul %281, %267, %cst_85 {dimension_numbers = #tpu.dot_dimension_numbers<[1], [0], [0], [1], [0, 0, 1, 1], [], []>} : vector<3x3xbf16>, vector<3x8xbf16>, vector<3x8xf32> -> vector<3x8xf32>
    %283 = vector.extract_strided_slice %246 {offsets = [0, 16], sizes = [3, 8], strides = [1, 1]} : vector<3x96xbf16> to vector<3x8xbf16>
    %284 = vector.extract_strided_slice %246 {offsets = [0, 48], sizes = [3, 8], strides = [1, 1]} : vector<3x96xbf16> to vector<3x8xbf16>
    %285 = vector.extract_strided_slice %246 {offsets = [0, 80], sizes = [3, 8], strides = [1, 1]} : vector<3x96xbf16> to vector<3x8xbf16>
    %cst_86 = arith.constant dense<0.000000e+00> : vector<3x3xf32>
    %286 = tpu.matmul %283, %284, %cst_86 {dimension_numbers = #tpu.dot_dimension_numbers<[1], [1], [0], [0], [0, 0, 1, 0], [], []>} : vector<3x8xbf16>, vector<3x8xbf16>, vector<3x3xf32> -> vector<3x3xf32>
    %cst_87 = arith.constant 0.353553385 : f32
    %287 = vector.broadcast %cst_87 : f32 to vector<3x3xf32>
    %288 = arith.mulf %286, %287 : vector<3x3xf32>
    %cst_88 = arith.constant dense<0xFF800000> : vector<3xf32>
    %289 = vector.multi_reduction <maximumf>, %288, %cst_88 [1] : vector<3x3xf32> to vector<3xf32>
    %290 = vector.shape_cast %289 : vector<3xf32> to vector<3x1xf32>
    %291 = vector.broadcast %290 : vector<3x1xf32> to vector<3x3xf32>
    %292 = arith.subf %288, %291 : vector<3x3xf32>
    %293 = math.exp %292 : vector<3x3xf32>
    %cst_89 = arith.constant dense<0.000000e+00> : vector<3xf32>
    %294 = vector.multi_reduction <add>, %293, %cst_89 [1] : vector<3x3xf32> to vector<3xf32>
    %295 = vector.shape_cast %294 : vector<3xf32> to vector<3x1xf32>
    %296 = tpu.reciprocal %295 {approx = true} : vector<3x1xf32> -> vector<3x1xf32>
    %297 = vector.broadcast %296 : vector<3x1xf32> to vector<3x3xf32>
    %298 = arith.mulf %293, %297 : vector<3x3xf32>
    %299 = arith.truncf %298 : vector<3x3xf32> to vector<3x3xbf16>
    %cst_90 = arith.constant dense<0.000000e+00> : vector<3x8xf32>
    %300 = tpu.matmul %299, %285, %cst_90 {dimension_numbers = #tpu.dot_dimension_numbers<[1], [0], [0], [1], [0, 0, 1, 1], [], []>} : vector<3x3xbf16>, vector<3x8xbf16>, vector<3x8xf32> -> vector<3x8xf32>
    %301 = vector.extract_strided_slice %246 {offsets = [0, 24], sizes = [3, 8], strides = [1, 1]} : vector<3x96xbf16> to vector<3x8xbf16>
    %302 = vector.extract_strided_slice %246 {offsets = [0, 56], sizes = [3, 8], strides = [1, 1]} : vector<3x96xbf16> to vector<3x8xbf16>
    %303 = vector.extract_strided_slice %246 {offsets = [0, 88], sizes = [3, 8], strides = [1, 1]} : vector<3x96xbf16> to vector<3x8xbf16>
    %cst_91 = arith.constant dense<0.000000e+00> : vector<3x3xf32>
    %304 = tpu.matmul %301, %302, %cst_91 {dimension_numbers = #tpu.dot_dimension_numbers<[1], [1], [0], [0], [0, 0, 1, 0], [], []>} : vector<3x8xbf16>, vector<3x8xbf16>, vector<3x3xf32> -> vector<3x3xf32>
    %cst_92 = arith.constant 0.353553385 : f32
    %305 = vector.broadcast %cst_92 : f32 to vector<3x3xf32>
    %306 = arith.mulf %304, %305 : vector<3x3xf32>
    %cst_93 = arith.constant dense<0xFF800000> : vector<3xf32>
    %307 = vector.multi_reduction <maximumf>, %306, %cst_93 [1] : vector<3x3xf32> to vector<3xf32>
    %308 = vector.shape_cast %307 : vector<3xf32> to vector<3x1xf32>
    %309 = vector.broadcast %308 : vector<3x1xf32> to vector<3x3xf32>
    %310 = arith.subf %306, %309 : vector<3x3xf32>
    %311 = math.exp %310 : vector<3x3xf32>
    %cst_94 = arith.constant dense<0.000000e+00> : vector<3xf32>
    %312 = vector.multi_reduction <add>, %311, %cst_94 [1] : vector<3x3xf32> to vector<3xf32>
    %313 = vector.shape_cast %312 : vector<3xf32> to vector<3x1xf32>
    %314 = tpu.reciprocal %313 {approx = true} : vector<3x1xf32> -> vector<3x1xf32>
    %315 = vector.broadcast %314 : vector<3x1xf32> to vector<3x3xf32>
    %316 = arith.mulf %311, %315 : vector<3x3xf32>
    %317 = arith.truncf %316 : vector<3x3xf32> to vector<3x3xbf16>
    %cst_95 = arith.constant dense<0.000000e+00> : vector<3x8xf32>
    %318 = tpu.matmul %317, %303, %cst_95 {dimension_numbers = #tpu.dot_dimension_numbers<[1], [0], [0], [1], [0, 0, 1, 1], [], []>} : vector<3x3xbf16>, vector<3x8xbf16>, vector<3x8xf32> -> vector<3x8xf32>
    %319 = tpu.concatenate %264, %282, %300, %318 in 1 : vector<3x8xf32>, vector<3x8xf32>, vector<3x8xf32>, vector<3x8xf32> -> vector<3x32xf32>
    %320 = arith.truncf %319 : vector<3x32xf32> to vector<3x32xbf16>
    %c9 = arith.constant 9 : index
    %c0_96 = arith.constant 0 : index
    %321 = vector.load %arg16[%c9, %c0_96] : memref<24x32xbf16, #tpu.memory_space<vmem>>, vector<3x32xbf16>
    tpu.vector_store %arg16[%c9, %c0_96], %320 {strides = array<i32>} : memref<24x32xbf16, #tpu.memory_space<vmem>>, vector<3x32xbf16>,
    %322 = vector.extract_strided_slice %13 {offsets = [12, 0], sizes = [3, 96], strides = [1, 1]} : vector<24x96xf32> to vector<3x96xf32>
    %323 = arith.truncf %322 : vector<3x96xf32> to vector<3x96xbf16>
    %324 = vector.extract_strided_slice %323 {offsets = [0, 0], sizes = [3, 8], strides = [1, 1]} : vector<3x96xbf16> to vector<3x8xbf16>
    %325 = vector.extract_strided_slice %323 {offsets = [0, 32], sizes = [3, 8], strides = [1, 1]} : vector<3x96xbf16> to vector<3x8xbf16>
    %326 = vector.extract_strided_slice %323 {offsets = [0, 64], sizes = [3, 8], strides = [1, 1]} : vector<3x96xbf16> to vector<3x8xbf16>
    %cst_97 = arith.constant dense<0.000000e+00> : vector<3x3xf32>
    %327 = tpu.matmul %324, %325, %cst_97 {dimension_numbers = #tpu.dot_dimension_numbers<[1], [1], [0], [0], [0, 0, 1, 0], [], []>} : vector<3x8xbf16>, vector<3x8xbf16>, vector<3x3xf32> -> vector<3x3xf32>
    %cst_98 = arith.constant 0.353553385 : f32
    %328 = vector.broadcast %cst_98 : f32 to vector<3x3xf32>
    %329 = arith.mulf %327, %328 : vector<3x3xf32>
    %cst_99 = arith.constant dense<0xFF800000> : vector<3xf32>
    %330 = vector.multi_reduction <maximumf>, %329, %cst_99 [1] : vector<3x3xf32> to vector<3xf32>
    %331 = vector.shape_cast %330 : vector<3xf32> to vector<3x1xf32>
    %332 = vector.broadcast %331 : vector<3x1xf32> to vector<3x3xf32>
    %333 = arith.subf %329, %332 : vector<3x3xf32>
    %334 = math.exp %333 : vector<3x3xf32>
    %cst_100 = arith.constant dense<0.000000e+00> : vector<3xf32>
    %335 = vector.multi_reduction <add>, %334, %cst_100 [1] : vector<3x3xf32> to vector<3xf32>
    %336 = vector.shape_cast %335 : vector<3xf32> to vector<3x1xf32>
    %337 = tpu.reciprocal %336 {approx = true} : vector<3x1xf32> -> vector<3x1xf32>
    %338 = vector.broadcast %337 : vector<3x1xf32> to vector<3x3xf32>
    %339 = arith.mulf %334, %338 : vector<3x3xf32>
    %340 = arith.truncf %339 : vector<3x3xf32> to vector<3x3xbf16>
    %cst_101 = arith.constant dense<0.000000e+00> : vector<3x8xf32>
    %341 = tpu.matmul %340, %326, %cst_101 {dimension_numbers = #tpu.dot_dimension_numbers<[1], [0], [0], [1], [0, 0, 1, 1], [], []>} : vector<3x3xbf16>, vector<3x8xbf16>, vector<3x8xf32> -> vector<3x8xf32>
    %342 = vector.extract_strided_slice %323 {offsets = [0, 8], sizes = [3, 8], strides = [1, 1]} : vector<3x96xbf16> to vector<3x8xbf16>
    %343 = vector.extract_strided_slice %323 {offsets = [0, 40], sizes = [3, 8], strides = [1, 1]} : vector<3x96xbf16> to vector<3x8xbf16>
    %344 = vector.extract_strided_slice %323 {offsets = [0, 72], sizes = [3, 8], strides = [1, 1]} : vector<3x96xbf16> to vector<3x8xbf16>
    %cst_102 = arith.constant dense<0.000000e+00> : vector<3x3xf32>
    %345 = tpu.matmul %342, %343, %cst_102 {dimension_numbers = #tpu.dot_dimension_numbers<[1], [1], [0], [0], [0, 0, 1, 0], [], []>} : vector<3x8xbf16>, vector<3x8xbf16>, vector<3x3xf32> -> vector<3x3xf32>
    %cst_103 = arith.constant 0.353553385 : f32
    %346 = vector.broadcast %cst_103 : f32 to vector<3x3xf32>
    %347 = arith.mulf %345, %346 : vector<3x3xf32>
    %cst_104 = arith.constant dense<0xFF800000> : vector<3xf32>
    %348 = vector.multi_reduction <maximumf>, %347, %cst_104 [1] : vector<3x3xf32> to vector<3xf32>
    %349 = vector.shape_cast %348 : vector<3xf32> to vector<3x1xf32>
    %350 = vector.broadcast %349 : vector<3x1xf32> to vector<3x3xf32>
    %351 = arith.subf %347, %350 : vector<3x3xf32>
    %352 = math.exp %351 : vector<3x3xf32>
    %cst_105 = arith.constant dense<0.000000e+00> : vector<3xf32>
    %353 = vector.multi_reduction <add>, %352, %cst_105 [1] : vector<3x3xf32> to vector<3xf32>
    %354 = vector.shape_cast %353 : vector<3xf32> to vector<3x1xf32>
    %355 = tpu.reciprocal %354 {approx = true} : vector<3x1xf32> -> vector<3x1xf32>
    %356 = vector.broadcast %355 : vector<3x1xf32> to vector<3x3xf32>
    %357 = arith.mulf %352, %356 : vector<3x3xf32>
    %358 = arith.truncf %357 : vector<3x3xf32> to vector<3x3xbf16>
    %cst_106 = arith.constant dense<0.000000e+00> : vector<3x8xf32>
    %359 = tpu.matmul %358, %344, %cst_106 {dimension_numbers = #tpu.dot_dimension_numbers<[1], [0], [0], [1], [0, 0, 1, 1], [], []>} : vector<3x3xbf16>, vector<3x8xbf16>, vector<3x8xf32> -> vector<3x8xf32>
    %360 = vector.extract_strided_slice %323 {offsets = [0, 16], sizes = [3, 8], strides = [1, 1]} : vector<3x96xbf16> to vector<3x8xbf16>
    %361 = vector.extract_strided_slice %323 {offsets = [0, 48], sizes = [3, 8], strides = [1, 1]} : vector<3x96xbf16> to vector<3x8xbf16>
    %362 = vector.extract_strided_slice %323 {offsets = [0, 80], sizes = [3, 8], strides = [1, 1]} : vector<3x96xbf16> to vector<3x8xbf16>
    %cst_107 = arith.constant dense<0.000000e+00> : vector<3x3xf32>
    %363 = tpu.matmul %360, %361, %cst_107 {dimension_numbers = #tpu.dot_dimension_numbers<[1], [1], [0], [0], [0, 0, 1, 0], [], []>} : vector<3x8xbf16>, vector<3x8xbf16>, vector<3x3xf32> -> vector<3x3xf32>
    %cst_108 = arith.constant 0.353553385 : f32
    %364 = vector.broadcast %cst_108 : f32 to vector<3x3xf32>
    %365 = arith.mulf %363, %364 : vector<3x3xf32>
    %cst_109 = arith.constant dense<0xFF800000> : vector<3xf32>
    %366 = vector.multi_reduction <maximumf>, %365, %cst_109 [1] : vector<3x3xf32> to vector<3xf32>
    %367 = vector.shape_cast %366 : vector<3xf32> to vector<3x1xf32>
    %368 = vector.broadcast %367 : vector<3x1xf32> to vector<3x3xf32>
    %369 = arith.subf %365, %368 : vector<3x3xf32>
    %370 = math.exp %369 : vector<3x3xf32>
    %cst_110 = arith.constant dense<0.000000e+00> : vector<3xf32>
    %371 = vector.multi_reduction <add>, %370, %cst_110 [1] : vector<3x3xf32> to vector<3xf32>
    %372 = vector.shape_cast %371 : vector<3xf32> to vector<3x1xf32>
    %373 = tpu.reciprocal %372 {approx = true} : vector<3x1xf32> -> vector<3x1xf32>
    %374 = vector.broadcast %373 : vector<3x1xf32> to vector<3x3xf32>
    %375 = arith.mulf %370, %374 : vector<3x3xf32>
    %376 = arith.truncf %375 : vector<3x3xf32> to vector<3x3xbf16>
    %cst_111 = arith.constant dense<0.000000e+00> : vector<3x8xf32>
    %377 = tpu.matmul %376, %362, %cst_111 {dimension_numbers = #tpu.dot_dimension_numbers<[1], [0], [0], [1], [0, 0, 1, 1], [], []>} : vector<3x3xbf16>, vector<3x8xbf16>, vector<3x8xf32> -> vector<3x8xf32>
    %378 = vector.extract_strided_slice %323 {offsets = [0, 24], sizes = [3, 8], strides = [1, 1]} : vector<3x96xbf16> to vector<3x8xbf16>
    %379 = vector.extract_strided_slice %323 {offsets = [0, 56], sizes = [3, 8], strides = [1, 1]} : vector<3x96xbf16> to vector<3x8xbf16>
    %380 = vector.extract_strided_slice %323 {offsets = [0, 88], sizes = [3, 8], strides = [1, 1]} : vector<3x96xbf16> to vector<3x8xbf16>
    %cst_112 = arith.constant dense<0.000000e+00> : vector<3x3xf32>
    %381 = tpu.matmul %378, %379, %cst_112 {dimension_numbers = #tpu.dot_dimension_numbers<[1], [1], [0], [0], [0, 0, 1, 0], [], []>} : vector<3x8xbf16>, vector<3x8xbf16>, vector<3x3xf32> -> vector<3x3xf32>
    %cst_113 = arith.constant 0.353553385 : f32
    %382 = vector.broadcast %cst_113 : f32 to vector<3x3xf32>
    %383 = arith.mulf %381, %382 : vector<3x3xf32>
    %cst_114 = arith.constant dense<0xFF800000> : vector<3xf32>
    %384 = vector.multi_reduction <maximumf>, %383, %cst_114 [1] : vector<3x3xf32> to vector<3xf32>
    %385 = vector.shape_cast %384 : vector<3xf32> to vector<3x1xf32>
    %386 = vector.broadcast %385 : vector<3x1xf32> to vector<3x3xf32>
    %387 = arith.subf %383, %386 : vector<3x3xf32>
    %388 = math.exp %387 : vector<3x3xf32>
    %cst_115 = arith.constant dense<0.000000e+00> : vector<3xf32>
    %389 = vector.multi_reduction <add>, %388, %cst_115 [1] : vector<3x3xf32> to vector<3xf32>
    %390 = vector.shape_cast %389 : vector<3xf32> to vector<3x1xf32>
    %391 = tpu.reciprocal %390 {approx = true} : vector<3x1xf32> -> vector<3x1xf32>
    %392 = vector.broadcast %391 : vector<3x1xf32> to vector<3x3xf32>
    %393 = arith.mulf %388, %392 : vector<3x3xf32>
    %394 = arith.truncf %393 : vector<3x3xf32> to vector<3x3xbf16>
    %cst_116 = arith.constant dense<0.000000e+00> : vector<3x8xf32>
    %395 = tpu.matmul %394, %380, %cst_116 {dimension_numbers = #tpu.dot_dimension_numbers<[1], [0], [0], [1], [0, 0, 1, 1], [], []>} : vector<3x3xbf16>, vector<3x8xbf16>, vector<3x8xf32> -> vector<3x8xf32>
    %396 = tpu.concatenate %341, %359, %377, %395 in 1 : vector<3x8xf32>, vector<3x8xf32>, vector<3x8xf32>, vector<3x8xf32> -> vector<3x32xf32>
    %397 = arith.truncf %396 : vector<3x32xf32> to vector<3x32xbf16>
    %c12 = arith.constant 12 : index
    %c0_117 = arith.constant 0 : index
    %398 = vector.load %arg16[%c12, %c0_117] : memref<24x32xbf16, #tpu.memory_space<vmem>>, vector<3x32xbf16>
    tpu.vector_store %arg16[%c12, %c0_117], %397 {strides = array<i32>} : memref<24x32xbf16, #tpu.memory_space<vmem>>, vector<3x32xbf16>,
    %399 = vector.extract_strided_slice %13 {offsets = [15, 0], sizes = [3, 96], strides = [1, 1]} : vector<24x96xf32> to vector<3x96xf32>
    %400 = arith.truncf %399 : vector<3x96xf32> to vector<3x96xbf16>
    %401 = vector.extract_strided_slice %400 {offsets = [0, 0], sizes = [3, 8], strides = [1, 1]} : vector<3x96xbf16> to vector<3x8xbf16>
    %402 = vector.extract_strided_slice %400 {offsets = [0, 32], sizes = [3, 8], strides = [1, 1]} : vector<3x96xbf16> to vector<3x8xbf16>
    %403 = vector.extract_strided_slice %400 {offsets = [0, 64], sizes = [3, 8], strides = [1, 1]} : vector<3x96xbf16> to vector<3x8xbf16>
    %cst_118 = arith.constant dense<0.000000e+00> : vector<3x3xf32>
    %404 = tpu.matmul %401, %402, %cst_118 {dimension_numbers = #tpu.dot_dimension_numbers<[1], [1], [0], [0], [0, 0, 1, 0], [], []>} : vector<3x8xbf16>, vector<3x8xbf16>, vector<3x3xf32> -> vector<3x3xf32>
    %cst_119 = arith.constant 0.353553385 : f32
    %405 = vector.broadcast %cst_119 : f32 to vector<3x3xf32>
    %406 = arith.mulf %404, %405 : vector<3x3xf32>
    %cst_120 = arith.constant dense<0xFF800000> : vector<3xf32>
    %407 = vector.multi_reduction <maximumf>, %406, %cst_120 [1] : vector<3x3xf32> to vector<3xf32>
    %408 = vector.shape_cast %407 : vector<3xf32> to vector<3x1xf32>
    %409 = vector.broadcast %408 : vector<3x1xf32> to vector<3x3xf32>
    %410 = arith.subf %406, %409 : vector<3x3xf32>
    %411 = math.exp %410 : vector<3x3xf32>
    %cst_121 = arith.constant dense<0.000000e+00> : vector<3xf32>
    %412 = vector.multi_reduction <add>, %411, %cst_121 [1] : vector<3x3xf32> to vector<3xf32>
    %413 = vector.shape_cast %412 : vector<3xf32> to vector<3x1xf32>
    %414 = tpu.reciprocal %413 {approx = true} : vector<3x1xf32> -> vector<3x1xf32>
    %415 = vector.broadcast %414 : vector<3x1xf32> to vector<3x3xf32>
    %416 = arith.mulf %411, %415 : vector<3x3xf32>
    %417 = arith.truncf %416 : vector<3x3xf32> to vector<3x3xbf16>
    %cst_122 = arith.constant dense<0.000000e+00> : vector<3x8xf32>
    %418 = tpu.matmul %417, %403, %cst_122 {dimension_numbers = #tpu.dot_dimension_numbers<[1], [0], [0], [1], [0, 0, 1, 1], [], []>} : vector<3x3xbf16>, vector<3x8xbf16>, vector<3x8xf32> -> vector<3x8xf32>
    %419 = vector.extract_strided_slice %400 {offsets = [0, 8], sizes = [3, 8], strides = [1, 1]} : vector<3x96xbf16> to vector<3x8xbf16>
    %420 = vector.extract_strided_slice %400 {offsets = [0, 40], sizes = [3, 8], strides = [1, 1]} : vector<3x96xbf16> to vector<3x8xbf16>
    %421 = vector.extract_strided_slice %400 {offsets = [0, 72], sizes = [3, 8], strides = [1, 1]} : vector<3x96xbf16> to vector<3x8xbf16>
    %cst_123 = arith.constant dense<0.000000e+00> : vector<3x3xf32>
    %422 = tpu.matmul %419, %420, %cst_123 {dimension_numbers = #tpu.dot_dimension_numbers<[1], [1], [0], [0], [0, 0, 1, 0], [], []>} : vector<3x8xbf16>, vector<3x8xbf16>, vector<3x3xf32> -> vector<3x3xf32>
    %cst_124 = arith.constant 0.353553385 : f32
    %423 = vector.broadcast %cst_124 : f32 to vector<3x3xf32>
    %424 = arith.mulf %422, %423 : vector<3x3xf32>
    %cst_125 = arith.constant dense<0xFF800000> : vector<3xf32>
    %425 = vector.multi_reduction <maximumf>, %424, %cst_125 [1] : vector<3x3xf32> to vector<3xf32>
    %426 = vector.shape_cast %425 : vector<3xf32> to vector<3x1xf32>
    %427 = vector.broadcast %426 : vector<3x1xf32> to vector<3x3xf32>
    %428 = arith.subf %424, %427 : vector<3x3xf32>
    %429 = math.exp %428 : vector<3x3xf32>
    %cst_126 = arith.constant dense<0.000000e+00> : vector<3xf32>
    %430 = vector.multi_reduction <add>, %429, %cst_126 [1] : vector<3x3xf32> to vector<3xf32>
    %431 = vector.shape_cast %430 : vector<3xf32> to vector<3x1xf32>
    %432 = tpu.reciprocal %431 {approx = true} : vector<3x1xf32> -> vector<3x1xf32>
    %433 = vector.broadcast %432 : vector<3x1xf32> to vector<3x3xf32>
    %434 = arith.mulf %429, %433 : vector<3x3xf32>
    %435 = arith.truncf %434 : vector<3x3xf32> to vector<3x3xbf16>
    %cst_127 = arith.constant dense<0.000000e+00> : vector<3x8xf32>
    %436 = tpu.matmul %435, %421, %cst_127 {dimension_numbers = #tpu.dot_dimension_numbers<[1], [0], [0], [1], [0, 0, 1, 1], [], []>} : vector<3x3xbf16>, vector<3x8xbf16>, vector<3x8xf32> -> vector<3x8xf32>
    %437 = vector.extract_strided_slice %400 {offsets = [0, 16], sizes = [3, 8], strides = [1, 1]} : vector<3x96xbf16> to vector<3x8xbf16>
    %438 = vector.extract_strided_slice %400 {offsets = [0, 48], sizes = [3, 8], strides = [1, 1]} : vector<3x96xbf16> to vector<3x8xbf16>
    %439 = vector.extract_strided_slice %400 {offsets = [0, 80], sizes = [3, 8], strides = [1, 1]} : vector<3x96xbf16> to vector<3x8xbf16>
    %cst_128 = arith.constant dense<0.000000e+00> : vector<3x3xf32>
    %440 = tpu.matmul %437, %438, %cst_128 {dimension_numbers = #tpu.dot_dimension_numbers<[1], [1], [0], [0], [0, 0, 1, 0], [], []>} : vector<3x8xbf16>, vector<3x8xbf16>, vector<3x3xf32> -> vector<3x3xf32>
    %cst_129 = arith.constant 0.353553385 : f32
    %441 = vector.broadcast %cst_129 : f32 to vector<3x3xf32>
    %442 = arith.mulf %440, %441 : vector<3x3xf32>
    %cst_130 = arith.constant dense<0xFF800000> : vector<3xf32>
    %443 = vector.multi_reduction <maximumf>, %442, %cst_130 [1] : vector<3x3xf32> to vector<3xf32>
    %444 = vector.shape_cast %443 : vector<3xf32> to vector<3x1xf32>
    %445 = vector.broadcast %444 : vector<3x1xf32> to vector<3x3xf32>
    %446 = arith.subf %442, %445 : vector<3x3xf32>
    %447 = math.exp %446 : vector<3x3xf32>
    %cst_131 = arith.constant dense<0.000000e+00> : vector<3xf32>
    %448 = vector.multi_reduction <add>, %447, %cst_131 [1] : vector<3x3xf32> to vector<3xf32>
    %449 = vector.shape_cast %448 : vector<3xf32> to vector<3x1xf32>
    %450 = tpu.reciprocal %449 {approx = true} : vector<3x1xf32> -> vector<3x1xf32>
    %451 = vector.broadcast %450 : vector<3x1xf32> to vector<3x3xf32>
    %452 = arith.mulf %447, %451 : vector<3x3xf32>
    %453 = arith.truncf %452 : vector<3x3xf32> to vector<3x3xbf16>
    %cst_132 = arith.constant dense<0.000000e+00> : vector<3x8xf32>
    %454 = tpu.matmul %453, %439, %cst_132 {dimension_numbers = #tpu.dot_dimension_numbers<[1], [0], [0], [1], [0, 0, 1, 1], [], []>} : vector<3x3xbf16>, vector<3x8xbf16>, vector<3x8xf32> -> vector<3x8xf32>
    %455 = vector.extract_strided_slice %400 {offsets = [0, 24], sizes = [3, 8], strides = [1, 1]} : vector<3x96xbf16> to vector<3x8xbf16>
    %456 = vector.extract_strided_slice %400 {offsets = [0, 56], sizes = [3, 8], strides = [1, 1]} : vector<3x96xbf16> to vector<3x8xbf16>
    %457 = vector.extract_strided_slice %400 {offsets = [0, 88], sizes = [3, 8], strides = [1, 1]} : vector<3x96xbf16> to vector<3x8xbf16>
    %cst_133 = arith.constant dense<0.000000e+00> : vector<3x3xf32>
    %458 = tpu.matmul %455, %456, %cst_133 {dimension_numbers = #tpu.dot_dimension_numbers<[1], [1], [0], [0], [0, 0, 1, 0], [], []>} : vector<3x8xbf16>, vector<3x8xbf16>, vector<3x3xf32> -> vector<3x3xf32>
    %cst_134 = arith.constant 0.353553385 : f32
    %459 = vector.broadcast %cst_134 : f32 to vector<3x3xf32>
    %460 = arith.mulf %458, %459 : vector<3x3xf32>
    %cst_135 = arith.constant dense<0xFF800000> : vector<3xf32>
    %461 = vector.multi_reduction <maximumf>, %460, %cst_135 [1] : vector<3x3xf32> to vector<3xf32>
    %462 = vector.shape_cast %461 : vector<3xf32> to vector<3x1xf32>
    %463 = vector.broadcast %462 : vector<3x1xf32> to vector<3x3xf32>
    %464 = arith.subf %460, %463 : vector<3x3xf32>
    %465 = math.exp %464 : vector<3x3xf32>
    %cst_136 = arith.constant dense<0.000000e+00> : vector<3xf32>
    %466 = vector.multi_reduction <add>, %465, %cst_136 [1] : vector<3x3xf32> to vector<3xf32>
    %467 = vector.shape_cast %466 : vector<3xf32> to vector<3x1xf32>
    %468 = tpu.reciprocal %467 {approx = true} : vector<3x1xf32> -> vector<3x1xf32>
    %469 = vector.broadcast %468 : vector<3x1xf32> to vector<3x3xf32>
    %470 = arith.mulf %465, %469 : vector<3x3xf32>
    %471 = arith.truncf %470 : vector<3x3xf32> to vector<3x3xbf16>
    %cst_137 = arith.constant dense<0.000000e+00> : vector<3x8xf32>
    %472 = tpu.matmul %471, %457, %cst_137 {dimension_numbers = #tpu.dot_dimension_numbers<[1], [0], [0], [1], [0, 0, 1, 1], [], []>} : vector<3x3xbf16>, vector<3x8xbf16>, vector<3x8xf32> -> vector<3x8xf32>
    %473 = tpu.concatenate %418, %436, %454, %472 in 1 : vector<3x8xf32>, vector<3x8xf32>, vector<3x8xf32>, vector<3x8xf32> -> vector<3x32xf32>
    %474 = arith.truncf %473 : vector<3x32xf32> to vector<3x32xbf16>
    %c15 = arith.constant 15 : index
    %c0_138 = arith.constant 0 : index
    %475 = vector.load %arg16[%c15, %c0_138] : memref<24x32xbf16, #tpu.memory_space<vmem>>, vector<3x32xbf16>
    tpu.vector_store %arg16[%c15, %c0_138], %474 {strides = array<i32>} : memref<24x32xbf16, #tpu.memory_space<vmem>>, vector<3x32xbf16>,
    %476 = vector.extract_strided_slice %13 {offsets = [18, 0], sizes = [3, 96], strides = [1, 1]} : vector<24x96xf32> to vector<3x96xf32>
    %477 = arith.truncf %476 : vector<3x96xf32> to vector<3x96xbf16>
    %478 = vector.extract_strided_slice %477 {offsets = [0, 0], sizes = [3, 8], strides = [1, 1]} : vector<3x96xbf16> to vector<3x8xbf16>
    %479 = vector.extract_strided_slice %477 {offsets = [0, 32], sizes = [3, 8], strides = [1, 1]} : vector<3x96xbf16> to vector<3x8xbf16>
    %480 = vector.extract_strided_slice %477 {offsets = [0, 64], sizes = [3, 8], strides = [1, 1]} : vector<3x96xbf16> to vector<3x8xbf16>
    %cst_139 = arith.constant dense<0.000000e+00> : vector<3x3xf32>
    %481 = tpu.matmul %478, %479, %cst_139 {dimension_numbers = #tpu.dot_dimension_numbers<[1], [1], [0], [0], [0, 0, 1, 0], [], []>} : vector<3x8xbf16>, vector<3x8xbf16>, vector<3x3xf32> -> vector<3x3xf32>
    %cst_140 = arith.constant 0.353553385 : f32
    %482 = vector.broadcast %cst_140 : f32 to vector<3x3xf32>
    %483 = arith.mulf %481, %482 : vector<3x3xf32>
    %cst_141 = arith.constant dense<0xFF800000> : vector<3xf32>
    %484 = vector.multi_reduction <maximumf>, %483, %cst_141 [1] : vector<3x3xf32> to vector<3xf32>
    %485 = vector.shape_cast %484 : vector<3xf32> to vector<3x1xf32>
    %486 = vector.broadcast %485 : vector<3x1xf32> to vector<3x3xf32>
    %487 = arith.subf %483, %486 : vector<3x3xf32>
    %488 = math.exp %487 : vector<3x3xf32>
    %cst_142 = arith.constant dense<0.000000e+00> : vector<3xf32>
    %489 = vector.multi_reduction <add>, %488, %cst_142 [1] : vector<3x3xf32> to vector<3xf32>
    %490 = vector.shape_cast %489 : vector<3xf32> to vector<3x1xf32>
    %491 = tpu.reciprocal %490 {approx = true} : vector<3x1xf32> -> vector<3x1xf32>
    %492 = vector.broadcast %491 : vector<3x1xf32> to vector<3x3xf32>
    %493 = arith.mulf %488, %492 : vector<3x3xf32>
    %494 = arith.truncf %493 : vector<3x3xf32> to vector<3x3xbf16>
    %cst_143 = arith.constant dense<0.000000e+00> : vector<3x8xf32>
    %495 = tpu.matmul %494, %480, %cst_143 {dimension_numbers = #tpu.dot_dimension_numbers<[1], [0], [0], [1], [0, 0, 1, 1], [], []>} : vector<3x3xbf16>, vector<3x8xbf16>, vector<3x8xf32> -> vector<3x8xf32>
    %496 = vector.extract_strided_slice %477 {offsets = [0, 8], sizes = [3, 8], strides = [1, 1]} : vector<3x96xbf16> to vector<3x8xbf16>
    %497 = vector.extract_strided_slice %477 {offsets = [0, 40], sizes = [3, 8], strides = [1, 1]} : vector<3x96xbf16> to vector<3x8xbf16>
    %498 = vector.extract_strided_slice %477 {offsets = [0, 72], sizes = [3, 8], strides = [1, 1]} : vector<3x96xbf16> to vector<3x8xbf16>
    %cst_144 = arith.constant dense<0.000000e+00> : vector<3x3xf32>
    %499 = tpu.matmul %496, %497, %cst_144 {dimension_numbers = #tpu.dot_dimension_numbers<[1], [1], [0], [0], [0, 0, 1, 0], [], []>} : vector<3x8xbf16>, vector<3x8xbf16>, vector<3x3xf32> -> vector<3x3xf32>
    %cst_145 = arith.constant 0.353553385 : f32
    %500 = vector.broadcast %cst_145 : f32 to vector<3x3xf32>
    %501 = arith.mulf %499, %500 : vector<3x3xf32>
    %cst_146 = arith.constant dense<0xFF800000> : vector<3xf32>
    %502 = vector.multi_reduction <maximumf>, %501, %cst_146 [1] : vector<3x3xf32> to vector<3xf32>
    %503 = vector.shape_cast %502 : vector<3xf32> to vector<3x1xf32>
    %504 = vector.broadcast %503 : vector<3x1xf32> to vector<3x3xf32>
    %505 = arith.subf %501, %504 : vector<3x3xf32>
    %506 = math.exp %505 : vector<3x3xf32>
    %cst_147 = arith.constant dense<0.000000e+00> : vector<3xf32>
    %507 = vector.multi_reduction <add>, %506, %cst_147 [1] : vector<3x3xf32> to vector<3xf32>
    %508 = vector.shape_cast %507 : vector<3xf32> to vector<3x1xf32>
    %509 = tpu.reciprocal %508 {approx = true} : vector<3x1xf32> -> vector<3x1xf32>
    %510 = vector.broadcast %509 : vector<3x1xf32> to vector<3x3xf32>
    %511 = arith.mulf %506, %510 : vector<3x3xf32>
    %512 = arith.truncf %511 : vector<3x3xf32> to vector<3x3xbf16>
    %cst_148 = arith.constant dense<0.000000e+00> : vector<3x8xf32>
    %513 = tpu.matmul %512, %498, %cst_148 {dimension_numbers = #tpu.dot_dimension_numbers<[1], [0], [0], [1], [0, 0, 1, 1], [], []>} : vector<3x3xbf16>, vector<3x8xbf16>, vector<3x8xf32> -> vector<3x8xf32>
    %514 = vector.extract_strided_slice %477 {offsets = [0, 16], sizes = [3, 8], strides = [1, 1]} : vector<3x96xbf16> to vector<3x8xbf16>
    %515 = vector.extract_strided_slice %477 {offsets = [0, 48], sizes = [3, 8], strides = [1, 1]} : vector<3x96xbf16> to vector<3x8xbf16>
    %516 = vector.extract_strided_slice %477 {offsets = [0, 80], sizes = [3, 8], strides = [1, 1]} : vector<3x96xbf16> to vector<3x8xbf16>
    %cst_149 = arith.constant dense<0.000000e+00> : vector<3x3xf32>
    %517 = tpu.matmul %514, %515, %cst_149 {dimension_numbers = #tpu.dot_dimension_numbers<[1], [1], [0], [0], [0, 0, 1, 0], [], []>} : vector<3x8xbf16>, vector<3x8xbf16>, vector<3x3xf32> -> vector<3x3xf32>
    %cst_150 = arith.constant 0.353553385 : f32
    %518 = vector.broadcast %cst_150 : f32 to vector<3x3xf32>
    %519 = arith.mulf %517, %518 : vector<3x3xf32>
    %cst_151 = arith.constant dense<0xFF800000> : vector<3xf32>
    %520 = vector.multi_reduction <maximumf>, %519, %cst_151 [1] : vector<3x3xf32> to vector<3xf32>
    %521 = vector.shape_cast %520 : vector<3xf32> to vector<3x1xf32>
    %522 = vector.broadcast %521 : vector<3x1xf32> to vector<3x3xf32>
    %523 = arith.subf %519, %522 : vector<3x3xf32>
    %524 = math.exp %523 : vector<3x3xf32>
    %cst_152 = arith.constant dense<0.000000e+00> : vector<3xf32>
    %525 = vector.multi_reduction <add>, %524, %cst_152 [1] : vector<3x3xf32> to vector<3xf32>
    %526 = vector.shape_cast %525 : vector<3xf32> to vector<3x1xf32>
    %527 = tpu.reciprocal %526 {approx = true} : vector<3x1xf32> -> vector<3x1xf32>
    %528 = vector.broadcast %527 : vector<3x1xf32> to vector<3x3xf32>
    %529 = arith.mulf %524, %528 : vector<3x3xf32>
    %530 = arith.truncf %529 : vector<3x3xf32> to vector<3x3xbf16>
    %cst_153 = arith.constant dense<0.000000e+00> : vector<3x8xf32>
    %531 = tpu.matmul %530, %516, %cst_153 {dimension_numbers = #tpu.dot_dimension_numbers<[1], [0], [0], [1], [0, 0, 1, 1], [], []>} : vector<3x3xbf16>, vector<3x8xbf16>, vector<3x8xf32> -> vector<3x8xf32>
    %532 = vector.extract_strided_slice %477 {offsets = [0, 24], sizes = [3, 8], strides = [1, 1]} : vector<3x96xbf16> to vector<3x8xbf16>
    %533 = vector.extract_strided_slice %477 {offsets = [0, 56], sizes = [3, 8], strides = [1, 1]} : vector<3x96xbf16> to vector<3x8xbf16>
    %534 = vector.extract_strided_slice %477 {offsets = [0, 88], sizes = [3, 8], strides = [1, 1]} : vector<3x96xbf16> to vector<3x8xbf16>
    %cst_154 = arith.constant dense<0.000000e+00> : vector<3x3xf32>
    %535 = tpu.matmul %532, %533, %cst_154 {dimension_numbers = #tpu.dot_dimension_numbers<[1], [1], [0], [0], [0, 0, 1, 0], [], []>} : vector<3x8xbf16>, vector<3x8xbf16>, vector<3x3xf32> -> vector<3x3xf32>
    %cst_155 = arith.constant 0.353553385 : f32
    %536 = vector.broadcast %cst_155 : f32 to vector<3x3xf32>
    %537 = arith.mulf %535, %536 : vector<3x3xf32>
    %cst_156 = arith.constant dense<0xFF800000> : vector<3xf32>
    %538 = vector.multi_reduction <maximumf>, %537, %cst_156 [1] : vector<3x3xf32> to vector<3xf32>
    %539 = vector.shape_cast %538 : vector<3xf32> to vector<3x1xf32>
    %540 = vector.broadcast %539 : vector<3x1xf32> to vector<3x3xf32>
    %541 = arith.subf %537, %540 : vector<3x3xf32>
    %542 = math.exp %541 : vector<3x3xf32>
    %cst_157 = arith.constant dense<0.000000e+00> : vector<3xf32>
    %543 = vector.multi_reduction <add>, %542, %cst_157 [1] : vector<3x3xf32> to vector<3xf32>
    %544 = vector.shape_cast %543 : vector<3xf32> to vector<3x1xf32>
    %545 = tpu.reciprocal %544 {approx = true} : vector<3x1xf32> -> vector<3x1xf32>
    %546 = vector.broadcast %545 : vector<3x1xf32> to vector<3x3xf32>
    %547 = arith.mulf %542, %546 : vector<3x3xf32>
    %548 = arith.truncf %547 : vector<3x3xf32> to vector<3x3xbf16>
    %cst_158 = arith.constant dense<0.000000e+00> : vector<3x8xf32>
    %549 = tpu.matmul %548, %534, %cst_158 {dimension_numbers = #tpu.dot_dimension_numbers<[1], [0], [0], [1], [0, 0, 1, 1], [], []>} : vector<3x3xbf16>, vector<3x8xbf16>, vector<3x8xf32> -> vector<3x8xf32>
    %550 = tpu.concatenate %495, %513, %531, %549 in 1 : vector<3x8xf32>, vector<3x8xf32>, vector<3x8xf32>, vector<3x8xf32> -> vector<3x32xf32>
    %551 = arith.truncf %550 : vector<3x32xf32> to vector<3x32xbf16>
    %c18 = arith.constant 18 : index
    %c0_159 = arith.constant 0 : index
    %552 = vector.load %arg16[%c18, %c0_159] : memref<24x32xbf16, #tpu.memory_space<vmem>>, vector<3x32xbf16>
    tpu.vector_store %arg16[%c18, %c0_159], %551 {strides = array<i32>} : memref<24x32xbf16, #tpu.memory_space<vmem>>, vector<3x32xbf16>,
    %553 = vector.extract_strided_slice %13 {offsets = [21, 0], sizes = [3, 96], strides = [1, 1]} : vector<24x96xf32> to vector<3x96xf32>
    %554 = arith.truncf %553 : vector<3x96xf32> to vector<3x96xbf16>
    %555 = vector.extract_strided_slice %554 {offsets = [0, 0], sizes = [3, 8], strides = [1, 1]} : vector<3x96xbf16> to vector<3x8xbf16>
    %556 = vector.extract_strided_slice %554 {offsets = [0, 32], sizes = [3, 8], strides = [1, 1]} : vector<3x96xbf16> to vector<3x8xbf16>
    %557 = vector.extract_strided_slice %554 {offsets = [0, 64], sizes = [3, 8], strides = [1, 1]} : vector<3x96xbf16> to vector<3x8xbf16>
    %cst_160 = arith.constant dense<0.000000e+00> : vector<3x3xf32>
    %558 = tpu.matmul %555, %556, %cst_160 {dimension_numbers = #tpu.dot_dimension_numbers<[1], [1], [0], [0], [0, 0, 1, 0], [], []>} : vector<3x8xbf16>, vector<3x8xbf16>, vector<3x3xf32> -> vector<3x3xf32>
    %cst_161 = arith.constant 0.353553385 : f32
    %559 = vector.broadcast %cst_161 : f32 to vector<3x3xf32>
    %560 = arith.mulf %558, %559 : vector<3x3xf32>
    %cst_162 = arith.constant dense<0xFF800000> : vector<3xf32>
    %561 = vector.multi_reduction <maximumf>, %560, %cst_162 [1] : vector<3x3xf32> to vector<3xf32>
    %562 = vector.shape_cast %561 : vector<3xf32> to vector<3x1xf32>
    %563 = vector.broadcast %562 : vector<3x1xf32> to vector<3x3xf32>
    %564 = arith.subf %560, %563 : vector<3x3xf32>
    %565 = math.exp %564 : vector<3x3xf32>
    %cst_163 = arith.constant dense<0.000000e+00> : vector<3xf32>
    %566 = vector.multi_reduction <add>, %565, %cst_163 [1] : vector<3x3xf32> to vector<3xf32>
    %567 = vector.shape_cast %566 : vector<3xf32> to vector<3x1xf32>
    %568 = tpu.reciprocal %567 {approx = true} : vector<3x1xf32> -> vector<3x1xf32>
    %569 = vector.broadcast %568 : vector<3x1xf32> to vector<3x3xf32>
    %570 = arith.mulf %565, %569 : vector<3x3xf32>
    %571 = arith.truncf %570 : vector<3x3xf32> to vector<3x3xbf16>
    %cst_164 = arith.constant dense<0.000000e+00> : vector<3x8xf32>
    %572 = tpu.matmul %571, %557, %cst_164 {dimension_numbers = #tpu.dot_dimension_numbers<[1], [0], [0], [1], [0, 0, 1, 1], [], []>} : vector<3x3xbf16>, vector<3x8xbf16>, vector<3x8xf32> -> vector<3x8xf32>
    %573 = vector.extract_strided_slice %554 {offsets = [0, 8], sizes = [3, 8], strides = [1, 1]} : vector<3x96xbf16> to vector<3x8xbf16>
    %574 = vector.extract_strided_slice %554 {offsets = [0, 40], sizes = [3, 8], strides = [1, 1]} : vector<3x96xbf16> to vector<3x8xbf16>
    %575 = vector.extract_strided_slice %554 {offsets = [0, 72], sizes = [3, 8], strides = [1, 1]} : vector<3x96xbf16> to vector<3x8xbf16>
    %cst_165 = arith.constant dense<0.000000e+00> : vector<3x3xf32>
    %576 = tpu.matmul %573, %574, %cst_165 {dimension_numbers = #tpu.dot_dimension_numbers<[1], [1], [0], [0], [0, 0, 1, 0], [], []>} : vector<3x8xbf16>, vector<3x8xbf16>, vector<3x3xf32> -> vector<3x3xf32>
    %cst_166 = arith.constant 0.353553385 : f32
    %577 = vector.broadcast %cst_166 : f32 to vector<3x3xf32>
    %578 = arith.mulf %576, %577 : vector<3x3xf32>
    %cst_167 = arith.constant dense<0xFF800000> : vector<3xf32>
    %579 = vector.multi_reduction <maximumf>, %578, %cst_167 [1] : vector<3x3xf32> to vector<3xf32>
    %580 = vector.shape_cast %579 : vector<3xf32> to vector<3x1xf32>
    %581 = vector.broadcast %580 : vector<3x1xf32> to vector<3x3xf32>
    %582 = arith.subf %578, %581 : vector<3x3xf32>
    %583 = math.exp %582 : vector<3x3xf32>
    %cst_168 = arith.constant dense<0.000000e+00> : vector<3xf32>
    %584 = vector.multi_reduction <add>, %583, %cst_168 [1] : vector<3x3xf32> to vector<3xf32>
    %585 = vector.shape_cast %584 : vector<3xf32> to vector<3x1xf32>
    %586 = tpu.reciprocal %585 {approx = true} : vector<3x1xf32> -> vector<3x1xf32>
    %587 = vector.broadcast %586 : vector<3x1xf32> to vector<3x3xf32>
    %588 = arith.mulf %583, %587 : vector<3x3xf32>
    %589 = arith.truncf %588 : vector<3x3xf32> to vector<3x3xbf16>
    %cst_169 = arith.constant dense<0.000000e+00> : vector<3x8xf32>
    %590 = tpu.matmul %589, %575, %cst_169 {dimension_numbers = #tpu.dot_dimension_numbers<[1], [0], [0], [1], [0, 0, 1, 1], [], []>} : vector<3x3xbf16>, vector<3x8xbf16>, vector<3x8xf32> -> vector<3x8xf32>
    %591 = vector.extract_strided_slice %554 {offsets = [0, 16], sizes = [3, 8], strides = [1, 1]} : vector<3x96xbf16> to vector<3x8xbf16>
    %592 = vector.extract_strided_slice %554 {offsets = [0, 48], sizes = [3, 8], strides = [1, 1]} : vector<3x96xbf16> to vector<3x8xbf16>
    %593 = vector.extract_strided_slice %554 {offsets = [0, 80], sizes = [3, 8], strides = [1, 1]} : vector<3x96xbf16> to vector<3x8xbf16>
    %cst_170 = arith.constant dense<0.000000e+00> : vector<3x3xf32>
    %594 = tpu.matmul %591, %592, %cst_170 {dimension_numbers = #tpu.dot_dimension_numbers<[1], [1], [0], [0], [0, 0, 1, 0], [], []>} : vector<3x8xbf16>, vector<3x8xbf16>, vector<3x3xf32> -> vector<3x3xf32>
    %cst_171 = arith.constant 0.353553385 : f32
    %595 = vector.broadcast %cst_171 : f32 to vector<3x3xf32>
    %596 = arith.mulf %594, %595 : vector<3x3xf32>
    %cst_172 = arith.constant dense<0xFF800000> : vector<3xf32>
    %597 = vector.multi_reduction <maximumf>, %596, %cst_172 [1] : vector<3x3xf32> to vector<3xf32>
    %598 = vector.shape_cast %597 : vector<3xf32> to vector<3x1xf32>
    %599 = vector.broadcast %598 : vector<3x1xf32> to vector<3x3xf32>
    %600 = arith.subf %596, %599 : vector<3x3xf32>
    %601 = math.exp %600 : vector<3x3xf32>
    %cst_173 = arith.constant dense<0.000000e+00> : vector<3xf32>
    %602 = vector.multi_reduction <add>, %601, %cst_173 [1] : vector<3x3xf32> to vector<3xf32>
    %603 = vector.shape_cast %602 : vector<3xf32> to vector<3x1xf32>
    %604 = tpu.reciprocal %603 {approx = true} : vector<3x1xf32> -> vector<3x1xf32>
    %605 = vector.broadcast %604 : vector<3x1xf32> to vector<3x3xf32>
    %606 = arith.mulf %601, %605 : vector<3x3xf32>
    %607 = arith.truncf %606 : vector<3x3xf32> to vector<3x3xbf16>
    %cst_174 = arith.constant dense<0.000000e+00> : vector<3x8xf32>
    %608 = tpu.matmul %607, %593, %cst_174 {dimension_numbers = #tpu.dot_dimension_numbers<[1], [0], [0], [1], [0, 0, 1, 1], [], []>} : vector<3x3xbf16>, vector<3x8xbf16>, vector<3x8xf32> -> vector<3x8xf32>
    %609 = vector.extract_strided_slice %554 {offsets = [0, 24], sizes = [3, 8], strides = [1, 1]} : vector<3x96xbf16> to vector<3x8xbf16>
    %610 = vector.extract_strided_slice %554 {offsets = [0, 56], sizes = [3, 8], strides = [1, 1]} : vector<3x96xbf16> to vector<3x8xbf16>
    %611 = vector.extract_strided_slice %554 {offsets = [0, 88], sizes = [3, 8], strides = [1, 1]} : vector<3x96xbf16> to vector<3x8xbf16>
    %cst_175 = arith.constant dense<0.000000e+00> : vector<3x3xf32>
    %612 = tpu.matmul %609, %610, %cst_175 {dimension_numbers = #tpu.dot_dimension_numbers<[1], [1], [0], [0], [0, 0, 1, 0], [], []>} : vector<3x8xbf16>, vector<3x8xbf16>, vector<3x3xf32> -> vector<3x3xf32>
    %cst_176 = arith.constant 0.353553385 : f32
    %613 = vector.broadcast %cst_176 : f32 to vector<3x3xf32>
    %614 = arith.mulf %612, %613 : vector<3x3xf32>
    %cst_177 = arith.constant dense<0xFF800000> : vector<3xf32>
    %615 = vector.multi_reduction <maximumf>, %614, %cst_177 [1] : vector<3x3xf32> to vector<3xf32>
    %616 = vector.shape_cast %615 : vector<3xf32> to vector<3x1xf32>
    %617 = vector.broadcast %616 : vector<3x1xf32> to vector<3x3xf32>
    %618 = arith.subf %614, %617 : vector<3x3xf32>
    %619 = math.exp %618 : vector<3x3xf32>
    %cst_178 = arith.constant dense<0.000000e+00> : vector<3xf32>
    %620 = vector.multi_reduction <add>, %619, %cst_178 [1] : vector<3x3xf32> to vector<3xf32>
    %621 = vector.shape_cast %620 : vector<3xf32> to vector<3x1xf32>
    %622 = tpu.reciprocal %621 {approx = true} : vector<3x1xf32> -> vector<3x1xf32>
    %623 = vector.broadcast %622 : vector<3x1xf32> to vector<3x3xf32>
    %624 = arith.mulf %619, %623 : vector<3x3xf32>
    %625 = arith.truncf %624 : vector<3x3xf32> to vector<3x3xbf16>
    %cst_179 = arith.constant dense<0.000000e+00> : vector<3x8xf32>
    %626 = tpu.matmul %625, %611, %cst_179 {dimension_numbers = #tpu.dot_dimension_numbers<[1], [0], [0], [1], [0, 0, 1, 1], [], []>} : vector<3x3xbf16>, vector<3x8xbf16>, vector<3x8xf32> -> vector<3x8xf32>
    %627 = tpu.concatenate %572, %590, %608, %626 in 1 : vector<3x8xf32>, vector<3x8xf32>, vector<3x8xf32>, vector<3x8xf32> -> vector<3x32xf32>
    %628 = arith.truncf %627 : vector<3x32xf32> to vector<3x32xbf16>
    %c21 = arith.constant 21 : index
    %c0_180 = arith.constant 0 : index
    %629 = vector.load %arg16[%c21, %c0_180] : memref<24x32xbf16, #tpu.memory_space<vmem>>, vector<3x32xbf16>
    tpu.vector_store %arg16[%c21, %c0_180], %628 {strides = array<i32>} : memref<24x32xbf16, #tpu.memory_space<vmem>>, vector<3x32xbf16>,
    %c0_181 = arith.constant 0 : index
    %c0_182 = arith.constant 0 : index
    %630 = vector.load %arg16[%c0_181, %c0_182] : memref<24x32xbf16, #tpu.memory_space<vmem>>, vector<24x32xbf16>
    %c0_183 = arith.constant 0 : index
    %c0_184 = arith.constant 0 : index
    %c0_185 = arith.constant 0 : index
    %631 = vector.load %arg5[%c0_183, %c0_184, %c0_185] : memref<2x32x32xbf16, #tpu.memory_space<vmem>>, vector<1x32x32xbf16>
    %632 = vector.shape_cast %631 : vector<1x32x32xbf16> to vector<32x32xbf16>
    %cst_186 = arith.constant dense<0.000000e+00> : vector<24x32xf32>
    %633 = tpu.matmul %630, %632, %cst_186 {dimension_numbers = #tpu.dot_dimension_numbers<[1], [0], [0], [1], [0, 0, 1, 1], [], []>} : vector<24x32xbf16>, vector<32x32xbf16>, vector<24x32xf32> -> vector<24x32xf32>
    %c0_187 = arith.constant 0 : index
    %c0_188 = arith.constant 0 : index
    %c0_189 = arith.constant 0 : index
    %634 = vector.load %arg6[%c0_187, %c0_188, %c0_189] : memref<2x1x32xf32, #tpu.memory_space<vmem>>, vector<1x1x32xf32>
    %635 = vector.shape_cast %634 : vector<1x1x32xf32> to vector<1x32xf32>
    %636 = vector.broadcast %635 : vector<1x32xf32> to vector<24x32xf32>
    %637 = arith.addf %633, %636 : vector<24x32xf32>
    %638 = arith.addf %5, %637 : vector<24x32xf32>
    %c0_190 = arith.constant 0 : index
    %c0_191 = arith.constant 0 : index
    %c0_192 = arith.constant 0 : index
    %639 = vector.load %arg7[%c0_190, %c0_191, %c0_192] : memref<2x1x32xf32, #tpu.memory_space<vmem>>, vector<1x1x32xf32>
    %640 = vector.shape_cast %639 : vector<1x1x32xf32> to vector<1x32xf32>
    %c0_193 = arith.constant 0 : index
    %c0_194 = arith.constant 0 : index
    %c0_195 = arith.constant 0 : index
    %641 = vector.load %arg8[%c0_193, %c0_194, %c0_195] : memref<2x1x32xf32, #tpu.memory_space<vmem>>, vector<1x1x32xf32>
    %642 = vector.shape_cast %641 : vector<1x1x32xf32> to vector<1x32xf32>
    %cst_196 = arith.constant dense<0.000000e+00> : vector<32xf32>
    %643 = vector.multi_reduction <add>, %638, %cst_196 [0] : vector<24x32xf32> to vector<32xf32>
    %644 = vector.shape_cast %643 : vector<32xf32> to vector<1x32xf32>
    %cst_197 = arith.constant 2.400000e+01 : f32
    %645 = vector.broadcast %cst_197 : f32 to vector<1x32xf32>
    %646 = arith.divf %644, %645 : vector<1x32xf32>
    %647 = arith.mulf %638, %638 : vector<24x32xf32>
    %cst_198 = arith.constant dense<0.000000e+00> : vector<32xf32>
    %648 = vector.multi_reduction <add>, %647, %cst_198 [0] : vector<24x32xf32> to vector<32xf32>
    %649 = vector.shape_cast %648 : vector<32xf32> to vector<1x32xf32>
    %cst_199 = arith.constant 2.400000e+01 : f32
    %650 = vector.broadcast %cst_199 : f32 to vector<1x32xf32>
    %651 = arith.divf %649, %650 : vector<1x32xf32>
    %652 = arith.mulf %646, %646 : vector<1x32xf32>
    %653 = arith.subf %651, %652 : vector<1x32xf32>
    %cst_200 = arith.constant 0.000000e+00 : f32
    %654 = vector.broadcast %cst_200 : f32 to vector<1x32xf32>
    %655 = arith.maximumf %653, %654 : vector<1x32xf32>
    %656 = vector.broadcast %646 : vector<1x32xf32> to vector<24x32xf32>
    %657 = arith.subf %638, %656 : vector<24x32xf32>
    %cst_201 = arith.constant 9.99999974E-6 : f32
    %658 = vector.broadcast %cst_201 : f32 to vector<1x32xf32>
    %659 = arith.addf %655, %658 : vector<1x32xf32>
    %660 = math.rsqrt %659 : vector<1x32xf32>
    %661 = vector.broadcast %660 : vector<1x32xf32> to vector<24x32xf32>
    %662 = arith.mulf %657, %661 : vector<24x32xf32>
    %663 = vector.broadcast %640 : vector<1x32xf32> to vector<24x32xf32>
    %664 = arith.mulf %662, %663 : vector<24x32xf32>
    %665 = vector.broadcast %642 : vector<1x32xf32> to vector<24x32xf32>
    %666 = arith.addf %664, %665 : vector<24x32xf32>
    %667 = arith.truncf %666 : vector<24x32xf32> to vector<24x32xbf16>
    %c0_202 = arith.constant 0 : index
    %c0_203 = arith.constant 0 : index
    %c0_204 = arith.constant 0 : index
    %668 = vector.load %arg9[%c0_202, %c0_203, %c0_204] : memref<2x32x64xbf16, #tpu.memory_space<vmem>>, vector<1x32x64xbf16>
    %669 = vector.shape_cast %668 : vector<1x32x64xbf16> to vector<32x64xbf16>
    %cst_205 = arith.constant dense<0.000000e+00> : vector<24x64xf32>
    %670 = tpu.matmul %667, %669, %cst_205 {dimension_numbers = #tpu.dot_dimension_numbers<[1], [0], [0], [1], [0, 0, 1, 1], [], []>} : vector<24x32xbf16>, vector<32x64xbf16>, vector<24x64xf32> -> vector<24x64xf32>
    %c0_206 = arith.constant 0 : index
    %c0_207 = arith.constant 0 : index
    %c0_208 = arith.constant 0 : index
    %671 = vector.load %arg10[%c0_206, %c0_207, %c0_208] : memref<2x1x64xf32, #tpu.memory_space<vmem>>, vector<1x1x64xf32>
    %672 = vector.shape_cast %671 : vector<1x1x64xf32> to vector<1x64xf32>
    %673 = vector.broadcast %672 : vector<1x64xf32> to vector<24x64xf32>
    %674 = arith.addf %670, %673 : vector<24x64xf32>
    %cst_209 = arith.constant 5.000000e-01 : f32
    %675 = vector.broadcast %cst_209 : f32 to vector<24x64xf32>
    %676 = arith.mulf %675, %674 : vector<24x64xf32>
    %cst_210 = arith.constant 0.707106769 : f32
    %677 = vector.broadcast %cst_210 : f32 to vector<24x64xf32>
    %678 = arith.mulf %674, %677 : vector<24x64xf32>
    %cst_211 = arith.constant 0.000000e+00 : f32
    %679 = vector.broadcast %cst_211 : f32 to vector<24x64xf32>
    %680 = arith.cmpf oge, %678, %679 : vector<24x64xf32>
    %cst_212 = arith.constant 1.000000e+00 : f32
    %cst_213 = arith.constant -1.000000e+00 : f32
    %681 = vector.broadcast %cst_212 : f32 to vector<24x64xf32>
    %682 = vector.broadcast %cst_213 : f32 to vector<24x64xf32>
    %683 = arith.select %680, %681, %682 : vector<24x64xi1>, vector<24x64xf32>
    %684 = math.absf %678 : vector<24x64xf32>
    %cst_214 = arith.constant 0.327591091 : f32
    %685 = vector.broadcast %cst_214 : f32 to vector<24x64xf32>
    %686 = arith.mulf %685, %684 : vector<24x64xf32>
    %cst_215 = arith.constant 1.000000e+00 : f32
    %687 = vector.broadcast %cst_215 : f32 to vector<24x64xf32>
    %688 = arith.addf %687, %686 : vector<24x64xf32>
    %689 = tpu.reciprocal %688 {approx = true} : vector<24x64xf32> -> vector<24x64xf32>
    %690 = arith.mulf %688, %689 : vector<24x64xf32>
    %cst_216 = arith.constant 2.000000e+00 : f32
    %691 = vector.broadcast %cst_216 : f32 to vector<24x64xf32>
    %692 = arith.subf %691, %690 : vector<24x64xf32>
    %693 = arith.mulf %689, %692 : vector<24x64xf32>
    %cst_217 = arith.constant 1.06140542 : f32
    %694 = vector.broadcast %cst_217 : f32 to vector<24x64xf32>
    %695 = arith.mulf %694, %693 : vector<24x64xf32>
    %cst_218 = arith.constant -1.45315206 : f32
    %696 = vector.broadcast %cst_218 : f32 to vector<24x64xf32>
    %697 = arith.addf %695, %696 : vector<24x64xf32>
    %698 = arith.mulf %697, %693 : vector<24x64xf32>
    %cst_219 = arith.constant 1.42141378 : f32
    %699 = vector.broadcast %cst_219 : f32 to vector<24x64xf32>
    %700 = arith.addf %698, %699 : vector<24x64xf32>
    %701 = arith.mulf %700, %693 : vector<24x64xf32>
    %cst_220 = arith.constant -0.284496725 : f32
    %702 = vector.broadcast %cst_220 : f32 to vector<24x64xf32>
    %703 = arith.addf %701, %702 : vector<24x64xf32>
    %704 = arith.mulf %703, %693 : vector<24x64xf32>
    %cst_221 = arith.constant 0.254829586 : f32
    %705 = vector.broadcast %cst_221 : f32 to vector<24x64xf32>
    %706 = arith.addf %704, %705 : vector<24x64xf32>
    %707 = arith.mulf %706, %693 : vector<24x64xf32>
    %cst_222 = arith.constant 0.000000e+00 : f32
    %708 = vector.broadcast %cst_222 : f32 to vector<24x64xf32>
    %709 = arith.subf %708, %684 : vector<24x64xf32>
    %710 = arith.mulf %709, %684 : vector<24x64xf32>
    %711 = math.exp %710 : vector<24x64xf32>
    %712 = arith.mulf %707, %711 : vector<24x64xf32>
    %cst_223 = arith.constant 1.000000e+00 : f32
    %713 = vector.broadcast %cst_223 : f32 to vector<24x64xf32>
    %714 = arith.subf %713, %712 : vector<24x64xf32>
    %715 = arith.mulf %683, %714 : vector<24x64xf32>
    %cst_224 = arith.constant 1.000000e+00 : f32
    %716 = vector.broadcast %cst_224 : f32 to vector<24x64xf32>
    %717 = arith.addf %716, %715 : vector<24x64xf32>
    %718 = arith.mulf %676, %717 : vector<24x64xf32>
    %719 = arith.truncf %718 : vector<24x64xf32> to vector<24x64xbf16>
    %c0_225 = arith.constant 0 : index
    %c0_226 = arith.constant 0 : index
    %c0_227 = arith.constant 0 : index
    %720 = vector.load %arg11[%c0_225, %c0_226, %c0_227] : memref<2x64x32xbf16, #tpu.memory_space<vmem>>, vector<1x64x32xbf16>
    %721 = vector.shape_cast %720 : vector<1x64x32xbf16> to vector<64x32xbf16>
    %cst_228 = arith.constant dense<0.000000e+00> : vector<24x32xf32>
    %722 = tpu.matmul %719, %721, %cst_228 {dimension_numbers = #tpu.dot_dimension_numbers<[1], [0], [0], [1], [0, 0, 1, 1], [], []>} : vector<24x64xbf16>, vector<64x32xbf16>, vector<24x32xf32> -> vector<24x32xf32>
    %c0_229 = arith.constant 0 : index
    %c0_230 = arith.constant 0 : index
    %c0_231 = arith.constant 0 : index
    %723 = vector.load %arg12[%c0_229, %c0_230, %c0_231] : memref<2x1x32xf32, #tpu.memory_space<vmem>>, vector<1x1x32xf32>
    %724 = vector.shape_cast %723 : vector<1x1x32xf32> to vector<1x32xf32>
    %725 = vector.broadcast %724 : vector<1x32xf32> to vector<24x32xf32>
    %726 = arith.addf %722, %725 : vector<24x32xf32>
    %727 = arith.addf %666, %726 : vector<24x32xf32>
    %c0_232 = arith.constant 0 : index
    %c0_233 = arith.constant 0 : index
    %c0_234 = arith.constant 0 : index
    %728 = vector.load %arg13[%c0_232, %c0_233, %c0_234] : memref<2x1x32xf32, #tpu.memory_space<vmem>>, vector<1x1x32xf32>
    %729 = vector.shape_cast %728 : vector<1x1x32xf32> to vector<1x32xf32>
    %c0_235 = arith.constant 0 : index
    %c0_236 = arith.constant 0 : index
    %c0_237 = arith.constant 0 : index
    %730 = vector.load %arg14[%c0_235, %c0_236, %c0_237] : memref<2x1x32xf32, #tpu.memory_space<vmem>>, vector<1x1x32xf32>
    %731 = vector.shape_cast %730 : vector<1x1x32xf32> to vector<1x32xf32>
    %cst_238 = arith.constant dense<0.000000e+00> : vector<32xf32>
    %732 = vector.multi_reduction <add>, %727, %cst_238 [0] : vector<24x32xf32> to vector<32xf32>
    %733 = vector.shape_cast %732 : vector<32xf32> to vector<1x32xf32>
    %cst_239 = arith.constant 2.400000e+01 : f32
    %734 = vector.broadcast %cst_239 : f32 to vector<1x32xf32>
    %735 = arith.divf %733, %734 : vector<1x32xf32>
    %736 = arith.mulf %727, %727 : vector<24x32xf32>
    %cst_240 = arith.constant dense<0.000000e+00> : vector<32xf32>
    %737 = vector.multi_reduction <add>, %736, %cst_240 [0] : vector<24x32xf32> to vector<32xf32>
    %738 = vector.shape_cast %737 : vector<32xf32> to vector<1x32xf32>
    %cst_241 = arith.constant 2.400000e+01 : f32
    %739 = vector.broadcast %cst_241 : f32 to vector<1x32xf32>
    %740 = arith.divf %738, %739 : vector<1x32xf32>
    %741 = arith.mulf %735, %735 : vector<1x32xf32>
    %742 = arith.subf %740, %741 : vector<1x32xf32>
    %cst_242 = arith.constant 0.000000e+00 : f32
    %743 = vector.broadcast %cst_242 : f32 to vector<1x32xf32>
    %744 = arith.maximumf %742, %743 : vector<1x32xf32>
    %745 = vector.broadcast %735 : vector<1x32xf32> to vector<24x32xf32>
    %746 = arith.subf %727, %745 : vector<24x32xf32>
    %cst_243 = arith.constant 9.99999974E-6 : f32
    %747 = vector.broadcast %cst_243 : f32 to vector<1x32xf32>
    %748 = arith.addf %744, %747 : vector<1x32xf32>
    %749 = math.rsqrt %748 : vector<1x32xf32>
    %750 = vector.broadcast %749 : vector<1x32xf32> to vector<24x32xf32>
    %751 = arith.mulf %746, %750 : vector<24x32xf32>
    %752 = vector.broadcast %729 : vector<1x32xf32> to vector<24x32xf32>
    %753 = arith.mulf %751, %752 : vector<24x32xf32>
    %754 = vector.broadcast %731 : vector<1x32xf32> to vector<24x32xf32>
    %755 = arith.addf %753, %754 : vector<24x32xf32>
    %756 = arith.truncf %755 : vector<24x32xf32> to vector<24x32xbf16>
    %c1 = arith.constant 1 : index
    %c0_244 = arith.constant 0 : index
    %c0_245 = arith.constant 0 : index
    %757 = vector.load %arg3[%c1, %c0_244, %c0_245] : memref<2x32x96xbf16, #tpu.memory_space<vmem>>, vector<1x32x96xbf16>
    %758 = vector.shape_cast %757 : vector<1x32x96xbf16> to vector<32x96xbf16>
    %cst_246 = arith.constant dense<0.000000e+00> : vector<24x96xf32>
    %759 = tpu.matmul %756, %758, %cst_246 {dimension_numbers = #tpu.dot_dimension_numbers<[1], [0], [0], [1], [0, 0, 1, 1], [], []>} : vector<24x32xbf16>, vector<32x96xbf16>, vector<24x96xf32> -> vector<24x96xf32>
    %c1_247 = arith.constant 1 : index
    %c0_248 = arith.constant 0 : index
    %c0_249 = arith.constant 0 : index
    %760 = vector.load %arg4[%c1_247, %c0_248, %c0_249] : memref<2x1x96xf32, #tpu.memory_space<vmem>>, vector<1x1x96xf32>
    %761 = vector.shape_cast %760 : vector<1x1x96xf32> to vector<1x96xf32>
    %762 = vector.broadcast %761 : vector<1x96xf32> to vector<24x96xf32>
    %763 = arith.addf %759, %762 : vector<24x96xf32>
    %764 = vector.extract_strided_slice %763 {offsets = [0, 0], sizes = [3, 96], strides = [1, 1]} : vector<24x96xf32> to vector<3x96xf32>
    %765 = arith.truncf %764 : vector<3x96xf32> to vector<3x96xbf16>
    %766 = vector.extract_strided_slice %765 {offsets = [0, 0], sizes = [3, 8], strides = [1, 1]} : vector<3x96xbf16> to vector<3x8xbf16>
    %767 = vector.extract_strided_slice %765 {offsets = [0, 32], sizes = [3, 8], strides = [1, 1]} : vector<3x96xbf16> to vector<3x8xbf16>
    %768 = vector.extract_strided_slice %765 {offsets = [0, 64], sizes = [3, 8], strides = [1, 1]} : vector<3x96xbf16> to vector<3x8xbf16>
    %cst_250 = arith.constant dense<0.000000e+00> : vector<3x3xf32>
    %769 = tpu.matmul %766, %767, %cst_250 {dimension_numbers = #tpu.dot_dimension_numbers<[1], [1], [0], [0], [0, 0, 1, 0], [], []>} : vector<3x8xbf16>, vector<3x8xbf16>, vector<3x3xf32> -> vector<3x3xf32>
    %cst_251 = arith.constant 0.353553385 : f32
    %770 = vector.broadcast %cst_251 : f32 to vector<3x3xf32>
    %771 = arith.mulf %769, %770 : vector<3x3xf32>
    %772 = arith.addf %771, %21 : vector<3x3xf32>
    %cst_252 = arith.constant dense<0xFF800000> : vector<3xf32>
    %773 = vector.multi_reduction <maximumf>, %772, %cst_252 [1] : vector<3x3xf32> to vector<3xf32>
    %774 = vector.shape_cast %773 : vector<3xf32> to vector<3x1xf32>
    %775 = vector.broadcast %774 : vector<3x1xf32> to vector<3x3xf32>
    %776 = arith.subf %772, %775 : vector<3x3xf32>
    %777 = math.exp %776 : vector<3x3xf32>
    %cst_253 = arith.constant dense<0.000000e+00> : vector<3xf32>
    %778 = vector.multi_reduction <add>, %777, %cst_253 [1] : vector<3x3xf32> to vector<3xf32>
    %779 = vector.shape_cast %778 : vector<3xf32> to vector<3x1xf32>
    %780 = tpu.reciprocal %779 {approx = true} : vector<3x1xf32> -> vector<3x1xf32>
    %781 = vector.broadcast %780 : vector<3x1xf32> to vector<3x3xf32>
    %782 = arith.mulf %777, %781 : vector<3x3xf32>
    %783 = arith.truncf %782 : vector<3x3xf32> to vector<3x3xbf16>
    %cst_254 = arith.constant dense<0.000000e+00> : vector<3x8xf32>
    %784 = tpu.matmul %783, %768, %cst_254 {dimension_numbers = #tpu.dot_dimension_numbers<[1], [0], [0], [1], [0, 0, 1, 1], [], []>} : vector<3x3xbf16>, vector<3x8xbf16>, vector<3x8xf32> -> vector<3x8xf32>
    %785 = vector.extract_strided_slice %765 {offsets = [0, 8], sizes = [3, 8], strides = [1, 1]} : vector<3x96xbf16> to vector<3x8xbf16>
    %786 = vector.extract_strided_slice %765 {offsets = [0, 40], sizes = [3, 8], strides = [1, 1]} : vector<3x96xbf16> to vector<3x8xbf16>
    %787 = vector.extract_strided_slice %765 {offsets = [0, 72], sizes = [3, 8], strides = [1, 1]} : vector<3x96xbf16> to vector<3x8xbf16>
    %cst_255 = arith.constant dense<0.000000e+00> : vector<3x3xf32>
    %788 = tpu.matmul %785, %786, %cst_255 {dimension_numbers = #tpu.dot_dimension_numbers<[1], [1], [0], [0], [0, 0, 1, 0], [], []>} : vector<3x8xbf16>, vector<3x8xbf16>, vector<3x3xf32> -> vector<3x3xf32>
    %cst_256 = arith.constant 0.353553385 : f32
    %789 = vector.broadcast %cst_256 : f32 to vector<3x3xf32>
    %790 = arith.mulf %788, %789 : vector<3x3xf32>
    %791 = arith.addf %790, %39 : vector<3x3xf32>
    %cst_257 = arith.constant dense<0xFF800000> : vector<3xf32>
    %792 = vector.multi_reduction <maximumf>, %791, %cst_257 [1] : vector<3x3xf32> to vector<3xf32>
    %793 = vector.shape_cast %792 : vector<3xf32> to vector<3x1xf32>
    %794 = vector.broadcast %793 : vector<3x1xf32> to vector<3x3xf32>
    %795 = arith.subf %791, %794 : vector<3x3xf32>
    %796 = math.exp %795 : vector<3x3xf32>
    %cst_258 = arith.constant dense<0.000000e+00> : vector<3xf32>
    %797 = vector.multi_reduction <add>, %796, %cst_258 [1] : vector<3x3xf32> to vector<3xf32>
    %798 = vector.shape_cast %797 : vector<3xf32> to vector<3x1xf32>
    %799 = tpu.reciprocal %798 {approx = true} : vector<3x1xf32> -> vector<3x1xf32>
    %800 = vector.broadcast %799 : vector<3x1xf32> to vector<3x3xf32>
    %801 = arith.mulf %796, %800 : vector<3x3xf32>
    %802 = arith.truncf %801 : vector<3x3xf32> to vector<3x3xbf16>
    %cst_259 = arith.constant dense<0.000000e+00> : vector<3x8xf32>
    %803 = tpu.matmul %802, %787, %cst_259 {dimension_numbers = #tpu.dot_dimension_numbers<[1], [0], [0], [1], [0, 0, 1, 1], [], []>} : vector<3x3xbf16>, vector<3x8xbf16>, vector<3x8xf32> -> vector<3x8xf32>
    %804 = vector.extract_strided_slice %765 {offsets = [0, 16], sizes = [3, 8], strides = [1, 1]} : vector<3x96xbf16> to vector<3x8xbf16>
    %805 = vector.extract_strided_slice %765 {offsets = [0, 48], sizes = [3, 8], strides = [1, 1]} : vector<3x96xbf16> to vector<3x8xbf16>
    %806 = vector.extract_strided_slice %765 {offsets = [0, 80], sizes = [3, 8], strides = [1, 1]} : vector<3x96xbf16> to vector<3x8xbf16>
    %cst_260 = arith.constant dense<0.000000e+00> : vector<3x3xf32>
    %807 = tpu.matmul %804, %805, %cst_260 {dimension_numbers = #tpu.dot_dimension_numbers<[1], [1], [0], [0], [0, 0, 1, 0], [], []>} : vector<3x8xbf16>, vector<3x8xbf16>, vector<3x3xf32> -> vector<3x3xf32>
    %cst_261 = arith.constant 0.353553385 : f32
    %808 = vector.broadcast %cst_261 : f32 to vector<3x3xf32>
    %809 = arith.mulf %807, %808 : vector<3x3xf32>
    %810 = arith.addf %809, %57 : vector<3x3xf32>
    %cst_262 = arith.constant dense<0xFF800000> : vector<3xf32>
    %811 = vector.multi_reduction <maximumf>, %810, %cst_262 [1] : vector<3x3xf32> to vector<3xf32>
    %812 = vector.shape_cast %811 : vector<3xf32> to vector<3x1xf32>
    %813 = vector.broadcast %812 : vector<3x1xf32> to vector<3x3xf32>
    %814 = arith.subf %810, %813 : vector<3x3xf32>
    %815 = math.exp %814 : vector<3x3xf32>
    %cst_263 = arith.constant dense<0.000000e+00> : vector<3xf32>
    %816 = vector.multi_reduction <add>, %815, %cst_263 [1] : vector<3x3xf32> to vector<3xf32>
    %817 = vector.shape_cast %816 : vector<3xf32> to vector<3x1xf32>
    %818 = tpu.reciprocal %817 {approx = true} : vector<3x1xf32> -> vector<3x1xf32>
    %819 = vector.broadcast %818 : vector<3x1xf32> to vector<3x3xf32>
    %820 = arith.mulf %815, %819 : vector<3x3xf32>
    %821 = arith.truncf %820 : vector<3x3xf32> to vector<3x3xbf16>
    %cst_264 = arith.constant dense<0.000000e+00> : vector<3x8xf32>
    %822 = tpu.matmul %821, %806, %cst_264 {dimension_numbers = #tpu.dot_dimension_numbers<[1], [0], [0], [1], [0, 0, 1, 1], [], []>} : vector<3x3xbf16>, vector<3x8xbf16>, vector<3x8xf32> -> vector<3x8xf32>
    %823 = vector.extract_strided_slice %765 {offsets = [0, 24], sizes = [3, 8], strides = [1, 1]} : vector<3x96xbf16> to vector<3x8xbf16>
    %824 = vector.extract_strided_slice %765 {offsets = [0, 56], sizes = [3, 8], strides = [1, 1]} : vector<3x96xbf16> to vector<3x8xbf16>
    %825 = vector.extract_strided_slice %765 {offsets = [0, 88], sizes = [3, 8], strides = [1, 1]} : vector<3x96xbf16> to vector<3x8xbf16>
    %cst_265 = arith.constant dense<0.000000e+00> : vector<3x3xf32>
    %826 = tpu.matmul %823, %824, %cst_265 {dimension_numbers = #tpu.dot_dimension_numbers<[1], [1], [0], [0], [0, 0, 1, 0], [], []>} : vector<3x8xbf16>, vector<3x8xbf16>, vector<3x3xf32> -> vector<3x3xf32>
    %cst_266 = arith.constant 0.353553385 : f32
    %827 = vector.broadcast %cst_266 : f32 to vector<3x3xf32>
    %828 = arith.mulf %826, %827 : vector<3x3xf32>
    %829 = arith.addf %828, %75 : vector<3x3xf32>
    %cst_267 = arith.constant dense<0xFF800000> : vector<3xf32>
    %830 = vector.multi_reduction <maximumf>, %829, %cst_267 [1] : vector<3x3xf32> to vector<3xf32>
    %831 = vector.shape_cast %830 : vector<3xf32> to vector<3x1xf32>
    %832 = vector.broadcast %831 : vector<3x1xf32> to vector<3x3xf32>
    %833 = arith.subf %829, %832 : vector<3x3xf32>
    %834 = math.exp %833 : vector<3x3xf32>
    %cst_268 = arith.constant dense<0.000000e+00> : vector<3xf32>
    %835 = vector.multi_reduction <add>, %834, %cst_268 [1] : vector<3x3xf32> to vector<3xf32>
    %836 = vector.shape_cast %835 : vector<3xf32> to vector<3x1xf32>
    %837 = tpu.reciprocal %836 {approx = true} : vector<3x1xf32> -> vector<3x1xf32>
    %838 = vector.broadcast %837 : vector<3x1xf32> to vector<3x3xf32>
    %839 = arith.mulf %834, %838 : vector<3x3xf32>
    %840 = arith.truncf %839 : vector<3x3xf32> to vector<3x3xbf16>
    %cst_269 = arith.constant dense<0.000000e+00> : vector<3x8xf32>
    %841 = tpu.matmul %840, %825, %cst_269 {dimension_numbers = #tpu.dot_dimension_numbers<[1], [0], [0], [1], [0, 0, 1, 1], [], []>} : vector<3x3xbf16>, vector<3x8xbf16>, vector<3x8xf32> -> vector<3x8xf32>
    %842 = tpu.concatenate %784, %803, %822, %841 in 1 : vector<3x8xf32>, vector<3x8xf32>, vector<3x8xf32>, vector<3x8xf32> -> vector<3x32xf32>
    %843 = arith.truncf %842 : vector<3x32xf32> to vector<3x32xbf16>
    %c0_270 = arith.constant 0 : index
    %c0_271 = arith.constant 0 : index
    %844 = vector.load %arg16[%c0_270, %c0_271] : memref<24x32xbf16, #tpu.memory_space<vmem>>, vector<3x32xbf16>
    tpu.vector_store %arg16[%c0_270, %c0_271], %843 {strides = array<i32>} : memref<24x32xbf16, #tpu.memory_space<vmem>>, vector<3x32xbf16>,
    %845 = vector.extract_strided_slice %763 {offsets = [3, 0], sizes = [3, 96], strides = [1, 1]} : vector<24x96xf32> to vector<3x96xf32>
    %846 = arith.truncf %845 : vector<3x96xf32> to vector<3x96xbf16>
    %847 = vector.extract_strided_slice %846 {offsets = [0, 0], sizes = [3, 8], strides = [1, 1]} : vector<3x96xbf16> to vector<3x8xbf16>
    %848 = vector.extract_strided_slice %846 {offsets = [0, 32], sizes = [3, 8], strides = [1, 1]} : vector<3x96xbf16> to vector<3x8xbf16>
    %849 = vector.extract_strided_slice %846 {offsets = [0, 64], sizes = [3, 8], strides = [1, 1]} : vector<3x96xbf16> to vector<3x8xbf16>
    %cst_272 = arith.constant dense<0.000000e+00> : vector<3x3xf32>
    %850 = tpu.matmul %847, %848, %cst_272 {dimension_numbers = #tpu.dot_dimension_numbers<[1], [1], [0], [0], [0, 0, 1, 0], [], []>} : vector<3x8xbf16>, vector<3x8xbf16>, vector<3x3xf32> -> vector<3x3xf32>
    %cst_273 = arith.constant 0.353553385 : f32
    %851 = vector.broadcast %cst_273 : f32 to vector<3x3xf32>
    %852 = arith.mulf %850, %851 : vector<3x3xf32>
    %853 = arith.addf %852, %98 : vector<3x3xf32>
    %cst_274 = arith.constant dense<0xFF800000> : vector<3xf32>
    %854 = vector.multi_reduction <maximumf>, %853, %cst_274 [1] : vector<3x3xf32> to vector<3xf32>
    %855 = vector.shape_cast %854 : vector<3xf32> to vector<3x1xf32>
    %856 = vector.broadcast %855 : vector<3x1xf32> to vector<3x3xf32>
    %857 = arith.subf %853, %856 : vector<3x3xf32>
    %858 = math.exp %857 : vector<3x3xf32>
    %cst_275 = arith.constant dense<0.000000e+00> : vector<3xf32>
    %859 = vector.multi_reduction <add>, %858, %cst_275 [1] : vector<3x3xf32> to vector<3xf32>
    %860 = vector.shape_cast %859 : vector<3xf32> to vector<3x1xf32>
    %861 = tpu.reciprocal %860 {approx = true} : vector<3x1xf32> -> vector<3x1xf32>
    %862 = vector.broadcast %861 : vector<3x1xf32> to vector<3x3xf32>
    %863 = arith.mulf %858, %862 : vector<3x3xf32>
    %864 = arith.truncf %863 : vector<3x3xf32> to vector<3x3xbf16>
    %cst_276 = arith.constant dense<0.000000e+00> : vector<3x8xf32>
    %865 = tpu.matmul %864, %849, %cst_276 {dimension_numbers = #tpu.dot_dimension_numbers<[1], [0], [0], [1], [0, 0, 1, 1], [], []>} : vector<3x3xbf16>, vector<3x8xbf16>, vector<3x8xf32> -> vector<3x8xf32>
    %866 = vector.extract_strided_slice %846 {offsets = [0, 8], sizes = [3, 8], strides = [1, 1]} : vector<3x96xbf16> to vector<3x8xbf16>
    %867 = vector.extract_strided_slice %846 {offsets = [0, 40], sizes = [3, 8], strides = [1, 1]} : vector<3x96xbf16> to vector<3x8xbf16>
    %868 = vector.extract_strided_slice %846 {offsets = [0, 72], sizes = [3, 8], strides = [1, 1]} : vector<3x96xbf16> to vector<3x8xbf16>
    %cst_277 = arith.constant dense<0.000000e+00> : vector<3x3xf32>
    %869 = tpu.matmul %866, %867, %cst_277 {dimension_numbers = #tpu.dot_dimension_numbers<[1], [1], [0], [0], [0, 0, 1, 0], [], []>} : vector<3x8xbf16>, vector<3x8xbf16>, vector<3x3xf32> -> vector<3x3xf32>
    %cst_278 = arith.constant 0.353553385 : f32
    %870 = vector.broadcast %cst_278 : f32 to vector<3x3xf32>
    %871 = arith.mulf %869, %870 : vector<3x3xf32>
    %872 = arith.addf %871, %116 : vector<3x3xf32>
    %cst_279 = arith.constant dense<0xFF800000> : vector<3xf32>
    %873 = vector.multi_reduction <maximumf>, %872, %cst_279 [1] : vector<3x3xf32> to vector<3xf32>
    %874 = vector.shape_cast %873 : vector<3xf32> to vector<3x1xf32>
    %875 = vector.broadcast %874 : vector<3x1xf32> to vector<3x3xf32>
    %876 = arith.subf %872, %875 : vector<3x3xf32>
    %877 = math.exp %876 : vector<3x3xf32>
    %cst_280 = arith.constant dense<0.000000e+00> : vector<3xf32>
    %878 = vector.multi_reduction <add>, %877, %cst_280 [1] : vector<3x3xf32> to vector<3xf32>
    %879 = vector.shape_cast %878 : vector<3xf32> to vector<3x1xf32>
    %880 = tpu.reciprocal %879 {approx = true} : vector<3x1xf32> -> vector<3x1xf32>
    %881 = vector.broadcast %880 : vector<3x1xf32> to vector<3x3xf32>
    %882 = arith.mulf %877, %881 : vector<3x3xf32>
    %883 = arith.truncf %882 : vector<3x3xf32> to vector<3x3xbf16>
    %cst_281 = arith.constant dense<0.000000e+00> : vector<3x8xf32>
    %884 = tpu.matmul %883, %868, %cst_281 {dimension_numbers = #tpu.dot_dimension_numbers<[1], [0], [0], [1], [0, 0, 1, 1], [], []>} : vector<3x3xbf16>, vector<3x8xbf16>, vector<3x8xf32> -> vector<3x8xf32>
    %885 = vector.extract_strided_slice %846 {offsets = [0, 16], sizes = [3, 8], strides = [1, 1]} : vector<3x96xbf16> to vector<3x8xbf16>
    %886 = vector.extract_strided_slice %846 {offsets = [0, 48], sizes = [3, 8], strides = [1, 1]} : vector<3x96xbf16> to vector<3x8xbf16>
    %887 = vector.extract_strided_slice %846 {offsets = [0, 80], sizes = [3, 8], strides = [1, 1]} : vector<3x96xbf16> to vector<3x8xbf16>
    %cst_282 = arith.constant dense<0.000000e+00> : vector<3x3xf32>
    %888 = tpu.matmul %885, %886, %cst_282 {dimension_numbers = #tpu.dot_dimension_numbers<[1], [1], [0], [0], [0, 0, 1, 0], [], []>} : vector<3x8xbf16>, vector<3x8xbf16>, vector<3x3xf32> -> vector<3x3xf32>
    %cst_283 = arith.constant 0.353553385 : f32
    %889 = vector.broadcast %cst_283 : f32 to vector<3x3xf32>
    %890 = arith.mulf %888, %889 : vector<3x3xf32>
    %891 = arith.addf %890, %134 : vector<3x3xf32>
    %cst_284 = arith.constant dense<0xFF800000> : vector<3xf32>
    %892 = vector.multi_reduction <maximumf>, %891, %cst_284 [1] : vector<3x3xf32> to vector<3xf32>
    %893 = vector.shape_cast %892 : vector<3xf32> to vector<3x1xf32>
    %894 = vector.broadcast %893 : vector<3x1xf32> to vector<3x3xf32>
    %895 = arith.subf %891, %894 : vector<3x3xf32>
    %896 = math.exp %895 : vector<3x3xf32>
    %cst_285 = arith.constant dense<0.000000e+00> : vector<3xf32>
    %897 = vector.multi_reduction <add>, %896, %cst_285 [1] : vector<3x3xf32> to vector<3xf32>
    %898 = vector.shape_cast %897 : vector<3xf32> to vector<3x1xf32>
    %899 = tpu.reciprocal %898 {approx = true} : vector<3x1xf32> -> vector<3x1xf32>
    %900 = vector.broadcast %899 : vector<3x1xf32> to vector<3x3xf32>
    %901 = arith.mulf %896, %900 : vector<3x3xf32>
    %902 = arith.truncf %901 : vector<3x3xf32> to vector<3x3xbf16>
    %cst_286 = arith.constant dense<0.000000e+00> : vector<3x8xf32>
    %903 = tpu.matmul %902, %887, %cst_286 {dimension_numbers = #tpu.dot_dimension_numbers<[1], [0], [0], [1], [0, 0, 1, 1], [], []>} : vector<3x3xbf16>, vector<3x8xbf16>, vector<3x8xf32> -> vector<3x8xf32>
    %904 = vector.extract_strided_slice %846 {offsets = [0, 24], sizes = [3, 8], strides = [1, 1]} : vector<3x96xbf16> to vector<3x8xbf16>
    %905 = vector.extract_strided_slice %846 {offsets = [0, 56], sizes = [3, 8], strides = [1, 1]} : vector<3x96xbf16> to vector<3x8xbf16>
    %906 = vector.extract_strided_slice %846 {offsets = [0, 88], sizes = [3, 8], strides = [1, 1]} : vector<3x96xbf16> to vector<3x8xbf16>
    %cst_287 = arith.constant dense<0.000000e+00> : vector<3x3xf32>
    %907 = tpu.matmul %904, %905, %cst_287 {dimension_numbers = #tpu.dot_dimension_numbers<[1], [1], [0], [0], [0, 0, 1, 0], [], []>} : vector<3x8xbf16>, vector<3x8xbf16>, vector<3x3xf32> -> vector<3x3xf32>
    %cst_288 = arith.constant 0.353553385 : f32
    %908 = vector.broadcast %cst_288 : f32 to vector<3x3xf32>
    %909 = arith.mulf %907, %908 : vector<3x3xf32>
    %910 = arith.addf %909, %152 : vector<3x3xf32>
    %cst_289 = arith.constant dense<0xFF800000> : vector<3xf32>
    %911 = vector.multi_reduction <maximumf>, %910, %cst_289 [1] : vector<3x3xf32> to vector<3xf32>
    %912 = vector.shape_cast %911 : vector<3xf32> to vector<3x1xf32>
    %913 = vector.broadcast %912 : vector<3x1xf32> to vector<3x3xf32>
    %914 = arith.subf %910, %913 : vector<3x3xf32>
    %915 = math.exp %914 : vector<3x3xf32>
    %cst_290 = arith.constant dense<0.000000e+00> : vector<3xf32>
    %916 = vector.multi_reduction <add>, %915, %cst_290 [1] : vector<3x3xf32> to vector<3xf32>
    %917 = vector.shape_cast %916 : vector<3xf32> to vector<3x1xf32>
    %918 = tpu.reciprocal %917 {approx = true} : vector<3x1xf32> -> vector<3x1xf32>
    %919 = vector.broadcast %918 : vector<3x1xf32> to vector<3x3xf32>
    %920 = arith.mulf %915, %919 : vector<3x3xf32>
    %921 = arith.truncf %920 : vector<3x3xf32> to vector<3x3xbf16>
    %cst_291 = arith.constant dense<0.000000e+00> : vector<3x8xf32>
    %922 = tpu.matmul %921, %906, %cst_291 {dimension_numbers = #tpu.dot_dimension_numbers<[1], [0], [0], [1], [0, 0, 1, 1], [], []>} : vector<3x3xbf16>, vector<3x8xbf16>, vector<3x8xf32> -> vector<3x8xf32>
    %923 = tpu.concatenate %865, %884, %903, %922 in 1 : vector<3x8xf32>, vector<3x8xf32>, vector<3x8xf32>, vector<3x8xf32> -> vector<3x32xf32>
    %924 = arith.truncf %923 : vector<3x32xf32> to vector<3x32xbf16>
    %c3_292 = arith.constant 3 : index
    %c0_293 = arith.constant 0 : index
    %925 = vector.load %arg16[%c3_292, %c0_293] : memref<24x32xbf16, #tpu.memory_space<vmem>>, vector<3x32xbf16>
    tpu.vector_store %arg16[%c3_292, %c0_293], %924 {strides = array<i32>} : memref<24x32xbf16, #tpu.memory_space<vmem>>, vector<3x32xbf16>,
    %926 = vector.extract_strided_slice %763 {offsets = [6, 0], sizes = [3, 96], strides = [1, 1]} : vector<24x96xf32> to vector<3x96xf32>
    %927 = arith.truncf %926 : vector<3x96xf32> to vector<3x96xbf16>
    %928 = vector.extract_strided_slice %927 {offsets = [0, 0], sizes = [3, 8], strides = [1, 1]} : vector<3x96xbf16> to vector<3x8xbf16>
    %929 = vector.extract_strided_slice %927 {offsets = [0, 32], sizes = [3, 8], strides = [1, 1]} : vector<3x96xbf16> to vector<3x8xbf16>
    %930 = vector.extract_strided_slice %927 {offsets = [0, 64], sizes = [3, 8], strides = [1, 1]} : vector<3x96xbf16> to vector<3x8xbf16>
    %cst_294 = arith.constant dense<0.000000e+00> : vector<3x3xf32>
    %931 = tpu.matmul %928, %929, %cst_294 {dimension_numbers = #tpu.dot_dimension_numbers<[1], [1], [0], [0], [0, 0, 1, 0], [], []>} : vector<3x8xbf16>, vector<3x8xbf16>, vector<3x3xf32> -> vector<3x3xf32>
    %cst_295 = arith.constant 0.353553385 : f32
    %932 = vector.broadcast %cst_295 : f32 to vector<3x3xf32>
    %933 = arith.mulf %931, %932 : vector<3x3xf32>
    %934 = arith.addf %933, %175 : vector<3x3xf32>
    %cst_296 = arith.constant dense<0xFF800000> : vector<3xf32>
    %935 = vector.multi_reduction <maximumf>, %934, %cst_296 [1] : vector<3x3xf32> to vector<3xf32>
    %936 = vector.shape_cast %935 : vector<3xf32> to vector<3x1xf32>
    %937 = vector.broadcast %936 : vector<3x1xf32> to vector<3x3xf32>
    %938 = arith.subf %934, %937 : vector<3x3xf32>
    %939 = math.exp %938 : vector<3x3xf32>
    %cst_297 = arith.constant dense<0.000000e+00> : vector<3xf32>
    %940 = vector.multi_reduction <add>, %939, %cst_297 [1] : vector<3x3xf32> to vector<3xf32>
    %941 = vector.shape_cast %940 : vector<3xf32> to vector<3x1xf32>
    %942 = tpu.reciprocal %941 {approx = true} : vector<3x1xf32> -> vector<3x1xf32>
    %943 = vector.broadcast %942 : vector<3x1xf32> to vector<3x3xf32>
    %944 = arith.mulf %939, %943 : vector<3x3xf32>
    %945 = arith.truncf %944 : vector<3x3xf32> to vector<3x3xbf16>
    %cst_298 = arith.constant dense<0.000000e+00> : vector<3x8xf32>
    %946 = tpu.matmul %945, %930, %cst_298 {dimension_numbers = #tpu.dot_dimension_numbers<[1], [0], [0], [1], [0, 0, 1, 1], [], []>} : vector<3x3xbf16>, vector<3x8xbf16>, vector<3x8xf32> -> vector<3x8xf32>
    %947 = vector.extract_strided_slice %927 {offsets = [0, 8], sizes = [3, 8], strides = [1, 1]} : vector<3x96xbf16> to vector<3x8xbf16>
    %948 = vector.extract_strided_slice %927 {offsets = [0, 40], sizes = [3, 8], strides = [1, 1]} : vector<3x96xbf16> to vector<3x8xbf16>
    %949 = vector.extract_strided_slice %927 {offsets = [0, 72], sizes = [3, 8], strides = [1, 1]} : vector<3x96xbf16> to vector<3x8xbf16>
    %cst_299 = arith.constant dense<0.000000e+00> : vector<3x3xf32>
    %950 = tpu.matmul %947, %948, %cst_299 {dimension_numbers = #tpu.dot_dimension_numbers<[1], [1], [0], [0], [0, 0, 1, 0], [], []>} : vector<3x8xbf16>, vector<3x8xbf16>, vector<3x3xf32> -> vector<3x3xf32>
    %cst_300 = arith.constant 0.353553385 : f32
    %951 = vector.broadcast %cst_300 : f32 to vector<3x3xf32>
    %952 = arith.mulf %950, %951 : vector<3x3xf32>
    %953 = arith.addf %952, %193 : vector<3x3xf32>
    %cst_301 = arith.constant dense<0xFF800000> : vector<3xf32>
    %954 = vector.multi_reduction <maximumf>, %953, %cst_301 [1] : vector<3x3xf32> to vector<3xf32>
    %955 = vector.shape_cast %954 : vector<3xf32> to vector<3x1xf32>
    %956 = vector.broadcast %955 : vector<3x1xf32> to vector<3x3xf32>
    %957 = arith.subf %953, %956 : vector<3x3xf32>
    %958 = math.exp %957 : vector<3x3xf32>
    %cst_302 = arith.constant dense<0.000000e+00> : vector<3xf32>
    %959 = vector.multi_reduction <add>, %958, %cst_302 [1] : vector<3x3xf32> to vector<3xf32>
    %960 = vector.shape_cast %959 : vector<3xf32> to vector<3x1xf32>
    %961 = tpu.reciprocal %960 {approx = true} : vector<3x1xf32> -> vector<3x1xf32>
    %962 = vector.broadcast %961 : vector<3x1xf32> to vector<3x3xf32>
    %963 = arith.mulf %958, %962 : vector<3x3xf32>
    %964 = arith.truncf %963 : vector<3x3xf32> to vector<3x3xbf16>
    %cst_303 = arith.constant dense<0.000000e+00> : vector<3x8xf32>
    %965 = tpu.matmul %964, %949, %cst_303 {dimension_numbers = #tpu.dot_dimension_numbers<[1], [0], [0], [1], [0, 0, 1, 1], [], []>} : vector<3x3xbf16>, vector<3x8xbf16>, vector<3x8xf32> -> vector<3x8xf32>
    %966 = vector.extract_strided_slice %927 {offsets = [0, 16], sizes = [3, 8], strides = [1, 1]} : vector<3x96xbf16> to vector<3x8xbf16>
    %967 = vector.extract_strided_slice %927 {offsets = [0, 48], sizes = [3, 8], strides = [1, 1]} : vector<3x96xbf16> to vector<3x8xbf16>
    %968 = vector.extract_strided_slice %927 {offsets = [0, 80], sizes = [3, 8], strides = [1, 1]} : vector<3x96xbf16> to vector<3x8xbf16>
    %cst_304 = arith.constant dense<0.000000e+00> : vector<3x3xf32>
    %969 = tpu.matmul %966, %967, %cst_304 {dimension_numbers = #tpu.dot_dimension_numbers<[1], [1], [0], [0], [0, 0, 1, 0], [], []>} : vector<3x8xbf16>, vector<3x8xbf16>, vector<3x3xf32> -> vector<3x3xf32>
    %cst_305 = arith.constant 0.353553385 : f32
    %970 = vector.broadcast %cst_305 : f32 to vector<3x3xf32>
    %971 = arith.mulf %969, %970 : vector<3x3xf32>
    %972 = arith.addf %971, %211 : vector<3x3xf32>
    %cst_306 = arith.constant dense<0xFF800000> : vector<3xf32>
    %973 = vector.multi_reduction <maximumf>, %972, %cst_306 [1] : vector<3x3xf32> to vector<3xf32>
    %974 = vector.shape_cast %973 : vector<3xf32> to vector<3x1xf32>
    %975 = vector.broadcast %974 : vector<3x1xf32> to vector<3x3xf32>
    %976 = arith.subf %972, %975 : vector<3x3xf32>
    %977 = math.exp %976 : vector<3x3xf32>
    %cst_307 = arith.constant dense<0.000000e+00> : vector<3xf32>
    %978 = vector.multi_reduction <add>, %977, %cst_307 [1] : vector<3x3xf32> to vector<3xf32>
    %979 = vector.shape_cast %978 : vector<3xf32> to vector<3x1xf32>
    %980 = tpu.reciprocal %979 {approx = true} : vector<3x1xf32> -> vector<3x1xf32>
    %981 = vector.broadcast %980 : vector<3x1xf32> to vector<3x3xf32>
    %982 = arith.mulf %977, %981 : vector<3x3xf32>
    %983 = arith.truncf %982 : vector<3x3xf32> to vector<3x3xbf16>
    %cst_308 = arith.constant dense<0.000000e+00> : vector<3x8xf32>
    %984 = tpu.matmul %983, %968, %cst_308 {dimension_numbers = #tpu.dot_dimension_numbers<[1], [0], [0], [1], [0, 0, 1, 1], [], []>} : vector<3x3xbf16>, vector<3x8xbf16>, vector<3x8xf32> -> vector<3x8xf32>
    %985 = vector.extract_strided_slice %927 {offsets = [0, 24], sizes = [3, 8], strides = [1, 1]} : vector<3x96xbf16> to vector<3x8xbf16>
    %986 = vector.extract_strided_slice %927 {offsets = [0, 56], sizes = [3, 8], strides = [1, 1]} : vector<3x96xbf16> to vector<3x8xbf16>
    %987 = vector.extract_strided_slice %927 {offsets = [0, 88], sizes = [3, 8], strides = [1, 1]} : vector<3x96xbf16> to vector<3x8xbf16>
    %cst_309 = arith.constant dense<0.000000e+00> : vector<3x3xf32>
    %988 = tpu.matmul %985, %986, %cst_309 {dimension_numbers = #tpu.dot_dimension_numbers<[1], [1], [0], [0], [0, 0, 1, 0], [], []>} : vector<3x8xbf16>, vector<3x8xbf16>, vector<3x3xf32> -> vector<3x3xf32>
    %cst_310 = arith.constant 0.353553385 : f32
    %989 = vector.broadcast %cst_310 : f32 to vector<3x3xf32>
    %990 = arith.mulf %988, %989 : vector<3x3xf32>
    %991 = arith.addf %990, %229 : vector<3x3xf32>
    %cst_311 = arith.constant dense<0xFF800000> : vector<3xf32>
    %992 = vector.multi_reduction <maximumf>, %991, %cst_311 [1] : vector<3x3xf32> to vector<3xf32>
    %993 = vector.shape_cast %992 : vector<3xf32> to vector<3x1xf32>
    %994 = vector.broadcast %993 : vector<3x1xf32> to vector<3x3xf32>
    %995 = arith.subf %991, %994 : vector<3x3xf32>
    %996 = math.exp %995 : vector<3x3xf32>
    %cst_312 = arith.constant dense<0.000000e+00> : vector<3xf32>
    %997 = vector.multi_reduction <add>, %996, %cst_312 [1] : vector<3x3xf32> to vector<3xf32>
    %998 = vector.shape_cast %997 : vector<3xf32> to vector<3x1xf32>
    %999 = tpu.reciprocal %998 {approx = true} : vector<3x1xf32> -> vector<3x1xf32>
    %1000 = vector.broadcast %999 : vector<3x1xf32> to vector<3x3xf32>
    %1001 = arith.mulf %996, %1000 : vector<3x3xf32>
    %1002 = arith.truncf %1001 : vector<3x3xf32> to vector<3x3xbf16>
    %cst_313 = arith.constant dense<0.000000e+00> : vector<3x8xf32>
    %1003 = tpu.matmul %1002, %987, %cst_313 {dimension_numbers = #tpu.dot_dimension_numbers<[1], [0], [0], [1], [0, 0, 1, 1], [], []>} : vector<3x3xbf16>, vector<3x8xbf16>, vector<3x8xf32> -> vector<3x8xf32>
    %1004 = tpu.concatenate %946, %965, %984, %1003 in 1 : vector<3x8xf32>, vector<3x8xf32>, vector<3x8xf32>, vector<3x8xf32> -> vector<3x32xf32>
    %1005 = arith.truncf %1004 : vector<3x32xf32> to vector<3x32xbf16>
    %c6_314 = arith.constant 6 : index
    %c0_315 = arith.constant 0 : index
    %1006 = vector.load %arg16[%c6_314, %c0_315] : memref<24x32xbf16, #tpu.memory_space<vmem>>, vector<3x32xbf16>
    tpu.vector_store %arg16[%c6_314, %c0_315], %1005 {strides = array<i32>} : memref<24x32xbf16, #tpu.memory_space<vmem>>, vector<3x32xbf16>,
    %1007 = vector.extract_strided_slice %763 {offsets = [9, 0], sizes = [3, 96], strides = [1, 1]} : vector<24x96xf32> to vector<3x96xf32>
    %1008 = arith.truncf %1007 : vector<3x96xf32> to vector<3x96xbf16>
    %1009 = vector.extract_strided_slice %1008 {offsets = [0, 0], sizes = [3, 8], strides = [1, 1]} : vector<3x96xbf16> to vector<3x8xbf16>
    %1010 = vector.extract_strided_slice %1008 {offsets = [0, 32], sizes = [3, 8], strides = [1, 1]} : vector<3x96xbf16> to vector<3x8xbf16>
    %1011 = vector.extract_strided_slice %1008 {offsets = [0, 64], sizes = [3, 8], strides = [1, 1]} : vector<3x96xbf16> to vector<3x8xbf16>
    %cst_316 = arith.constant dense<0.000000e+00> : vector<3x3xf32>
    %1012 = tpu.matmul %1009, %1010, %cst_316 {dimension_numbers = #tpu.dot_dimension_numbers<[1], [1], [0], [0], [0, 0, 1, 0], [], []>} : vector<3x8xbf16>, vector<3x8xbf16>, vector<3x3xf32> -> vector<3x3xf32>
    %cst_317 = arith.constant 0.353553385 : f32
    %1013 = vector.broadcast %cst_317 : f32 to vector<3x3xf32>
    %1014 = arith.mulf %1012, %1013 : vector<3x3xf32>
    %1015 = arith.addf %1014, %252 : vector<3x3xf32>
    %cst_318 = arith.constant dense<0xFF800000> : vector<3xf32>
    %1016 = vector.multi_reduction <maximumf>, %1015, %cst_318 [1] : vector<3x3xf32> to vector<3xf32>
    %1017 = vector.shape_cast %1016 : vector<3xf32> to vector<3x1xf32>
    %1018 = vector.broadcast %1017 : vector<3x1xf32> to vector<3x3xf32>
    %1019 = arith.subf %1015, %1018 : vector<3x3xf32>
    %1020 = math.exp %1019 : vector<3x3xf32>
    %cst_319 = arith.constant dense<0.000000e+00> : vector<3xf32>
    %1021 = vector.multi_reduction <add>, %1020, %cst_319 [1] : vector<3x3xf32> to vector<3xf32>
    %1022 = vector.shape_cast %1021 : vector<3xf32> to vector<3x1xf32>
    %1023 = tpu.reciprocal %1022 {approx = true} : vector<3x1xf32> -> vector<3x1xf32>
    %1024 = vector.broadcast %1023 : vector<3x1xf32> to vector<3x3xf32>
    %1025 = arith.mulf %1020, %1024 : vector<3x3xf32>
    %1026 = arith.truncf %1025 : vector<3x3xf32> to vector<3x3xbf16>
    %cst_320 = arith.constant dense<0.000000e+00> : vector<3x8xf32>
    %1027 = tpu.matmul %1026, %1011, %cst_320 {dimension_numbers = #tpu.dot_dimension_numbers<[1], [0], [0], [1], [0, 0, 1, 1], [], []>} : vector<3x3xbf16>, vector<3x8xbf16>, vector<3x8xf32> -> vector<3x8xf32>
    %1028 = vector.extract_strided_slice %1008 {offsets = [0, 8], sizes = [3, 8], strides = [1, 1]} : vector<3x96xbf16> to vector<3x8xbf16>
    %1029 = vector.extract_strided_slice %1008 {offsets = [0, 40], sizes = [3, 8], strides = [1, 1]} : vector<3x96xbf16> to vector<3x8xbf16>
    %1030 = vector.extract_strided_slice %1008 {offsets = [0, 72], sizes = [3, 8], strides = [1, 1]} : vector<3x96xbf16> to vector<3x8xbf16>
    %cst_321 = arith.constant dense<0.000000e+00> : vector<3x3xf32>
    %1031 = tpu.matmul %1028, %1029, %cst_321 {dimension_numbers = #tpu.dot_dimension_numbers<[1], [1], [0], [0], [0, 0, 1, 0], [], []>} : vector<3x8xbf16>, vector<3x8xbf16>, vector<3x3xf32> -> vector<3x3xf32>
    %cst_322 = arith.constant 0.353553385 : f32
    %1032 = vector.broadcast %cst_322 : f32 to vector<3x3xf32>
    %1033 = arith.mulf %1031, %1032 : vector<3x3xf32>
    %1034 = arith.addf %1033, %270 : vector<3x3xf32>
    %cst_323 = arith.constant dense<0xFF800000> : vector<3xf32>
    %1035 = vector.multi_reduction <maximumf>, %1034, %cst_323 [1] : vector<3x3xf32> to vector<3xf32>
    %1036 = vector.shape_cast %1035 : vector<3xf32> to vector<3x1xf32>
    %1037 = vector.broadcast %1036 : vector<3x1xf32> to vector<3x3xf32>
    %1038 = arith.subf %1034, %1037 : vector<3x3xf32>
    %1039 = math.exp %1038 : vector<3x3xf32>
    %cst_324 = arith.constant dense<0.000000e+00> : vector<3xf32>
    %1040 = vector.multi_reduction <add>, %1039, %cst_324 [1] : vector<3x3xf32> to vector<3xf32>
    %1041 = vector.shape_cast %1040 : vector<3xf32> to vector<3x1xf32>
    %1042 = tpu.reciprocal %1041 {approx = true} : vector<3x1xf32> -> vector<3x1xf32>
    %1043 = vector.broadcast %1042 : vector<3x1xf32> to vector<3x3xf32>
    %1044 = arith.mulf %1039, %1043 : vector<3x3xf32>
    %1045 = arith.truncf %1044 : vector<3x3xf32> to vector<3x3xbf16>
    %cst_325 = arith.constant dense<0.000000e+00> : vector<3x8xf32>
    %1046 = tpu.matmul %1045, %1030, %cst_325 {dimension_numbers = #tpu.dot_dimension_numbers<[1], [0], [0], [1], [0, 0, 1, 1], [], []>} : vector<3x3xbf16>, vector<3x8xbf16>, vector<3x8xf32> -> vector<3x8xf32>
    %1047 = vector.extract_strided_slice %1008 {offsets = [0, 16], sizes = [3, 8], strides = [1, 1]} : vector<3x96xbf16> to vector<3x8xbf16>
    %1048 = vector.extract_strided_slice %1008 {offsets = [0, 48], sizes = [3, 8], strides = [1, 1]} : vector<3x96xbf16> to vector<3x8xbf16>
    %1049 = vector.extract_strided_slice %1008 {offsets = [0, 80], sizes = [3, 8], strides = [1, 1]} : vector<3x96xbf16> to vector<3x8xbf16>
    %cst_326 = arith.constant dense<0.000000e+00> : vector<3x3xf32>
    %1050 = tpu.matmul %1047, %1048, %cst_326 {dimension_numbers = #tpu.dot_dimension_numbers<[1], [1], [0], [0], [0, 0, 1, 0], [], []>} : vector<3x8xbf16>, vector<3x8xbf16>, vector<3x3xf32> -> vector<3x3xf32>
    %cst_327 = arith.constant 0.353553385 : f32
    %1051 = vector.broadcast %cst_327 : f32 to vector<3x3xf32>
    %1052 = arith.mulf %1050, %1051 : vector<3x3xf32>
    %1053 = arith.addf %1052, %288 : vector<3x3xf32>
    %cst_328 = arith.constant dense<0xFF800000> : vector<3xf32>
    %1054 = vector.multi_reduction <maximumf>, %1053, %cst_328 [1] : vector<3x3xf32> to vector<3xf32>
    %1055 = vector.shape_cast %1054 : vector<3xf32> to vector<3x1xf32>
    %1056 = vector.broadcast %1055 : vector<3x1xf32> to vector<3x3xf32>
    %1057 = arith.subf %1053, %1056 : vector<3x3xf32>
    %1058 = math.exp %1057 : vector<3x3xf32>
    %cst_329 = arith.constant dense<0.000000e+00> : vector<3xf32>
    %1059 = vector.multi_reduction <add>, %1058, %cst_329 [1] : vector<3x3xf32> to vector<3xf32>
    %1060 = vector.shape_cast %1059 : vector<3xf32> to vector<3x1xf32>
    %1061 = tpu.reciprocal %1060 {approx = true} : vector<3x1xf32> -> vector<3x1xf32>
    %1062 = vector.broadcast %1061 : vector<3x1xf32> to vector<3x3xf32>
    %1063 = arith.mulf %1058, %1062 : vector<3x3xf32>
    %1064 = arith.truncf %1063 : vector<3x3xf32> to vector<3x3xbf16>
    %cst_330 = arith.constant dense<0.000000e+00> : vector<3x8xf32>
    %1065 = tpu.matmul %1064, %1049, %cst_330 {dimension_numbers = #tpu.dot_dimension_numbers<[1], [0], [0], [1], [0, 0, 1, 1], [], []>} : vector<3x3xbf16>, vector<3x8xbf16>, vector<3x8xf32> -> vector<3x8xf32>
    %1066 = vector.extract_strided_slice %1008 {offsets = [0, 24], sizes = [3, 8], strides = [1, 1]} : vector<3x96xbf16> to vector<3x8xbf16>
    %1067 = vector.extract_strided_slice %1008 {offsets = [0, 56], sizes = [3, 8], strides = [1, 1]} : vector<3x96xbf16> to vector<3x8xbf16>
    %1068 = vector.extract_strided_slice %1008 {offsets = [0, 88], sizes = [3, 8], strides = [1, 1]} : vector<3x96xbf16> to vector<3x8xbf16>
    %cst_331 = arith.constant dense<0.000000e+00> : vector<3x3xf32>
    %1069 = tpu.matmul %1066, %1067, %cst_331 {dimension_numbers = #tpu.dot_dimension_numbers<[1], [1], [0], [0], [0, 0, 1, 0], [], []>} : vector<3x8xbf16>, vector<3x8xbf16>, vector<3x3xf32> -> vector<3x3xf32>
    %cst_332 = arith.constant 0.353553385 : f32
    %1070 = vector.broadcast %cst_332 : f32 to vector<3x3xf32>
    %1071 = arith.mulf %1069, %1070 : vector<3x3xf32>
    %1072 = arith.addf %1071, %306 : vector<3x3xf32>
    %cst_333 = arith.constant dense<0xFF800000> : vector<3xf32>
    %1073 = vector.multi_reduction <maximumf>, %1072, %cst_333 [1] : vector<3x3xf32> to vector<3xf32>
    %1074 = vector.shape_cast %1073 : vector<3xf32> to vector<3x1xf32>
    %1075 = vector.broadcast %1074 : vector<3x1xf32> to vector<3x3xf32>
    %1076 = arith.subf %1072, %1075 : vector<3x3xf32>
    %1077 = math.exp %1076 : vector<3x3xf32>
    %cst_334 = arith.constant dense<0.000000e+00> : vector<3xf32>
    %1078 = vector.multi_reduction <add>, %1077, %cst_334 [1] : vector<3x3xf32> to vector<3xf32>
    %1079 = vector.shape_cast %1078 : vector<3xf32> to vector<3x1xf32>
    %1080 = tpu.reciprocal %1079 {approx = true} : vector<3x1xf32> -> vector<3x1xf32>
    %1081 = vector.broadcast %1080 : vector<3x1xf32> to vector<3x3xf32>
    %1082 = arith.mulf %1077, %1081 : vector<3x3xf32>
    %1083 = arith.truncf %1082 : vector<3x3xf32> to vector<3x3xbf16>
    %cst_335 = arith.constant dense<0.000000e+00> : vector<3x8xf32>
    %1084 = tpu.matmul %1083, %1068, %cst_335 {dimension_numbers = #tpu.dot_dimension_numbers<[1], [0], [0], [1], [0, 0, 1, 1], [], []>} : vector<3x3xbf16>, vector<3x8xbf16>, vector<3x8xf32> -> vector<3x8xf32>
    %1085 = tpu.concatenate %1027, %1046, %1065, %1084 in 1 : vector<3x8xf32>, vector<3x8xf32>, vector<3x8xf32>, vector<3x8xf32> -> vector<3x32xf32>
    %1086 = arith.truncf %1085 : vector<3x32xf32> to vector<3x32xbf16>
    %c9_336 = arith.constant 9 : index
    %c0_337 = arith.constant 0 : index
    %1087 = vector.load %arg16[%c9_336, %c0_337] : memref<24x32xbf16, #tpu.memory_space<vmem>>, vector<3x32xbf16>
    tpu.vector_store %arg16[%c9_336, %c0_337], %1086 {strides = array<i32>} : memref<24x32xbf16, #tpu.memory_space<vmem>>, vector<3x32xbf16>,
    %1088 = vector.extract_strided_slice %763 {offsets = [12, 0], sizes = [3, 96], strides = [1, 1]} : vector<24x96xf32> to vector<3x96xf32>
    %1089 = arith.truncf %1088 : vector<3x96xf32> to vector<3x96xbf16>
    %1090 = vector.extract_strided_slice %1089 {offsets = [0, 0], sizes = [3, 8], strides = [1, 1]} : vector<3x96xbf16> to vector<3x8xbf16>
    %1091 = vector.extract_strided_slice %1089 {offsets = [0, 32], sizes = [3, 8], strides = [1, 1]} : vector<3x96xbf16> to vector<3x8xbf16>
    %1092 = vector.extract_strided_slice %1089 {offsets = [0, 64], sizes = [3, 8], strides = [1, 1]} : vector<3x96xbf16> to vector<3x8xbf16>
    %cst_338 = arith.constant dense<0.000000e+00> : vector<3x3xf32>
    %1093 = tpu.matmul %1090, %1091, %cst_338 {dimension_numbers = #tpu.dot_dimension_numbers<[1], [1], [0], [0], [0, 0, 1, 0], [], []>} : vector<3x8xbf16>, vector<3x8xbf16>, vector<3x3xf32> -> vector<3x3xf32>
    %cst_339 = arith.constant 0.353553385 : f32
    %1094 = vector.broadcast %cst_339 : f32 to vector<3x3xf32>
    %1095 = arith.mulf %1093, %1094 : vector<3x3xf32>
    %1096 = arith.addf %1095, %329 : vector<3x3xf32>
    %cst_340 = arith.constant dense<0xFF800000> : vector<3xf32>
    %1097 = vector.multi_reduction <maximumf>, %1096, %cst_340 [1] : vector<3x3xf32> to vector<3xf32>
    %1098 = vector.shape_cast %1097 : vector<3xf32> to vector<3x1xf32>
    %1099 = vector.broadcast %1098 : vector<3x1xf32> to vector<3x3xf32>
    %1100 = arith.subf %1096, %1099 : vector<3x3xf32>
    %1101 = math.exp %1100 : vector<3x3xf32>
    %cst_341 = arith.constant dense<0.000000e+00> : vector<3xf32>
    %1102 = vector.multi_reduction <add>, %1101, %cst_341 [1] : vector<3x3xf32> to vector<3xf32>
    %1103 = vector.shape_cast %1102 : vector<3xf32> to vector<3x1xf32>
    %1104 = tpu.reciprocal %1103 {approx = true} : vector<3x1xf32> -> vector<3x1xf32>
    %1105 = vector.broadcast %1104 : vector<3x1xf32> to vector<3x3xf32>
    %1106 = arith.mulf %1101, %1105 : vector<3x3xf32>
    %1107 = arith.truncf %1106 : vector<3x3xf32> to vector<3x3xbf16>
    %cst_342 = arith.constant dense<0.000000e+00> : vector<3x8xf32>
    %1108 = tpu.matmul %1107, %1092, %cst_342 {dimension_numbers = #tpu.dot_dimension_numbers<[1], [0], [0], [1], [0, 0, 1, 1], [], []>} : vector<3x3xbf16>, vector<3x8xbf16>, vector<3x8xf32> -> vector<3x8xf32>
    %1109 = vector.extract_strided_slice %1089 {offsets = [0, 8], sizes = [3, 8], strides = [1, 1]} : vector<3x96xbf16> to vector<3x8xbf16>
    %1110 = vector.extract_strided_slice %1089 {offsets = [0, 40], sizes = [3, 8], strides = [1, 1]} : vector<3x96xbf16> to vector<3x8xbf16>
    %1111 = vector.extract_strided_slice %1089 {offsets = [0, 72], sizes = [3, 8], strides = [1, 1]} : vector<3x96xbf16> to vector<3x8xbf16>
    %cst_343 = arith.constant dense<0.000000e+00> : vector<3x3xf32>
    %1112 = tpu.matmul %1109, %1110, %cst_343 {dimension_numbers = #tpu.dot_dimension_numbers<[1], [1], [0], [0], [0, 0, 1, 0], [], []>} : vector<3x8xbf16>, vector<3x8xbf16>, vector<3x3xf32> -> vector<3x3xf32>
    %cst_344 = arith.constant 0.353553385 : f32
    %1113 = vector.broadcast %cst_344 : f32 to vector<3x3xf32>
    %1114 = arith.mulf %1112, %1113 : vector<3x3xf32>
    %1115 = arith.addf %1114, %347 : vector<3x3xf32>
    %cst_345 = arith.constant dense<0xFF800000> : vector<3xf32>
    %1116 = vector.multi_reduction <maximumf>, %1115, %cst_345 [1] : vector<3x3xf32> to vector<3xf32>
    %1117 = vector.shape_cast %1116 : vector<3xf32> to vector<3x1xf32>
    %1118 = vector.broadcast %1117 : vector<3x1xf32> to vector<3x3xf32>
    %1119 = arith.subf %1115, %1118 : vector<3x3xf32>
    %1120 = math.exp %1119 : vector<3x3xf32>
    %cst_346 = arith.constant dense<0.000000e+00> : vector<3xf32>
    %1121 = vector.multi_reduction <add>, %1120, %cst_346 [1] : vector<3x3xf32> to vector<3xf32>
    %1122 = vector.shape_cast %1121 : vector<3xf32> to vector<3x1xf32>
    %1123 = tpu.reciprocal %1122 {approx = true} : vector<3x1xf32> -> vector<3x1xf32>
    %1124 = vector.broadcast %1123 : vector<3x1xf32> to vector<3x3xf32>
    %1125 = arith.mulf %1120, %1124 : vector<3x3xf32>
    %1126 = arith.truncf %1125 : vector<3x3xf32> to vector<3x3xbf16>
    %cst_347 = arith.constant dense<0.000000e+00> : vector<3x8xf32>
    %1127 = tpu.matmul %1126, %1111, %cst_347 {dimension_numbers = #tpu.dot_dimension_numbers<[1], [0], [0], [1], [0, 0, 1, 1], [], []>} : vector<3x3xbf16>, vector<3x8xbf16>, vector<3x8xf32> -> vector<3x8xf32>
    %1128 = vector.extract_strided_slice %1089 {offsets = [0, 16], sizes = [3, 8], strides = [1, 1]} : vector<3x96xbf16> to vector<3x8xbf16>
    %1129 = vector.extract_strided_slice %1089 {offsets = [0, 48], sizes = [3, 8], strides = [1, 1]} : vector<3x96xbf16> to vector<3x8xbf16>
    %1130 = vector.extract_strided_slice %1089 {offsets = [0, 80], sizes = [3, 8], strides = [1, 1]} : vector<3x96xbf16> to vector<3x8xbf16>
    %cst_348 = arith.constant dense<0.000000e+00> : vector<3x3xf32>
    %1131 = tpu.matmul %1128, %1129, %cst_348 {dimension_numbers = #tpu.dot_dimension_numbers<[1], [1], [0], [0], [0, 0, 1, 0], [], []>} : vector<3x8xbf16>, vector<3x8xbf16>, vector<3x3xf32> -> vector<3x3xf32>
    %cst_349 = arith.constant 0.353553385 : f32
    %1132 = vector.broadcast %cst_349 : f32 to vector<3x3xf32>
    %1133 = arith.mulf %1131, %1132 : vector<3x3xf32>
    %1134 = arith.addf %1133, %365 : vector<3x3xf32>
    %cst_350 = arith.constant dense<0xFF800000> : vector<3xf32>
    %1135 = vector.multi_reduction <maximumf>, %1134, %cst_350 [1] : vector<3x3xf32> to vector<3xf32>
    %1136 = vector.shape_cast %1135 : vector<3xf32> to vector<3x1xf32>
    %1137 = vector.broadcast %1136 : vector<3x1xf32> to vector<3x3xf32>
    %1138 = arith.subf %1134, %1137 : vector<3x3xf32>
    %1139 = math.exp %1138 : vector<3x3xf32>
    %cst_351 = arith.constant dense<0.000000e+00> : vector<3xf32>
    %1140 = vector.multi_reduction <add>, %1139, %cst_351 [1] : vector<3x3xf32> to vector<3xf32>
    %1141 = vector.shape_cast %1140 : vector<3xf32> to vector<3x1xf32>
    %1142 = tpu.reciprocal %1141 {approx = true} : vector<3x1xf32> -> vector<3x1xf32>
    %1143 = vector.broadcast %1142 : vector<3x1xf32> to vector<3x3xf32>
    %1144 = arith.mulf %1139, %1143 : vector<3x3xf32>
    %1145 = arith.truncf %1144 : vector<3x3xf32> to vector<3x3xbf16>
    %cst_352 = arith.constant dense<0.000000e+00> : vector<3x8xf32>
    %1146 = tpu.matmul %1145, %1130, %cst_352 {dimension_numbers = #tpu.dot_dimension_numbers<[1], [0], [0], [1], [0, 0, 1, 1], [], []>} : vector<3x3xbf16>, vector<3x8xbf16>, vector<3x8xf32> -> vector<3x8xf32>
    %1147 = vector.extract_strided_slice %1089 {offsets = [0, 24], sizes = [3, 8], strides = [1, 1]} : vector<3x96xbf16> to vector<3x8xbf16>
    %1148 = vector.extract_strided_slice %1089 {offsets = [0, 56], sizes = [3, 8], strides = [1, 1]} : vector<3x96xbf16> to vector<3x8xbf16>
    %1149 = vector.extract_strided_slice %1089 {offsets = [0, 88], sizes = [3, 8], strides = [1, 1]} : vector<3x96xbf16> to vector<3x8xbf16>
    %cst_353 = arith.constant dense<0.000000e+00> : vector<3x3xf32>
    %1150 = tpu.matmul %1147, %1148, %cst_353 {dimension_numbers = #tpu.dot_dimension_numbers<[1], [1], [0], [0], [0, 0, 1, 0], [], []>} : vector<3x8xbf16>, vector<3x8xbf16>, vector<3x3xf32> -> vector<3x3xf32>
    %cst_354 = arith.constant 0.353553385 : f32
    %1151 = vector.broadcast %cst_354 : f32 to vector<3x3xf32>
    %1152 = arith.mulf %1150, %1151 : vector<3x3xf32>
    %1153 = arith.addf %1152, %383 : vector<3x3xf32>
    %cst_355 = arith.constant dense<0xFF800000> : vector<3xf32>
    %1154 = vector.multi_reduction <maximumf>, %1153, %cst_355 [1] : vector<3x3xf32> to vector<3xf32>
    %1155 = vector.shape_cast %1154 : vector<3xf32> to vector<3x1xf32>
    %1156 = vector.broadcast %1155 : vector<3x1xf32> to vector<3x3xf32>
    %1157 = arith.subf %1153, %1156 : vector<3x3xf32>
    %1158 = math.exp %1157 : vector<3x3xf32>
    %cst_356 = arith.constant dense<0.000000e+00> : vector<3xf32>
    %1159 = vector.multi_reduction <add>, %1158, %cst_356 [1] : vector<3x3xf32> to vector<3xf32>
    %1160 = vector.shape_cast %1159 : vector<3xf32> to vector<3x1xf32>
    %1161 = tpu.reciprocal %1160 {approx = true} : vector<3x1xf32> -> vector<3x1xf32>
    %1162 = vector.broadcast %1161 : vector<3x1xf32> to vector<3x3xf32>
    %1163 = arith.mulf %1158, %1162 : vector<3x3xf32>
    %1164 = arith.truncf %1163 : vector<3x3xf32> to vector<3x3xbf16>
    %cst_357 = arith.constant dense<0.000000e+00> : vector<3x8xf32>
    %1165 = tpu.matmul %1164, %1149, %cst_357 {dimension_numbers = #tpu.dot_dimension_numbers<[1], [0], [0], [1], [0, 0, 1, 1], [], []>} : vector<3x3xbf16>, vector<3x8xbf16>, vector<3x8xf32> -> vector<3x8xf32>
    %1166 = tpu.concatenate %1108, %1127, %1146, %1165 in 1 : vector<3x8xf32>, vector<3x8xf32>, vector<3x8xf32>, vector<3x8xf32> -> vector<3x32xf32>
    %1167 = arith.truncf %1166 : vector<3x32xf32> to vector<3x32xbf16>
    %c12_358 = arith.constant 12 : index
    %c0_359 = arith.constant 0 : index
    %1168 = vector.load %arg16[%c12_358, %c0_359] : memref<24x32xbf16, #tpu.memory_space<vmem>>, vector<3x32xbf16>
    tpu.vector_store %arg16[%c12_358, %c0_359], %1167 {strides = array<i32>} : memref<24x32xbf16, #tpu.memory_space<vmem>>, vector<3x32xbf16>,
    %1169 = vector.extract_strided_slice %763 {offsets = [15, 0], sizes = [3, 96], strides = [1, 1]} : vector<24x96xf32> to vector<3x96xf32>
    %1170 = arith.truncf %1169 : vector<3x96xf32> to vector<3x96xbf16>
    %1171 = vector.extract_strided_slice %1170 {offsets = [0, 0], sizes = [3, 8], strides = [1, 1]} : vector<3x96xbf16> to vector<3x8xbf16>
    %1172 = vector.extract_strided_slice %1170 {offsets = [0, 32], sizes = [3, 8], strides = [1, 1]} : vector<3x96xbf16> to vector<3x8xbf16>
    %1173 = vector.extract_strided_slice %1170 {offsets = [0, 64], sizes = [3, 8], strides = [1, 1]} : vector<3x96xbf16> to vector<3x8xbf16>
    %cst_360 = arith.constant dense<0.000000e+00> : vector<3x3xf32>
    %1174 = tpu.matmul %1171, %1172, %cst_360 {dimension_numbers = #tpu.dot_dimension_numbers<[1], [1], [0], [0], [0, 0, 1, 0], [], []>} : vector<3x8xbf16>, vector<3x8xbf16>, vector<3x3xf32> -> vector<3x3xf32>
    %cst_361 = arith.constant 0.353553385 : f32
    %1175 = vector.broadcast %cst_361 : f32 to vector<3x3xf32>
    %1176 = arith.mulf %1174, %1175 : vector<3x3xf32>
    %1177 = arith.addf %1176, %406 : vector<3x3xf32>
    %cst_362 = arith.constant dense<0xFF800000> : vector<3xf32>
    %1178 = vector.multi_reduction <maximumf>, %1177, %cst_362 [1] : vector<3x3xf32> to vector<3xf32>
    %1179 = vector.shape_cast %1178 : vector<3xf32> to vector<3x1xf32>
    %1180 = vector.broadcast %1179 : vector<3x1xf32> to vector<3x3xf32>
    %1181 = arith.subf %1177, %1180 : vector<3x3xf32>
    %1182 = math.exp %1181 : vector<3x3xf32>
    %cst_363 = arith.constant dense<0.000000e+00> : vector<3xf32>
    %1183 = vector.multi_reduction <add>, %1182, %cst_363 [1] : vector<3x3xf32> to vector<3xf32>
    %1184 = vector.shape_cast %1183 : vector<3xf32> to vector<3x1xf32>
    %1185 = tpu.reciprocal %1184 {approx = true} : vector<3x1xf32> -> vector<3x1xf32>
    %1186 = vector.broadcast %1185 : vector<3x1xf32> to vector<3x3xf32>
    %1187 = arith.mulf %1182, %1186 : vector<3x3xf32>
    %1188 = arith.truncf %1187 : vector<3x3xf32> to vector<3x3xbf16>
    %cst_364 = arith.constant dense<0.000000e+00> : vector<3x8xf32>
    %1189 = tpu.matmul %1188, %1173, %cst_364 {dimension_numbers = #tpu.dot_dimension_numbers<[1], [0], [0], [1], [0, 0, 1, 1], [], []>} : vector<3x3xbf16>, vector<3x8xbf16>, vector<3x8xf32> -> vector<3x8xf32>
    %1190 = vector.extract_strided_slice %1170 {offsets = [0, 8], sizes = [3, 8], strides = [1, 1]} : vector<3x96xbf16> to vector<3x8xbf16>
    %1191 = vector.extract_strided_slice %1170 {offsets = [0, 40], sizes = [3, 8], strides = [1, 1]} : vector<3x96xbf16> to vector<3x8xbf16>
    %1192 = vector.extract_strided_slice %1170 {offsets = [0, 72], sizes = [3, 8], strides = [1, 1]} : vector<3x96xbf16> to vector<3x8xbf16>
    %cst_365 = arith.constant dense<0.000000e+00> : vector<3x3xf32>
    %1193 = tpu.matmul %1190, %1191, %cst_365 {dimension_numbers = #tpu.dot_dimension_numbers<[1], [1], [0], [0], [0, 0, 1, 0], [], []>} : vector<3x8xbf16>, vector<3x8xbf16>, vector<3x3xf32> -> vector<3x3xf32>
    %cst_366 = arith.constant 0.353553385 : f32
    %1194 = vector.broadcast %cst_366 : f32 to vector<3x3xf32>
    %1195 = arith.mulf %1193, %1194 : vector<3x3xf32>
    %1196 = arith.addf %1195, %424 : vector<3x3xf32>
    %cst_367 = arith.constant dense<0xFF800000> : vector<3xf32>
    %1197 = vector.multi_reduction <maximumf>, %1196, %cst_367 [1] : vector<3x3xf32> to vector<3xf32>
    %1198 = vector.shape_cast %1197 : vector<3xf32> to vector<3x1xf32>
    %1199 = vector.broadcast %1198 : vector<3x1xf32> to vector<3x3xf32>
    %1200 = arith.subf %1196, %1199 : vector<3x3xf32>
    %1201 = math.exp %1200 : vector<3x3xf32>
    %cst_368 = arith.constant dense<0.000000e+00> : vector<3xf32>
    %1202 = vector.multi_reduction <add>, %1201, %cst_368 [1] : vector<3x3xf32> to vector<3xf32>
    %1203 = vector.shape_cast %1202 : vector<3xf32> to vector<3x1xf32>
    %1204 = tpu.reciprocal %1203 {approx = true} : vector<3x1xf32> -> vector<3x1xf32>
    %1205 = vector.broadcast %1204 : vector<3x1xf32> to vector<3x3xf32>
    %1206 = arith.mulf %1201, %1205 : vector<3x3xf32>
    %1207 = arith.truncf %1206 : vector<3x3xf32> to vector<3x3xbf16>
    %cst_369 = arith.constant dense<0.000000e+00> : vector<3x8xf32>
    %1208 = tpu.matmul %1207, %1192, %cst_369 {dimension_numbers = #tpu.dot_dimension_numbers<[1], [0], [0], [1], [0, 0, 1, 1], [], []>} : vector<3x3xbf16>, vector<3x8xbf16>, vector<3x8xf32> -> vector<3x8xf32>
    %1209 = vector.extract_strided_slice %1170 {offsets = [0, 16], sizes = [3, 8], strides = [1, 1]} : vector<3x96xbf16> to vector<3x8xbf16>
    %1210 = vector.extract_strided_slice %1170 {offsets = [0, 48], sizes = [3, 8], strides = [1, 1]} : vector<3x96xbf16> to vector<3x8xbf16>
    %1211 = vector.extract_strided_slice %1170 {offsets = [0, 80], sizes = [3, 8], strides = [1, 1]} : vector<3x96xbf16> to vector<3x8xbf16>
    %cst_370 = arith.constant dense<0.000000e+00> : vector<3x3xf32>
    %1212 = tpu.matmul %1209, %1210, %cst_370 {dimension_numbers = #tpu.dot_dimension_numbers<[1], [1], [0], [0], [0, 0, 1, 0], [], []>} : vector<3x8xbf16>, vector<3x8xbf16>, vector<3x3xf32> -> vector<3x3xf32>
    %cst_371 = arith.constant 0.353553385 : f32
    %1213 = vector.broadcast %cst_371 : f32 to vector<3x3xf32>
    %1214 = arith.mulf %1212, %1213 : vector<3x3xf32>
    %1215 = arith.addf %1214, %442 : vector<3x3xf32>
    %cst_372 = arith.constant dense<0xFF800000> : vector<3xf32>
    %1216 = vector.multi_reduction <maximumf>, %1215, %cst_372 [1] : vector<3x3xf32> to vector<3xf32>
    %1217 = vector.shape_cast %1216 : vector<3xf32> to vector<3x1xf32>
    %1218 = vector.broadcast %1217 : vector<3x1xf32> to vector<3x3xf32>
    %1219 = arith.subf %1215, %1218 : vector<3x3xf32>
    %1220 = math.exp %1219 : vector<3x3xf32>
    %cst_373 = arith.constant dense<0.000000e+00> : vector<3xf32>
    %1221 = vector.multi_reduction <add>, %1220, %cst_373 [1] : vector<3x3xf32> to vector<3xf32>
    %1222 = vector.shape_cast %1221 : vector<3xf32> to vector<3x1xf32>
    %1223 = tpu.reciprocal %1222 {approx = true} : vector<3x1xf32> -> vector<3x1xf32>
    %1224 = vector.broadcast %1223 : vector<3x1xf32> to vector<3x3xf32>
    %1225 = arith.mulf %1220, %1224 : vector<3x3xf32>
    %1226 = arith.truncf %1225 : vector<3x3xf32> to vector<3x3xbf16>
    %cst_374 = arith.constant dense<0.000000e+00> : vector<3x8xf32>
    %1227 = tpu.matmul %1226, %1211, %cst_374 {dimension_numbers = #tpu.dot_dimension_numbers<[1], [0], [0], [1], [0, 0, 1, 1], [], []>} : vector<3x3xbf16>, vector<3x8xbf16>, vector<3x8xf32> -> vector<3x8xf32>
    %1228 = vector.extract_strided_slice %1170 {offsets = [0, 24], sizes = [3, 8], strides = [1, 1]} : vector<3x96xbf16> to vector<3x8xbf16>
    %1229 = vector.extract_strided_slice %1170 {offsets = [0, 56], sizes = [3, 8], strides = [1, 1]} : vector<3x96xbf16> to vector<3x8xbf16>
    %1230 = vector.extract_strided_slice %1170 {offsets = [0, 88], sizes = [3, 8], strides = [1, 1]} : vector<3x96xbf16> to vector<3x8xbf16>
    %cst_375 = arith.constant dense<0.000000e+00> : vector<3x3xf32>
    %1231 = tpu.matmul %1228, %1229, %cst_375 {dimension_numbers = #tpu.dot_dimension_numbers<[1], [1], [0], [0], [0, 0, 1, 0], [], []>} : vector<3x8xbf16>, vector<3x8xbf16>, vector<3x3xf32> -> vector<3x3xf32>
    %cst_376 = arith.constant 0.353553385 : f32
    %1232 = vector.broadcast %cst_376 : f32 to vector<3x3xf32>
    %1233 = arith.mulf %1231, %1232 : vector<3x3xf32>
    %1234 = arith.addf %1233, %460 : vector<3x3xf32>
    %cst_377 = arith.constant dense<0xFF800000> : vector<3xf32>
    %1235 = vector.multi_reduction <maximumf>, %1234, %cst_377 [1] : vector<3x3xf32> to vector<3xf32>
    %1236 = vector.shape_cast %1235 : vector<3xf32> to vector<3x1xf32>
    %1237 = vector.broadcast %1236 : vector<3x1xf32> to vector<3x3xf32>
    %1238 = arith.subf %1234, %1237 : vector<3x3xf32>
    %1239 = math.exp %1238 : vector<3x3xf32>
    %cst_378 = arith.constant dense<0.000000e+00> : vector<3xf32>
    %1240 = vector.multi_reduction <add>, %1239, %cst_378 [1] : vector<3x3xf32> to vector<3xf32>
    %1241 = vector.shape_cast %1240 : vector<3xf32> to vector<3x1xf32>
    %1242 = tpu.reciprocal %1241 {approx = true} : vector<3x1xf32> -> vector<3x1xf32>
    %1243 = vector.broadcast %1242 : vector<3x1xf32> to vector<3x3xf32>
    %1244 = arith.mulf %1239, %1243 : vector<3x3xf32>
    %1245 = arith.truncf %1244 : vector<3x3xf32> to vector<3x3xbf16>
    %cst_379 = arith.constant dense<0.000000e+00> : vector<3x8xf32>
    %1246 = tpu.matmul %1245, %1230, %cst_379 {dimension_numbers = #tpu.dot_dimension_numbers<[1], [0], [0], [1], [0, 0, 1, 1], [], []>} : vector<3x3xbf16>, vector<3x8xbf16>, vector<3x8xf32> -> vector<3x8xf32>
    %1247 = tpu.concatenate %1189, %1208, %1227, %1246 in 1 : vector<3x8xf32>, vector<3x8xf32>, vector<3x8xf32>, vector<3x8xf32> -> vector<3x32xf32>
    %1248 = arith.truncf %1247 : vector<3x32xf32> to vector<3x32xbf16>
    %c15_380 = arith.constant 15 : index
    %c0_381 = arith.constant 0 : index
    %1249 = vector.load %arg16[%c15_380, %c0_381] : memref<24x32xbf16, #tpu.memory_space<vmem>>, vector<3x32xbf16>
    tpu.vector_store %arg16[%c15_380, %c0_381], %1248 {strides = array<i32>} : memref<24x32xbf16, #tpu.memory_space<vmem>>, vector<3x32xbf16>,
    %1250 = vector.extract_strided_slice %763 {offsets = [18, 0], sizes = [3, 96], strides = [1, 1]} : vector<24x96xf32> to vector<3x96xf32>
    %1251 = arith.truncf %1250 : vector<3x96xf32> to vector<3x96xbf16>
    %1252 = vector.extract_strided_slice %1251 {offsets = [0, 0], sizes = [3, 8], strides = [1, 1]} : vector<3x96xbf16> to vector<3x8xbf16>
    %1253 = vector.extract_strided_slice %1251 {offsets = [0, 32], sizes = [3, 8], strides = [1, 1]} : vector<3x96xbf16> to vector<3x8xbf16>
    %1254 = vector.extract_strided_slice %1251 {offsets = [0, 64], sizes = [3, 8], strides = [1, 1]} : vector<3x96xbf16> to vector<3x8xbf16>
    %cst_382 = arith.constant dense<0.000000e+00> : vector<3x3xf32>
    %1255 = tpu.matmul %1252, %1253, %cst_382 {dimension_numbers = #tpu.dot_dimension_numbers<[1], [1], [0], [0], [0, 0, 1, 0], [], []>} : vector<3x8xbf16>, vector<3x8xbf16>, vector<3x3xf32> -> vector<3x3xf32>
    %cst_383 = arith.constant 0.353553385 : f32
    %1256 = vector.broadcast %cst_383 : f32 to vector<3x3xf32>
    %1257 = arith.mulf %1255, %1256 : vector<3x3xf32>
    %1258 = arith.addf %1257, %483 : vector<3x3xf32>
    %cst_384 = arith.constant dense<0xFF800000> : vector<3xf32>
    %1259 = vector.multi_reduction <maximumf>, %1258, %cst_384 [1] : vector<3x3xf32> to vector<3xf32>
    %1260 = vector.shape_cast %1259 : vector<3xf32> to vector<3x1xf32>
    %1261 = vector.broadcast %1260 : vector<3x1xf32> to vector<3x3xf32>
    %1262 = arith.subf %1258, %1261 : vector<3x3xf32>
    %1263 = math.exp %1262 : vector<3x3xf32>
    %cst_385 = arith.constant dense<0.000000e+00> : vector<3xf32>
    %1264 = vector.multi_reduction <add>, %1263, %cst_385 [1] : vector<3x3xf32> to vector<3xf32>
    %1265 = vector.shape_cast %1264 : vector<3xf32> to vector<3x1xf32>
    %1266 = tpu.reciprocal %1265 {approx = true} : vector<3x1xf32> -> vector<3x1xf32>
    %1267 = vector.broadcast %1266 : vector<3x1xf32> to vector<3x3xf32>
    %1268 = arith.mulf %1263, %1267 : vector<3x3xf32>
    %1269 = arith.truncf %1268 : vector<3x3xf32> to vector<3x3xbf16>
    %cst_386 = arith.constant dense<0.000000e+00> : vector<3x8xf32>
    %1270 = tpu.matmul %1269, %1254, %cst_386 {dimension_numbers = #tpu.dot_dimension_numbers<[1], [0], [0], [1], [0, 0, 1, 1], [], []>} : vector<3x3xbf16>, vector<3x8xbf16>, vector<3x8xf32> -> vector<3x8xf32>
    %1271 = vector.extract_strided_slice %1251 {offsets = [0, 8], sizes = [3, 8], strides = [1, 1]} : vector<3x96xbf16> to vector<3x8xbf16>
    %1272 = vector.extract_strided_slice %1251 {offsets = [0, 40], sizes = [3, 8], strides = [1, 1]} : vector<3x96xbf16> to vector<3x8xbf16>
    %1273 = vector.extract_strided_slice %1251 {offsets = [0, 72], sizes = [3, 8], strides = [1, 1]} : vector<3x96xbf16> to vector<3x8xbf16>
    %cst_387 = arith.constant dense<0.000000e+00> : vector<3x3xf32>
    %1274 = tpu.matmul %1271, %1272, %cst_387 {dimension_numbers = #tpu.dot_dimension_numbers<[1], [1], [0], [0], [0, 0, 1, 0], [], []>} : vector<3x8xbf16>, vector<3x8xbf16>, vector<3x3xf32> -> vector<3x3xf32>
    %cst_388 = arith.constant 0.353553385 : f32
    %1275 = vector.broadcast %cst_388 : f32 to vector<3x3xf32>
    %1276 = arith.mulf %1274, %1275 : vector<3x3xf32>
    %1277 = arith.addf %1276, %501 : vector<3x3xf32>
    %cst_389 = arith.constant dense<0xFF800000> : vector<3xf32>
    %1278 = vector.multi_reduction <maximumf>, %1277, %cst_389 [1] : vector<3x3xf32> to vector<3xf32>
    %1279 = vector.shape_cast %1278 : vector<3xf32> to vector<3x1xf32>
    %1280 = vector.broadcast %1279 : vector<3x1xf32> to vector<3x3xf32>
    %1281 = arith.subf %1277, %1280 : vector<3x3xf32>
    %1282 = math.exp %1281 : vector<3x3xf32>
    %cst_390 = arith.constant dense<0.000000e+00> : vector<3xf32>
    %1283 = vector.multi_reduction <add>, %1282, %cst_390 [1] : vector<3x3xf32> to vector<3xf32>
    %1284 = vector.shape_cast %1283 : vector<3xf32> to vector<3x1xf32>
    %1285 = tpu.reciprocal %1284 {approx = true} : vector<3x1xf32> -> vector<3x1xf32>
    %1286 = vector.broadcast %1285 : vector<3x1xf32> to vector<3x3xf32>
    %1287 = arith.mulf %1282, %1286 : vector<3x3xf32>
    %1288 = arith.truncf %1287 : vector<3x3xf32> to vector<3x3xbf16>
    %cst_391 = arith.constant dense<0.000000e+00> : vector<3x8xf32>
    %1289 = tpu.matmul %1288, %1273, %cst_391 {dimension_numbers = #tpu.dot_dimension_numbers<[1], [0], [0], [1], [0, 0, 1, 1], [], []>} : vector<3x3xbf16>, vector<3x8xbf16>, vector<3x8xf32> -> vector<3x8xf32>
    %1290 = vector.extract_strided_slice %1251 {offsets = [0, 16], sizes = [3, 8], strides = [1, 1]} : vector<3x96xbf16> to vector<3x8xbf16>
    %1291 = vector.extract_strided_slice %1251 {offsets = [0, 48], sizes = [3, 8], strides = [1, 1]} : vector<3x96xbf16> to vector<3x8xbf16>
    %1292 = vector.extract_strided_slice %1251 {offsets = [0, 80], sizes = [3, 8], strides = [1, 1]} : vector<3x96xbf16> to vector<3x8xbf16>
    %cst_392 = arith.constant dense<0.000000e+00> : vector<3x3xf32>
    %1293 = tpu.matmul %1290, %1291, %cst_392 {dimension_numbers = #tpu.dot_dimension_numbers<[1], [1], [0], [0], [0, 0, 1, 0], [], []>} : vector<3x8xbf16>, vector<3x8xbf16>, vector<3x3xf32> -> vector<3x3xf32>
    %cst_393 = arith.constant 0.353553385 : f32
    %1294 = vector.broadcast %cst_393 : f32 to vector<3x3xf32>
    %1295 = arith.mulf %1293, %1294 : vector<3x3xf32>
    %1296 = arith.addf %1295, %519 : vector<3x3xf32>
    %cst_394 = arith.constant dense<0xFF800000> : vector<3xf32>
    %1297 = vector.multi_reduction <maximumf>, %1296, %cst_394 [1] : vector<3x3xf32> to vector<3xf32>
    %1298 = vector.shape_cast %1297 : vector<3xf32> to vector<3x1xf32>
    %1299 = vector.broadcast %1298 : vector<3x1xf32> to vector<3x3xf32>
    %1300 = arith.subf %1296, %1299 : vector<3x3xf32>
    %1301 = math.exp %1300 : vector<3x3xf32>
    %cst_395 = arith.constant dense<0.000000e+00> : vector<3xf32>
    %1302 = vector.multi_reduction <add>, %1301, %cst_395 [1] : vector<3x3xf32> to vector<3xf32>
    %1303 = vector.shape_cast %1302 : vector<3xf32> to vector<3x1xf32>
    %1304 = tpu.reciprocal %1303 {approx = true} : vector<3x1xf32> -> vector<3x1xf32>
    %1305 = vector.broadcast %1304 : vector<3x1xf32> to vector<3x3xf32>
    %1306 = arith.mulf %1301, %1305 : vector<3x3xf32>
    %1307 = arith.truncf %1306 : vector<3x3xf32> to vector<3x3xbf16>
    %cst_396 = arith.constant dense<0.000000e+00> : vector<3x8xf32>
    %1308 = tpu.matmul %1307, %1292, %cst_396 {dimension_numbers = #tpu.dot_dimension_numbers<[1], [0], [0], [1], [0, 0, 1, 1], [], []>} : vector<3x3xbf16>, vector<3x8xbf16>, vector<3x8xf32> -> vector<3x8xf32>
    %1309 = vector.extract_strided_slice %1251 {offsets = [0, 24], sizes = [3, 8], strides = [1, 1]} : vector<3x96xbf16> to vector<3x8xbf16>
    %1310 = vector.extract_strided_slice %1251 {offsets = [0, 56], sizes = [3, 8], strides = [1, 1]} : vector<3x96xbf16> to vector<3x8xbf16>
    %1311 = vector.extract_strided_slice %1251 {offsets = [0, 88], sizes = [3, 8], strides = [1, 1]} : vector<3x96xbf16> to vector<3x8xbf16>
    %cst_397 = arith.constant dense<0.000000e+00> : vector<3x3xf32>
    %1312 = tpu.matmul %1309, %1310, %cst_397 {dimension_numbers = #tpu.dot_dimension_numbers<[1], [1], [0], [0], [0, 0, 1, 0], [], []>} : vector<3x8xbf16>, vector<3x8xbf16>, vector<3x3xf32> -> vector<3x3xf32>
    %cst_398 = arith.constant 0.353553385 : f32
    %1313 = vector.broadcast %cst_398 : f32 to vector<3x3xf32>
    %1314 = arith.mulf %1312, %1313 : vector<3x3xf32>
    %1315 = arith.addf %1314, %537 : vector<3x3xf32>
    %cst_399 = arith.constant dense<0xFF800000> : vector<3xf32>
    %1316 = vector.multi_reduction <maximumf>, %1315, %cst_399 [1] : vector<3x3xf32> to vector<3xf32>
    %1317 = vector.shape_cast %1316 : vector<3xf32> to vector<3x1xf32>
    %1318 = vector.broadcast %1317 : vector<3x1xf32> to vector<3x3xf32>
    %1319 = arith.subf %1315, %1318 : vector<3x3xf32>
    %1320 = math.exp %1319 : vector<3x3xf32>
    %cst_400 = arith.constant dense<0.000000e+00> : vector<3xf32>
    %1321 = vector.multi_reduction <add>, %1320, %cst_400 [1] : vector<3x3xf32> to vector<3xf32>
    %1322 = vector.shape_cast %1321 : vector<3xf32> to vector<3x1xf32>
    %1323 = tpu.reciprocal %1322 {approx = true} : vector<3x1xf32> -> vector<3x1xf32>
    %1324 = vector.broadcast %1323 : vector<3x1xf32> to vector<3x3xf32>
    %1325 = arith.mulf %1320, %1324 : vector<3x3xf32>
    %1326 = arith.truncf %1325 : vector<3x3xf32> to vector<3x3xbf16>
    %cst_401 = arith.constant dense<0.000000e+00> : vector<3x8xf32>
    %1327 = tpu.matmul %1326, %1311, %cst_401 {dimension_numbers = #tpu.dot_dimension_numbers<[1], [0], [0], [1], [0, 0, 1, 1], [], []>} : vector<3x3xbf16>, vector<3x8xbf16>, vector<3x8xf32> -> vector<3x8xf32>
    %1328 = tpu.concatenate %1270, %1289, %1308, %1327 in 1 : vector<3x8xf32>, vector<3x8xf32>, vector<3x8xf32>, vector<3x8xf32> -> vector<3x32xf32>
    %1329 = arith.truncf %1328 : vector<3x32xf32> to vector<3x32xbf16>
    %c18_402 = arith.constant 18 : index
    %c0_403 = arith.constant 0 : index
    %1330 = vector.load %arg16[%c18_402, %c0_403] : memref<24x32xbf16, #tpu.memory_space<vmem>>, vector<3x32xbf16>
    tpu.vector_store %arg16[%c18_402, %c0_403], %1329 {strides = array<i32>} : memref<24x32xbf16, #tpu.memory_space<vmem>>, vector<3x32xbf16>,
    %1331 = vector.extract_strided_slice %763 {offsets = [21, 0], sizes = [3, 96], strides = [1, 1]} : vector<24x96xf32> to vector<3x96xf32>
    %1332 = arith.truncf %1331 : vector<3x96xf32> to vector<3x96xbf16>
    %1333 = vector.extract_strided_slice %1332 {offsets = [0, 0], sizes = [3, 8], strides = [1, 1]} : vector<3x96xbf16> to vector<3x8xbf16>
    %1334 = vector.extract_strided_slice %1332 {offsets = [0, 32], sizes = [3, 8], strides = [1, 1]} : vector<3x96xbf16> to vector<3x8xbf16>
    %1335 = vector.extract_strided_slice %1332 {offsets = [0, 64], sizes = [3, 8], strides = [1, 1]} : vector<3x96xbf16> to vector<3x8xbf16>
    %cst_404 = arith.constant dense<0.000000e+00> : vector<3x3xf32>
    %1336 = tpu.matmul %1333, %1334, %cst_404 {dimension_numbers = #tpu.dot_dimension_numbers<[1], [1], [0], [0], [0, 0, 1, 0], [], []>} : vector<3x8xbf16>, vector<3x8xbf16>, vector<3x3xf32> -> vector<3x3xf32>
    %cst_405 = arith.constant 0.353553385 : f32
    %1337 = vector.broadcast %cst_405 : f32 to vector<3x3xf32>
    %1338 = arith.mulf %1336, %1337 : vector<3x3xf32>
    %1339 = arith.addf %1338, %560 : vector<3x3xf32>
    %cst_406 = arith.constant dense<0xFF800000> : vector<3xf32>
    %1340 = vector.multi_reduction <maximumf>, %1339, %cst_406 [1] : vector<3x3xf32> to vector<3xf32>
    %1341 = vector.shape_cast %1340 : vector<3xf32> to vector<3x1xf32>
    %1342 = vector.broadcast %1341 : vector<3x1xf32> to vector<3x3xf32>
    %1343 = arith.subf %1339, %1342 : vector<3x3xf32>
    %1344 = math.exp %1343 : vector<3x3xf32>
    %cst_407 = arith.constant dense<0.000000e+00> : vector<3xf32>
    %1345 = vector.multi_reduction <add>, %1344, %cst_407 [1] : vector<3x3xf32> to vector<3xf32>
    %1346 = vector.shape_cast %1345 : vector<3xf32> to vector<3x1xf32>
    %1347 = tpu.reciprocal %1346 {approx = true} : vector<3x1xf32> -> vector<3x1xf32>
    %1348 = vector.broadcast %1347 : vector<3x1xf32> to vector<3x3xf32>
    %1349 = arith.mulf %1344, %1348 : vector<3x3xf32>
    %1350 = arith.truncf %1349 : vector<3x3xf32> to vector<3x3xbf16>
    %cst_408 = arith.constant dense<0.000000e+00> : vector<3x8xf32>
    %1351 = tpu.matmul %1350, %1335, %cst_408 {dimension_numbers = #tpu.dot_dimension_numbers<[1], [0], [0], [1], [0, 0, 1, 1], [], []>} : vector<3x3xbf16>, vector<3x8xbf16>, vector<3x8xf32> -> vector<3x8xf32>
    %1352 = vector.extract_strided_slice %1332 {offsets = [0, 8], sizes = [3, 8], strides = [1, 1]} : vector<3x96xbf16> to vector<3x8xbf16>
    %1353 = vector.extract_strided_slice %1332 {offsets = [0, 40], sizes = [3, 8], strides = [1, 1]} : vector<3x96xbf16> to vector<3x8xbf16>
    %1354 = vector.extract_strided_slice %1332 {offsets = [0, 72], sizes = [3, 8], strides = [1, 1]} : vector<3x96xbf16> to vector<3x8xbf16>
    %cst_409 = arith.constant dense<0.000000e+00> : vector<3x3xf32>
    %1355 = tpu.matmul %1352, %1353, %cst_409 {dimension_numbers = #tpu.dot_dimension_numbers<[1], [1], [0], [0], [0, 0, 1, 0], [], []>} : vector<3x8xbf16>, vector<3x8xbf16>, vector<3x3xf32> -> vector<3x3xf32>
    %cst_410 = arith.constant 0.353553385 : f32
    %1356 = vector.broadcast %cst_410 : f32 to vector<3x3xf32>
    %1357 = arith.mulf %1355, %1356 : vector<3x3xf32>
    %1358 = arith.addf %1357, %578 : vector<3x3xf32>
    %cst_411 = arith.constant dense<0xFF800000> : vector<3xf32>
    %1359 = vector.multi_reduction <maximumf>, %1358, %cst_411 [1] : vector<3x3xf32> to vector<3xf32>
    %1360 = vector.shape_cast %1359 : vector<3xf32> to vector<3x1xf32>
    %1361 = vector.broadcast %1360 : vector<3x1xf32> to vector<3x3xf32>
    %1362 = arith.subf %1358, %1361 : vector<3x3xf32>
    %1363 = math.exp %1362 : vector<3x3xf32>
    %cst_412 = arith.constant dense<0.000000e+00> : vector<3xf32>
    %1364 = vector.multi_reduction <add>, %1363, %cst_412 [1] : vector<3x3xf32> to vector<3xf32>
    %1365 = vector.shape_cast %1364 : vector<3xf32> to vector<3x1xf32>
    %1366 = tpu.reciprocal %1365 {approx = true} : vector<3x1xf32> -> vector<3x1xf32>
    %1367 = vector.broadcast %1366 : vector<3x1xf32> to vector<3x3xf32>
    %1368 = arith.mulf %1363, %1367 : vector<3x3xf32>
    %1369 = arith.truncf %1368 : vector<3x3xf32> to vector<3x3xbf16>
    %cst_413 = arith.constant dense<0.000000e+00> : vector<3x8xf32>
    %1370 = tpu.matmul %1369, %1354, %cst_413 {dimension_numbers = #tpu.dot_dimension_numbers<[1], [0], [0], [1], [0, 0, 1, 1], [], []>} : vector<3x3xbf16>, vector<3x8xbf16>, vector<3x8xf32> -> vector<3x8xf32>
    %1371 = vector.extract_strided_slice %1332 {offsets = [0, 16], sizes = [3, 8], strides = [1, 1]} : vector<3x96xbf16> to vector<3x8xbf16>
    %1372 = vector.extract_strided_slice %1332 {offsets = [0, 48], sizes = [3, 8], strides = [1, 1]} : vector<3x96xbf16> to vector<3x8xbf16>
    %1373 = vector.extract_strided_slice %1332 {offsets = [0, 80], sizes = [3, 8], strides = [1, 1]} : vector<3x96xbf16> to vector<3x8xbf16>
    %cst_414 = arith.constant dense<0.000000e+00> : vector<3x3xf32>
    %1374 = tpu.matmul %1371, %1372, %cst_414 {dimension_numbers = #tpu.dot_dimension_numbers<[1], [1], [0], [0], [0, 0, 1, 0], [], []>} : vector<3x8xbf16>, vector<3x8xbf16>, vector<3x3xf32> -> vector<3x3xf32>
    %cst_415 = arith.constant 0.353553385 : f32
    %1375 = vector.broadcast %cst_415 : f32 to vector<3x3xf32>
    %1376 = arith.mulf %1374, %1375 : vector<3x3xf32>
    %1377 = arith.addf %1376, %596 : vector<3x3xf32>
    %cst_416 = arith.constant dense<0xFF800000> : vector<3xf32>
    %1378 = vector.multi_reduction <maximumf>, %1377, %cst_416 [1] : vector<3x3xf32> to vector<3xf32>
    %1379 = vector.shape_cast %1378 : vector<3xf32> to vector<3x1xf32>
    %1380 = vector.broadcast %1379 : vector<3x1xf32> to vector<3x3xf32>
    %1381 = arith.subf %1377, %1380 : vector<3x3xf32>
    %1382 = math.exp %1381 : vector<3x3xf32>
    %cst_417 = arith.constant dense<0.000000e+00> : vector<3xf32>
    %1383 = vector.multi_reduction <add>, %1382, %cst_417 [1] : vector<3x3xf32> to vector<3xf32>
    %1384 = vector.shape_cast %1383 : vector<3xf32> to vector<3x1xf32>
    %1385 = tpu.reciprocal %1384 {approx = true} : vector<3x1xf32> -> vector<3x1xf32>
    %1386 = vector.broadcast %1385 : vector<3x1xf32> to vector<3x3xf32>
    %1387 = arith.mulf %1382, %1386 : vector<3x3xf32>
    %1388 = arith.truncf %1387 : vector<3x3xf32> to vector<3x3xbf16>
    %cst_418 = arith.constant dense<0.000000e+00> : vector<3x8xf32>
    %1389 = tpu.matmul %1388, %1373, %cst_418 {dimension_numbers = #tpu.dot_dimension_numbers<[1], [0], [0], [1], [0, 0, 1, 1], [], []>} : vector<3x3xbf16>, vector<3x8xbf16>, vector<3x8xf32> -> vector<3x8xf32>
    %1390 = vector.extract_strided_slice %1332 {offsets = [0, 24], sizes = [3, 8], strides = [1, 1]} : vector<3x96xbf16> to vector<3x8xbf16>
    %1391 = vector.extract_strided_slice %1332 {offsets = [0, 56], sizes = [3, 8], strides = [1, 1]} : vector<3x96xbf16> to vector<3x8xbf16>
    %1392 = vector.extract_strided_slice %1332 {offsets = [0, 88], sizes = [3, 8], strides = [1, 1]} : vector<3x96xbf16> to vector<3x8xbf16>
    %cst_419 = arith.constant dense<0.000000e+00> : vector<3x3xf32>
    %1393 = tpu.matmul %1390, %1391, %cst_419 {dimension_numbers = #tpu.dot_dimension_numbers<[1], [1], [0], [0], [0, 0, 1, 0], [], []>} : vector<3x8xbf16>, vector<3x8xbf16>, vector<3x3xf32> -> vector<3x3xf32>
    %cst_420 = arith.constant 0.353553385 : f32
    %1394 = vector.broadcast %cst_420 : f32 to vector<3x3xf32>
    %1395 = arith.mulf %1393, %1394 : vector<3x3xf32>
    %1396 = arith.addf %1395, %614 : vector<3x3xf32>
    %cst_421 = arith.constant dense<0xFF800000> : vector<3xf32>
    %1397 = vector.multi_reduction <maximumf>, %1396, %cst_421 [1] : vector<3x3xf32> to vector<3xf32>
    %1398 = vector.shape_cast %1397 : vector<3xf32> to vector<3x1xf32>
    %1399 = vector.broadcast %1398 : vector<3x1xf32> to vector<3x3xf32>
    %1400 = arith.subf %1396, %1399 : vector<3x3xf32>
    %1401 = math.exp %1400 : vector<3x3xf32>
    %cst_422 = arith.constant dense<0.000000e+00> : vector<3xf32>
    %1402 = vector.multi_reduction <add>, %1401, %cst_422 [1] : vector<3x3xf32> to vector<3xf32>
    %1403 = vector.shape_cast %1402 : vector<3xf32> to vector<3x1xf32>
    %1404 = tpu.reciprocal %1403 {approx = true} : vector<3x1xf32> -> vector<3x1xf32>
    %1405 = vector.broadcast %1404 : vector<3x1xf32> to vector<3x3xf32>
    %1406 = arith.mulf %1401, %1405 : vector<3x3xf32>
    %1407 = arith.truncf %1406 : vector<3x3xf32> to vector<3x3xbf16>
    %cst_423 = arith.constant dense<0.000000e+00> : vector<3x8xf32>
    %1408 = tpu.matmul %1407, %1392, %cst_423 {dimension_numbers = #tpu.dot_dimension_numbers<[1], [0], [0], [1], [0, 0, 1, 1], [], []>} : vector<3x3xbf16>, vector<3x8xbf16>, vector<3x8xf32> -> vector<3x8xf32>
    %1409 = tpu.concatenate %1351, %1370, %1389, %1408 in 1 : vector<3x8xf32>, vector<3x8xf32>, vector<3x8xf32>, vector<3x8xf32> -> vector<3x32xf32>
    %1410 = arith.truncf %1409 : vector<3x32xf32> to vector<3x32xbf16>
    %c21_424 = arith.constant 21 : index
    %c0_425 = arith.constant 0 : index
    %1411 = vector.load %arg16[%c21_424, %c0_425] : memref<24x32xbf16, #tpu.memory_space<vmem>>, vector<3x32xbf16>
    tpu.vector_store %arg16[%c21_424, %c0_425], %1410 {strides = array<i32>} : memref<24x32xbf16, #tpu.memory_space<vmem>>, vector<3x32xbf16>,
    %c0_426 = arith.constant 0 : index
    %c0_427 = arith.constant 0 : index
    %1412 = vector.load %arg16[%c0_426, %c0_427] : memref<24x32xbf16, #tpu.memory_space<vmem>>, vector<24x32xbf16>
    %c1_428 = arith.constant 1 : index
    %c0_429 = arith.constant 0 : index
    %c0_430 = arith.constant 0 : index
    %1413 = vector.load %arg5[%c1_428, %c0_429, %c0_430] : memref<2x32x32xbf16, #tpu.memory_space<vmem>>, vector<1x32x32xbf16>
    %1414 = vector.shape_cast %1413 : vector<1x32x32xbf16> to vector<32x32xbf16>
    %cst_431 = arith.constant dense<0.000000e+00> : vector<24x32xf32>
    %1415 = tpu.matmul %1412, %1414, %cst_431 {dimension_numbers = #tpu.dot_dimension_numbers<[1], [0], [0], [1], [0, 0, 1, 1], [], []>} : vector<24x32xbf16>, vector<32x32xbf16>, vector<24x32xf32> -> vector<24x32xf32>
    %c1_432 = arith.constant 1 : index
    %c0_433 = arith.constant 0 : index
    %c0_434 = arith.constant 0 : index
    %1416 = vector.load %arg6[%c1_432, %c0_433, %c0_434] : memref<2x1x32xf32, #tpu.memory_space<vmem>>, vector<1x1x32xf32>
    %1417 = vector.shape_cast %1416 : vector<1x1x32xf32> to vector<1x32xf32>
    %1418 = vector.broadcast %1417 : vector<1x32xf32> to vector<24x32xf32>
    %1419 = arith.addf %1415, %1418 : vector<24x32xf32>
    %1420 = arith.addf %755, %1419 : vector<24x32xf32>
    %c1_435 = arith.constant 1 : index
    %c0_436 = arith.constant 0 : index
    %c0_437 = arith.constant 0 : index
    %1421 = vector.load %arg7[%c1_435, %c0_436, %c0_437] : memref<2x1x32xf32, #tpu.memory_space<vmem>>, vector<1x1x32xf32>
    %1422 = vector.shape_cast %1421 : vector<1x1x32xf32> to vector<1x32xf32>
    %c1_438 = arith.constant 1 : index
    %c0_439 = arith.constant 0 : index
    %c0_440 = arith.constant 0 : index
    %1423 = vector.load %arg8[%c1_438, %c0_439, %c0_440] : memref<2x1x32xf32, #tpu.memory_space<vmem>>, vector<1x1x32xf32>
    %1424 = vector.shape_cast %1423 : vector<1x1x32xf32> to vector<1x32xf32>
    %cst_441 = arith.constant dense<0.000000e+00> : vector<32xf32>
    %1425 = vector.multi_reduction <add>, %1420, %cst_441 [0] : vector<24x32xf32> to vector<32xf32>
    %1426 = vector.shape_cast %1425 : vector<32xf32> to vector<1x32xf32>
    %cst_442 = arith.constant 2.400000e+01 : f32
    %1427 = vector.broadcast %cst_442 : f32 to vector<1x32xf32>
    %1428 = arith.divf %1426, %1427 : vector<1x32xf32>
    %1429 = arith.mulf %1420, %1420 : vector<24x32xf32>
    %cst_443 = arith.constant dense<0.000000e+00> : vector<32xf32>
    %1430 = vector.multi_reduction <add>, %1429, %cst_443 [0] : vector<24x32xf32> to vector<32xf32>
    %1431 = vector.shape_cast %1430 : vector<32xf32> to vector<1x32xf32>
    %cst_444 = arith.constant 2.400000e+01 : f32
    %1432 = vector.broadcast %cst_444 : f32 to vector<1x32xf32>
    %1433 = arith.divf %1431, %1432 : vector<1x32xf32>
    %1434 = arith.mulf %1428, %1428 : vector<1x32xf32>
    %1435 = arith.subf %1433, %1434 : vector<1x32xf32>
    %cst_445 = arith.constant 0.000000e+00 : f32
    %1436 = vector.broadcast %cst_445 : f32 to vector<1x32xf32>
    %1437 = arith.maximumf %1435, %1436 : vector<1x32xf32>
    %1438 = vector.broadcast %1428 : vector<1x32xf32> to vector<24x32xf32>
    %1439 = arith.subf %1420, %1438 : vector<24x32xf32>
    %cst_446 = arith.constant 9.99999974E-6 : f32
    %1440 = vector.broadcast %cst_446 : f32 to vector<1x32xf32>
    %1441 = arith.addf %1437, %1440 : vector<1x32xf32>
    %1442 = math.rsqrt %1441 : vector<1x32xf32>
    %1443 = vector.broadcast %1442 : vector<1x32xf32> to vector<24x32xf32>
    %1444 = arith.mulf %1439, %1443 : vector<24x32xf32>
    %1445 = vector.broadcast %1422 : vector<1x32xf32> to vector<24x32xf32>
    %1446 = arith.mulf %1444, %1445 : vector<24x32xf32>
    %1447 = vector.broadcast %1424 : vector<1x32xf32> to vector<24x32xf32>
    %1448 = arith.addf %1446, %1447 : vector<24x32xf32>
    %1449 = arith.truncf %1448 : vector<24x32xf32> to vector<24x32xbf16>
    %c1_447 = arith.constant 1 : index
    %c0_448 = arith.constant 0 : index
    %c0_449 = arith.constant 0 : index
    %1450 = vector.load %arg9[%c1_447, %c0_448, %c0_449] : memref<2x32x64xbf16, #tpu.memory_space<vmem>>, vector<1x32x64xbf16>
    %1451 = vector.shape_cast %1450 : vector<1x32x64xbf16> to vector<32x64xbf16>
    %cst_450 = arith.constant dense<0.000000e+00> : vector<24x64xf32>
    %1452 = tpu.matmul %1449, %1451, %cst_450 {dimension_numbers = #tpu.dot_dimension_numbers<[1], [0], [0], [1], [0, 0, 1, 1], [], []>} : vector<24x32xbf16>, vector<32x64xbf16>, vector<24x64xf32> -> vector<24x64xf32>
    %c1_451 = arith.constant 1 : index
    %c0_452 = arith.constant 0 : index
    %c0_453 = arith.constant 0 : index
    %1453 = vector.load %arg10[%c1_451, %c0_452, %c0_453] : memref<2x1x64xf32, #tpu.memory_space<vmem>>, vector<1x1x64xf32>
    %1454 = vector.shape_cast %1453 : vector<1x1x64xf32> to vector<1x64xf32>
    %1455 = vector.broadcast %1454 : vector<1x64xf32> to vector<24x64xf32>
    %1456 = arith.addf %1452, %1455 : vector<24x64xf32>
    %cst_454 = arith.constant 5.000000e-01 : f32
    %1457 = vector.broadcast %cst_454 : f32 to vector<24x64xf32>
    %1458 = arith.mulf %1457, %1456 : vector<24x64xf32>
    %cst_455 = arith.constant 0.707106769 : f32
    %1459 = vector.broadcast %cst_455 : f32 to vector<24x64xf32>
    %1460 = arith.mulf %1456, %1459 : vector<24x64xf32>
    %cst_456 = arith.constant 0.000000e+00 : f32
    %1461 = vector.broadcast %cst_456 : f32 to vector<24x64xf32>
    %1462 = arith.cmpf oge, %1460, %1461 : vector<24x64xf32>
    %cst_457 = arith.constant 1.000000e+00 : f32
    %cst_458 = arith.constant -1.000000e+00 : f32
    %1463 = vector.broadcast %cst_457 : f32 to vector<24x64xf32>
    %1464 = vector.broadcast %cst_458 : f32 to vector<24x64xf32>
    %1465 = arith.select %1462, %1463, %1464 : vector<24x64xi1>, vector<24x64xf32>
    %1466 = math.absf %1460 : vector<24x64xf32>
    %cst_459 = arith.constant 0.327591091 : f32
    %1467 = vector.broadcast %cst_459 : f32 to vector<24x64xf32>
    %1468 = arith.mulf %1467, %1466 : vector<24x64xf32>
    %cst_460 = arith.constant 1.000000e+00 : f32
    %1469 = vector.broadcast %cst_460 : f32 to vector<24x64xf32>
    %1470 = arith.addf %1469, %1468 : vector<24x64xf32>
    %1471 = tpu.reciprocal %1470 {approx = true} : vector<24x64xf32> -> vector<24x64xf32>
    %1472 = arith.mulf %1470, %1471 : vector<24x64xf32>
    %cst_461 = arith.constant 2.000000e+00 : f32
    %1473 = vector.broadcast %cst_461 : f32 to vector<24x64xf32>
    %1474 = arith.subf %1473, %1472 : vector<24x64xf32>
    %1475 = arith.mulf %1471, %1474 : vector<24x64xf32>
    %cst_462 = arith.constant 1.06140542 : f32
    %1476 = vector.broadcast %cst_462 : f32 to vector<24x64xf32>
    %1477 = arith.mulf %1476, %1475 : vector<24x64xf32>
    %cst_463 = arith.constant -1.45315206 : f32
    %1478 = vector.broadcast %cst_463 : f32 to vector<24x64xf32>
    %1479 = arith.addf %1477, %1478 : vector<24x64xf32>
    %1480 = arith.mulf %1479, %1475 : vector<24x64xf32>
    %cst_464 = arith.constant 1.42141378 : f32
    %1481 = vector.broadcast %cst_464 : f32 to vector<24x64xf32>
    %1482 = arith.addf %1480, %1481 : vector<24x64xf32>
    %1483 = arith.mulf %1482, %1475 : vector<24x64xf32>
    %cst_465 = arith.constant -0.284496725 : f32
    %1484 = vector.broadcast %cst_465 : f32 to vector<24x64xf32>
    %1485 = arith.addf %1483, %1484 : vector<24x64xf32>
    %1486 = arith.mulf %1485, %1475 : vector<24x64xf32>
    %cst_466 = arith.constant 0.254829586 : f32
    %1487 = vector.broadcast %cst_466 : f32 to vector<24x64xf32>
    %1488 = arith.addf %1486, %1487 : vector<24x64xf32>
    %1489 = arith.mulf %1488, %1475 : vector<24x64xf32>
    %cst_467 = arith.constant 0.000000e+00 : f32
    %1490 = vector.broadcast %cst_467 : f32 to vector<24x64xf32>
    %1491 = arith.subf %1490, %1466 : vector<24x64xf32>
    %1492 = arith.mulf %1491, %1466 : vector<24x64xf32>
    %1493 = math.exp %1492 : vector<24x64xf32>
    %1494 = arith.mulf %1489, %1493 : vector<24x64xf32>
    %cst_468 = arith.constant 1.000000e+00 : f32
    %1495 = vector.broadcast %cst_468 : f32 to vector<24x64xf32>
    %1496 = arith.subf %1495, %1494 : vector<24x64xf32>
    %1497 = arith.mulf %1465, %1496 : vector<24x64xf32>
    %cst_469 = arith.constant 1.000000e+00 : f32
    %1498 = vector.broadcast %cst_469 : f32 to vector<24x64xf32>
    %1499 = arith.addf %1498, %1497 : vector<24x64xf32>
    %1500 = arith.mulf %1458, %1499 : vector<24x64xf32>
    %1501 = arith.truncf %1500 : vector<24x64xf32> to vector<24x64xbf16>
    %c1_470 = arith.constant 1 : index
    %c0_471 = arith.constant 0 : index
    %c0_472 = arith.constant 0 : index
    %1502 = vector.load %arg11[%c1_470, %c0_471, %c0_472] : memref<2x64x32xbf16, #tpu.memory_space<vmem>>, vector<1x64x32xbf16>
    %1503 = vector.shape_cast %1502 : vector<1x64x32xbf16> to vector<64x32xbf16>
    %cst_473 = arith.constant dense<0.000000e+00> : vector<24x32xf32>
    %1504 = tpu.matmul %1501, %1503, %cst_473 {dimension_numbers = #tpu.dot_dimension_numbers<[1], [0], [0], [1], [0, 0, 1, 1], [], []>} : vector<24x64xbf16>, vector<64x32xbf16>, vector<24x32xf32> -> vector<24x32xf32>
    %c1_474 = arith.constant 1 : index
    %c0_475 = arith.constant 0 : index
    %c0_476 = arith.constant 0 : index
    %1505 = vector.load %arg12[%c1_474, %c0_475, %c0_476] : memref<2x1x32xf32, #tpu.memory_space<vmem>>, vector<1x1x32xf32>
    %1506 = vector.shape_cast %1505 : vector<1x1x32xf32> to vector<1x32xf32>
    %1507 = vector.broadcast %1506 : vector<1x32xf32> to vector<24x32xf32>
    %1508 = arith.addf %1504, %1507 : vector<24x32xf32>
    %1509 = arith.addf %1448, %1508 : vector<24x32xf32>
    %c1_477 = arith.constant 1 : index
    %c0_478 = arith.constant 0 : index
    %c0_479 = arith.constant 0 : index
    %1510 = vector.load %arg13[%c1_477, %c0_478, %c0_479] : memref<2x1x32xf32, #tpu.memory_space<vmem>>, vector<1x1x32xf32>
    %1511 = vector.shape_cast %1510 : vector<1x1x32xf32> to vector<1x32xf32>
    %c1_480 = arith.constant 1 : index
    %c0_481 = arith.constant 0 : index
    %c0_482 = arith.constant 0 : index
    %1512 = vector.load %arg14[%c1_480, %c0_481, %c0_482] : memref<2x1x32xf32, #tpu.memory_space<vmem>>, vector<1x1x32xf32>
    %1513 = vector.shape_cast %1512 : vector<1x1x32xf32> to vector<1x32xf32>
    %cst_483 = arith.constant dense<0.000000e+00> : vector<32xf32>
    %1514 = vector.multi_reduction <add>, %1509, %cst_483 [0] : vector<24x32xf32> to vector<32xf32>
    %1515 = vector.shape_cast %1514 : vector<32xf32> to vector<1x32xf32>
    %cst_484 = arith.constant 2.400000e+01 : f32
    %1516 = vector.broadcast %cst_484 : f32 to vector<1x32xf32>
    %1517 = arith.divf %1515, %1516 : vector<1x32xf32>
    %1518 = arith.mulf %1509, %1509 : vector<24x32xf32>
    %cst_485 = arith.constant dense<0.000000e+00> : vector<32xf32>
    %1519 = vector.multi_reduction <add>, %1518, %cst_485 [0] : vector<24x32xf32> to vector<32xf32>
    %1520 = vector.shape_cast %1519 : vector<32xf32> to vector<1x32xf32>
    %cst_486 = arith.constant 2.400000e+01 : f32
    %1521 = vector.broadcast %cst_486 : f32 to vector<1x32xf32>
    %1522 = arith.divf %1520, %1521 : vector<1x32xf32>
    %1523 = arith.mulf %1517, %1517 : vector<1x32xf32>
    %1524 = arith.subf %1522, %1523 : vector<1x32xf32>
    %cst_487 = arith.constant 0.000000e+00 : f32
    %1525 = vector.broadcast %cst_487 : f32 to vector<1x32xf32>
    %1526 = arith.maximumf %1524, %1525 : vector<1x32xf32>
    %1527 = vector.broadcast %1517 : vector<1x32xf32> to vector<24x32xf32>
    %1528 = arith.subf %1509, %1527 : vector<24x32xf32>
    %cst_488 = arith.constant 9.99999974E-6 : f32
    %1529 = vector.broadcast %cst_488 : f32 to vector<1x32xf32>
    %1530 = arith.addf %1526, %1529 : vector<1x32xf32>
    %1531 = math.rsqrt %1530 : vector<1x32xf32>
    %1532 = vector.broadcast %1531 : vector<1x32xf32> to vector<24x32xf32>
    %1533 = arith.mulf %1528, %1532 : vector<24x32xf32>
    %1534 = vector.broadcast %1511 : vector<1x32xf32> to vector<24x32xf32>
    %1535 = arith.mulf %1533, %1534 : vector<24x32xf32>
    %1536 = vector.broadcast %1513 : vector<1x32xf32> to vector<24x32xf32>
    %1537 = arith.addf %1535, %1536 : vector<24x32xf32>
    %c0_489 = arith.constant 0 : index
    %c0_490 = arith.constant 0 : index
    %1538 = vector.load %arg15[%c0_489, %c0_490] : memref<24x32xf32, #tpu.memory_space<vmem>>, vector<24x32xf32>
    tpu.vector_store %arg15[%c0_489, %c0_490], %1537 {strides = array<i32>} : memref<24x32xf32, #tpu.memory_space<vmem>>, vector<24x32xf32>,
    return
  }
}

</mosaic_0001>

<llo_original>
// kernel: tile.9
$region0: #{tile.9}
  %s0 = inlined_call_operand.vmem [shape: f32[8,3,32], index: 0, kind: input, shape index: {}]
  %s1 = inlined_call_operand.vmem [shape: f32[24,32], index: 1, kind: output, shape index: {}]
  $region1: #{tile.9} parent=0
    #allocation0 [shape = 'u8[32768]{0}', space=vmem, size = 0x8000, scoped, tag = 'scoped mem for input reshape']
    %s3 = sshllo.u32 0, 4
    %s4 = smul.addr 4, 7
    %s5 = scalar_lea.vmem %s0, %s4
    %v6 = vld [vmem:[%s5] sm:%s3]
    %s7 = scalar_lea.vmem [#allocation0], 56
    %8 = vst [vmem:[%s7] sm:%s3] %v6
    %s9 = smul.addr 4, 6
    %s10 = scalar_lea.vmem %s0, %s9
    %v11 = vld [vmem:[%s10] sm:%s3]
    %s12 = scalar_lea.vmem [#allocation0], 48
    %13 = vst [vmem:[%s12] sm:%s3] %v11
    %s14 = smul.addr 4, 5
    %s15 = scalar_lea.vmem %s0, %s14
    %v16 = vld [vmem:[%s15] sm:%s3]
    %s17 = scalar_lea.vmem [#allocation0], 40
    %18 = vst [vmem:[%s17] sm:%s3] %v16
    %s19 = smul.addr 4, 4
    %s20 = scalar_lea.vmem %s0, %s19
    %v21 = vld [vmem:[%s20] sm:%s3]
    %s22 = scalar_lea.vmem [#allocation0], 32
    %23 = vst [vmem:[%s22] sm:%s3] %v21
    %s24 = smul.addr 4, 3
    %s25 = scalar_lea.vmem %s0, %s24
    %v26 = vld [vmem:[%s25] sm:%s3]
    %s27 = scalar_lea.vmem [#allocation0], 24
    %28 = vst [vmem:[%s27] sm:%s3] %v26
    %s29 = smul.addr 4, 2
    %s30 = scalar_lea.vmem %s0, %s29
    %v31 = vld [vmem:[%s30] sm:%s3]
    %s32 = scalar_lea.vmem [#allocation0], 16
    %33 = vst [vmem:[%s32] sm:%s3] %v31
    %s34 = scalar_lea.vmem %s0, 4
    %v35 = vld [vmem:[%s34] sm:%s3]
    %s36 = scalar_lea.vmem [#allocation0], 8
    %37 = vst [vmem:[%s36] sm:%s3] %v35
    %v38 = vld [vmem:[%s0] sm:%s3]
    %39 = vst [vmem:[#allocation0] sm:%s3] %v38
    %v40 = vld [vmem:[#allocation0] sm:$0x7]
    %vm41 = vcmask 261120
    %42 = vst.msk [vmem:[%s1] sm:$0x7] %vm41, %v40
    %s43 = scalar_lea.vmem [#allocation0], 8
    %v44 = vld [vmem:[%s43] sm:$0x7]
    %vm45 = vcmask 261120
    %s46 = scalar_lea.vmem %s1, 3
    %47 = vst.msk [vmem:[%s46] sm:$0x7] %vm45, %v44
    %s48 = scalar_lea.vmem [#allocation0], 16
    %v49 = vld [vmem:[%s48] sm:$0x7]
    %vm50 = vcmask 261120
    %s51 = scalar_lea.vmem %s1, 6
    %52 = vst.msk [vmem:[%s51] sm:$0x7] %vm50, %v49
    %s53 = scalar_lea.vmem [#allocation0], 24
    %v54 = vld [vmem:[%s53] sm:$0x7]
    %vm55 = vcmask 261120
    %s56 = scalar_lea.vmem %s1, 9
    %57 = vst.msk [vmem:[%s56] sm:$0x7] %vm55, %v54
    %s58 = scalar_lea.vmem [#allocation0], 32
    %v59 = vld [vmem:[%s58] sm:$0x7]
    %vm60 = vcmask 261120
    %s61 = scalar_lea.vmem %s1, 12
    %62 = vst.msk [vmem:[%s61] sm:$0x7] %vm60, %v59
    %s63 = scalar_lea.vmem [#allocation0], 40
    %v64 = vld [vmem:[%s63] sm:$0x7]
    %vm65 = vcmask 261120
    %s66 = scalar_lea.vmem %s1, 15
    %67 = vst.msk [vmem:[%s66] sm:$0x7] %vm65, %v64
    %s68 = scalar_lea.vmem [#allocation0], 48
    %v69 = vld [vmem:[%s68] sm:$0x7]
    %vm70 = vcmask 261120
    %s71 = scalar_lea.vmem %s1, 18
    %72 = vst.msk [vmem:[%s71] sm:$0x7] %vm70, %v69
    %s73 = scalar_lea.vmem [#allocation0], 56
    %v74 = vld [vmem:[%s73] sm:$0x7]
    %vm75 = vcmask 261120
    %s76 = scalar_lea.vmem %s1, 21
    %77 = vst.msk [vmem:[%s76] sm:$0x7] %vm75, %v74

// kernel: _lambda_.1
$region0: #{_lambda_.1}
  #allocation0 [shape = 'u32[]', space=smem, size = 0x4, offset = 0x4, fixed_abs, tag = 'smem constant byte address 0x4 - core index']
  #allocation1 [shape = 'u32[144,128]{1,0:T(1,128)}', space=vmem, size = 0x12000, scoped, tag = 'internal scratch']
  #allocation2 [shape = 'bf16[24,32]{1,0:T(8,128)(2,1)}', space=vmem, size = 0x1800, scoped, tag = 'scratch operand']
  %s0 = inlined_call_operand.vmem [shape: f32[24,8], index: 0, kind: input, shape index: {}]
  %s1 = inlined_call_operand.vmem [shape: f32[24,32], index: 1, kind: input, shape index: {}]
  %s2 = inlined_call_operand.vmem [shape: bf16[8,32], index: 2, kind: input, shape index: {}]
  %s3 = inlined_call_operand.vmem [shape: bf16[2,32,96], index: 3, kind: input, shape index: {}]
  %s4 = inlined_call_operand.vmem [shape: f32[2,1,96], index: 4, kind: input, shape index: {}]
  %s5 = inlined_call_operand.vmem [shape: bf16[2,32,32], index: 5, kind: input, shape index: {}]
  %s6 = inlined_call_operand.vmem [shape: f32[2,1,32], index: 6, kind: input, shape index: {}]
  %s7 = inlined_call_operand.vmem [shape: f32[2,1,32], index: 7, kind: input, shape index: {}, may-alias: {7,13}]
  %s8 = inlined_call_operand.vmem [shape: f32[2,1,32], index: 8, kind: input, shape index: {}, may-alias: {8,14}]
  %s9 = inlined_call_operand.vmem [shape: bf16[2,32,64], index: 9, kind: input, shape index: {}]
  %s10 = inlined_call_operand.vmem [shape: f32[2,1,64], index: 10, kind: input, shape index: {}]
  %s11 = inlined_call_operand.vmem [shape: bf16[2,64,32], index: 11, kind: input, shape index: {}]
  %s12 = inlined_call_operand.vmem [shape: f32[2,1,32], index: 12, kind: input, shape index: {}]
  %s13 = inlined_call_operand.vmem [shape: f32[2,1,32], index: 13, kind: input, shape index: {}, may-alias: {7,13}]
  %s14 = inlined_call_operand.vmem [shape: f32[2,1,32], index: 14, kind: input, shape index: {}, may-alias: {8,14}]
  %s15 = inlined_call_operand.vmem [shape: f32[24,32], index: 15, kind: output, shape index: {}]
  %s16 = sld [smem:[#allocation0]]
  $region70: #{_lambda_.1} parent=0
    _
  %s18 = ssub.s32 1, %s16
  %s19 = scalar_select 0, %s18, %s16
  // Predicated region
  $region2: #{_lambda_.1} parent=0 // pred_check
    _
  $region3: #{_lambda_.1} parent=0 // pred_check_branch
    %21 = sbr.rel (0) target = $region5
  $region4: #{_lambda_.1} parent=0 // pred_region
    _
  $region5: #{_lambda_.1} parent=0 // pred_fallthru
    _
  // Predicated region
  $region6: #{_lambda_.1} parent=0 // pred_check
    _
  $region7: #{_lambda_.1} parent=0 // pred_check_branch
    %23 = sbr.rel (0) target = $region9
  $region8: #{_lambda_.1} parent=0 // pred_region
    _
  $region9: #{_lambda_.1} parent=0 // pred_fallthru
    _
  // Predicated region
  $region10: #{_lambda_.1} parent=0 // pred_check
    _
  $region11: #{_lambda_.1} parent=0 // pred_check_branch
    %25 = sbr.rel (0) target = $region13
  $region12: #{_lambda_.1} parent=0 // pred_region
    _
  $region13: #{_lambda_.1} parent=0 // pred_fallthru
    _
  // Predicated region
  $region14: #{_lambda_.1} parent=0 // pred_check
    _
  $region15: #{_lambda_.1} parent=0 // pred_check_branch
    %27 = sbr.rel (0) target = $region17
  $region16: #{_lambda_.1} parent=0 // pred_region
    _
  $region17: #{_lambda_.1} parent=0 // pred_fallthru
    _
  // Predicated region
  $region18: #{_lambda_.1} parent=0 // pred_check
    _
  $region19: #{_lambda_.1} parent=0 // pred_check_branch
    %29 = sbr.rel (0) target = $region21
  $region20: #{_lambda_.1} parent=0 // pred_region
    _
  $region21: #{_lambda_.1} parent=0 // pred_fallthru
    _
  // Predicated region
  $region22: #{_lambda_.1} parent=0 // pred_check
    _
  $region23: #{_lambda_.1} parent=0 // pred_check_branch
    %31 = sbr.rel (0) target = $region25
  $region24: #{_lambda_.1} parent=0 // pred_region
    _
  $region25: #{_lambda_.1} parent=0 // pred_fallthru
    _
  // Predicated region
  $region26: #{_lambda_.1} parent=0 // pred_check
    _
  $region27: #{_lambda_.1} parent=0 // pred_check_branch
    %33 = sbr.rel (0) target = $region29
  $region28: #{_lambda_.1} parent=0 // pred_region
    _
  $region29: #{_lambda_.1} parent=0 // pred_fallthru
    _
  // Predicated region
  $region30: #{_lambda_.1} parent=0 // pred_check
    _
  $region31: #{_lambda_.1} parent=0 // pred_check_branch
    %35 = sbr.rel (0) target = $region33
  $region32: #{_lambda_.1} parent=0 // pred_region
    _
  $region33: #{_lambda_.1} parent=0 // pred_fallthru
    _
  // Predicated region
  $region34: #{_lambda_.1} parent=0 // pred_check
    _
  $region35: #{_lambda_.1} parent=0 // pred_check_branch
    %37 = sbr.rel (0) target = $region37
  $region36: #{_lambda_.1} parent=0 // pred_region
    _
  $region37: #{_lambda_.1} parent=0 // pred_fallthru
    _
  // Predicated region
  $region38: #{_lambda_.1} parent=0 // pred_check
    _
  $region39: #{_lambda_.1} parent=0 // pred_check_branch
    %39 = sbr.rel (0) target = $region41
  $region40: #{_lambda_.1} parent=0 // pred_region
    _
  $region41: #{_lambda_.1} parent=0 // pred_fallthru
    _
  // Predicated region
  $region42: #{_lambda_.1} parent=0 // pred_check
    _
  $region43: #{_lambda_.1} parent=0 // pred_check_branch
    %41 = sbr.rel (0) target = $region45
  $region44: #{_lambda_.1} parent=0 // pred_region
    _
  $region45: #{_lambda_.1} parent=0 // pred_fallthru
    _
  // Predicated region
  $region46: #{_lambda_.1} parent=0 // pred_check
    _
  $region47: #{_lambda_.1} parent=0 // pred_check_branch
    %43 = sbr.rel (0) target = $region49
  $region48: #{_lambda_.1} parent=0 // pred_region
    _
  $region49: #{_lambda_.1} parent=0 // pred_fallthru
    _
  // Predicated region
  $region50: #{_lambda_.1} parent=0 // pred_check
    _
  $region51: #{_lambda_.1} parent=0 // pred_check_branch
    %45 = sbr.rel (0) target = $region53
  $region52: #{_lambda_.1} parent=0 // pred_region
    _
  $region53: #{_lambda_.1} parent=0 // pred_fallthru
    _
  // Predicated region
  $region54: #{_lambda_.1} parent=0 // pred_check
    _
  $region55: #{_lambda_.1} parent=0 // pred_check_branch
    %47 = sbr.rel (0) target = $region57
  $region56: #{_lambda_.1} parent=0 // pred_region
    _
  $region57: #{_lambda_.1} parent=0 // pred_fallthru
    _
  // Predicated region
  $region58: #{_lambda_.1} parent=0 // pred_check
    _
  $region59: #{_lambda_.1} parent=0 // pred_check_branch
    %49 = sbr.rel (0) target = $region61
  $region60: #{_lambda_.1} parent=0 // pred_region
    _
  $region61: #{_lambda_.1} parent=0 // pred_fallthru
    _
  %v51 = vld [vmem:[%s0] sm:$0xff]
  %v52 = vld [vmem:[%s0 + $0x8] sm:$0xff]
  %v53 = vld [vmem:[%s0 + $0x10] sm:$0xff]
  %v54 = vpack.c.bf16 %v52, %v51
  %v55 = vpack.c.bf16 %v53, %v53
  %v56 = vld [vmem:[%s2] sm:$0xf]
  %v57 = vld [vmem:[%s1] sm:$0xff]
  %v58 = vld [vmem:[%s1 + $0x8] sm:$0xff]
  %v59 = vld [vmem:[%s1 + $0x10] sm:$0xff]
  %vm60 = vcmask 64512
  %v62 = vsel %vm60, %v54, 0
  %v65 = vsel %vm60, %v55, 0
  %vm67 = vcmask 1043456
  %v69 = vsel %vm67, %v56, 0
  %71 = vmatprep.subr.bf16.mxu0 0
  %72 = vmatpush1.bf16.msra.mxu0 %v69
  %73 = vmatprep.subr.bf16.mxu0 0
  %74 = vmatpush1.bf16.msra.mxu0 0
  %75 = vmatprep.subr.bf16.mxu0 0
  %76 = vmatpush1.bf16.msra.mxu0 0
  %77 = vmatprep.subr.bf16.mxu0 0
  %78 = vmatpush1.bf16.msra.mxu0 0
  %79 = vmatprep.subr.bf16.mxu0 0
  %80 = vmatpush1.bf16.msra.mxu0 0
  %81 = vmatprep.subr.bf16.mxu0 0
  %82 = vmatpush1.bf16.msra.mxu0 0
  %83 = vmatprep.subr.bf16.mxu0 0
  %84 = vmatpush1.bf16.msra.mxu0 0
  %85 = vmatprep.subr.bf16.mxu0 0
  %86 = vmatpush1.bf16.msra.mxu0 0
  %87 = vmatprep.subr.bf16.mxu0 0
  %88 = vmatpush1.bf16.msra.mxu0 0
  %89 = vmatprep.subr.bf16.mxu0 0
  %90 = vmatpush1.bf16.msra.mxu0 0
  %91 = vmatprep.subr.bf16.mxu0 0
  %92 = vmatpush1.bf16.msra.mxu0 0
  %93 = vmatprep.subr.bf16.mxu0 0
  %94 = vmatpush1.bf16.msra.mxu0 0
  %95 = vmatprep.subr.bf16.mxu0 0
  %96 = vmatpush1.bf16.msra.mxu0 0
  %97 = vmatprep.subr.bf16.mxu0 0
  %98 = vmatpush1.bf16.msra.mxu0 0
  %99 = vmatprep.subr.bf16.mxu0 0
  %100 = vmatpush1.bf16.msra.mxu0 0
  %101 = vmatprep.subr.bf16.mxu0 0
  %102 = vmatpush1.bf16.msra.mxu0 0
  %103 = vmatprep.mubr.bf16.mxu0 0
  %104 = vmatmul.mubr.bf16.gmra.mrb[0].mxu0 %v62
  %v105 = vpop.f32.mrb[0].mxu0
  %v106 = vadd.f32 %v57, %v105
  %v107 = vpop.f32.mrb[0].mxu0
  %v108 = vpop.f32.mrb[0].mxu0
  %v109 = vadd.f32 %v58, %v108
  %v110 = vpop.f32.mrb[0].mxu0
  %111 = vmatprep.mubr.bf16.mxu0 0
  %112 = vmatmul.mubr.bf16.gmra.mrb[0].mxu0 %v65
  %v113 = vpop.f32.mrb[0].mxu0
  %v114 = vadd.f32 %v59, %v113
  %v115 = vpop.f32.mrb[0].mxu0
  %v116 = vpop.f32.mrb[0].mxu0
  %v117 = vpop.f32.mrb[0].mxu0
  %118 = vdwg.mxu0
  %v119 = vpack.c.bf16 %v109, %v106
  %v120 = vpack.c.bf16 %v114, %v114
  %v121 = vld [vmem:[%s3] sm:$0xf]
  %v122 = vld [vmem:[%s3 + $0x4] sm:$0xf]
  %v123 = vld [vmem:[%s3 + $0x8] sm:$0xf]
  %v124 = vld [vmem:[%s3 + $0xc] sm:$0xf]
  %v125 = vld [vmem:[%s4] sm:$0x1]
  %v127 = vlaneseq
  %v128 = vshrl.u32 %v127, 7
  %v129 = vsub.s32 0, %v128
  %v130 = vrot.slane %v125, %v129
  %v136 = vunpack.c.l.b16 %v121
  %v137 = vunpack.c.l.b16 %v122
  %v138 = vunpack.c.l.b16 %v123
  %v139 = vunpack.c.l.b16 %v124
  %v140 = vpack.c.b16 %v137, %v136
  %v141 = vpack.c.b16 %v139, %v138
  %vm144 = vcmask 261120
  %v146 = vsel %vm144, %v119, 0
  %v149 = vsel %vm144, %v120, 0
  %151 = vmatprep.subr.bf16.mxu0 0
  %152 = vmatpush1.bf16.msra.mxu0 %v140
  %153 = vmatprep.subr.bf16.mxu0 0
  %154 = vmatpush1.bf16.msra.mxu0 %v141
  %155 = vmatprep.subr.bf16.mxu0 0
  %156 = vmatpush1.bf16.msra.mxu0 0
  %157 = vmatprep.subr.bf16.mxu0 0
  %158 = vmatpush1.bf16.msra.mxu0 0
  %159 = vmatprep.subr.bf16.mxu0 0
  %160 = vmatpush1.bf16.msra.mxu0 0
  %161 = vmatprep.subr.bf16.mxu0 0
  %162 = vmatpush1.bf16.msra.mxu0 0
  %163 = vmatprep.subr.bf16.mxu0 0
  %164 = vmatpush1.bf16.msra.mxu0 0
  %165 = vmatprep.subr.bf16.mxu0 0
  %166 = vmatpush1.bf16.msra.mxu0 0
  %167 = vmatprep.subr.bf16.mxu0 0
  %168 = vmatpush1.bf16.msra.mxu0 0
  %169 = vmatprep.subr.bf16.mxu0 0
  %170 = vmatpush1.bf16.msra.mxu0 0
  %171 = vmatprep.subr.bf16.mxu0 0
  %172 = vmatpush1.bf16.msra.mxu0 0
  %173 = vmatprep.subr.bf16.mxu0 0
  %174 = vmatpush1.bf16.msra.mxu0 0
  %175 = vmatprep.subr.bf16.mxu0 0
  %176 = vmatpush1.bf16.msra.mxu0 0
  %177 = vmatprep.subr.bf16.mxu0 0
  %178 = vmatpush1.bf16.msra.mxu0 0
  %179 = vmatprep.subr.bf16.mxu0 0
  %180 = vmatpush1.bf16.msra.mxu0 0
  %181 = vmatprep.subr.bf16.mxu0 0
  %182 = vmatpush1.bf16.msra.mxu0 0
  %183 = vmatprep.mubr.bf16.mxu0 0
  %184 = vmatmul.mubr.bf16.gmra.mrb[0].mxu0 %v146
  %v185 = vpop.f32.mrb[0].mxu0
  %v186 = vadd.f32 %v130, %v185
  %v187 = vpop.f32.mrb[0].mxu0
  %v188 = vpop.f32.mrb[0].mxu0
  %v189 = vadd.f32 %v130, %v188
  %v190 = vpop.f32.mrb[0].mxu0
  %191 = vmatprep.mubr.bf16.mxu0 0
  %192 = vmatmul.mubr.bf16.gmra.mrb[0].mxu0 %v149
  %v193 = vpop.f32.mrb[0].mxu0
  %v194 = vadd.f32 %v130, %v193
  %v195 = vpop.f32.mrb[0].mxu0
  %v196 = vpop.f32.mrb[0].mxu0
  %v197 = vpop.f32.mrb[0].mxu0
  %198 = vdwg.mxu0
  %v199 = vpack.c.bf16 %v186, %v186
  %201 = vrot.lane.b32.xlu0 %v199, 96
  %v202 = vpop.permute.xlu0 %201
  %v204 = vsel %vm60, %v199, 0
  %v207 = vsel %vm60, %v202, 0
  %209 = vmatprep.subr.bf16.mxu0 0
  %210 = vmatpush1.bf16.xpose.msra.mxu0 %v207
  %211 = vmatprep.subr.bf16.mxu0 0
  %212 = vmatpush1.bf16.xpose.msra.mxu0 0
  %213 = vmatprep.subr.bf16.mxu0 0
  %214 = vmatpush1.bf16.xpose.msra.mxu0 0
  %215 = vmatprep.subr.bf16.mxu0 0
  %216 = vmatpush1.bf16.xpose.msra.mxu0 0
  %217 = vmatprep.subr.bf16.mxu0 0
  %218 = vmatpush1.bf16.xpose.msra.mxu0 0
  %219 = vmatprep.subr.bf16.mxu0 0
  %220 = vmatpush1.bf16.xpose.msra.mxu0 0
  %221 = vmatprep.subr.bf16.mxu0 0
  %222 = vmatpush1.bf16.xpose.msra.mxu0 0
  %223 = vmatprep.subr.bf16.mxu0 0
  %224 = vmatpush1.bf16.xpose.msra.mxu0 0
  %225 = vmatprep.subr.bf16.mxu0 0
  %226 = vmatpush1.bf16.xpose.msra.mxu0 0
  %227 = vmatprep.subr.bf16.mxu0 0
  %228 = vmatpush1.bf16.xpose.msra.mxu0 0
  %229 = vmatprep.subr.bf16.mxu0 0
  %230 = vmatpush1.bf16.xpose.msra.mxu0 0
  %231 = vmatprep.subr.bf16.mxu0 0
  %232 = vmatpush1.bf16.xpose.msra.mxu0 0
  %233 = vmatprep.subr.bf16.mxu0 0
  %234 = vmatpush1.bf16.xpose.msra.mxu0 0
  %235 = vmatprep.subr.bf16.mxu0 0
  %236 = vmatpush1.bf16.xpose.msra.mxu0 0
  %237 = vmatprep.subr.bf16.mxu0 0
  %238 = vmatpush1.bf16.xpose.msra.mxu0 0
  %239 = vmatprep.subr.bf16.mxu0 0
  %240 = vmatpush1.bf16.xpose.msra.mxu0 0
  %241 = vmatprep.mubr.bf16.mxu0 0
  %242 = vmatmul.mubr.bf16.gmra.mrb[0].mxu0 %v204
  %v243 = vpop.f32.mrb[0].mxu0
  %v244 = vadd.f32 0.0, %v243
  %v245 = vpop.f32.mrb[0].mxu0
  %v246 = vpop.f32.mrb[0].mxu0
  %v247 = vpop.f32.mrb[0].mxu0
  %248 = vdwg.mxu0
  %v249 = vmul.f32 %v244, 0.35355338
  %vm250 = vcmask 18432
  %v251 = vsel %vm250, %v249, -inf
  %252 = vmax.xlane.f32.xlu0 %v251
  %v253 = vpop.xlane.xlu0 %252
  %v254 = vsub.f32 %v249, %v253
  %v255 = vmul.f32 %v254, 1.442695
  %v256 = vpow.pop %v255
  %v257 = vsel %vm250, %v256, 0.0
  %258 = vadd.xlane.f32.xlu0 %v257
  %v259 = vpop.xlane.xlu0 %258
  %v260 = vrcp.pop %v259
  %v261 = vmul.f32 %v256, %v260
  %v262 = vpack.c.bf16 %v261, %v261
  %263 = vrot.lane.b32.xlu0 %v199, 64
  %v264 = vpop.permute.xlu0 %263
  %vm265 = vcmask 23552
  %v267 = vsel %vm265, %v262, 0
  %vm269 = vcmask 1040384
  %vm270 = vcmask 1041408
  %v271 = vsel %vm269, 4294967295, 65535
  %v272 = vsel %vm270, %v271, 0
  %v274 = vand.u32 %v264, %v272
  %276 = vmatprep.subr.bf16.mxu0 0
  %277 = vmatpush1.bf16.msra.mxu0 %v274
  %278 = vmatprep.subr.bf16.mxu0 0
  %279 = vmatpush1.bf16.msra.mxu0 0
  %280 = vmatprep.subr.bf16.mxu0 0
  %281 = vmatpush1.bf16.msra.mxu0 0
  %282 = vmatprep.subr.bf16.mxu0 0
  %283 = vmatpush1.bf16.msra.mxu0 0
  %284 = vmatprep.subr.bf16.mxu0 0
  %285 = vmatpush1.bf16.msra.mxu0 0
  %286 = vmatprep.subr.bf16.mxu0 0
  %287 = vmatpush1.bf16.msra.mxu0 0
  %288 = vmatprep.subr.bf16.mxu0 0
  %289 = vmatpush1.bf16.msra.mxu0 0
  %290 = vmatprep.subr.bf16.mxu0 0
  %291 = vmatpush1.bf16.msra.mxu0 0
  %292 = vmatprep.subr.bf16.mxu0 0
  %293 = vmatpush1.bf16.msra.mxu0 0
  %294 = vmatprep.subr.bf16.mxu0 0
  %295 = vmatpush1.bf16.msra.mxu0 0
  %296 = vmatprep.subr.bf16.mxu0 0
  %297 = vmatpush1.bf16.msra.mxu0 0
  %298 = vmatprep.subr.bf16.mxu0 0
  %299 = vmatpush1.bf16.msra.mxu0 0
  %300 = vmatprep.subr.bf16.mxu0 0
  %301 = vmatpush1.bf16.msra.mxu0 0
  %302 = vmatprep.subr.bf16.mxu0 0
  %303 = vmatpush1.bf16.msra.mxu0 0
  %304 = vmatprep.subr.bf16.mxu0 0
  %305 = vmatpush1.bf16.msra.mxu0 0
  %306 = vmatprep.subr.bf16.mxu0 0
  %307 = vmatpush1.bf16.msra.mxu0 0
  %308 = vmatprep.mubr.bf16.mxu0 0
  %309 = vmatmul.mubr.bf16.gmra.mrb[0].mxu0 %v267
  %v310 = vpop.f32.mrb[0].mxu0
  %v311 = vadd.f32 0.0, %v310
  %v312 = vpop.f32.mrb[0].mxu0
  %v313 = vpop.f32.mrb[0].mxu0
  %v314 = vpop.f32.mrb[0].mxu0
  %315 = vdwg.mxu0
  %316 = vrot.lane.b32.xlu0 %v199, 120
  %v317 = vpop.permute.xlu0 %316
  %318 = vrot.lane.b32.xlu0 %v199, 88
  %v319 = vpop.permute.xlu0 %318
  %v321 = vsel %vm60, %v317, 0
  %v324 = vsel %vm60, %v319, 0
  %326 = vmatprep.subr.bf16.mxu0 0
  %327 = vmatpush1.bf16.xpose.msra.mxu0 %v324
  %328 = vmatprep.subr.bf16.mxu0 0
  %329 = vmatpush1.bf16.xpose.msra.mxu0 0
  %330 = vmatprep.subr.bf16.mxu0 0
  %331 = vmatpush1.bf16.xpose.msra.mxu0 0
  %332 = vmatprep.subr.bf16.mxu0 0
  %333 = vmatpush1.bf16.xpose.msra.mxu0 0
  %334 = vmatprep.subr.bf16.mxu0 0
  %335 = vmatpush1.bf16.xpose.msra.mxu0 0
  %336 = vmatprep.subr.bf16.mxu0 0
  %337 = vmatpush1.bf16.xpose.msra.mxu0 0
  %338 = vmatprep.subr.bf16.mxu0 0
  %339 = vmatpush1.bf16.xpose.msra.mxu0 0
  %340 = vmatprep.subr.bf16.mxu0 0
  %341 = vmatpush1.bf16.xpose.msra.mxu0 0
  %342 = vmatprep.subr.bf16.mxu0 0
  %343 = vmatpush1.bf16.xpose.msra.mxu0 0
  %344 = vmatprep.subr.bf16.mxu0 0
  %345 = vmatpush1.bf16.xpose.msra.mxu0 0
  %346 = vmatprep.subr.bf16.mxu0 0
  %347 = vmatpush1.bf16.xpose.msra.mxu0 0
  %348 = vmatprep.subr.bf16.mxu0 0
  %349 = vmatpush1.bf16.xpose.msra.mxu0 0
  %350 = vmatprep.subr.bf16.mxu0 0
  %351 = vmatpush1.bf16.xpose.msra.mxu0 0
  %352 = vmatprep.subr.bf16.mxu0 0
  %353 = vmatpush1.bf16.xpose.msra.mxu0 0
  %354 = vmatprep.subr.bf16.mxu0 0
  %355 = vmatpush1.bf16.xpose.msra.mxu0 0
  %356 = vmatprep.subr.bf16.mxu0 0
  %357 = vmatpush1.bf16.xpose.msra.mxu0 0
  %358 = vmatprep.mubr.bf16.mxu0 0
  %359 = vmatmul.mubr.bf16.gmra.mrb[0].mxu0 %v321
  %v360 = vpop.f32.mrb[0].mxu0
  %v361 = vadd.f32 0.0, %v360
  %v362 = vpop.f32.mrb[0].mxu0
  %v363 = vpop.f32.mrb[0].mxu0
  %v364 = vpop.f32.mrb[0].mxu0
  %365 = vdwg.mxu0
  %v366 = vmul.f32 %v361, 0.35355338
  %v367 = vsel %vm250, %v366, -inf
  %368 = vmax.xlane.f32.xlu0 %v367
  %v369 = vpop.xlane.xlu0 %368
  %v370 = vsub.f32 %v366, %v369
  %v371 = vmul.f32 %v370, 1.442695
  %v372 = vpow.pop %v371
  %v373 = vsel %vm250, %v372, 0.0
  %374 = vadd.xlane.f32.xlu0 %v373
  %v375 = vpop.xlane.xlu0 %374
  %v376 = vrcp.pop %v375
  %v377 = vmul.f32 %v372, %v376
  %v378 = vpack.c.bf16 %v377, %v377
  %379 = vrot.lane.b32.xlu0 %v199, 56
  %v380 = vpop.permute.xlu0 %379
  %v382 = vsel %vm265, %v378, 0
  %v385 = vand.u32 %v380, %v272
  %387 = vmatprep.subr.bf16.mxu0 0
  %388 = vmatpush1.bf16.msra.mxu0 %v385
  %389 = vmatprep.subr.bf16.mxu0 0
  %390 = vmatpush1.bf16.msra.mxu0 0
  %391 = vmatprep.subr.bf16.mxu0 0
  %392 = vmatpush1.bf16.msra.mxu0 0
  %393 = vmatprep.subr.bf16.mxu0 0
  %394 = vmatpush1.bf16.msra.mxu0 0
  %395 = vmatprep.subr.bf16.mxu0 0
  %396 = vmatpush1.bf16.msra.mxu0 0
  %397 = vmatprep.subr.bf16.mxu0 0
  %398 = vmatpush1.bf16.msra.mxu0 0
  %399 = vmatprep.subr.bf16.mxu0 0
  %400 = vmatpush1.bf16.msra.mxu0 0
  %401 = vmatprep.subr.bf16.mxu0 0
  %402 = vmatpush1.bf16.msra.mxu0 0
  %403 = vmatprep.subr.bf16.mxu0 0
  %404 = vmatpush1.bf16.msra.mxu0 0
  %405 = vmatprep.subr.bf16.mxu0 0
  %406 = vmatpush1.bf16.msra.mxu0 0
  %407 = vmatprep.subr.bf16.mxu0 0
  %408 = vmatpush1.bf16.msra.mxu0 0
  %409 = vmatprep.subr.bf16.mxu0 0
  %410 = vmatpush1.bf16.msra.mxu0 0
  %411 = vmatprep.subr.bf16.mxu0 0
  %412 = vmatpush1.bf16.msra.mxu0 0
  %413 = vmatprep.subr.bf16.mxu0 0
  %414 = vmatpush1.bf16.msra.mxu0 0
  %415 = vmatprep.subr.bf16.mxu0 0
  %416 = vmatpush1.bf16.msra.mxu0 0
  %417 = vmatprep.subr.bf16.mxu0 0
  %418 = vmatpush1.bf16.msra.mxu0 0
  %419 = vmatprep.mubr.bf16.mxu0 0
  %420 = vmatmul.mubr.bf16.gmra.mrb[0].mxu0 %v382
  %v421 = vpop.f32.mrb[0].mxu0
  %v422 = vadd.f32 0.0, %v421
  %v423 = vpop.f32.mrb[0].mxu0
  %v424 = vpop.f32.mrb[0].mxu0
  %v425 = vpop.f32.mrb[0].mxu0
  %426 = vdwg.mxu0
  %427 = vrot.lane.b32.xlu0 %v199, 112
  %v428 = vpop.permute.xlu0 %427
  %429 = vrot.lane.b32.xlu0 %v199, 80
  %v430 = vpop.permute.xlu0 %429
  %v432 = vsel %vm60, %v428, 0
  %v435 = vsel %vm60, %v430, 0
  %437 = vmatprep.subr.bf16.mxu0 0
  %438 = vmatpush1.bf16.xpose.msra.mxu0 %v435
  %439 = vmatprep.subr.bf16.mxu0 0
  %440 = vmatpush1.bf16.xpose.msra.mxu0 0
  %441 = vmatprep.subr.bf16.mxu0 0
  %442 = vmatpush1.bf16.xpose.msra.mxu0 0
  %443 = vmatprep.subr.bf16.mxu0 0
  %444 = vmatpush1.bf16.xpose.msra.mxu0 0
  %445 = vmatprep.subr.bf16.mxu0 0
  %446 = vmatpush1.bf16.xpose.msra.mxu0 0
  %447 = vmatprep.subr.bf16.mxu0 0
  %448 = vmatpush1.bf16.xpose.msra.mxu0 0
  %449 = vmatprep.subr.bf16.mxu0 0
  %450 = vmatpush1.bf16.xpose.msra.mxu0 0
  %451 = vmatprep.subr.bf16.mxu0 0
  %452 = vmatpush1.bf16.xpose.msra.mxu0 0
  %453 = vmatprep.subr.bf16.mxu0 0
  %454 = vmatpush1.bf16.xpose.msra.mxu0 0
  %455 = vmatprep.subr.bf16.mxu0 0
  %456 = vmatpush1.bf16.xpose.msra.mxu0 0
  %457 = vmatprep.subr.bf16.mxu0 0
  %458 = vmatpush1.bf16.xpose.msra.mxu0 0
  %459 = vmatprep.subr.bf16.mxu0 0
  %460 = vmatpush1.bf16.xpose.msra.mxu0 0
  %461 = vmatprep.subr.bf16.mxu0 0
  %462 = vmatpush1.bf16.xpose.msra.mxu0 0
  %463 = vmatprep.subr.bf16.mxu0 0
  %464 = vmatpush1.bf16.xpose.msra.mxu0 0
  %465 = vmatprep.subr.bf16.mxu0 0
  %466 = vmatpush1.bf16.xpose.msra.mxu0 0
  %467 = vmatprep.subr.bf16.mxu0 0
  %468 = vmatpush1.bf16.xpose.msra.mxu0 0
  %469 = vmatprep.mubr.bf16.mxu0 0
  %470 = vmatmul.mubr.bf16.gmra.mrb[0].mxu0 %v432
  %v471 = vpop.f32.mrb[0].mxu0
  %v472 = vadd.f32 0.0, %v471
  %v473 = vpop.f32.mrb[0].mxu0
  %v474 = vpop.f32.mrb[0].mxu0
  %v475 = vpop.f32.mrb[0].mxu0
  %476 = vdwg.mxu0
  %v477 = vmul.f32 %v472, 0.35355338
  %v478 = vsel %vm250, %v477, -inf
  %479 = vmax.xlane.f32.xlu0 %v478
  %v480 = vpop.xlane.xlu0 %479
  %v481 = vsub.f32 %v477, %v480
  %v482 = vmul.f32 %v481, 1.442695
  %v483 = vpow.pop %v482
  %v484 = vsel %vm250, %v483, 0.0
  %485 = vadd.xlane.f32.xlu0 %v484
  %v486 = vpop.xlane.xlu0 %485
  %v487 = vrcp.pop %v486
  %v488 = vmul.f32 %v483, %v487
  %v489 = vpack.c.bf16 %v488, %v488
  %490 = vrot.lane.b32.xlu0 %v199, 48
  %v491 = vpop.permute.xlu0 %490
  %v493 = vsel %vm265, %v489, 0
  %v496 = vand.u32 %v491, %v272
  %498 = vmatprep.subr.bf16.mxu0 0
  %499 = vmatpush1.bf16.msra.mxu0 %v496
  %500 = vmatprep.subr.bf16.mxu0 0
  %501 = vmatpush1.bf16.msra.mxu0 0
  %502 = vmatprep.subr.bf16.mxu0 0
  %503 = vmatpush1.bf16.msra.mxu0 0
  %504 = vmatprep.subr.bf16.mxu0 0
  %505 = vmatpush1.bf16.msra.mxu0 0
  %506 = vmatprep.subr.bf16.mxu0 0
  %507 = vmatpush1.bf16.msra.mxu0 0
  %508 = vmatprep.subr.bf16.mxu0 0
  %509 = vmatpush1.bf16.msra.mxu0 0
  %510 = vmatprep.subr.bf16.mxu0 0
  %511 = vmatpush1.bf16.msra.mxu0 0
  %512 = vmatprep.subr.bf16.mxu0 0
  %513 = vmatpush1.bf16.msra.mxu0 0
  %514 = vmatprep.subr.bf16.mxu0 0
  %515 = vmatpush1.bf16.msra.mxu0 0
  %516 = vmatprep.subr.bf16.mxu0 0
  %517 = vmatpush1.bf16.msra.mxu0 0
  %518 = vmatprep.subr.bf16.mxu0 0
  %519 = vmatpush1.bf16.msra.mxu0 0
  %520 = vmatprep.subr.bf16.mxu0 0
  %521 = vmatpush1.bf16.msra.mxu0 0
  %522 = vmatprep.subr.bf16.mxu0 0
  %523 = vmatpush1.bf16.msra.mxu0 0
  %524 = vmatprep.subr.bf16.mxu0 0
  %525 = vmatpush1.bf16.msra.mxu0 0
  %526 = vmatprep.subr.bf16.mxu0 0
  %527 = vmatpush1.bf16.msra.mxu0 0
  %528 = vmatprep.subr.bf16.mxu0 0
  %529 = vmatpush1.bf16.msra.mxu0 0
  %530 = vmatprep.mubr.bf16.mxu0 0
  %531 = vmatmul.mubr.bf16.gmra.mrb[0].mxu0 %v493
  %v532 = vpop.f32.mrb[0].mxu0
  %v533 = vadd.f32 0.0, %v532
  %v534 = vpop.f32.mrb[0].mxu0
  %v535 = vpop.f32.mrb[0].mxu0
  %v536 = vpop.f32.mrb[0].mxu0
  %537 = vdwg.mxu0
  %538 = vrot.lane.b32.xlu0 %v199, 104
  %v539 = vpop.permute.xlu0 %538
  %540 = vrot.lane.b32.xlu0 %v199, 72
  %v541 = vpop.permute.xlu0 %540
  %v543 = vsel %vm60, %v539, 0
  %v546 = vsel %vm60, %v541, 0
  %548 = vmatprep.subr.bf16.mxu0 0
  %549 = vmatpush1.bf16.xpose.msra.mxu0 %v546
  %550 = vmatprep.subr.bf16.mxu0 0
  %551 = vmatpush1.bf16.xpose.msra.mxu0 0
  %552 = vmatprep.subr.bf16.mxu0 0
  %553 = vmatpush1.bf16.xpose.msra.mxu0 0
  %554 = vmatprep.subr.bf16.mxu0 0
  %555 = vmatpush1.bf16.xpose.msra.mxu0 0
  %556 = vmatprep.subr.bf16.mxu0 0
  %557 = vmatpush1.bf16.xpose.msra.mxu0 0
  %558 = vmatprep.subr.bf16.mxu0 0
  %559 = vmatpush1.bf16.xpose.msra.mxu0 0
  %560 = vmatprep.subr.bf16.mxu0 0
  %561 = vmatpush1.bf16.xpose.msra.mxu0 0
  %562 = vmatprep.subr.bf16.mxu0 0
  %563 = vmatpush1.bf16.xpose.msra.mxu0 0
  %564 = vmatprep.subr.bf16.mxu0 0
  %565 = vmatpush1.bf16.xpose.msra.mxu0 0
  %566 = vmatprep.subr.bf16.mxu0 0
  %567 = vmatpush1.bf16.xpose.msra.mxu0 0
  %568 = vmatprep.subr.bf16.mxu0 0
  %569 = vmatpush1.bf16.xpose.msra.mxu0 0
  %570 = vmatprep.subr.bf16.mxu0 0
  %571 = vmatpush1.bf16.xpose.msra.mxu0 0
  %572 = vmatprep.subr.bf16.mxu0 0
  %573 = vmatpush1.bf16.xpose.msra.mxu0 0
  %574 = vmatprep.subr.bf16.mxu0 0
  %575 = vmatpush1.bf16.xpose.msra.mxu0 0
  %576 = vmatprep.subr.bf16.mxu0 0
  %577 = vmatpush1.bf16.xpose.msra.mxu0 0
  %578 = vmatprep.subr.bf16.mxu0 0
  %579 = vmatpush1.bf16.xpose.msra.mxu0 0
  %580 = vmatprep.mubr.bf16.mxu0 0
  %581 = vmatmul.mubr.bf16.gmra.mrb[0].mxu0 %v543
  %v582 = vpop.f32.mrb[0].mxu0
  %v583 = vadd.f32 0.0, %v582
  %v584 = vpop.f32.mrb[0].mxu0
  %v585 = vpop.f32.mrb[0].mxu0
  %v586 = vpop.f32.mrb[0].mxu0
  %587 = vdwg.mxu0
  %v588 = vmul.f32 %v583, 0.35355338
  %v589 = vsel %vm250, %v588, -inf
  %590 = vmax.xlane.f32.xlu0 %v589
  %v591 = vpop.xlane.xlu0 %590
  %v592 = vsub.f32 %v588, %v591
  %v593 = vmul.f32 %v592, 1.442695
  %v594 = vpow.pop %v593
  %v595 = vsel %vm250, %v594, 0.0
  %596 = vadd.xlane.f32.xlu0 %v595
  %v597 = vpop.xlane.xlu0 %596
  %v598 = vrcp.pop %v597
  %v599 = vmul.f32 %v594, %v598
  %v600 = vpack.c.bf16 %v599, %v599
  %601 = vrot.lane.b32.xlu0 %v199, 40
  %v602 = vpop.permute.xlu0 %601
  %v604 = vsel %vm265, %v600, 0
  %v607 = vand.u32 %v602, %v272
  %609 = vmatprep.subr.bf16.mxu0 0
  %610 = vmatpush1.bf16.msra.mxu0 %v607
  %611 = vmatprep.subr.bf16.mxu0 0
  %612 = vmatpush1.bf16.msra.mxu0 0
  %613 = vmatprep.subr.bf16.mxu0 0
  %614 = vmatpush1.bf16.msra.mxu0 0
  %615 = vmatprep.subr.bf16.mxu0 0
  %616 = vmatpush1.bf16.msra.mxu0 0
  %617 = vmatprep.subr.bf16.mxu0 0
  %618 = vmatpush1.bf16.msra.mxu0 0
  %619 = vmatprep.subr.bf16.mxu0 0
  %620 = vmatpush1.bf16.msra.mxu0 0
  %621 = vmatprep.subr.bf16.mxu0 0
  %622 = vmatpush1.bf16.msra.mxu0 0
  %623 = vmatprep.subr.bf16.mxu0 0
  %624 = vmatpush1.bf16.msra.mxu0 0
  %625 = vmatprep.subr.bf16.mxu0 0
  %626 = vmatpush1.bf16.msra.mxu0 0
  %627 = vmatprep.subr.bf16.mxu0 0
  %628 = vmatpush1.bf16.msra.mxu0 0
  %629 = vmatprep.subr.bf16.mxu0 0
  %630 = vmatpush1.bf16.msra.mxu0 0
  %631 = vmatprep.subr.bf16.mxu0 0
  %632 = vmatpush1.bf16.msra.mxu0 0
  %633 = vmatprep.subr.bf16.mxu0 0
  %634 = vmatpush1.bf16.msra.mxu0 0
  %635 = vmatprep.subr.bf16.mxu0 0
  %636 = vmatpush1.bf16.msra.mxu0 0
  %637 = vmatprep.subr.bf16.mxu0 0
  %638 = vmatpush1.bf16.msra.mxu0 0
  %639 = vmatprep.subr.bf16.mxu0 0
  %640 = vmatpush1.bf16.msra.mxu0 0
  %641 = vmatprep.mubr.bf16.mxu0 0
  %642 = vmatmul.mubr.bf16.gmra.mrb[0].mxu0 %v604
  %v643 = vpop.f32.mrb[0].mxu0
  %v644 = vadd.f32 0.0, %v643
  %v645 = vpop.f32.mrb[0].mxu0
  %v646 = vpop.f32.mrb[0].mxu0
  %v647 = vpop.f32.mrb[0].mxu0
  %648 = vdwg.mxu0
  %650 = vrot.lane.b32.xlu0 %v422, 8
  %v651 = vpop.permute.xlu0 %650
  %654 = vrot.lane.b32.xlu0 %v533, 16
  %v655 = vpop.permute.xlu0 %654
  %658 = vrot.lane.b32.xlu0 %v644, 24
  %v659 = vpop.permute.xlu0 %658
  %v661 = vsel %vm60, %v311, %v651
  %vm662 = vcmask 130048
  %v663 = vsel %vm662, %v661, %v655
  %vm664 = vcmask 195584
  %v665 = vsel %vm664, %v663, %v659
  %v666 = vpack.c.bf16 %v665, %v665
  %vm667 = vcmask 254976
  %vm668 = vsmask.f32 1280
  %vm669 = vmand %vm667, %vm668
  %v670 = vld [vmem:[#allocation2] sm:$0x3]
  %v671 = vsel %vm669, %v666, %v670
  %672 = vst [vmem:[#allocation2] sm:$0x3] %v671
  %v673 = vshrl.u32 %v199, 16
  %v675 = vrot.slane %v673, 1
  %v676 = vshll.u32 %v199, 16
  %v678 = vrot.slane %v676, 2
  %v679 = vor.u32 %v675, %v678
  %680 = vrot.lane.b32.xlu0 %v679, 96
  %v681 = vpop.permute.xlu0 %680
  %v683 = vsel %vm60, %v679, 0
  %v686 = vsel %vm60, %v681, 0
  %688 = vmatprep.subr.bf16.mxu0 0
  %689 = vmatpush1.bf16.xpose.msra.mxu0 %v686
  %690 = vmatprep.subr.bf16.mxu0 0
  %691 = vmatpush1.bf16.xpose.msra.mxu0 0
  %692 = vmatprep.subr.bf16.mxu0 0
  %693 = vmatpush1.bf16.xpose.msra.mxu0 0
  %694 = vmatprep.subr.bf16.mxu0 0
  %695 = vmatpush1.bf16.xpose.msra.mxu0 0
  %696 = vmatprep.subr.bf16.mxu0 0
  %697 = vmatpush1.bf16.xpose.msra.mxu0 0
  %698 = vmatprep.subr.bf16.mxu0 0
  %699 = vmatpush1.bf16.xpose.msra.mxu0 0
  %700 = vmatprep.subr.bf16.mxu0 0
  %701 = vmatpush1.bf16.xpose.msra.mxu0 0
  %702 = vmatprep.subr.bf16.mxu0 0
  %703 = vmatpush1.bf16.xpose.msra.mxu0 0
  %704 = vmatprep.subr.bf16.mxu0 0
  %705 = vmatpush1.bf16.xpose.msra.mxu0 0
  %706 = vmatprep.subr.bf16.mxu0 0
  %707 = vmatpush1.bf16.xpose.msra.mxu0 0
  %708 = vmatprep.subr.bf16.mxu0 0
  %709 = vmatpush1.bf16.xpose.msra.mxu0 0
  %710 = vmatprep.subr.bf16.mxu0 0
  %711 = vmatpush1.bf16.xpose.msra.mxu0 0
  %712 = vmatprep.subr.bf16.mxu0 0
  %713 = vmatpush1.bf16.xpose.msra.mxu0 0
  %714 = vmatprep.subr.bf16.mxu0 0
  %715 = vmatpush1.bf16.xpose.msra.mxu0 0
  %716 = vmatprep.subr.bf16.mxu0 0
  %717 = vmatpush1.bf16.xpose.msra.mxu0 0
  %718 = vmatprep.subr.bf16.mxu0 0
  %719 = vmatpush1.bf16.xpose.msra.mxu0 0
  %720 = vmatprep.mubr.bf16.mxu0 0
  %721 = vmatmul.mubr.bf16.gmra.mrb[0].mxu0 %v683
  %v722 = vpop.f32.mrb[0].mxu0
  %v723 = vadd.f32 0.0, %v722
  %v724 = vpop.f32.mrb[0].mxu0
  %v725 = vpop.f32.mrb[0].mxu0
  %v726 = vpop.f32.mrb[0].mxu0
  %727 = vdwg.mxu0
  %v728 = vmul.f32 %v723, 0.35355338
  %v729 = vsel %vm250, %v728, -inf
  %730 = vmax.xlane.f32.xlu0 %v729
  %v731 = vpop.xlane.xlu0 %730
  %v732 = vsub.f32 %v728, %v731
  %v733 = vmul.f32 %v732, 1.442695
  %v734 = vpow.pop %v733
  %v735 = vsel %vm250, %v734, 0.0
  %736 = vadd.xlane.f32.xlu0 %v735
  %v737 = vpop.xlane.xlu0 %736
  %v738 = vrcp.pop %v737
  %v739 = vmul.f32 %v734, %v738
  %v740 = vpack.c.bf16 %v739, %v739
  %741 = vrot.lane.b32.xlu0 %v679, 64
  %v742 = vpop.permute.xlu0 %741
  %v744 = vsel %vm265, %v740, 0
  %v747 = vand.u32 %v742, %v272
  %749 = vmatprep.subr.bf16.mxu0 0
  %750 = vmatpush1.bf16.msra.mxu0 %v747
  %751 = vmatprep.subr.bf16.mxu0 0
  %752 = vmatpush1.bf16.msra.mxu0 0
  %753 = vmatprep.subr.bf16.mxu0 0
  %754 = vmatpush1.bf16.msra.mxu0 0
  %755 = vmatprep.subr.bf16.mxu0 0
  %756 = vmatpush1.bf16.msra.mxu0 0
  %757 = vmatprep.subr.bf16.mxu0 0
  %758 = vmatpush1.bf16.msra.mxu0 0
  %759 = vmatprep.subr.bf16.mxu0 0
  %760 = vmatpush1.bf16.msra.mxu0 0
  %761 = vmatprep.subr.bf16.mxu0 0
  %762 = vmatpush1.bf16.msra.mxu0 0
  %763 = vmatprep.subr.bf16.mxu0 0
  %764 = vmatpush1.bf16.msra.mxu0 0
  %765 = vmatprep.subr.bf16.mxu0 0
  %766 = vmatpush1.bf16.msra.mxu0 0
  %767 = vmatprep.subr.bf16.mxu0 0
  %768 = vmatpush1.bf16.msra.mxu0 0
  %769 = vmatprep.subr.bf16.mxu0 0
  %770 = vmatpush1.bf16.msra.mxu0 0
  %771 = vmatprep.subr.bf16.mxu0 0
  %772 = vmatpush1.bf16.msra.mxu0 0
  %773 = vmatprep.subr.bf16.mxu0 0
  %774 = vmatpush1.bf16.msra.mxu0 0
  %775 = vmatprep.subr.bf16.mxu0 0
  %776 = vmatpush1.bf16.msra.mxu0 0
  %777 = vmatprep.subr.bf16.mxu0 0
  %778 = vmatpush1.bf16.msra.mxu0 0
  %779 = vmatprep.subr.bf16.mxu0 0
  %780 = vmatpush1.bf16.msra.mxu0 0
  %781 = vmatprep.mubr.bf16.mxu0 0
  %782 = vmatmul.mubr.bf16.gmra.mrb[0].mxu0 %v744
  %v783 = vpop.f32.mrb[0].mxu0
  %v784 = vadd.f32 0.0, %v783
  %v785 = vpop.f32.mrb[0].mxu0
  %v786 = vpop.f32.mrb[0].mxu0
  %v787 = vpop.f32.mrb[0].mxu0
  %788 = vdwg.mxu0
  %789 = vrot.lane.b32.xlu0 %v679, 120
  %v790 = vpop.permute.xlu0 %789
  %791 = vrot.lane.b32.xlu0 %v679, 88
  %v792 = vpop.permute.xlu0 %791
  %v794 = vsel %vm60, %v790, 0
  %v797 = vsel %vm60, %v792, 0
  %799 = vmatprep.subr.bf16.mxu0 0
  %800 = vmatpush1.bf16.xpose.msra.mxu0 %v797
  %801 = vmatprep.subr.bf16.mxu0 0
  %802 = vmatpush1.bf16.xpose.msra.mxu0 0
  %803 = vmatprep.subr.bf16.mxu0 0
  %804 = vmatpush1.bf16.xpose.msra.mxu0 0
  %805 = vmatprep.subr.bf16.mxu0 0
  %806 = vmatpush1.bf16.xpose.msra.mxu0 0
  %807 = vmatprep.subr.bf16.mxu0 0
  %808 = vmatpush1.bf16.xpose.msra.mxu0 0
  %809 = vmatprep.subr.bf16.mxu0 0
  %810 = vmatpush1.bf16.xpose.msra.mxu0 0
  %811 = vmatprep.subr.bf16.mxu0 0
  %812 = vmatpush1.bf16.xpose.msra.mxu0 0
  %813 = vmatprep.subr.bf16.mxu0 0
  %814 = vmatpush1.bf16.xpose.msra.mxu0 0
  %815 = vmatprep.subr.bf16.mxu0 0
  %816 = vmatpush1.bf16.xpose.msra.mxu0 0
  %817 = vmatprep.subr.bf16.mxu0 0
  %818 = vmatpush1.bf16.xpose.msra.mxu0 0
  %819 = vmatprep.subr.bf16.mxu0 0
  %820 = vmatpush1.bf16.xpose.msra.mxu0 0
  %821 = vmatprep.subr.bf16.mxu0 0
  %822 = vmatpush1.bf16.xpose.msra.mxu0 0
  %823 = vmatprep.subr.bf16.mxu0 0
  %824 = vmatpush1.bf16.xpose.msra.mxu0 0
  %825 = vmatprep.subr.bf16.mxu0 0
  %826 = vmatpush1.bf16.xpose.msra.mxu0 0
  %827 = vmatprep.subr.bf16.mxu0 0
  %828 = vmatpush1.bf16.xpose.msra.mxu0 0
  %829 = vmatprep.subr.bf16.mxu0 0
  %830 = vmatpush1.bf16.xpose.msra.mxu0 0
  %831 = vmatprep.mubr.bf16.mxu0 0
  %832 = vmatmul.mubr.bf16.gmra.mrb[0].mxu0 %v794
  %v833 = vpop.f32.mrb[0].mxu0
  %v834 = vadd.f32 0.0, %v833
  %v835 = vpop.f32.mrb[0].mxu0
  %v836 = vpop.f32.mrb[0].mxu0
  %v837 = vpop.f32.mrb[0].mxu0
  %838 = vdwg.mxu0
  %v839 = vmul.f32 %v834, 0.35355338
  %v840 = vsel %vm250, %v839, -inf
  %841 = vmax.xlane.f32.xlu0 %v840
  %v842 = vpop.xlane.xlu0 %841
  %v843 = vsub.f32 %v839, %v842
  %v844 = vmul.f32 %v843, 1.442695
  %v845 = vpow.pop %v844
  %v846 = vsel %vm250, %v845, 0.0
  %847 = vadd.xlane.f32.xlu0 %v846
  %v848 = vpop.xlane.xlu0 %847
  %v849 = vrcp.pop %v848
  %v850 = vmul.f32 %v845, %v849
  %v851 = vpack.c.bf16 %v850, %v850
  %852 = vrot.lane.b32.xlu0 %v679, 56
  %v853 = vpop.permute.xlu0 %852
  %v855 = vsel %vm265, %v851, 0
  %v858 = vand.u32 %v853, %v272
  %860 = vmatprep.subr.bf16.mxu0 0
  %861 = vmatpush1.bf16.msra.mxu0 %v858
  %862 = vmatprep.subr.bf16.mxu0 0
  %863 = vmatpush1.bf16.msra.mxu0 0
  %864 = vmatprep.subr.bf16.mxu0 0
  %865 = vmatpush1.bf16.msra.mxu0 0
  %866 = vmatprep.subr.bf16.mxu0 0
  %867 = vmatpush1.bf16.msra.mxu0 0
  %868 = vmatprep.subr.bf16.mxu0 0
  %869 = vmatpush1.bf16.msra.mxu0 0
  %870 = vmatprep.subr.bf16.mxu0 0
  %871 = vmatpush1.bf16.msra.mxu0 0
  %872 = vmatprep.subr.bf16.mxu0 0
  %873 = vmatpush1.bf16.msra.mxu0 0
  %874 = vmatprep.subr.bf16.mxu0 0
  %875 = vmatpush1.bf16.msra.mxu0 0
  %876 = vmatprep.subr.bf16.mxu0 0
  %877 = vmatpush1.bf16.msra.mxu0 0
  %878 = vmatprep.subr.bf16.mxu0 0
  %879 = vmatpush1.bf16.msra.mxu0 0
  %880 = vmatprep.subr.bf16.mxu0 0
  %881 = vmatpush1.bf16.msra.mxu0 0
  %882 = vmatprep.subr.bf16.mxu0 0
  %883 = vmatpush1.bf16.msra.mxu0 0
  %884 = vmatprep.subr.bf16.mxu0 0
  %885 = vmatpush1.bf16.msra.mxu0 0
  %886 = vmatprep.subr.bf16.mxu0 0
  %887 = vmatpush1.bf16.msra.mxu0 0
  %888 = vmatprep.subr.bf16.mxu0 0
  %889 = vmatpush1.bf16.msra.mxu0 0
  %890 = vmatprep.subr.bf16.mxu0 0
  %891 = vmatpush1.bf16.msra.mxu0 0
  %892 = vmatprep.mubr.bf16.mxu0 0
  %893 = vmatmul.mubr.bf16.gmra.mrb[0].mxu0 %v855
  %v894 = vpop.f32.mrb[0].mxu0
  %v895 = vadd.f32 0.0, %v894
  %v896 = vpop.f32.mrb[0].mxu0
  %v897 = vpop.f32.mrb[0].mxu0
  %v898 = vpop.f32.mrb[0].mxu0
  %899 = vdwg.mxu0
  %900 = vrot.lane.b32.xlu0 %v679, 112
  %v901 = vpop.permute.xlu0 %900
  %902 = vrot.lane.b32.xlu0 %v679, 80
  %v903 = vpop.permute.xlu0 %902
  %v905 = vsel %vm60, %v901, 0
  %v908 = vsel %vm60, %v903, 0
  %910 = vmatprep.subr.bf16.mxu0 0
  %911 = vmatpush1.bf16.xpose.msra.mxu0 %v908
  %912 = vmatprep.subr.bf16.mxu0 0
  %913 = vmatpush1.bf16.xpose.msra.mxu0 0
  %914 = vmatprep.subr.bf16.mxu0 0
  %915 = vmatpush1.bf16.xpose.msra.mxu0 0
  %916 = vmatprep.subr.bf16.mxu0 0
  %917 = vmatpush1.bf16.xpose.msra.mxu0 0
  %918 = vmatprep.subr.bf16.mxu0 0
  %919 = vmatpush1.bf16.xpose.msra.mxu0 0
  %920 = vmatprep.subr.bf16.mxu0 0
  %921 = vmatpush1.bf16.xpose.msra.mxu0 0
  %922 = vmatprep.subr.bf16.mxu0 0
  %923 = vmatpush1.bf16.xpose.msra.mxu0 0
  %924 = vmatprep.subr.bf16.mxu0 0
  %925 = vmatpush1.bf16.xpose.msra.mxu0 0
  %926 = vmatprep.subr.bf16.mxu0 0
  %927 = vmatpush1.bf16.xpose.msra.mxu0 0
  %928 = vmatprep.subr.bf16.mxu0 0
  %929 = vmatpush1.bf16.xpose.msra.mxu0 0
  %930 = vmatprep.subr.bf16.mxu0 0
  %931 = vmatpush1.bf16.xpose.msra.mxu0 0
  %932 = vmatprep.subr.bf16.mxu0 0
  %933 = vmatpush1.bf16.xpose.msra.mxu0 0
  %934 = vmatprep.subr.bf16.mxu0 0
  %935 = vmatpush1.bf16.xpose.msra.mxu0 0
  %936 = vmatprep.subr.bf16.mxu0 0
  %937 = vmatpush1.bf16.xpose.msra.mxu0 0
  %938 = vmatprep.subr.bf16.mxu0 0
  %939 = vmatpush1.bf16.xpose.msra.mxu0 0
  %940 = vmatprep.subr.bf16.mxu0 0
  %941 = vmatpush1.bf16.xpose.msra.mxu0 0
  %942 = vmatprep.mubr.bf16.mxu0 0
  %943 = vmatmul.mubr.bf16.gmra.mrb[0].mxu0 %v905
  %v944 = vpop.f32.mrb[0].mxu0
  %v945 = vadd.f32 0.0, %v944
  %v946 = vpop.f32.mrb[0].mxu0
  %v947 = vpop.f32.mrb[0].mxu0
  %v948 = vpop.f32.mrb[0].mxu0
  %949 = vdwg.mxu0
  %v950 = vmul.f32 %v945, 0.35355338
  %v951 = vsel %vm250, %v950, -inf
  %952 = vmax.xlane.f32.xlu0 %v951
  %v953 = vpop.xlane.xlu0 %952
  %v954 = vsub.f32 %v950, %v953
  %v955 = vmul.f32 %v954, 1.442695
  %v956 = vpow.pop %v955
  %v957 = vsel %vm250, %v956, 0.0
  %958 = vadd.xlane.f32.xlu0 %v957
  %v959 = vpop.xlane.xlu0 %958
  %v960 = vrcp.pop %v959
  %v961 = vmul.f32 %v956, %v960
  %v962 = vpack.c.bf16 %v961, %v961
  %963 = vrot.lane.b32.xlu0 %v679, 48
  %v964 = vpop.permute.xlu0 %963
  %v966 = vsel %vm265, %v962, 0
  %v969 = vand.u32 %v964, %v272
  %971 = vmatprep.subr.bf16.mxu0 0
  %972 = vmatpush1.bf16.msra.mxu0 %v969
  %973 = vmatprep.subr.bf16.mxu0 0
  %974 = vmatpush1.bf16.msra.mxu0 0
  %975 = vmatprep.subr.bf16.mxu0 0
  %976 = vmatpush1.bf16.msra.mxu0 0
  %977 = vmatprep.subr.bf16.mxu0 0
  %978 = vmatpush1.bf16.msra.mxu0 0
  %979 = vmatprep.subr.bf16.mxu0 0
  %980 = vmatpush1.bf16.msra.mxu0 0
  %981 = vmatprep.subr.bf16.mxu0 0
  %982 = vmatpush1.bf16.msra.mxu0 0
  %983 = vmatprep.subr.bf16.mxu0 0
  %984 = vmatpush1.bf16.msra.mxu0 0
  %985 = vmatprep.subr.bf16.mxu0 0
  %986 = vmatpush1.bf16.msra.mxu0 0
  %987 = vmatprep.subr.bf16.mxu0 0
  %988 = vmatpush1.bf16.msra.mxu0 0
  %989 = vmatprep.subr.bf16.mxu0 0
  %990 = vmatpush1.bf16.msra.mxu0 0
  %991 = vmatprep.subr.bf16.mxu0 0
  %992 = vmatpush1.bf16.msra.mxu0 0
  %993 = vmatprep.subr.bf16.mxu0 0
  %994 = vmatpush1.bf16.msra.mxu0 0
  %995 = vmatprep.subr.bf16.mxu0 0
  %996 = vmatpush1.bf16.msra.mxu0 0
  %997 = vmatprep.subr.bf16.mxu0 0
  %998 = vmatpush1.bf16.msra.mxu0 0
  %999 = vmatprep.subr.bf16.mxu0 0
  %1000 = vmatpush1.bf16.msra.mxu0 0
  %1001 = vmatprep.subr.bf16.mxu0 0
  %1002 = vmatpush1.bf16.msra.mxu0 0
  %1003 = vmatprep.mubr.bf16.mxu0 0
  %1004 = vmatmul.mubr.bf16.gmra.mrb[0].mxu0 %v966
  %v1005 = vpop.f32.mrb[0].mxu0
  %v1006 = vadd.f32 0.0, %v1005
  %v1007 = vpop.f32.mrb[0].mxu0
  %v1008 = vpop.f32.mrb[0].mxu0
  %v1009 = vpop.f32.mrb[0].mxu0
  %1010 = vdwg.mxu0
  %1011 = vrot.lane.b32.xlu0 %v679, 104
  %v1012 = vpop.permute.xlu0 %1011
  %1013 = vrot.lane.b32.xlu0 %v679, 72
  %v1014 = vpop.permute.xlu0 %1013
  %v1016 = vsel %vm60, %v1012, 0
  %v1019 = vsel %vm60, %v1014, 0
  %1021 = vmatprep.subr.bf16.mxu0 0
  %1022 = vmatpush1.bf16.xpose.msra.mxu0 %v1019
  %1023 = vmatprep.subr.bf16.mxu0 0
  %1024 = vmatpush1.bf16.xpose.msra.mxu0 0
  %1025 = vmatprep.subr.bf16.mxu0 0
  %1026 = vmatpush1.bf16.xpose.msra.mxu0 0
  %1027 = vmatprep.subr.bf16.mxu0 0
  %1028 = vmatpush1.bf16.xpose.msra.mxu0 0
  %1029 = vmatprep.subr.bf16.mxu0 0
  %1030 = vmatpush1.bf16.xpose.msra.mxu0 0
  %1031 = vmatprep.subr.bf16.mxu0 0
  %1032 = vmatpush1.bf16.xpose.msra.mxu0 0
  %1033 = vmatprep.subr.bf16.mxu0 0
  %1034 = vmatpush1.bf16.xpose.msra.mxu0 0
  %1035 = vmatprep.subr.bf16.mxu0 0
  %1036 = vmatpush1.bf16.xpose.msra.mxu0 0
  %1037 = vmatprep.subr.bf16.mxu0 0
  %1038 = vmatpush1.bf16.xpose.msra.mxu0 0
  %1039 = vmatprep.subr.bf16.mxu0 0
  %1040 = vmatpush1.bf16.xpose.msra.mxu0 0
  %1041 = vmatprep.subr.bf16.mxu0 0
  %1042 = vmatpush1.bf16.xpose.msra.mxu0 0
  %1043 = vmatprep.subr.bf16.mxu0 0
  %1044 = vmatpush1.bf16.xpose.msra.mxu0 0
  %1045 = vmatprep.subr.bf16.mxu0 0
  %1046 = vmatpush1.bf16.xpose.msra.mxu0 0
  %1047 = vmatprep.subr.bf16.mxu0 0
  %1048 = vmatpush1.bf16.xpose.msra.mxu0 0
  %1049 = vmatprep.subr.bf16.mxu0 0
  %1050 = vmatpush1.bf16.xpose.msra.mxu0 0
  %1051 = vmatprep.subr.bf16.mxu0 0
  %1052 = vmatpush1.bf16.xpose.msra.mxu0 0
  %1053 = vmatprep.mubr.bf16.mxu0 0
  %1054 = vmatmul.mubr.bf16.gmra.mrb[0].mxu0 %v1016
  %v1055 = vpop.f32.mrb[0].mxu0
  %v1056 = vadd.f32 0.0, %v1055
  %v1057 = vpop.f32.mrb[0].mxu0
  %v1058 = vpop.f32.mrb[0].mxu0
  %v1059 = vpop.f32.mrb[0].mxu0
  %1060 = vdwg.mxu0
  %v1061 = vmul.f32 %v1056, 0.35355338
  %v1062 = vsel %vm250, %v1061, -inf
  %1063 = vmax.xlane.f32.xlu0 %v1062
  %v1064 = vpop.xlane.xlu0 %1063
  %v1065 = vsub.f32 %v1061, %v1064
  %v1066 = vmul.f32 %v1065, 1.442695
  %v1067 = vpow.pop %v1066
  %v1068 = vsel %vm250, %v1067, 0.0
  %1069 = vadd.xlane.f32.xlu0 %v1068
  %v1070 = vpop.xlane.xlu0 %1069
  %v1071 = vrcp.pop %v1070
  %v1072 = vmul.f32 %v1067, %v1071
  %v1073 = vpack.c.bf16 %v1072, %v1072
  %1074 = vrot.lane.b32.xlu0 %v679, 40
  %v1075 = vpop.permute.xlu0 %1074
  %v1077 = vsel %vm265, %v1073, 0
  %v1080 = vand.u32 %v1075, %v272
  %1082 = vmatprep.subr.bf16.mxu0 0
  %1083 = vmatpush1.bf16.msra.mxu0 %v1080
  %1084 = vmatprep.subr.bf16.mxu0 0
  %1085 = vmatpush1.bf16.msra.mxu0 0
  %1086 = vmatprep.subr.bf16.mxu0 0
  %1087 = vmatpush1.bf16.msra.mxu0 0
  %1088 = vmatprep.subr.bf16.mxu0 0
  %1089 = vmatpush1.bf16.msra.mxu0 0
  %1090 = vmatprep.subr.bf16.mxu0 0
  %1091 = vmatpush1.bf16.msra.mxu0 0
  %1092 = vmatprep.subr.bf16.mxu0 0
  %1093 = vmatpush1.bf16.msra.mxu0 0
  %1094 = vmatprep.subr.bf16.mxu0 0
  %1095 = vmatpush1.bf16.msra.mxu0 0
  %1096 = vmatprep.subr.bf16.mxu0 0
  %1097 = vmatpush1.bf16.msra.mxu0 0
  %1098 = vmatprep.subr.bf16.mxu0 0
  %1099 = vmatpush1.bf16.msra.mxu0 0
  %1100 = vmatprep.subr.bf16.mxu0 0
  %1101 = vmatpush1.bf16.msra.mxu0 0
  %1102 = vmatprep.subr.bf16.mxu0 0
  %1103 = vmatpush1.bf16.msra.mxu0 0
  %1104 = vmatprep.subr.bf16.mxu0 0
  %1105 = vmatpush1.bf16.msra.mxu0 0
  %1106 = vmatprep.subr.bf16.mxu0 0
  %1107 = vmatpush1.bf16.msra.mxu0 0
  %1108 = vmatprep.subr.bf16.mxu0 0
  %1109 = vmatpush1.bf16.msra.mxu0 0
  %1110 = vmatprep.subr.bf16.mxu0 0
  %1111 = vmatpush1.bf16.msra.mxu0 0
  %1112 = vmatprep.subr.bf16.mxu0 0
  %1113 = vmatpush1.bf16.msra.mxu0 0
  %1114 = vmatprep.mubr.bf16.mxu0 0
  %1115 = vmatmul.mubr.bf16.gmra.mrb[0].mxu0 %v1077
  %v1116 = vpop.f32.mrb[0].mxu0
  %v1117 = vadd.f32 0.0, %v1116
  %v1118 = vpop.f32.mrb[0].mxu0
  %v1119 = vpop.f32.mrb[0].mxu0
  %v1120 = vpop.f32.mrb[0].mxu0
  %1121 = vdwg.mxu0
  %1123 = vrot.lane.b32.xlu0 %v895, 8
  %v1124 = vpop.permute.xlu0 %1123
  %1127 = vrot.lane.b32.xlu0 %v1006, 16
  %v1128 = vpop.permute.xlu0 %1127
  %1131 = vrot.lane.b32.xlu0 %v1117, 24
  %v1132 = vpop.permute.xlu0 %1131
  %v1134 = vsel %vm60, %v784, %v1124
  %v1135 = vsel %vm662, %v1134, %v1128
  %v1136 = vsel %vm664, %v1135, %v1132
  %v1137 = vpack.c.bf16 %v1136, %v1136
  %v1139 = vunpack.c.l.b16 %v1137
  %v1140 = vpack.c.b16 %v1139, %v1139
  %v1142 = vshrl.u32 %v1140, 16
  %v1144 = vrot.slane %v1142, 6
  %v1145 = vshll.u32 %v1140, 16
  %v1147 = vrot.slane %v1145, 7
  %v1148 = vor.u32 %v1144, %v1147
  %vm1150 = vcmask 256001
  %vm1151 = vsmask.f32 7942
  %vm1152 = vmand %vm1150, %vm1151
  %v1153 = vld [vmem:[#allocation2] sm:$0x6]
  %v1154 = vsel %vm1152, %v1148, %v1153
  %1155 = vst [vmem:[#allocation2] sm:$0x6] %v1154
  %v1156 = vpack.c.bf16 %v189, %v186
  %v1158 = vrot.slane %v1156, 3
  %1159 = vrot.lane.b32.xlu0 %v1158, 96
  %v1160 = vpop.permute.xlu0 %1159
  %v1162 = vsel %vm60, %v1158, 0
  %v1165 = vsel %vm60, %v1160, 0
  %1167 = vmatprep.subr.bf16.mxu0 0
  %1168 = vmatpush1.bf16.xpose.msra.mxu0 %v1165
  %1169 = vmatprep.subr.bf16.mxu0 0
  %1170 = vmatpush1.bf16.xpose.msra.mxu0 0
  %1171 = vmatprep.subr.bf16.mxu0 0
  %1172 = vmatpush1.bf16.xpose.msra.mxu0 0
  %1173 = vmatprep.subr.bf16.mxu0 0
  %1174 = vmatpush1.bf16.xpose.msra.mxu0 0
  %1175 = vmatprep.subr.bf16.mxu0 0
  %1176 = vmatpush1.bf16.xpose.msra.mxu0 0
  %1177 = vmatprep.subr.bf16.mxu0 0
  %1178 = vmatpush1.bf16.xpose.msra.mxu0 0
  %1179 = vmatprep.subr.bf16.mxu0 0
  %1180 = vmatpush1.bf16.xpose.msra.mxu0 0
  %1181 = vmatprep.subr.bf16.mxu0 0
  %1182 = vmatpush1.bf16.xpose.msra.mxu0 0
  %1183 = vmatprep.subr.bf16.mxu0 0
  %1184 = vmatpush1.bf16.xpose.msra.mxu0 0
  %1185 = vmatprep.subr.bf16.mxu0 0
  %1186 = vmatpush1.bf16.xpose.msra.mxu0 0
  %1187 = vmatprep.subr.bf16.mxu0 0
  %1188 = vmatpush1.bf16.xpose.msra.mxu0 0
  %1189 = vmatprep.subr.bf16.mxu0 0
  %1190 = vmatpush1.bf16.xpose.msra.mxu0 0
  %1191 = vmatprep.subr.bf16.mxu0 0
  %1192 = vmatpush1.bf16.xpose.msra.mxu0 0
  %1193 = vmatprep.subr.bf16.mxu0 0
  %1194 = vmatpush1.bf16.xpose.msra.mxu0 0
  %1195 = vmatprep.subr.bf16.mxu0 0
  %1196 = vmatpush1.bf16.xpose.msra.mxu0 0
  %1197 = vmatprep.subr.bf16.mxu0 0
  %1198 = vmatpush1.bf16.xpose.msra.mxu0 0
  %1199 = vmatprep.mubr.bf16.mxu0 0
  %1200 = vmatmul.mubr.bf16.gmra.mrb[0].mxu0 %v1162
  %v1201 = vpop.f32.mrb[0].mxu0
  %v1202 = vadd.f32 0.0, %v1201
  %v1203 = vpop.f32.mrb[0].mxu0
  %v1204 = vpop.f32.mrb[0].mxu0
  %v1205 = vpop.f32.mrb[0].mxu0
  %1206 = vdwg.mxu0
  %v1207 = vmul.f32 %v1202, 0.35355338
  %v1208 = vsel %vm250, %v1207, -inf
  %1209 = vmax.xlane.f32.xlu0 %v1208
  %v1210 = vpop.xlane.xlu0 %1209
  %v1211 = vsub.f32 %v1207, %v1210
  %v1212 = vmul.f32 %v1211, 1.442695
  %v1213 = vpow.pop %v1212
  %v1214 = vsel %vm250, %v1213, 0.0
  %1215 = vadd.xlane.f32.xlu0 %v1214
  %v1216 = vpop.xlane.xlu0 %1215
  %v1217 = vrcp.pop %v1216
  %v1218 = vmul.f32 %v1213, %v1217
  %v1219 = vpack.c.bf16 %v1218, %v1218
  %1220 = vrot.lane.b32.xlu0 %v1158, 64
  %v1221 = vpop.permute.xlu0 %1220
  %v1223 = vsel %vm265, %v1219, 0
  %v1226 = vand.u32 %v1221, %v272
  %1228 = vmatprep.subr.bf16.mxu0 0
  %1229 = vmatpush1.bf16.msra.mxu0 %v1226
  %1230 = vmatprep.subr.bf16.mxu0 0
  %1231 = vmatpush1.bf16.msra.mxu0 0
  %1232 = vmatprep.subr.bf16.mxu0 0
  %1233 = vmatpush1.bf16.msra.mxu0 0
  %1234 = vmatprep.subr.bf16.mxu0 0
  %1235 = vmatpush1.bf16.msra.mxu0 0
  %1236 = vmatprep.subr.bf16.mxu0 0
  %1237 = vmatpush1.bf16.msra.mxu0 0
  %1238 = vmatprep.subr.bf16.mxu0 0
  %1239 = vmatpush1.bf16.msra.mxu0 0
  %1240 = vmatprep.subr.bf16.mxu0 0
  %1241 = vmatpush1.bf16.msra.mxu0 0
  %1242 = vmatprep.subr.bf16.mxu0 0
  %1243 = vmatpush1.bf16.msra.mxu0 0
  %1244 = vmatprep.subr.bf16.mxu0 0
  %1245 = vmatpush1.bf16.msra.mxu0 0
  %1246 = vmatprep.subr.bf16.mxu0 0
  %1247 = vmatpush1.bf16.msra.mxu0 0
  %1248 = vmatprep.subr.bf16.mxu0 0
  %1249 = vmatpush1.bf16.msra.mxu0 0
  %1250 = vmatprep.subr.bf16.mxu0 0
  %1251 = vmatpush1.bf16.msra.mxu0 0
  %1252 = vmatprep.subr.bf16.mxu0 0
  %1253 = vmatpush1.bf16.msra.mxu0 0
  %1254 = vmatprep.subr.bf16.mxu0 0
  %1255 = vmatpush1.bf16.msra.mxu0 0
  %1256 = vmatprep.subr.bf16.mxu0 0
  %1257 = vmatpush1.bf16.msra.mxu0 0
  %1258 = vmatprep.subr.bf16.mxu0 0
  %1259 = vmatpush1.bf16.msra.mxu0 0
  %1260 = vmatprep.mubr.bf16.mxu0 0
  %1261 = vmatmul.mubr.bf16.gmra.mrb[0].mxu0 %v1223
  %v1262 = vpop.f32.mrb[0].mxu0
  %v1263 = vadd.f32 0.0, %v1262
  %v1264 = vpop.f32.mrb[0].mxu0
  %v1265 = vpop.f32.mrb[0].mxu0
  %v1266 = vpop.f32.mrb[0].mxu0
  %1267 = vdwg.mxu0
  %1268 = vrot.lane.b32.xlu0 %v1158, 120
  %v1269 = vpop.permute.xlu0 %1268
  %1270 = vrot.lane.b32.xlu0 %v1158, 88
  %v1271 = vpop.permute.xlu0 %1270
  %v1273 = vsel %vm60, %v1269, 0
  %v1276 = vsel %vm60, %v1271, 0
  %1278 = vmatprep.subr.bf16.mxu0 0
  %1279 = vmatpush1.bf16.xpose.msra.mxu0 %v1276
  %1280 = vmatprep.subr.bf16.mxu0 0
  %1281 = vmatpush1.bf16.xpose.msra.mxu0 0
  %1282 = vmatprep.subr.bf16.mxu0 0
  %1283 = vmatpush1.bf16.xpose.msra.mxu0 0
  %1284 = vmatprep.subr.bf16.mxu0 0
  %1285 = vmatpush1.bf16.xpose.msra.mxu0 0
  %1286 = vmatprep.subr.bf16.mxu0 0
  %1287 = vmatpush1.bf16.xpose.msra.mxu0 0
  %1288 = vmatprep.subr.bf16.mxu0 0
  %1289 = vmatpush1.bf16.xpose.msra.mxu0 0
  %1290 = vmatprep.subr.bf16.mxu0 0
  %1291 = vmatpush1.bf16.xpose.msra.mxu0 0
  %1292 = vmatprep.subr.bf16.mxu0 0
  %1293 = vmatpush1.bf16.xpose.msra.mxu0 0
  %1294 = vmatprep.subr.bf16.mxu0 0
  %1295 = vmatpush1.bf16.xpose.msra.mxu0 0
  %1296 = vmatprep.subr.bf16.mxu0 0
  %1297 = vmatpush1.bf16.xpose.msra.mxu0 0
  %1298 = vmatprep.subr.bf16.mxu0 0
  %1299 = vmatpush1.bf16.xpose.msra.mxu0 0
  %1300 = vmatprep.subr.bf16.mxu0 0
  %1301 = vmatpush1.bf16.xpose.msra.mxu0 0
  %1302 = vmatprep.subr.bf16.mxu0 0
  %1303 = vmatpush1.bf16.xpose.msra.mxu0 0
  %1304 = vmatprep.subr.bf16.mxu0 0
  %1305 = vmatpush1.bf16.xpose.msra.mxu0 0
  %1306 = vmatprep.subr.bf16.mxu0 0
  %1307 = vmatpush1.bf16.xpose.msra.mxu0 0
  %1308 = vmatprep.subr.bf16.mxu0 0
  %1309 = vmatpush1.bf16.xpose.msra.mxu0 0
  %1310 = vmatprep.mubr.bf16.mxu0 0
  %1311 = vmatmul.mubr.bf16.gmra.mrb[0].mxu0 %v1273
  %v1312 = vpop.f32.mrb[0].mxu0
  %v1313 = vadd.f32 0.0, %v1312
  %v1314 = vpop.f32.mrb[0].mxu0
  %v1315 = vpop.f32.mrb[0].mxu0
  %v1316 = vpop.f32.mrb[0].mxu0
  %1317 = vdwg.mxu0
  %v1318 = vmul.f32 %v1313, 0.35355338
  %v1319 = vsel %vm250, %v1318, -inf
  %1320 = vmax.xlane.f32.xlu0 %v1319
  %v1321 = vpop.xlane.xlu0 %1320
  %v1322 = vsub.f32 %v1318, %v1321
  %v1323 = vmul.f32 %v1322, 1.442695
  %v1324 = vpow.pop %v1323
  %v1325 = vsel %vm250, %v1324, 0.0
  %1326 = vadd.xlane.f32.xlu0 %v1325
  %v1327 = vpop.xlane.xlu0 %1326
  %v1328 = vrcp.pop %v1327
  %v1329 = vmul.f32 %v1324, %v1328
  %v1330 = vpack.c.bf16 %v1329, %v1329
  %1331 = vrot.lane.b32.xlu0 %v1158, 56
  %v1332 = vpop.permute.xlu0 %1331
  %v1334 = vsel %vm265, %v1330, 0
  %v1337 = vand.u32 %v1332, %v272
  %1339 = vmatprep.subr.bf16.mxu0 0
  %1340 = vmatpush1.bf16.msra.mxu0 %v1337
  %1341 = vmatprep.subr.bf16.mxu0 0
  %1342 = vmatpush1.bf16.msra.mxu0 0
  %1343 = vmatprep.subr.bf16.mxu0 0
  %1344 = vmatpush1.bf16.msra.mxu0 0
  %1345 = vmatprep.subr.bf16.mxu0 0
  %1346 = vmatpush1.bf16.msra.mxu0 0
  %1347 = vmatprep.subr.bf16.mxu0 0
  %1348 = vmatpush1.bf16.msra.mxu0 0
  %1349 = vmatprep.subr.bf16.mxu0 0
  %1350 = vmatpush1.bf16.msra.mxu0 0
  %1351 = vmatprep.subr.bf16.mxu0 0
  %1352 = vmatpush1.bf16.msra.mxu0 0
  %1353 = vmatprep.subr.bf16.mxu0 0
  %1354 = vmatpush1.bf16.msra.mxu0 0
  %1355 = vmatprep.subr.bf16.mxu0 0
  %1356 = vmatpush1.bf16.msra.mxu0 0
  %1357 = vmatprep.subr.bf16.mxu0 0
  %1358 = vmatpush1.bf16.msra.mxu0 0
  %1359 = vmatprep.subr.bf16.mxu0 0
  %1360 = vmatpush1.bf16.msra.mxu0 0
  %1361 = vmatprep.subr.bf16.mxu0 0
  %1362 = vmatpush1.bf16.msra.mxu0 0
  %1363 = vmatprep.subr.bf16.mxu0 0
  %1364 = vmatpush1.bf16.msra.mxu0 0
  %1365 = vmatprep.subr.bf16.mxu0 0
  %1366 = vmatpush1.bf16.msra.mxu0 0
  %1367 = vmatprep.subr.bf16.mxu0 0
  %1368 = vmatpush1.bf16.msra.mxu0 0
  %1369 = vmatprep.subr.bf16.mxu0 0
  %1370 = vmatpush1.bf16.msra.mxu0 0
  %1371 = vmatprep.mubr.bf16.mxu0 0
  %1372 = vmatmul.mubr.bf16.gmra.mrb[0].mxu0 %v1334
  %v1373 = vpop.f32.mrb[0].mxu0
  %v1374 = vadd.f32 0.0, %v1373
  %v1375 = vpop.f32.mrb[0].mxu0
  %v1376 = vpop.f32.mrb[0].mxu0
  %v1377 = vpop.f32.mrb[0].mxu0
  %1378 = vdwg.mxu0
  %1379 = vrot.lane.b32.xlu0 %v1158, 112
  %v1380 = vpop.permute.xlu0 %1379
  %1381 = vrot.lane.b32.xlu0 %v1158, 80
  %v1382 = vpop.permute.xlu0 %1381
  %v1384 = vsel %vm60, %v1380, 0
  %v1387 = vsel %vm60, %v1382, 0
  %1389 = vmatprep.subr.bf16.mxu0 0
  %1390 = vmatpush1.bf16.xpose.msra.mxu0 %v1387
  %1391 = vmatprep.subr.bf16.mxu0 0
  %1392 = vmatpush1.bf16.xpose.msra.mxu0 0
  %1393 = vmatprep.subr.bf16.mxu0 0
  %1394 = vmatpush1.bf16.xpose.msra.mxu0 0
  %1395 = vmatprep.subr.bf16.mxu0 0
  %1396 = vmatpush1.bf16.xpose.msra.mxu0 0
  %1397 = vmatprep.subr.bf16.mxu0 0
  %1398 = vmatpush1.bf16.xpose.msra.mxu0 0
  %1399 = vmatprep.subr.bf16.mxu0 0
  %1400 = vmatpush1.bf16.xpose.msra.mxu0 0
  %1401 = vmatprep.subr.bf16.mxu0 0
  %1402 = vmatpush1.bf16.xpose.msra.mxu0 0
  %1403 = vmatprep.subr.bf16.mxu0 0
  %1404 = vmatpush1.bf16.xpose.msra.mxu0 0
  %1405 = vmatprep.subr.bf16.mxu0 0
  %1406 = vmatpush1.bf16.xpose.msra.mxu0 0
  %1407 = vmatprep.subr.bf16.mxu0 0
  %1408 = vmatpush1.bf16.xpose.msra.mxu0 0
  %1409 = vmatprep.subr.bf16.mxu0 0
  %1410 = vmatpush1.bf16.xpose.msra.mxu0 0
  %1411 = vmatprep.subr.bf16.mxu0 0
  %1412 = vmatpush1.bf16.xpose.msra.mxu0 0
  %1413 = vmatprep.subr.bf16.mxu0 0
  %1414 = vmatpush1.bf16.xpose.msra.mxu0 0
  %1415 = vmatprep.subr.bf16.mxu0 0
  %1416 = vmatpush1.bf16.xpose.msra.mxu0 0
  %1417 = vmatprep.subr.bf16.mxu0 0
  %1418 = vmatpush1.bf16.xpose.msra.mxu0 0
  %1419 = vmatprep.subr.bf16.mxu0 0
  %1420 = vmatpush1.bf16.xpose.msra.mxu0 0
  %1421 = vmatprep.mubr.bf16.mxu0 0
  %1422 = vmatmul.mubr.bf16.gmra.mrb[0].mxu0 %v1384
  %v1423 = vpop.f32.mrb[0].mxu0
  %v1424 = vadd.f32 0.0, %v1423
  %v1425 = vpop.f32.mrb[0].mxu0
  %v1426 = vpop.f32.mrb[0].mxu0
  %v1427 = vpop.f32.mrb[0].mxu0
  %1428 = vdwg.mxu0
  %v1429 = vmul.f32 %v1424, 0.35355338
  %v1430 = vsel %vm250, %v1429, -inf
  %1431 = vmax.xlane.f32.xlu0 %v1430
  %v1432 = vpop.xlane.xlu0 %1431
  %v1433 = vsub.f32 %v1429, %v1432
  %v1434 = vmul.f32 %v1433, 1.442695
  %v1435 = vpow.pop %v1434
  %v1436 = vsel %vm250, %v1435, 0.0
  %1437 = vadd.xlane.f32.xlu0 %v1436
  %v1438 = vpop.xlane.xlu0 %1437
  %v1439 = vrcp.pop %v1438
  %v1440 = vmul.f32 %v1435, %v1439
  %v1441 = vpack.c.bf16 %v1440, %v1440
  %1442 = vrot.lane.b32.xlu0 %v1158, 48
  %v1443 = vpop.permute.xlu0 %1442
  %v1445 = vsel %vm265, %v1441, 0
  %v1448 = vand.u32 %v1443, %v272
  %1450 = vmatprep.subr.bf16.mxu0 0
  %1451 = vmatpush1.bf16.msra.mxu0 %v1448
  %1452 = vmatprep.subr.bf16.mxu0 0
  %1453 = vmatpush1.bf16.msra.mxu0 0
  %1454 = vmatprep.subr.bf16.mxu0 0
  %1455 = vmatpush1.bf16.msra.mxu0 0
  %1456 = vmatprep.subr.bf16.mxu0 0
  %1457 = vmatpush1.bf16.msra.mxu0 0
  %1458 = vmatprep.subr.bf16.mxu0 0
  %1459 = vmatpush1.bf16.msra.mxu0 0
  %1460 = vmatprep.subr.bf16.mxu0 0
  %1461 = vmatpush1.bf16.msra.mxu0 0
  %1462 = vmatprep.subr.bf16.mxu0 0
  %1463 = vmatpush1.bf16.msra.mxu0 0
  %1464 = vmatprep.subr.bf16.mxu0 0
  %1465 = vmatpush1.bf16.msra.mxu0 0
  %1466 = vmatprep.subr.bf16.mxu0 0
  %1467 = vmatpush1.bf16.msra.mxu0 0
  %1468 = vmatprep.subr.bf16.mxu0 0
  %1469 = vmatpush1.bf16.msra.mxu0 0
  %1470 = vmatprep.subr.bf16.mxu0 0
  %1471 = vmatpush1.bf16.msra.mxu0 0
  %1472 = vmatprep.subr.bf16.mxu0 0
  %1473 = vmatpush1.bf16.msra.mxu0 0
  %1474 = vmatprep.subr.bf16.mxu0 0
  %1475 = vmatpush1.bf16.msra.mxu0 0
  %1476 = vmatprep.subr.bf16.mxu0 0
  %1477 = vmatpush1.bf16.msra.mxu0 0
  %1478 = vmatprep.subr.bf16.mxu0 0
  %1479 = vmatpush1.bf16.msra.mxu0 0
  %1480 = vmatprep.subr.bf16.mxu0 0
  %1481 = vmatpush1.bf16.msra.mxu0 0
  %1482 = vmatprep.mubr.bf16.mxu0 0
  %1483 = vmatmul.mubr.bf16.gmra.mrb[0].mxu0 %v1445
  %v1484 = vpop.f32.mrb[0].mxu0
  %v1485 = vadd.f32 0.0, %v1484
  %v1486 = vpop.f32.mrb[0].mxu0
  %v1487 = vpop.f32.mrb[0].mxu0
  %v1488 = vpop.f32.mrb[0].mxu0
  %1489 = vdwg.mxu0
  %1490 = vrot.lane.b32.xlu0 %v1158, 104
  %v1491 = vpop.permute.xlu0 %1490
  %1492 = vrot.lane.b32.xlu0 %v1158, 72
  %v1493 = vpop.permute.xlu0 %1492
  %v1495 = vsel %vm60, %v1491, 0
  %v1498 = vsel %vm60, %v1493, 0
  %1500 = vmatprep.subr.bf16.mxu0 0
  %1501 = vmatpush1.bf16.xpose.msra.mxu0 %v1498
  %1502 = vmatprep.subr.bf16.mxu0 0
  %1503 = vmatpush1.bf16.xpose.msra.mxu0 0
  %1504 = vmatprep.subr.bf16.mxu0 0
  %1505 = vmatpush1.bf16.xpose.msra.mxu0 0
  %1506 = vmatprep.subr.bf16.mxu0 0
  %1507 = vmatpush1.bf16.xpose.msra.mxu0 0
  %1508 = vmatprep.subr.bf16.mxu0 0
  %1509 = vmatpush1.bf16.xpose.msra.mxu0 0
  %1510 = vmatprep.subr.bf16.mxu0 0
  %1511 = vmatpush1.bf16.xpose.msra.mxu0 0
  %1512 = vmatprep.subr.bf16.mxu0 0
  %1513 = vmatpush1.bf16.xpose.msra.mxu0 0
  %1514 = vmatprep.subr.bf16.mxu0 0
  %1515 = vmatpush1.bf16.xpose.msra.mxu0 0
  %1516 = vmatprep.subr.bf16.mxu0 0
  %1517 = vmatpush1.bf16.xpose.msra.mxu0 0
  %1518 = vmatprep.subr.bf16.mxu0 0
  %1519 = vmatpush1.bf16.xpose.msra.mxu0 0
  %1520 = vmatprep.subr.bf16.mxu0 0
  %1521 = vmatpush1.bf16.xpose.msra.mxu0 0
  %1522 = vmatprep.subr.bf16.mxu0 0
  %1523 = vmatpush1.bf16.xpose.msra.mxu0 0
  %1524 = vmatprep.subr.bf16.mxu0 0
  %1525 = vmatpush1.bf16.xpose.msra.mxu0 0
  %1526 = vmatprep.subr.bf16.mxu0 0
  %1527 = vmatpush1.bf16.xpose.msra.mxu0 0
  %1528 = vmatprep.subr.bf16.mxu0 0
  %1529 = vmatpush1.bf16.xpose.msra.mxu0 0
  %1530 = vmatprep.subr.bf16.mxu0 0
  %1531 = vmatpush1.bf16.xpose.msra.mxu0 0
  %1532 = vmatprep.mubr.bf16.mxu0 0
  %1533 = vmatmul.mubr.bf16.gmra.mrb[0].mxu0 %v1495
  %v1534 = vpop.f32.mrb[0].mxu0
  %v1535 = vadd.f32 0.0, %v1534
  %v1536 = vpop.f32.mrb[0].mxu0
  %v1537 = vpop.f32.mrb[0].mxu0
  %v1538 = vpop.f32.mrb[0].mxu0
  %1539 = vdwg.mxu0
  %v1540 = vmul.f32 %v1535, 0.35355338
  %v1541 = vsel %vm250, %v1540, -inf
  %1542 = vmax.xlane.f32.xlu0 %v1541
  %v1543 = vpop.xlane.xlu0 %1542
  %v1544 = vsub.f32 %v1540, %v1543
  %v1545 = vmul.f32 %v1544, 1.442695
  %v1546 = vpow.pop %v1545
  %v1547 = vsel %vm250, %v1546, 0.0
  %1548 = vadd.xlane.f32.xlu0 %v1547
  %v1549 = vpop.xlane.xlu0 %1548
  %v1550 = vrcp.pop %v1549
  %v1551 = vmul.f32 %v1546, %v1550
  %v1552 = vpack.c.bf16 %v1551, %v1551
  %1553 = vrot.lane.b32.xlu0 %v1158, 40
  %v1554 = vpop.permute.xlu0 %1553
  %v1556 = vsel %vm265, %v1552, 0
  %v1559 = vand.u32 %v1554, %v272
  %1561 = vmatprep.subr.bf16.mxu0 0
  %1562 = vmatpush1.bf16.msra.mxu0 %v1559
  %1563 = vmatprep.subr.bf16.mxu0 0
  %1564 = vmatpush1.bf16.msra.mxu0 0
  %1565 = vmatprep.subr.bf16.mxu0 0
  %1566 = vmatpush1.bf16.msra.mxu0 0
  %1567 = vmatprep.subr.bf16.mxu0 0
  %1568 = vmatpush1.bf16.msra.mxu0 0
  %1569 = vmatprep.subr.bf16.mxu0 0
  %1570 = vmatpush1.bf16.msra.mxu0 0
  %1571 = vmatprep.subr.bf16.mxu0 0
  %1572 = vmatpush1.bf16.msra.mxu0 0
  %1573 = vmatprep.subr.bf16.mxu0 0
  %1574 = vmatpush1.bf16.msra.mxu0 0
  %1575 = vmatprep.subr.bf16.mxu0 0
  %1576 = vmatpush1.bf16.msra.mxu0 0
  %1577 = vmatprep.subr.bf16.mxu0 0
  %1578 = vmatpush1.bf16.msra.mxu0 0
  %1579 = vmatprep.subr.bf16.mxu0 0
  %1580 = vmatpush1.bf16.msra.mxu0 0
  %1581 = vmatprep.subr.bf16.mxu0 0
  %1582 = vmatpush1.bf16.msra.mxu0 0
  %1583 = vmatprep.subr.bf16.mxu0 0
  %1584 = vmatpush1.bf16.msra.mxu0 0
  %1585 = vmatprep.subr.bf16.mxu0 0
  %1586 = vmatpush1.bf16.msra.mxu0 0
  %1587 = vmatprep.subr.bf16.mxu0 0
  %1588 = vmatpush1.bf16.msra.mxu0 0
  %1589 = vmatprep.subr.bf16.mxu0 0
  %1590 = vmatpush1.bf16.msra.mxu0 0
  %1591 = vmatprep.subr.bf16.mxu0 0
  %1592 = vmatpush1.bf16.msra.mxu0 0
  %1593 = vmatprep.mubr.bf16.mxu0 0
  %1594 = vmatmul.mubr.bf16.gmra.mrb[0].mxu0 %v1556
  %v1595 = vpop.f32.mrb[0].mxu0
  %v1596 = vadd.f32 0.0, %v1595
  %v1597 = vpop.f32.mrb[0].mxu0
  %v1598 = vpop.f32.mrb[0].mxu0
  %v1599 = vpop.f32.mrb[0].mxu0
  %1600 = vdwg.mxu0
  %1602 = vrot.lane.b32.xlu0 %v1374, 8
  %v1603 = vpop.permute.xlu0 %1602
  %1606 = vrot.lane.b32.xlu0 %v1485, 16
  %v1607 = vpop.permute.xlu0 %1606
  %1610 = vrot.lane.b32.xlu0 %v1596, 24
  %v1611 = vpop.permute.xlu0 %1610
  %v1613 = vsel %vm60, %v1263, %v1603
  %v1614 = vsel %vm662, %v1613, %v1607
  %v1615 = vsel %vm664, %v1614, %v1611
  %v1616 = vpack.c.bf16 %v1615, %v1615
  %v1618 = vunpack.c.l.b16 %v1616
  %v1619 = vpack.c.b16 %v1618, %v1618
  %v1620 = vrot.slane %v1619, 5
  %v1621 = vrot.slane %v1620, 4
  %vm1624 = vcmask 257027
  %1625 = vst.msk [vmem:[#allocation2] sm:$0x8] %vm1624, %v1620
  %vm1626 = vcmask 253952
  %vm1627 = vsmask.f32 256
  %vm1628 = vmand %vm1626, %vm1627
  %v1629 = vld [vmem:[#allocation2 + $0x4] sm:$0x1]
  %v1630 = vsel %vm1628, %v1621, %v1629
  %1631 = vst [vmem:[#allocation2 + $0x4] sm:$0x1] %v1630
  %v1632 = vpack.c.bf16 %v189, %v189
  %v1634 = vshrl.u32 %v1632, 16
  %v1636 = vshll.u32 %v1632, 16
  %v1638 = vrot.slane %v1636, 1
  %v1639 = vor.u32 %v1634, %v1638
  %1640 = vrot.lane.b32.xlu0 %v1639, 96
  %v1641 = vpop.permute.xlu0 %1640
  %v1643 = vsel %vm60, %v1639, 0
  %v1646 = vsel %vm60, %v1641, 0
  %1648 = vmatprep.subr.bf16.mxu0 0
  %1649 = vmatpush1.bf16.xpose.msra.mxu0 %v1646
  %1650 = vmatprep.subr.bf16.mxu0 0
  %1651 = vmatpush1.bf16.xpose.msra.mxu0 0
  %1652 = vmatprep.subr.bf16.mxu0 0
  %1653 = vmatpush1.bf16.xpose.msra.mxu0 0
  %1654 = vmatprep.subr.bf16.mxu0 0
  %1655 = vmatpush1.bf16.xpose.msra.mxu0 0
  %1656 = vmatprep.subr.bf16.mxu0 0
  %1657 = vmatpush1.bf16.xpose.msra.mxu0 0
  %1658 = vmatprep.subr.bf16.mxu0 0
  %1659 = vmatpush1.bf16.xpose.msra.mxu0 0
  %1660 = vmatprep.subr.bf16.mxu0 0
  %1661 = vmatpush1.bf16.xpose.msra.mxu0 0
  %1662 = vmatprep.subr.bf16.mxu0 0
  %1663 = vmatpush1.bf16.xpose.msra.mxu0 0
  %1664 = vmatprep.subr.bf16.mxu0 0
  %1665 = vmatpush1.bf16.xpose.msra.mxu0 0
  %1666 = vmatprep.subr.bf16.mxu0 0
  %1667 = vmatpush1.bf16.xpose.msra.mxu0 0
  %1668 = vmatprep.subr.bf16.mxu0 0
  %1669 = vmatpush1.bf16.xpose.msra.mxu0 0
  %1670 = vmatprep.subr.bf16.mxu0 0
  %1671 = vmatpush1.bf16.xpose.msra.mxu0 0
  %1672 = vmatprep.subr.bf16.mxu0 0
  %1673 = vmatpush1.bf16.xpose.msra.mxu0 0
  %1674 = vmatprep.subr.bf16.mxu0 0
  %1675 = vmatpush1.bf16.xpose.msra.mxu0 0
  %1676 = vmatprep.subr.bf16.mxu0 0
  %1677 = vmatpush1.bf16.xpose.msra.mxu0 0
  %1678 = vmatprep.subr.bf16.mxu0 0
  %1679 = vmatpush1.bf16.xpose.msra.mxu0 0
  %1680 = vmatprep.mubr.bf16.mxu0 0
  %1681 = vmatmul.mubr.bf16.gmra.mrb[0].mxu0 %v1643
  %v1682 = vpop.f32.mrb[0].mxu0
  %v1683 = vadd.f32 0.0, %v1682
  %v1684 = vpop.f32.mrb[0].mxu0
  %v1685 = vpop.f32.mrb[0].mxu0
  %v1686 = vpop.f32.mrb[0].mxu0
  %1687 = vdwg.mxu0
  %v1688 = vmul.f32 %v1683, 0.35355338
  %v1689 = vsel %vm250, %v1688, -inf
  %1690 = vmax.xlane.f32.xlu0 %v1689
  %v1691 = vpop.xlane.xlu0 %1690
  %v1692 = vsub.f32 %v1688, %v1691
  %v1693 = vmul.f32 %v1692, 1.442695
  %v1694 = vpow.pop %v1693
  %v1695 = vsel %vm250, %v1694, 0.0
  %1696 = vadd.xlane.f32.xlu0 %v1695
  %v1697 = vpop.xlane.xlu0 %1696
  %v1698 = vrcp.pop %v1697
  %v1699 = vmul.f32 %v1694, %v1698
  %v1700 = vpack.c.bf16 %v1699, %v1699
  %1701 = vrot.lane.b32.xlu0 %v1639, 64
  %v1702 = vpop.permute.xlu0 %1701
  %v1704 = vsel %vm265, %v1700, 0
  %v1707 = vand.u32 %v1702, %v272
  %1709 = vmatprep.subr.bf16.mxu0 0
  %1710 = vmatpush1.bf16.msra.mxu0 %v1707
  %1711 = vmatprep.subr.bf16.mxu0 0
  %1712 = vmatpush1.bf16.msra.mxu0 0
  %1713 = vmatprep.subr.bf16.mxu0 0
  %1714 = vmatpush1.bf16.msra.mxu0 0
  %1715 = vmatprep.subr.bf16.mxu0 0
  %1716 = vmatpush1.bf16.msra.mxu0 0
  %1717 = vmatprep.subr.bf16.mxu0 0
  %1718 = vmatpush1.bf16.msra.mxu0 0
  %1719 = vmatprep.subr.bf16.mxu0 0
  %1720 = vmatpush1.bf16.msra.mxu0 0
  %1721 = vmatprep.subr.bf16.mxu0 0
  %1722 = vmatpush1.bf16.msra.mxu0 0
  %1723 = vmatprep.subr.bf16.mxu0 0
  %1724 = vmatpush1.bf16.msra.mxu0 0
  %1725 = vmatprep.subr.bf16.mxu0 0
  %1726 = vmatpush1.bf16.msra.mxu0 0
  %1727 = vmatprep.subr.bf16.mxu0 0
  %1728 = vmatpush1.bf16.msra.mxu0 0
  %1729 = vmatprep.subr.bf16.mxu0 0
  %1730 = vmatpush1.bf16.msra.mxu0 0
  %1731 = vmatprep.subr.bf16.mxu0 0
  %1732 = vmatpush1.bf16.msra.mxu0 0
  %1733 = vmatprep.subr.bf16.mxu0 0
  %1734 = vmatpush1.bf16.msra.mxu0 0
  %1735 = vmatprep.subr.bf16.mxu0 0
  %1736 = vmatpush1.bf16.msra.mxu0 0
  %1737 = vmatprep.subr.bf16.mxu0 0
  %1738 = vmatpush1.bf16.msra.mxu0 0
  %1739 = vmatprep.subr.bf16.mxu0 0
  %1740 = vmatpush1.bf16.msra.mxu0 0
  %1741 = vmatprep.mubr.bf16.mxu0 0
  %1742 = vmatmul.mubr.bf16.gmra.mrb[0].mxu0 %v1704
  %v1743 = vpop.f32.mrb[0].mxu0
  %v1744 = vadd.f32 0.0, %v1743
  %v1745 = vpop.f32.mrb[0].mxu0
  %v1746 = vpop.f32.mrb[0].mxu0
  %v1747 = vpop.f32.mrb[0].mxu0
  %1748 = vdwg.mxu0
  %1749 = vrot.lane.b32.xlu0 %v1639, 120
  %v1750 = vpop.permute.xlu0 %1749
  %1751 = vrot.lane.b32.xlu0 %v1639, 88
  %v1752 = vpop.permute.xlu0 %1751
  %v1754 = vsel %vm60, %v1750, 0
  %v1757 = vsel %vm60, %v1752, 0
  %1759 = vmatprep.subr.bf16.mxu0 0
  %1760 = vmatpush1.bf16.xpose.msra.mxu0 %v1757
  %1761 = vmatprep.subr.bf16.mxu0 0
  %1762 = vmatpush1.bf16.xpose.msra.mxu0 0
  %1763 = vmatprep.subr.bf16.mxu0 0
  %1764 = vmatpush1.bf16.xpose.msra.mxu0 0
  %1765 = vmatprep.subr.bf16.mxu0 0
  %1766 = vmatpush1.bf16.xpose.msra.mxu0 0
  %1767 = vmatprep.subr.bf16.mxu0 0
  %1768 = vmatpush1.bf16.xpose.msra.mxu0 0
  %1769 = vmatprep.subr.bf16.mxu0 0
  %1770 = vmatpush1.bf16.xpose.msra.mxu0 0
  %1771 = vmatprep.subr.bf16.mxu0 0
  %1772 = vmatpush1.bf16.xpose.msra.mxu0 0
  %1773 = vmatprep.subr.bf16.mxu0 0
  %1774 = vmatpush1.bf16.xpose.msra.mxu0 0
  %1775 = vmatprep.subr.bf16.mxu0 0
  %1776 = vmatpush1.bf16.xpose.msra.mxu0 0
  %1777 = vmatprep.subr.bf16.mxu0 0
  %1778 = vmatpush1.bf16.xpose.msra.mxu0 0
  %1779 = vmatprep.subr.bf16.mxu0 0
  %1780 = vmatpush1.bf16.xpose.msra.mxu0 0
  %1781 = vmatprep.subr.bf16.mxu0 0
  %1782 = vmatpush1.bf16.xpose.msra.mxu0 0
  %1783 = vmatprep.subr.bf16.mxu0 0
  %1784 = vmatpush1.bf16.xpose.msra.mxu0 0
  %1785 = vmatprep.subr.bf16.mxu0 0
  %1786 = vmatpush1.bf16.xpose.msra.mxu0 0
  %1787 = vmatprep.subr.bf16.mxu0 0
  %1788 = vmatpush1.bf16.xpose.msra.mxu0 0
  %1789 = vmatprep.subr.bf16.mxu0 0
  %1790 = vmatpush1.bf16.xpose.msra.mxu0 0
  %1791 = vmatprep.mubr.bf16.mxu0 0
  %1792 = vmatmul.mubr.bf16.gmra.mrb[0].mxu0 %v1754
  %v1793 = vpop.f32.mrb[0].mxu0
  %v1794 = vadd.f32 0.0, %v1793
  %v1795 = vpop.f32.mrb[0].mxu0
  %v1796 = vpop.f32.mrb[0].mxu0
  %v1797 = vpop.f32.mrb[0].mxu0
  %1798 = vdwg.mxu0
  %v1799 = vmul.f32 %v1794, 0.35355338
  %v1800 = vsel %vm250, %v1799, -inf
  %1801 = vmax.xlane.f32.xlu0 %v1800
  %v1802 = vpop.xlane.xlu0 %1801
  %v1803 = vsub.f32 %v1799, %v1802
  %v1804 = vmul.f32 %v1803, 1.442695
  %v1805 = vpow.pop %v1804
  %v1806 = vsel %vm250, %v1805, 0.0
  %1807 = vadd.xlane.f32.xlu0 %v1806
  %v1808 = vpop.xlane.xlu0 %1807
  %v1809 = vrcp.pop %v1808
  %v1810 = vmul.f32 %v1805, %v1809
  %v1811 = vpack.c.bf16 %v1810, %v1810
  %1812 = vrot.lane.b32.xlu0 %v1639, 56
  %v1813 = vpop.permute.xlu0 %1812
  %v1815 = vsel %vm265, %v1811, 0
  %v1818 = vand.u32 %v1813, %v272
  %1820 = vmatprep.subr.bf16.mxu0 0
  %1821 = vmatpush1.bf16.msra.mxu0 %v1818
  %1822 = vmatprep.subr.bf16.mxu0 0
  %1823 = vmatpush1.bf16.msra.mxu0 0
  %1824 = vmatprep.subr.bf16.mxu0 0
  %1825 = vmatpush1.bf16.msra.mxu0 0
  %1826 = vmatprep.subr.bf16.mxu0 0
  %1827 = vmatpush1.bf16.msra.mxu0 0
  %1828 = vmatprep.subr.bf16.mxu0 0
  %1829 = vmatpush1.bf16.msra.mxu0 0
  %1830 = vmatprep.subr.bf16.mxu0 0
  %1831 = vmatpush1.bf16.msra.mxu0 0
  %1832 = vmatprep.subr.bf16.mxu0 0
  %1833 = vmatpush1.bf16.msra.mxu0 0
  %1834 = vmatprep.subr.bf16.mxu0 0
  %1835 = vmatpush1.bf16.msra.mxu0 0
  %1836 = vmatprep.subr.bf16.mxu0 0
  %1837 = vmatpush1.bf16.msra.mxu0 0
  %1838 = vmatprep.subr.bf16.mxu0 0
  %1839 = vmatpush1.bf16.msra.mxu0 0
  %1840 = vmatprep.subr.bf16.mxu0 0
  %1841 = vmatpush1.bf16.msra.mxu0 0
  %1842 = vmatprep.subr.bf16.mxu0 0
  %1843 = vmatpush1.bf16.msra.mxu0 0
  %1844 = vmatprep.subr.bf16.mxu0 0
  %1845 = vmatpush1.bf16.msra.mxu0 0
  %1846 = vmatprep.subr.bf16.mxu0 0
  %1847 = vmatpush1.bf16.msra.mxu0 0
  %1848 = vmatprep.subr.bf16.mxu0 0
  %1849 = vmatpush1.bf16.msra.mxu0 0
  %1850 = vmatprep.subr.bf16.mxu0 0
  %1851 = vmatpush1.bf16.msra.mxu0 0
  %1852 = vmatprep.mubr.bf16.mxu0 0
  %1853 = vmatmul.mubr.bf16.gmra.mrb[0].mxu0 %v1815
  %v1854 = vpop.f32.mrb[0].mxu0
  %v1855 = vadd.f32 0.0, %v1854
  %v1856 = vpop.f32.mrb[0].mxu0
  %v1857 = vpop.f32.mrb[0].mxu0
  %v1858 = vpop.f32.mrb[0].mxu0
  %1859 = vdwg.mxu0
  %1860 = vrot.lane.b32.xlu0 %v1639, 112
  %v1861 = vpop.permute.xlu0 %1860
  %1862 = vrot.lane.b32.xlu0 %v1639, 80
  %v1863 = vpop.permute.xlu0 %1862
  %v1865 = vsel %vm60, %v1861, 0
  %v1868 = vsel %vm60, %v1863, 0
  %1870 = vmatprep.subr.bf16.mxu0 0
  %1871 = vmatpush1.bf16.xpose.msra.mxu0 %v1868
  %1872 = vmatprep.subr.bf16.mxu0 0
  %1873 = vmatpush1.bf16.xpose.msra.mxu0 0
  %1874 = vmatprep.subr.bf16.mxu0 0
  %1875 = vmatpush1.bf16.xpose.msra.mxu0 0
  %1876 = vmatprep.subr.bf16.mxu0 0
  %1877 = vmatpush1.bf16.xpose.msra.mxu0 0
  %1878 = vmatprep.subr.bf16.mxu0 0
  %1879 = vmatpush1.bf16.xpose.msra.mxu0 0
  %1880 = vmatprep.subr.bf16.mxu0 0
  %1881 = vmatpush1.bf16.xpose.msra.mxu0 0
  %1882 = vmatprep.subr.bf16.mxu0 0
  %1883 = vmatpush1.bf16.xpose.msra.mxu0 0
  %1884 = vmatprep.subr.bf16.mxu0 0
  %1885 = vmatpush1.bf16.xpose.msra.mxu0 0
  %1886 = vmatprep.subr.bf16.mxu0 0
  %1887 = vmatpush1.bf16.xpose.msra.mxu0 0
  %1888 = vmatprep.subr.bf16.mxu0 0
  %1889 = vmatpush1.bf16.xpose.msra.mxu0 0
  %1890 = vmatprep.subr.bf16.mxu0 0
  %1891 = vmatpush1.bf16.xpose.msra.mxu0 0
  %1892 = vmatprep.subr.bf16.mxu0 0
  %1893 = vmatpush1.bf16.xpose.msra.mxu0 0
  %1894 = vmatprep.subr.bf16.mxu0 0
  %1895 = vmatpush1.bf16.xpose.msra.mxu0 0
  %1896 = vmatprep.subr.bf16.mxu0 0
  %1897 = vmatpush1.bf16.xpose.msra.mxu0 0
  %1898 = vmatprep.subr.bf16.mxu0 0
  %1899 = vmatpush1.bf16.xpose.msra.mxu0 0
  %1900 = vmatprep.subr.bf16.mxu0 0
  %1901 = vmatpush1.bf16.xpose.msra.mxu0 0
  %1902 = vmatprep.mubr.bf16.mxu0 0
  %1903 = vmatmul.mubr.bf16.gmra.mrb[0].mxu0 %v1865
  %v1904 = vpop.f32.mrb[0].mxu0
  %v1905 = vadd.f32 0.0, %v1904
  %v1906 = vpop.f32.mrb[0].mxu0
  %v1907 = vpop.f32.mrb[0].mxu0
  %v1908 = vpop.f32.mrb[0].mxu0
  %1909 = vdwg.mxu0
  %v1910 = vmul.f32 %v1905, 0.35355338
  %v1911 = vsel %vm250, %v1910, -inf
  %1912 = vmax.xlane.f32.xlu0 %v1911
  %v1913 = vpop.xlane.xlu0 %1912
  %v1914 = vsub.f32 %v1910, %v1913
  %v1915 = vmul.f32 %v1914, 1.442695
  %v1916 = vpow.pop %v1915
  %v1917 = vsel %vm250, %v1916, 0.0
  %1918 = vadd.xlane.f32.xlu0 %v1917
  %v1919 = vpop.xlane.xlu0 %1918
  %v1920 = vrcp.pop %v1919
  %v1921 = vmul.f32 %v1916, %v1920
  %v1922 = vpack.c.bf16 %v1921, %v1921
  %1923 = vrot.lane.b32.xlu0 %v1639, 48
  %v1924 = vpop.permute.xlu0 %1923
  %v1926 = vsel %vm265, %v1922, 0
  %v1929 = vand.u32 %v1924, %v272
  %1931 = vmatprep.subr.bf16.mxu0 0
  %1932 = vmatpush1.bf16.msra.mxu0 %v1929
  %1933 = vmatprep.subr.bf16.mxu0 0
  %1934 = vmatpush1.bf16.msra.mxu0 0
  %1935 = vmatprep.subr.bf16.mxu0 0
  %1936 = vmatpush1.bf16.msra.mxu0 0
  %1937 = vmatprep.subr.bf16.mxu0 0
  %1938 = vmatpush1.bf16.msra.mxu0 0
  %1939 = vmatprep.subr.bf16.mxu0 0
  %1940 = vmatpush1.bf16.msra.mxu0 0
  %1941 = vmatprep.subr.bf16.mxu0 0
  %1942 = vmatpush1.bf16.msra.mxu0 0
  %1943 = vmatprep.subr.bf16.mxu0 0
  %1944 = vmatpush1.bf16.msra.mxu0 0
  %1945 = vmatprep.subr.bf16.mxu0 0
  %1946 = vmatpush1.bf16.msra.mxu0 0
  %1947 = vmatprep.subr.bf16.mxu0 0
  %1948 = vmatpush1.bf16.msra.mxu0 0
  %1949 = vmatprep.subr.bf16.mxu0 0
  %1950 = vmatpush1.bf16.msra.mxu0 0
  %1951 = vmatprep.subr.bf16.mxu0 0
  %1952 = vmatpush1.bf16.msra.mxu0 0
  %1953 = vmatprep.subr.bf16.mxu0 0
  %1954 = vmatpush1.bf16.msra.mxu0 0
  %1955 = vmatprep.subr.bf16.mxu0 0
  %1956 = vmatpush1.bf16.msra.mxu0 0
  %1957 = vmatprep.subr.bf16.mxu0 0
  %1958 = vmatpush1.bf16.msra.mxu0 0
  %1959 = vmatprep.subr.bf16.mxu0 0
  %1960 = vmatpush1.bf16.msra.mxu0 0
  %1961 = vmatprep.subr.bf16.mxu0 0
  %1962 = vmatpush1.bf16.msra.mxu0 0
  %1963 = vmatprep.mubr.bf16.mxu0 0
  %1964 = vmatmul.mubr.bf16.gmra.mrb[0].mxu0 %v1926
  %v1965 = vpop.f32.mrb[0].mxu0
  %v1966 = vadd.f32 0.0, %v1965
  %v1967 = vpop.f32.mrb[0].mxu0
  %v1968 = vpop.f32.mrb[0].mxu0
  %v1969 = vpop.f32.mrb[0].mxu0
  %1970 = vdwg.mxu0
  %1971 = vrot.lane.b32.xlu0 %v1639, 104
  %v1972 = vpop.permute.xlu0 %1971
  %1973 = vrot.lane.b32.xlu0 %v1639, 72
  %v1974 = vpop.permute.xlu0 %1973
  %v1976 = vsel %vm60, %v1972, 0
  %v1979 = vsel %vm60, %v1974, 0
  %1981 = vmatprep.subr.bf16.mxu0 0
  %1982 = vmatpush1.bf16.xpose.msra.mxu0 %v1979
  %1983 = vmatprep.subr.bf16.mxu0 0
  %1984 = vmatpush1.bf16.xpose.msra.mxu0 0
  %1985 = vmatprep.subr.bf16.mxu0 0
  %1986 = vmatpush1.bf16.xpose.msra.mxu0 0
  %1987 = vmatprep.subr.bf16.mxu0 0
  %1988 = vmatpush1.bf16.xpose.msra.mxu0 0
  %1989 = vmatprep.subr.bf16.mxu0 0
  %1990 = vmatpush1.bf16.xpose.msra.mxu0 0
  %1991 = vmatprep.subr.bf16.mxu0 0
  %1992 = vmatpush1.bf16.xpose.msra.mxu0 0
  %1993 = vmatprep.subr.bf16.mxu0 0
  %1994 = vmatpush1.bf16.xpose.msra.mxu0 0
  %1995 = vmatprep.subr.bf16.mxu0 0
  %1996 = vmatpush1.bf16.xpose.msra.mxu0 0
  %1997 = vmatprep.subr.bf16.mxu0 0
  %1998 = vmatpush1.bf16.xpose.msra.mxu0 0
  %1999 = vmatprep.subr.bf16.mxu0 0
  %2000 = vmatpush1.bf16.xpose.msra.mxu0 0
  %2001 = vmatprep.subr.bf16.mxu0 0
  %2002 = vmatpush1.bf16.xpose.msra.mxu0 0
  %2003 = vmatprep.subr.bf16.mxu0 0
  %2004 = vmatpush1.bf16.xpose.msra.mxu0 0
  %2005 = vmatprep.subr.bf16.mxu0 0
  %2006 = vmatpush1.bf16.xpose.msra.mxu0 0
  %2007 = vmatprep.subr.bf16.mxu0 0
  %2008 = vmatpush1.bf16.xpose.msra.mxu0 0
  %2009 = vmatprep.subr.bf16.mxu0 0
  %2010 = vmatpush1.bf16.xpose.msra.mxu0 0
  %2011 = vmatprep.subr.bf16.mxu0 0
  %2012 = vmatpush1.bf16.xpose.msra.mxu0 0
  %2013 = vmatprep.mubr.bf16.mxu0 0
  %2014 = vmatmul.mubr.bf16.gmra.mrb[0].mxu0 %v1976
  %v2015 = vpop.f32.mrb[0].mxu0
  %v2016 = vadd.f32 0.0, %v2015
  %v2017 = vpop.f32.mrb[0].mxu0
  %v2018 = vpop.f32.mrb[0].mxu0
  %v2019 = vpop.f32.mrb[0].mxu0
  %2020 = vdwg.mxu0
  %v2021 = vmul.f32 %v2016, 0.35355338
  %v2022 = vsel %vm250, %v2021, -inf
  %2023 = vmax.xlane.f32.xlu0 %v2022
  %v2024 = vpop.xlane.xlu0 %2023
  %v2025 = vsub.f32 %v2021, %v2024
  %v2026 = vmul.f32 %v2025, 1.442695
  %v2027 = vpow.pop %v2026
  %v2028 = vsel %vm250, %v2027, 0.0
  %2029 = vadd.xlane.f32.xlu0 %v2028
  %v2030 = vpop.xlane.xlu0 %2029
  %v2031 = vrcp.pop %v2030
  %v2032 = vmul.f32 %v2027, %v2031
  %v2033 = vpack.c.bf16 %v2032, %v2032
  %2034 = vrot.lane.b32.xlu0 %v1639, 40
  %v2035 = vpop.permute.xlu0 %2034
  %v2037 = vsel %vm265, %v2033, 0
  %v2040 = vand.u32 %v2035, %v272
  %2042 = vmatprep.subr.bf16.mxu0 0
  %2043 = vmatpush1.bf16.msra.mxu0 %v2040
  %2044 = vmatprep.subr.bf16.mxu0 0
  %2045 = vmatpush1.bf16.msra.mxu0 0
  %2046 = vmatprep.subr.bf16.mxu0 0
  %2047 = vmatpush1.bf16.msra.mxu0 0
  %2048 = vmatprep.subr.bf16.mxu0 0
  %2049 = vmatpush1.bf16.msra.mxu0 0
  %2050 = vmatprep.subr.bf16.mxu0 0
  %2051 = vmatpush1.bf16.msra.mxu0 0
  %2052 = vmatprep.subr.bf16.mxu0 0
  %2053 = vmatpush1.bf16.msra.mxu0 0
  %2054 = vmatprep.subr.bf16.mxu0 0
  %2055 = vmatpush1.bf16.msra.mxu0 0
  %2056 = vmatprep.subr.bf16.mxu0 0
  %2057 = vmatpush1.bf16.msra.mxu0 0
  %2058 = vmatprep.subr.bf16.mxu0 0
  %2059 = vmatpush1.bf16.msra.mxu0 0
  %2060 = vmatprep.subr.bf16.mxu0 0
  %2061 = vmatpush1.bf16.msra.mxu0 0
  %2062 = vmatprep.subr.bf16.mxu0 0
  %2063 = vmatpush1.bf16.msra.mxu0 0
  %2064 = vmatprep.subr.bf16.mxu0 0
  %2065 = vmatpush1.bf16.msra.mxu0 0
  %2066 = vmatprep.subr.bf16.mxu0 0
  %2067 = vmatpush1.bf16.msra.mxu0 0
  %2068 = vmatprep.subr.bf16.mxu0 0
  %2069 = vmatpush1.bf16.msra.mxu0 0
  %2070 = vmatprep.subr.bf16.mxu0 0
  %2071 = vmatpush1.bf16.msra.mxu0 0
  %2072 = vmatprep.subr.bf16.mxu0 0
  %2073 = vmatpush1.bf16.msra.mxu0 0
  %2074 = vmatprep.mubr.bf16.mxu0 0
  %2075 = vmatmul.mubr.bf16.gmra.mrb[0].mxu0 %v2037
  %v2076 = vpop.f32.mrb[0].mxu0
  %v2077 = vadd.f32 0.0, %v2076
  %v2078 = vpop.f32.mrb[0].mxu0
  %v2079 = vpop.f32.mrb[0].mxu0
  %v2080 = vpop.f32.mrb[0].mxu0
  %2081 = vdwg.mxu0
  %2083 = vrot.lane.b32.xlu0 %v1855, 8
  %v2084 = vpop.permute.xlu0 %2083
  %2087 = vrot.lane.b32.xlu0 %v1966, 16
  %v2088 = vpop.permute.xlu0 %2087
  %2091 = vrot.lane.b32.xlu0 %v2077, 24
  %v2092 = vpop.permute.xlu0 %2091
  %v2094 = vsel %vm60, %v1744, %v2084
  %v2095 = vsel %vm662, %v2094, %v2088
  %v2096 = vsel %vm664, %v2095, %v2092
  %v2097 = vpack.c.bf16 %v2096, %v2096
  %v2099 = vunpack.c.l.b16 %v2097
  %v2100 = vpack.c.b16 %v2099, %v2099
  %v2102 = vshrl.u32 %v2100, 16
  %v2104 = vrot.slane %v2102, 7
  %v2105 = vshll.u32 %v2100, 16
  %v2107 = vor.u32 %v2104, %v2105
  %vm2109 = vsmask.f32 7938
  %vm2110 = vmand %vm667, %vm2109
  %v2111 = vld [vmem:[#allocation2 + $0x4] sm:$0x3]
  %v2112 = vsel %vm2110, %v2107, %v2111
  %2113 = vst [vmem:[#allocation2 + $0x4] sm:$0x3] %v2112
  %v2115 = vrot.slane %v1632, 2
  %2116 = vrot.lane.b32.xlu0 %v2115, 96
  %v2117 = vpop.permute.xlu0 %2116
  %v2119 = vsel %vm60, %v2115, 0
  %v2122 = vsel %vm60, %v2117, 0
  %2124 = vmatprep.subr.bf16.mxu0 0
  %2125 = vmatpush1.bf16.xpose.msra.mxu0 %v2122
  %2126 = vmatprep.subr.bf16.mxu0 0
  %2127 = vmatpush1.bf16.xpose.msra.mxu0 0
  %2128 = vmatprep.subr.bf16.mxu0 0
  %2129 = vmatpush1.bf16.xpose.msra.mxu0 0
  %2130 = vmatprep.subr.bf16.mxu0 0
  %2131 = vmatpush1.bf16.xpose.msra.mxu0 0
  %2132 = vmatprep.subr.bf16.mxu0 0
  %2133 = vmatpush1.bf16.xpose.msra.mxu0 0
  %2134 = vmatprep.subr.bf16.mxu0 0
  %2135 = vmatpush1.bf16.xpose.msra.mxu0 0
  %2136 = vmatprep.subr.bf16.mxu0 0
  %2137 = vmatpush1.bf16.xpose.msra.mxu0 0
  %2138 = vmatprep.subr.bf16.mxu0 0
  %2139 = vmatpush1.bf16.xpose.msra.mxu0 0
  %2140 = vmatprep.subr.bf16.mxu0 0
  %2141 = vmatpush1.bf16.xpose.msra.mxu0 0
  %2142 = vmatprep.subr.bf16.mxu0 0
  %2143 = vmatpush1.bf16.xpose.msra.mxu0 0
  %2144 = vmatprep.subr.bf16.mxu0 0
  %2145 = vmatpush1.bf16.xpose.msra.mxu0 0
  %2146 = vmatprep.subr.bf16.mxu0 0
  %2147 = vmatpush1.bf16.xpose.msra.mxu0 0
  %2148 = vmatprep.subr.bf16.mxu0 0
  %2149 = vmatpush1.bf16.xpose.msra.mxu0 0
  %2150 = vmatprep.subr.bf16.mxu0 0
  %2151 = vmatpush1.bf16.xpose.msra.mxu0 0
  %2152 = vmatprep.subr.bf16.mxu0 0
  %2153 = vmatpush1.bf16.xpose.msra.mxu0 0
  %2154 = vmatprep.subr.bf16.mxu0 0
  %2155 = vmatpush1.bf16.xpose.msra.mxu0 0
  %2156 = vmatprep.mubr.bf16.mxu0 0
  %2157 = vmatmul.mubr.bf16.gmra.mrb[0].mxu0 %v2119
  %v2158 = vpop.f32.mrb[0].mxu0
  %v2159 = vadd.f32 0.0, %v2158
  %v2160 = vpop.f32.mrb[0].mxu0
  %v2161 = vpop.f32.mrb[0].mxu0
  %v2162 = vpop.f32.mrb[0].mxu0
  %2163 = vdwg.mxu0
  %v2164 = vmul.f32 %v2159, 0.35355338
  %v2165 = vsel %vm250, %v2164, -inf
  %2166 = vmax.xlane.f32.xlu0 %v2165
  %v2167 = vpop.xlane.xlu0 %2166
  %v2168 = vsub.f32 %v2164, %v2167
  %v2169 = vmul.f32 %v2168, 1.442695
  %v2170 = vpow.pop %v2169
  %v2171 = vsel %vm250, %v2170, 0.0
  %2172 = vadd.xlane.f32.xlu0 %v2171
  %v2173 = vpop.xlane.xlu0 %2172
  %v2174 = vrcp.pop %v2173
  %v2175 = vmul.f32 %v2170, %v2174
  %v2176 = vpack.c.bf16 %v2175, %v2175
  %2177 = vrot.lane.b32.xlu0 %v2115, 64
  %v2178 = vpop.permute.xlu0 %2177
  %v2180 = vsel %vm265, %v2176, 0
  %v2183 = vand.u32 %v2178, %v272
  %2185 = vmatprep.subr.bf16.mxu0 0
  %2186 = vmatpush1.bf16.msra.mxu0 %v2183
  %2187 = vmatprep.subr.bf16.mxu0 0
  %2188 = vmatpush1.bf16.msra.mxu0 0
  %2189 = vmatprep.subr.bf16.mxu0 0
  %2190 = vmatpush1.bf16.msra.mxu0 0
  %2191 = vmatprep.subr.bf16.mxu0 0
  %2192 = vmatpush1.bf16.msra.mxu0 0
  %2193 = vmatprep.subr.bf16.mxu0 0
  %2194 = vmatpush1.bf16.msra.mxu0 0
  %2195 = vmatprep.subr.bf16.mxu0 0
  %2196 = vmatpush1.bf16.msra.mxu0 0
  %2197 = vmatprep.subr.bf16.mxu0 0
  %2198 = vmatpush1.bf16.msra.mxu0 0
  %2199 = vmatprep.subr.bf16.mxu0 0
  %2200 = vmatpush1.bf16.msra.mxu0 0
  %2201 = vmatprep.subr.bf16.mxu0 0
  %2202 = vmatpush1.bf16.msra.mxu0 0
  %2203 = vmatprep.subr.bf16.mxu0 0
  %2204 = vmatpush1.bf16.msra.mxu0 0
  %2205 = vmatprep.subr.bf16.mxu0 0
  %2206 = vmatpush1.bf16.msra.mxu0 0
  %2207 = vmatprep.subr.bf16.mxu0 0
  %2208 = vmatpush1.bf16.msra.mxu0 0
  %2209 = vmatprep.subr.bf16.mxu0 0
  %2210 = vmatpush1.bf16.msra.mxu0 0
  %2211 = vmatprep.subr.bf16.mxu0 0
  %2212 = vmatpush1.bf16.msra.mxu0 0
  %2213 = vmatprep.subr.bf16.mxu0 0
  %2214 = vmatpush1.bf16.msra.mxu0 0
  %2215 = vmatprep.subr.bf16.mxu0 0
  %2216 = vmatpush1.bf16.msra.mxu0 0
  %2217 = vmatprep.mubr.bf16.mxu0 0
  %2218 = vmatmul.mubr.bf16.gmra.mrb[0].mxu0 %v2180
  %v2219 = vpop.f32.mrb[0].mxu0
  %v2220 = vadd.f32 0.0, %v2219
  %v2221 = vpop.f32.mrb[0].mxu0
  %v2222 = vpop.f32.mrb[0].mxu0
  %v2223 = vpop.f32.mrb[0].mxu0
  %2224 = vdwg.mxu0
  %2225 = vrot.lane.b32.xlu0 %v2115, 120
  %v2226 = vpop.permute.xlu0 %2225
  %2227 = vrot.lane.b32.xlu0 %v2115, 88
  %v2228 = vpop.permute.xlu0 %2227
  %v2230 = vsel %vm60, %v2226, 0
  %v2233 = vsel %vm60, %v2228, 0
  %2235 = vmatprep.subr.bf16.mxu0 0
  %2236 = vmatpush1.bf16.xpose.msra.mxu0 %v2233
  %2237 = vmatprep.subr.bf16.mxu0 0
  %2238 = vmatpush1.bf16.xpose.msra.mxu0 0
  %2239 = vmatprep.subr.bf16.mxu0 0
  %2240 = vmatpush1.bf16.xpose.msra.mxu0 0
  %2241 = vmatprep.subr.bf16.mxu0 0
  %2242 = vmatpush1.bf16.xpose.msra.mxu0 0
  %2243 = vmatprep.subr.bf16.mxu0 0
  %2244 = vmatpush1.bf16.xpose.msra.mxu0 0
  %2245 = vmatprep.subr.bf16.mxu0 0
  %2246 = vmatpush1.bf16.xpose.msra.mxu0 0
  %2247 = vmatprep.subr.bf16.mxu0 0
  %2248 = vmatpush1.bf16.xpose.msra.mxu0 0
  %2249 = vmatprep.subr.bf16.mxu0 0
  %2250 = vmatpush1.bf16.xpose.msra.mxu0 0
  %2251 = vmatprep.subr.bf16.mxu0 0
  %2252 = vmatpush1.bf16.xpose.msra.mxu0 0
  %2253 = vmatprep.subr.bf16.mxu0 0
  %2254 = vmatpush1.bf16.xpose.msra.mxu0 0
  %2255 = vmatprep.subr.bf16.mxu0 0
  %2256 = vmatpush1.bf16.xpose.msra.mxu0 0
  %2257 = vmatprep.subr.bf16.mxu0 0
  %2258 = vmatpush1.bf16.xpose.msra.mxu0 0
  %2259 = vmatprep.subr.bf16.mxu0 0
  %2260 = vmatpush1.bf16.xpose.msra.mxu0 0
  %2261 = vmatprep.subr.bf16.mxu0 0
  %2262 = vmatpush1.bf16.xpose.msra.mxu0 0
  %2263 = vmatprep.subr.bf16.mxu0 0
  %2264 = vmatpush1.bf16.xpose.msra.mxu0 0
  %2265 = vmatprep.subr.bf16.mxu0 0
  %2266 = vmatpush1.bf16.xpose.msra.mxu0 0
  %2267 = vmatprep.mubr.bf16.mxu0 0
  %2268 = vmatmul.mubr.bf16.gmra.mrb[0].mxu0 %v2230
  %v2269 = vpop.f32.mrb[0].mxu0
  %v2270 = vadd.f32 0.0, %v2269
  %v2271 = vpop.f32.mrb[0].mxu0
  %v2272 = vpop.f32.mrb[0].mxu0
  %v2273 = vpop.f32.mrb[0].mxu0
  %2274 = vdwg.mxu0
  %v2275 = vmul.f32 %v2270, 0.35355338
  %v2276 = vsel %vm250, %v2275, -inf
  %2277 = vmax.xlane.f32.xlu0 %v2276
  %v2278 = vpop.xlane.xlu0 %2277
  %v2279 = vsub.f32 %v2275, %v2278
  %v2280 = vmul.f32 %v2279, 1.442695
  %v2281 = vpow.pop %v2280
  %v2282 = vsel %vm250, %v2281, 0.0
  %2283 = vadd.xlane.f32.xlu0 %v2282
  %v2284 = vpop.xlane.xlu0 %2283
  %v2285 = vrcp.pop %v2284
  %v2286 = vmul.f32 %v2281, %v2285
  %v2287 = vpack.c.bf16 %v2286, %v2286
  %2288 = vrot.lane.b32.xlu0 %v2115, 56
  %v2289 = vpop.permute.xlu0 %2288
  %v2291 = vsel %vm265, %v2287, 0
  %v2294 = vand.u32 %v2289, %v272
  %2296 = vmatprep.subr.bf16.mxu0 0
  %2297 = vmatpush1.bf16.msra.mxu0 %v2294
  %2298 = vmatprep.subr.bf16.mxu0 0
  %2299 = vmatpush1.bf16.msra.mxu0 0
  %2300 = vmatprep.subr.bf16.mxu0 0
  %2301 = vmatpush1.bf16.msra.mxu0 0
  %2302 = vmatprep.subr.bf16.mxu0 0
  %2303 = vmatpush1.bf16.msra.mxu0 0
  %2304 = vmatprep.subr.bf16.mxu0 0
  %2305 = vmatpush1.bf16.msra.mxu0 0
  %2306 = vmatprep.subr.bf16.mxu0 0
  %2307 = vmatpush1.bf16.msra.mxu0 0
  %2308 = vmatprep.subr.bf16.mxu0 0
  %2309 = vmatpush1.bf16.msra.mxu0 0
  %2310 = vmatprep.subr.bf16.mxu0 0
  %2311 = vmatpush1.bf16.msra.mxu0 0
  %2312 = vmatprep.subr.bf16.mxu0 0
  %2313 = vmatpush1.bf16.msra.mxu0 0
  %2314 = vmatprep.subr.bf16.mxu0 0
  %2315 = vmatpush1.bf16.msra.mxu0 0
  %2316 = vmatprep.subr.bf16.mxu0 0
  %2317 = vmatpush1.bf16.msra.mxu0 0
  %2318 = vmatprep.subr.bf16.mxu0 0
  %2319 = vmatpush1.bf16.msra.mxu0 0
  %2320 = vmatprep.subr.bf16.mxu0 0
  %2321 = vmatpush1.bf16.msra.mxu0 0
  %2322 = vmatprep.subr.bf16.mxu0 0
  %2323 = vmatpush1.bf16.msra.mxu0 0
  %2324 = vmatprep.subr.bf16.mxu0 0
  %2325 = vmatpush1.bf16.msra.mxu0 0
  %2326 = vmatprep.subr.bf16.mxu0 0
  %2327 = vmatpush1.bf16.msra.mxu0 0
  %2328 = vmatprep.mubr.bf16.mxu0 0
  %2329 = vmatmul.mubr.bf16.gmra.mrb[0].mxu0 %v2291
  %v2330 = vpop.f32.mrb[0].mxu0
  %v2331 = vadd.f32 0.0, %v2330
  %v2332 = vpop.f32.mrb[0].mxu0
  %v2333 = vpop.f32.mrb[0].mxu0
  %v2334 = vpop.f32.mrb[0].mxu0
  %2335 = vdwg.mxu0
  %2336 = vrot.lane.b32.xlu0 %v2115, 112
  %v2337 = vpop.permute.xlu0 %2336
  %2338 = vrot.lane.b32.xlu0 %v2115, 80
  %v2339 = vpop.permute.xlu0 %2338
  %v2341 = vsel %vm60, %v2337, 0
  %v2344 = vsel %vm60, %v2339, 0
  %2346 = vmatprep.subr.bf16.mxu0 0
  %2347 = vmatpush1.bf16.xpose.msra.mxu0 %v2344
  %2348 = vmatprep.subr.bf16.mxu0 0
  %2349 = vmatpush1.bf16.xpose.msra.mxu0 0
  %2350 = vmatprep.subr.bf16.mxu0 0
  %2351 = vmatpush1.bf16.xpose.msra.mxu0 0
  %2352 = vmatprep.subr.bf16.mxu0 0
  %2353 = vmatpush1.bf16.xpose.msra.mxu0 0
  %2354 = vmatprep.subr.bf16.mxu0 0
  %2355 = vmatpush1.bf16.xpose.msra.mxu0 0
  %2356 = vmatprep.subr.bf16.mxu0 0
  %2357 = vmatpush1.bf16.xpose.msra.mxu0 0
  %2358 = vmatprep.subr.bf16.mxu0 0
  %2359 = vmatpush1.bf16.xpose.msra.mxu0 0
  %2360 = vmatprep.subr.bf16.mxu0 0
  %2361 = vmatpush1.bf16.xpose.msra.mxu0 0
  %2362 = vmatprep.subr.bf16.mxu0 0
  %2363 = vmatpush1.bf16.xpose.msra.mxu0 0
  %2364 = vmatprep.subr.bf16.mxu0 0
  %2365 = vmatpush1.bf16.xpose.msra.mxu0 0
  %2366 = vmatprep.subr.bf16.mxu0 0
  %2367 = vmatpush1.bf16.xpose.msra.mxu0 0
  %2368 = vmatprep.subr.bf16.mxu0 0
  %2369 = vmatpush1.bf16.xpose.msra.mxu0 0
  %2370 = vmatprep.subr.bf16.mxu0 0
  %2371 = vmatpush1.bf16.xpose.msra.mxu0 0
  %2372 = vmatprep.subr.bf16.mxu0 0
  %2373 = vmatpush1.bf16.xpose.msra.mxu0 0
  %2374 = vmatprep.subr.bf16.mxu0 0
  %2375 = vmatpush1.bf16.xpose.msra.mxu0 0
  %2376 = vmatprep.subr.bf16.mxu0 0
  %2377 = vmatpush1.bf16.xpose.msra.mxu0 0
  %2378 = vmatprep.mubr.bf16.mxu0 0
  %2379 = vmatmul.mubr.bf16.gmra.mrb[0].mxu0 %v2341
  %v2380 = vpop.f32.mrb[0].mxu0
  %v2381 = vadd.f32 0.0, %v2380
  %v2382 = vpop.f32.mrb[0].mxu0
  %v2383 = vpop.f32.mrb[0].mxu0
  %v2384 = vpop.f32.mrb[0].mxu0
  %2385 = vdwg.mxu0
  %v2386 = vmul.f32 %v2381, 0.35355338
  %v2387 = vsel %vm250, %v2386, -inf
  %2388 = vmax.xlane.f32.xlu0 %v2387
  %v2389 = vpop.xlane.xlu0 %2388
  %v2390 = vsub.f32 %v2386, %v2389
  %v2391 = vmul.f32 %v2390, 1.442695
  %v2392 = vpow.pop %v2391
  %v2393 = vsel %vm250, %v2392, 0.0
  %2394 = vadd.xlane.f32.xlu0 %v2393
  %v2395 = vpop.xlane.xlu0 %2394
  %v2396 = vrcp.pop %v2395
  %v2397 = vmul.f32 %v2392, %v2396
  %v2398 = vpack.c.bf16 %v2397, %v2397
  %2399 = vrot.lane.b32.xlu0 %v2115, 48
  %v2400 = vpop.permute.xlu0 %2399
  %v2402 = vsel %vm265, %v2398, 0
  %v2405 = vand.u32 %v2400, %v272
  %2407 = vmatprep.subr.bf16.mxu0 0
  %2408 = vmatpush1.bf16.msra.mxu0 %v2405
  %2409 = vmatprep.subr.bf16.mxu0 0
  %2410 = vmatpush1.bf16.msra.mxu0 0
  %2411 = vmatprep.subr.bf16.mxu0 0
  %2412 = vmatpush1.bf16.msra.mxu0 0
  %2413 = vmatprep.subr.bf16.mxu0 0
  %2414 = vmatpush1.bf16.msra.mxu0 0
  %2415 = vmatprep.subr.bf16.mxu0 0
  %2416 = vmatpush1.bf16.msra.mxu0 0
  %2417 = vmatprep.subr.bf16.mxu0 0
  %2418 = vmatpush1.bf16.msra.mxu0 0
  %2419 = vmatprep.subr.bf16.mxu0 0
  %2420 = vmatpush1.bf16.msra.mxu0 0
  %2421 = vmatprep.subr.bf16.mxu0 0
  %2422 = vmatpush1.bf16.msra.mxu0 0
  %2423 = vmatprep.subr.bf16.mxu0 0
  %2424 = vmatpush1.bf16.msra.mxu0 0
  %2425 = vmatprep.subr.bf16.mxu0 0
  %2426 = vmatpush1.bf16.msra.mxu0 0
  %2427 = vmatprep.subr.bf16.mxu0 0
  %2428 = vmatpush1.bf16.msra.mxu0 0
  %2429 = vmatprep.subr.bf16.mxu0 0
  %2430 = vmatpush1.bf16.msra.mxu0 0
  %2431 = vmatprep.subr.bf16.mxu0 0
  %2432 = vmatpush1.bf16.msra.mxu0 0
  %2433 = vmatprep.subr.bf16.mxu0 0
  %2434 = vmatpush1.bf16.msra.mxu0 0
  %2435 = vmatprep.subr.bf16.mxu0 0
  %2436 = vmatpush1.bf16.msra.mxu0 0
  %2437 = vmatprep.subr.bf16.mxu0 0
  %2438 = vmatpush1.bf16.msra.mxu0 0
  %2439 = vmatprep.mubr.bf16.mxu0 0
  %2440 = vmatmul.mubr.bf16.gmra.mrb[0].mxu0 %v2402
  %v2441 = vpop.f32.mrb[0].mxu0
  %v2442 = vadd.f32 0.0, %v2441
  %v2443 = vpop.f32.mrb[0].mxu0
  %v2444 = vpop.f32.mrb[0].mxu0
  %v2445 = vpop.f32.mrb[0].mxu0
  %2446 = vdwg.mxu0
  %2447 = vrot.lane.b32.xlu0 %v2115, 104
  %v2448 = vpop.permute.xlu0 %2447
  %2449 = vrot.lane.b32.xlu0 %v2115, 72
  %v2450 = vpop.permute.xlu0 %2449
  %v2452 = vsel %vm60, %v2448, 0
  %v2455 = vsel %vm60, %v2450, 0
  %2457 = vmatprep.subr.bf16.mxu0 0
  %2458 = vmatpush1.bf16.xpose.msra.mxu0 %v2455
  %2459 = vmatprep.subr.bf16.mxu0 0
  %2460 = vmatpush1.bf16.xpose.msra.mxu0 0
  %2461 = vmatprep.subr.bf16.mxu0 0
  %2462 = vmatpush1.bf16.xpose.msra.mxu0 0
  %2463 = vmatprep.subr.bf16.mxu0 0
  %2464 = vmatpush1.bf16.xpose.msra.mxu0 0
  %2465 = vmatprep.subr.bf16.mxu0 0
  %2466 = vmatpush1.bf16.xpose.msra.mxu0 0
  %2467 = vmatprep.subr.bf16.mxu0 0
  %2468 = vmatpush1.bf16.xpose.msra.mxu0 0
  %2469 = vmatprep.subr.bf16.mxu0 0
  %2470 = vmatpush1.bf16.xpose.msra.mxu0 0
  %2471 = vmatprep.subr.bf16.mxu0 0
  %2472 = vmatpush1.bf16.xpose.msra.mxu0 0
  %2473 = vmatprep.subr.bf16.mxu0 0
  %2474 = vmatpush1.bf16.xpose.msra.mxu0 0
  %2475 = vmatprep.subr.bf16.mxu0 0
  %2476 = vmatpush1.bf16.xpose.msra.mxu0 0
  %2477 = vmatprep.subr.bf16.mxu0 0
  %2478 = vmatpush1.bf16.xpose.msra.mxu0 0
  %2479 = vmatprep.subr.bf16.mxu0 0
  %2480 = vmatpush1.bf16.xpose.msra.mxu0 0
  %2481 = vmatprep.subr.bf16.mxu0 0
  %2482 = vmatpush1.bf16.xpose.msra.mxu0 0
  %2483 = vmatprep.subr.bf16.mxu0 0
  %2484 = vmatpush1.bf16.xpose.msra.mxu0 0
  %2485 = vmatprep.subr.bf16.mxu0 0
  %2486 = vmatpush1.bf16.xpose.msra.mxu0 0
  %2487 = vmatprep.subr.bf16.mxu0 0
  %2488 = vmatpush1.bf16.xpose.msra.mxu0 0
  %2489 = vmatprep.mubr.bf16.mxu0 0
  %2490 = vmatmul.mubr.bf16.gmra.mrb[0].mxu0 %v2452
  %v2491 = vpop.f32.mrb[0].mxu0
  %v2492 = vadd.f32 0.0, %v2491
  %v2493 = vpop.f32.mrb[0].mxu0
  %v2494 = vpop.f32.mrb[0].mxu0
  %v2495 = vpop.f32.mrb[0].mxu0
  %2496 = vdwg.mxu0
  %v2497 = vmul.f32 %v2492, 0.35355338
  %v2498 = vsel %vm250, %v2497, -inf
  %2499 = vmax.xlane.f32.xlu0 %v2498
  %v2500 = vpop.xlane.xlu0 %2499
  %v2501 = vsub.f32 %v2497, %v2500
  %v2502 = vmul.f32 %v2501, 1.442695
  %v2503 = vpow.pop %v2502
  %v2504 = vsel %vm250, %v2503, 0.0
  %2505 = vadd.xlane.f32.xlu0 %v2504
  %v2506 = vpop.xlane.xlu0 %2505
  %v2507 = vrcp.pop %v2506
  %v2508 = vmul.f32 %v2503, %v2507
  %v2509 = vpack.c.bf16 %v2508, %v2508
  %2510 = vrot.lane.b32.xlu0 %v2115, 40
  %v2511 = vpop.permute.xlu0 %2510
  %v2513 = vsel %vm265, %v2509, 0
  %v2516 = vand.u32 %v2511, %v272
  %2518 = vmatprep.subr.bf16.mxu0 0
  %2519 = vmatpush1.bf16.msra.mxu0 %v2516
  %2520 = vmatprep.subr.bf16.mxu0 0
  %2521 = vmatpush1.bf16.msra.mxu0 0
  %2522 = vmatprep.subr.bf16.mxu0 0
  %2523 = vmatpush1.bf16.msra.mxu0 0
  %2524 = vmatprep.subr.bf16.mxu0 0
  %2525 = vmatpush1.bf16.msra.mxu0 0
  %2526 = vmatprep.subr.bf16.mxu0 0
  %2527 = vmatpush1.bf16.msra.mxu0 0
  %2528 = vmatprep.subr.bf16.mxu0 0
  %2529 = vmatpush1.bf16.msra.mxu0 0
  %2530 = vmatprep.subr.bf16.mxu0 0
  %2531 = vmatpush1.bf16.msra.mxu0 0
  %2532 = vmatprep.subr.bf16.mxu0 0
  %2533 = vmatpush1.bf16.msra.mxu0 0
  %2534 = vmatprep.subr.bf16.mxu0 0
  %2535 = vmatpush1.bf16.msra.mxu0 0
  %2536 = vmatprep.subr.bf16.mxu0 0
  %2537 = vmatpush1.bf16.msra.mxu0 0
  %2538 = vmatprep.subr.bf16.mxu0 0
  %2539 = vmatpush1.bf16.msra.mxu0 0
  %2540 = vmatprep.subr.bf16.mxu0 0
  %2541 = vmatpush1.bf16.msra.mxu0 0
  %2542 = vmatprep.subr.bf16.mxu0 0
  %2543 = vmatpush1.bf16.msra.mxu0 0
  %2544 = vmatprep.subr.bf16.mxu0 0
  %2545 = vmatpush1.bf16.msra.mxu0 0
  %2546 = vmatprep.subr.bf16.mxu0 0
  %2547 = vmatpush1.bf16.msra.mxu0 0
  %2548 = vmatprep.subr.bf16.mxu0 0
  %2549 = vmatpush1.bf16.msra.mxu0 0
  %2550 = vmatprep.mubr.bf16.mxu0 0
  %2551 = vmatmul.mubr.bf16.gmra.mrb[0].mxu0 %v2513
  %v2552 = vpop.f32.mrb[0].mxu0
  %v2553 = vadd.f32 0.0, %v2552
  %v2554 = vpop.f32.mrb[0].mxu0
  %v2555 = vpop.f32.mrb[0].mxu0
  %v2556 = vpop.f32.mrb[0].mxu0
  %2557 = vdwg.mxu0
  %2559 = vrot.lane.b32.xlu0 %v2331, 8
  %v2560 = vpop.permute.xlu0 %2559
  %2563 = vrot.lane.b32.xlu0 %v2442, 16
  %v2564 = vpop.permute.xlu0 %2563
  %2567 = vrot.lane.b32.xlu0 %v2553, 24
  %v2568 = vpop.permute.xlu0 %2567
  %v2570 = vsel %vm60, %v2220, %v2560
  %v2571 = vsel %vm662, %v2570, %v2564
  %v2572 = vsel %vm664, %v2571, %v2568
  %v2573 = vpack.c.bf16 %v2572, %v2572
  %v2575 = vunpack.c.l.b16 %v2573
  %v2576 = vpack.c.b16 %v2575, %v2575
  %v2577 = vrot.slane %v2576, 6
  %vm2579 = vcmask 257026
  %vm2580 = vsmask.f32 3328
  %vm2581 = vmand %vm2579, %vm2580
  %v2582 = vld [vmem:[#allocation2 + $0x4] sm:$0xc]
  %v2583 = vsel %vm2581, %v2577, %v2582
  %2584 = vst [vmem:[#allocation2 + $0x4] sm:$0xc] %v2583
  %v2585 = vpack.c.bf16 %v194, %v189
  %v2587 = vshrl.u32 %v2585, 16
  %v2589 = vrot.slane %v2587, 3
  %v2590 = vshll.u32 %v2585, 16
  %v2592 = vrot.slane %v2590, 4
  %v2593 = vor.u32 %v2589, %v2592
  %2594 = vrot.lane.b32.xlu0 %v2593, 96
  %v2595 = vpop.permute.xlu0 %2594
  %v2597 = vsel %vm60, %v2593, 0
  %v2600 = vsel %vm60, %v2595, 0
  %2602 = vmatprep.subr.bf16.mxu0 0
  %2603 = vmatpush1.bf16.xpose.msra.mxu0 %v2600
  %2604 = vmatprep.subr.bf16.mxu0 0
  %2605 = vmatpush1.bf16.xpose.msra.mxu0 0
  %2606 = vmatprep.subr.bf16.mxu0 0
  %2607 = vmatpush1.bf16.xpose.msra.mxu0 0
  %2608 = vmatprep.subr.bf16.mxu0 0
  %2609 = vmatpush1.bf16.xpose.msra.mxu0 0
  %2610 = vmatprep.subr.bf16.mxu0 0
  %2611 = vmatpush1.bf16.xpose.msra.mxu0 0
  %2612 = vmatprep.subr.bf16.mxu0 0
  %2613 = vmatpush1.bf16.xpose.msra.mxu0 0
  %2614 = vmatprep.subr.bf16.mxu0 0
  %2615 = vmatpush1.bf16.xpose.msra.mxu0 0
  %2616 = vmatprep.subr.bf16.mxu0 0
  %2617 = vmatpush1.bf16.xpose.msra.mxu0 0
  %2618 = vmatprep.subr.bf16.mxu0 0
  %2619 = vmatpush1.bf16.xpose.msra.mxu0 0
  %2620 = vmatprep.subr.bf16.mxu0 0
  %2621 = vmatpush1.bf16.xpose.msra.mxu0 0
  %2622 = vmatprep.subr.bf16.mxu0 0
  %2623 = vmatpush1.bf16.xpose.msra.mxu0 0
  %2624 = vmatprep.subr.bf16.mxu0 0
  %2625 = vmatpush1.bf16.xpose.msra.mxu0 0
  %2626 = vmatprep.subr.bf16.mxu0 0
  %2627 = vmatpush1.bf16.xpose.msra.mxu0 0
  %2628 = vmatprep.subr.bf16.mxu0 0
  %2629 = vmatpush1.bf16.xpose.msra.mxu0 0
  %2630 = vmatprep.subr.bf16.mxu0 0
  %2631 = vmatpush1.bf16.xpose.msra.mxu0 0
  %2632 = vmatprep.subr.bf16.mxu0 0
  %2633 = vmatpush1.bf16.xpose.msra.mxu0 0
  %2634 = vmatprep.mubr.bf16.mxu0 0
  %2635 = vmatmul.mubr.bf16.gmra.mrb[0].mxu0 %v2597
  %v2636 = vpop.f32.mrb[0].mxu0
  %v2637 = vadd.f32 0.0, %v2636
  %v2638 = vpop.f32.mrb[0].mxu0
  %v2639 = vpop.f32.mrb[0].mxu0
  %v2640 = vpop.f32.mrb[0].mxu0
  %2641 = vdwg.mxu0
  %v2642 = vmul.f32 %v2637, 0.35355338
  %v2643 = vsel %vm250, %v2642, -inf
  %2644 = vmax.xlane.f32.xlu0 %v2643
  %v2645 = vpop.xlane.xlu0 %2644
  %v2646 = vsub.f32 %v2642, %v2645
  %v2647 = vmul.f32 %v2646, 1.442695
  %v2648 = vpow.pop %v2647
  %v2649 = vsel %vm250, %v2648, 0.0
  %2650 = vadd.xlane.f32.xlu0 %v2649
  %v2651 = vpop.xlane.xlu0 %2650
  %v2652 = vrcp.pop %v2651
  %v2653 = vmul.f32 %v2648, %v2652
  %v2654 = vpack.c.bf16 %v2653, %v2653
  %2655 = vrot.lane.b32.xlu0 %v2593, 64
  %v2656 = vpop.permute.xlu0 %2655
  %v2658 = vsel %vm265, %v2654, 0
  %v2661 = vand.u32 %v2656, %v272
  %2663 = vmatprep.subr.bf16.mxu0 0
  %2664 = vmatpush1.bf16.msra.mxu0 %v2661
  %2665 = vmatprep.subr.bf16.mxu0 0
  %2666 = vmatpush1.bf16.msra.mxu0 0
  %2667 = vmatprep.subr.bf16.mxu0 0
  %2668 = vmatpush1.bf16.msra.mxu0 0
  %2669 = vmatprep.subr.bf16.mxu0 0
  %2670 = vmatpush1.bf16.msra.mxu0 0
  %2671 = vmatprep.subr.bf16.mxu0 0
  %2672 = vmatpush1.bf16.msra.mxu0 0
  %2673 = vmatprep.subr.bf16.mxu0 0
  %2674 = vmatpush1.bf16.msra.mxu0 0
  %2675 = vmatprep.subr.bf16.mxu0 0
  %2676 = vmatpush1.bf16.msra.mxu0 0
  %2677 = vmatprep.subr.bf16.mxu0 0
  %2678 = vmatpush1.bf16.msra.mxu0 0
  %2679 = vmatprep.subr.bf16.mxu0 0
  %2680 = vmatpush1.bf16.msra.mxu0 0
  %2681 = vmatprep.subr.bf16.mxu0 0
  %2682 = vmatpush1.bf16.msra.mxu0 0
  %2683 = vmatprep.subr.bf16.mxu0 0
  %2684 = vmatpush1.bf16.msra.mxu0 0
  %2685 = vmatprep.subr.bf16.mxu0 0
  %2686 = vmatpush1.bf16.msra.mxu0 0
  %2687 = vmatprep.subr.bf16.mxu0 0
  %2688 = vmatpush1.bf16.msra.mxu0 0
  %2689 = vmatprep.subr.bf16.mxu0 0
  %2690 = vmatpush1.bf16.msra.mxu0 0
  %2691 = vmatprep.subr.bf16.mxu0 0
  %2692 = vmatpush1.bf16.msra.mxu0 0
  %2693 = vmatprep.subr.bf16.mxu0 0
  %2694 = vmatpush1.bf16.msra.mxu0 0
  %2695 = vmatprep.mubr.bf16.mxu0 0
  %2696 = vmatmul.mubr.bf16.gmra.mrb[0].mxu0 %v2658
  %v2697 = vpop.f32.mrb[0].mxu0
  %v2698 = vadd.f32 0.0, %v2697
  %v2699 = vpop.f32.mrb[0].mxu0
  %v2700 = vpop.f32.mrb[0].mxu0
  %v2701 = vpop.f32.mrb[0].mxu0
  %2702 = vdwg.mxu0
  %2703 = vrot.lane.b32.xlu0 %v2593, 120
  %v2704 = vpop.permute.xlu0 %2703
  %2705 = vrot.lane.b32.xlu0 %v2593, 88
  %v2706 = vpop.permute.xlu0 %2705
  %v2708 = vsel %vm60, %v2704, 0
  %v2711 = vsel %vm60, %v2706, 0
  %2713 = vmatprep.subr.bf16.mxu0 0
  %2714 = vmatpush1.bf16.xpose.msra.mxu0 %v2711
  %2715 = vmatprep.subr.bf16.mxu0 0
  %2716 = vmatpush1.bf16.xpose.msra.mxu0 0
  %2717 = vmatprep.subr.bf16.mxu0 0
  %2718 = vmatpush1.bf16.xpose.msra.mxu0 0
  %2719 = vmatprep.subr.bf16.mxu0 0
  %2720 = vmatpush1.bf16.xpose.msra.mxu0 0
  %2721 = vmatprep.subr.bf16.mxu0 0
  %2722 = vmatpush1.bf16.xpose.msra.mxu0 0
  %2723 = vmatprep.subr.bf16.mxu0 0
  %2724 = vmatpush1.bf16.xpose.msra.mxu0 0
  %2725 = vmatprep.subr.bf16.mxu0 0
  %2726 = vmatpush1.bf16.xpose.msra.mxu0 0
  %2727 = vmatprep.subr.bf16.mxu0 0
  %2728 = vmatpush1.bf16.xpose.msra.mxu0 0
  %2729 = vmatprep.subr.bf16.mxu0 0
  %2730 = vmatpush1.bf16.xpose.msra.mxu0 0
  %2731 = vmatprep.subr.bf16.mxu0 0
  %2732 = vmatpush1.bf16.xpose.msra.mxu0 0
  %2733 = vmatprep.subr.bf16.mxu0 0
  %2734 = vmatpush1.bf16.xpose.msra.mxu0 0
  %2735 = vmatprep.subr.bf16.mxu0 0
  %2736 = vmatpush1.bf16.xpose.msra.mxu0 0
  %2737 = vmatprep.subr.bf16.mxu0 0
  %2738 = vmatpush1.bf16.xpose.msra.mxu0 0
  %2739 = vmatprep.subr.bf16.mxu0 0
  %2740 = vmatpush1.bf16.xpose.msra.mxu0 0
  %2741 = vmatprep.subr.bf16.mxu0 0
  %2742 = vmatpush1.bf16.xpose.msra.mxu0 0
  %2743 = vmatprep.subr.bf16.mxu0 0
  %2744 = vmatpush1.bf16.xpose.msra.mxu0 0
  %2745 = vmatprep.mubr.bf16.mxu0 0
  %2746 = vmatmul.mubr.bf16.gmra.mrb[0].mxu0 %v2708
  %v2747 = vpop.f32.mrb[0].mxu0
  %v2748 = vadd.f32 0.0, %v2747
  %v2749 = vpop.f32.mrb[0].mxu0
  %v2750 = vpop.f32.mrb[0].mxu0
  %v2751 = vpop.f32.mrb[0].mxu0
  %2752 = vdwg.mxu0
  %v2753 = vmul.f32 %v2748, 0.35355338
  %v2754 = vsel %vm250, %v2753, -inf
  %2755 = vmax.xlane.f32.xlu0 %v2754
  %v2756 = vpop.xlane.xlu0 %2755
  %v2757 = vsub.f32 %v2753, %v2756
  %v2758 = vmul.f32 %v2757, 1.442695
  %v2759 = vpow.pop %v2758
  %v2760 = vsel %vm250, %v2759, 0.0
  %2761 = vadd.xlane.f32.xlu0 %v2760
  %v2762 = vpop.xlane.xlu0 %2761
  %v2763 = vrcp.pop %v2762
  %v2764 = vmul.f32 %v2759, %v2763
  %v2765 = vpack.c.bf16 %v2764, %v2764
  %2766 = vrot.lane.b32.xlu0 %v2593, 56
  %v2767 = vpop.permute.xlu0 %2766
  %v2769 = vsel %vm265, %v2765, 0
  %v2772 = vand.u32 %v2767, %v272
  %2774 = vmatprep.subr.bf16.mxu0 0
  %2775 = vmatpush1.bf16.msra.mxu0 %v2772
  %2776 = vmatprep.subr.bf16.mxu0 0
  %2777 = vmatpush1.bf16.msra.mxu0 0
  %2778 = vmatprep.subr.bf16.mxu0 0
  %2779 = vmatpush1.bf16.msra.mxu0 0
  %2780 = vmatprep.subr.bf16.mxu0 0
  %2781 = vmatpush1.bf16.msra.mxu0 0
  %2782 = vmatprep.subr.bf16.mxu0 0
  %2783 = vmatpush1.bf16.msra.mxu0 0
  %2784 = vmatprep.subr.bf16.mxu0 0
  %2785 = vmatpush1.bf16.msra.mxu0 0
  %2786 = vmatprep.subr.bf16.mxu0 0
  %2787 = vmatpush1.bf16.msra.mxu0 0
  %2788 = vmatprep.subr.bf16.mxu0 0
  %2789 = vmatpush1.bf16.msra.mxu0 0
  %2790 = vmatprep.subr.bf16.mxu0 0
  %2791 = vmatpush1.bf16.msra.mxu0 0
  %2792 = vmatprep.subr.bf16.mxu0 0
  %2793 = vmatpush1.bf16.msra.mxu0 0
  %2794 = vmatprep.subr.bf16.mxu0 0
  %2795 = vmatpush1.bf16.msra.mxu0 0
  %2796 = vmatprep.subr.bf16.mxu0 0
  %2797 = vmatpush1.bf16.msra.mxu0 0
  %2798 = vmatprep.subr.bf16.mxu0 0
  %2799 = vmatpush1.bf16.msra.mxu0 0
  %2800 = vmatprep.subr.bf16.mxu0 0
  %2801 = vmatpush1.bf16.msra.mxu0 0
  %2802 = vmatprep.subr.bf16.mxu0 0
  %2803 = vmatpush1.bf16.msra.mxu0 0
  %2804 = vmatprep.subr.bf16.mxu0 0
  %2805 = vmatpush1.bf16.msra.mxu0 0
  %2806 = vmatprep.mubr.bf16.mxu0 0
  %2807 = vmatmul.mubr.bf16.gmra.mrb[0].mxu0 %v2769
  %v2808 = vpop.f32.mrb[0].mxu0
  %v2809 = vadd.f32 0.0, %v2808
  %v2810 = vpop.f32.mrb[0].mxu0
  %v2811 = vpop.f32.mrb[0].mxu0
  %v2812 = vpop.f32.mrb[0].mxu0
  %2813 = vdwg.mxu0
  %2814 = vrot.lane.b32.xlu0 %v2593, 112
  %v2815 = vpop.permute.xlu0 %2814
  %2816 = vrot.lane.b32.xlu0 %v2593, 80
  %v2817 = vpop.permute.xlu0 %2816
  %v2819 = vsel %vm60, %v2815, 0
  %v2822 = vsel %vm60, %v2817, 0
  %2824 = vmatprep.subr.bf16.mxu0 0
  %2825 = vmatpush1.bf16.xpose.msra.mxu0 %v2822
  %2826 = vmatprep.subr.bf16.mxu0 0
  %2827 = vmatpush1.bf16.xpose.msra.mxu0 0
  %2828 = vmatprep.subr.bf16.mxu0 0
  %2829 = vmatpush1.bf16.xpose.msra.mxu0 0
  %2830 = vmatprep.subr.bf16.mxu0 0
  %2831 = vmatpush1.bf16.xpose.msra.mxu0 0
  %2832 = vmatprep.subr.bf16.mxu0 0
  %2833 = vmatpush1.bf16.xpose.msra.mxu0 0
  %2834 = vmatprep.subr.bf16.mxu0 0
  %2835 = vmatpush1.bf16.xpose.msra.mxu0 0
  %2836 = vmatprep.subr.bf16.mxu0 0
  %2837 = vmatpush1.bf16.xpose.msra.mxu0 0
  %2838 = vmatprep.subr.bf16.mxu0 0
  %2839 = vmatpush1.bf16.xpose.msra.mxu0 0
  %2840 = vmatprep.subr.bf16.mxu0 0
  %2841 = vmatpush1.bf16.xpose.msra.mxu0 0
  %2842 = vmatprep.subr.bf16.mxu0 0
  %2843 = vmatpush1.bf16.xpose.msra.mxu0 0
  %2844 = vmatprep.subr.bf16.mxu0 0
  %2845 = vmatpush1.bf16.xpose.msra.mxu0 0
  %2846 = vmatprep.subr.bf16.mxu0 0
  %2847 = vmatpush1.bf16.xpose.msra.mxu0 0
  %2848 = vmatprep.subr.bf16.mxu0 0
  %2849 = vmatpush1.bf16.xpose.msra.mxu0 0
  %2850 = vmatprep.subr.bf16.mxu0 0
  %2851 = vmatpush1.bf16.xpose.msra.mxu0 0
  %2852 = vmatprep.subr.bf16.mxu0 0
  %2853 = vmatpush1.bf16.xpose.msra.mxu0 0
  %2854 = vmatprep.subr.bf16.mxu0 0
  %2855 = vmatpush1.bf16.xpose.msra.mxu0 0
  %2856 = vmatprep.mubr.bf16.mxu0 0
  %2857 = vmatmul.mubr.bf16.gmra.mrb[0].mxu0 %v2819
  %v2858 = vpop.f32.mrb[0].mxu0
  %v2859 = vadd.f32 0.0, %v2858
  %v2860 = vpop.f32.mrb[0].mxu0
  %v2861 = vpop.f32.mrb[0].mxu0
  %v2862 = vpop.f32.mrb[0].mxu0
  %2863 = vdwg.mxu0
  %v2864 = vmul.f32 %v2859, 0.35355338
  %v2865 = vsel %vm250, %v2864, -inf
  %2866 = vmax.xlane.f32.xlu0 %v2865
  %v2867 = vpop.xlane.xlu0 %2866
  %v2868 = vsub.f32 %v2864, %v2867
  %v2869 = vmul.f32 %v2868, 1.442695
  %v2870 = vpow.pop %v2869
  %v2871 = vsel %vm250, %v2870, 0.0
  %2872 = vadd.xlane.f32.xlu0 %v2871
  %v2873 = vpop.xlane.xlu0 %2872
  %v2874 = vrcp.pop %v2873
  %v2875 = vmul.f32 %v2870, %v2874
  %v2876 = vpack.c.bf16 %v2875, %v2875
  %2877 = vrot.lane.b32.xlu0 %v2593, 48
  %v2878 = vpop.permute.xlu0 %2877
  %v2880 = vsel %vm265, %v2876, 0
  %v2883 = vand.u32 %v2878, %v272
  %2885 = vmatprep.subr.bf16.mxu0 0
  %2886 = vmatpush1.bf16.msra.mxu0 %v2883
  %2887 = vmatprep.subr.bf16.mxu0 0
  %2888 = vmatpush1.bf16.msra.mxu0 0
  %2889 = vmatprep.subr.bf16.mxu0 0
  %2890 = vmatpush1.bf16.msra.mxu0 0
  %2891 = vmatprep.subr.bf16.mxu0 0
  %2892 = vmatpush1.bf16.msra.mxu0 0
  %2893 = vmatprep.subr.bf16.mxu0 0
  %2894 = vmatpush1.bf16.msra.mxu0 0
  %2895 = vmatprep.subr.bf16.mxu0 0
  %2896 = vmatpush1.bf16.msra.mxu0 0
  %2897 = vmatprep.subr.bf16.mxu0 0
  %2898 = vmatpush1.bf16.msra.mxu0 0
  %2899 = vmatprep.subr.bf16.mxu0 0
  %2900 = vmatpush1.bf16.msra.mxu0 0
  %2901 = vmatprep.subr.bf16.mxu0 0
  %2902 = vmatpush1.bf16.msra.mxu0 0
  %2903 = vmatprep.subr.bf16.mxu0 0
  %2904 = vmatpush1.bf16.msra.mxu0 0
  %2905 = vmatprep.subr.bf16.mxu0 0
  %2906 = vmatpush1.bf16.msra.mxu0 0
  %2907 = vmatprep.subr.bf16.mxu0 0
  %2908 = vmatpush1.bf16.msra.mxu0 0
  %2909 = vmatprep.subr.bf16.mxu0 0
  %2910 = vmatpush1.bf16.msra.mxu0 0
  %2911 = vmatprep.subr.bf16.mxu0 0
  %2912 = vmatpush1.bf16.msra.mxu0 0
  %2913 = vmatprep.subr.bf16.mxu0 0
  %2914 = vmatpush1.bf16.msra.mxu0 0
  %2915 = vmatprep.subr.bf16.mxu0 0
  %2916 = vmatpush1.bf16.msra.mxu0 0
  %2917 = vmatprep.mubr.bf16.mxu0 0
  %2918 = vmatmul.mubr.bf16.gmra.mrb[0].mxu0 %v2880
  %v2919 = vpop.f32.mrb[0].mxu0
  %v2920 = vadd.f32 0.0, %v2919
  %v2921 = vpop.f32.mrb[0].mxu0
  %v2922 = vpop.f32.mrb[0].mxu0
  %v2923 = vpop.f32.mrb[0].mxu0
  %2924 = vdwg.mxu0
  %2925 = vrot.lane.b32.xlu0 %v2593, 104
  %v2926 = vpop.permute.xlu0 %2925
  %2927 = vrot.lane.b32.xlu0 %v2593, 72
  %v2928 = vpop.permute.xlu0 %2927
  %v2930 = vsel %vm60, %v2926, 0
  %v2933 = vsel %vm60, %v2928, 0
  %2935 = vmatprep.subr.bf16.mxu0 0
  %2936 = vmatpush1.bf16.xpose.msra.mxu0 %v2933
  %2937 = vmatprep.subr.bf16.mxu0 0
  %2938 = vmatpush1.bf16.xpose.msra.mxu0 0
  %2939 = vmatprep.subr.bf16.mxu0 0
  %2940 = vmatpush1.bf16.xpose.msra.mxu0 0
  %2941 = vmatprep.subr.bf16.mxu0 0
  %2942 = vmatpush1.bf16.xpose.msra.mxu0 0
  %2943 = vmatprep.subr.bf16.mxu0 0
  %2944 = vmatpush1.bf16.xpose.msra.mxu0 0
  %2945 = vmatprep.subr.bf16.mxu0 0
  %2946 = vmatpush1.bf16.xpose.msra.mxu0 0
  %2947 = vmatprep.subr.bf16.mxu0 0
  %2948 = vmatpush1.bf16.xpose.msra.mxu0 0
  %2949 = vmatprep.subr.bf16.mxu0 0
  %2950 = vmatpush1.bf16.xpose.msra.mxu0 0
  %2951 = vmatprep.subr.bf16.mxu0 0
  %2952 = vmatpush1.bf16.xpose.msra.mxu0 0
  %2953 = vmatprep.subr.bf16.mxu0 0
  %2954 = vmatpush1.bf16.xpose.msra.mxu0 0
  %2955 = vmatprep.subr.bf16.mxu0 0
  %2956 = vmatpush1.bf16.xpose.msra.mxu0 0
  %2957 = vmatprep.subr.bf16.mxu0 0
  %2958 = vmatpush1.bf16.xpose.msra.mxu0 0
  %2959 = vmatprep.subr.bf16.mxu0 0
  %2960 = vmatpush1.bf16.xpose.msra.mxu0 0
  %2961 = vmatprep.subr.bf16.mxu0 0
  %2962 = vmatpush1.bf16.xpose.msra.mxu0 0
  %2963 = vmatprep.subr.bf16.mxu0 0
  %2964 = vmatpush1.bf16.xpose.msra.mxu0 0
  %2965 = vmatprep.subr.bf16.mxu0 0
  %2966 = vmatpush1.bf16.xpose.msra.mxu0 0
  %2967 = vmatprep.mubr.bf16.mxu0 0
  %2968 = vmatmul.mubr.bf16.gmra.mrb[0].mxu0 %v2930
  %v2969 = vpop.f32.mrb[0].mxu0
  %v2970 = vadd.f32 0.0, %v2969
  %v2971 = vpop.f32.mrb[0].mxu0
  %v2972 = vpop.f32.mrb[0].mxu0
  %v2973 = vpop.f32.mrb[0].mxu0
  %2974 = vdwg.mxu0
  %v2975 = vmul.f32 %v2970, 0.35355338
  %v2976 = vsel %vm250, %v2975, -inf
  %2977 = vmax.xlane.f32.xlu0 %v2976
  %v2978 = vpop.xlane.xlu0 %2977
  %v2979 = vsub.f32 %v2975, %v2978
  %v2980 = vmul.f32 %v2979, 1.442695
  %v2981 = vpow.pop %v2980
  %v2982 = vsel %vm250, %v2981, 0.0
  %2983 = vadd.xlane.f32.xlu0 %v2982
  %v2984 = vpop.xlane.xlu0 %2983
  %v2985 = vrcp.pop %v2984
  %v2986 = vmul.f32 %v2981, %v2985
  %v2987 = vpack.c.bf16 %v2986, %v2986
  %2988 = vrot.lane.b32.xlu0 %v2593, 40
  %v2989 = vpop.permute.xlu0 %2988
  %v2991 = vsel %vm265, %v2987, 0
  %v2994 = vand.u32 %v2989, %v272
  %2996 = vmatprep.subr.bf16.mxu0 0
  %2997 = vmatpush1.bf16.msra.mxu0 %v2994
  %2998 = vmatprep.subr.bf16.mxu0 0
  %2999 = vmatpush1.bf16.msra.mxu0 0
  %3000 = vmatprep.subr.bf16.mxu0 0
  %3001 = vmatpush1.bf16.msra.mxu0 0
  %3002 = vmatprep.subr.bf16.mxu0 0
  %3003 = vmatpush1.bf16.msra.mxu0 0
  %3004 = vmatprep.subr.bf16.mxu0 0
  %3005 = vmatpush1.bf16.msra.mxu0 0
  %3006 = vmatprep.subr.bf16.mxu0 0
  %3007 = vmatpush1.bf16.msra.mxu0 0
  %3008 = vmatprep.subr.bf16.mxu0 0
  %3009 = vmatpush1.bf16.msra.mxu0 0
  %3010 = vmatprep.subr.bf16.mxu0 0
  %3011 = vmatpush1.bf16.msra.mxu0 0
  %3012 = vmatprep.subr.bf16.mxu0 0
  %3013 = vmatpush1.bf16.msra.mxu0 0
  %3014 = vmatprep.subr.bf16.mxu0 0
  %3015 = vmatpush1.bf16.msra.mxu0 0
  %3016 = vmatprep.subr.bf16.mxu0 0
  %3017 = vmatpush1.bf16.msra.mxu0 0
  %3018 = vmatprep.subr.bf16.mxu0 0
  %3019 = vmatpush1.bf16.msra.mxu0 0
  %3020 = vmatprep.subr.bf16.mxu0 0
  %3021 = vmatpush1.bf16.msra.mxu0 0
  %3022 = vmatprep.subr.bf16.mxu0 0
  %3023 = vmatpush1.bf16.msra.mxu0 0
  %3024 = vmatprep.subr.bf16.mxu0 0
  %3025 = vmatpush1.bf16.msra.mxu0 0
  %3026 = vmatprep.subr.bf16.mxu0 0
  %3027 = vmatpush1.bf16.msra.mxu0 0
  %3028 = vmatprep.mubr.bf16.mxu0 0
  %3029 = vmatmul.mubr.bf16.gmra.mrb[0].mxu0 %v2991
  %v3030 = vpop.f32.mrb[0].mxu0
  %v3031 = vadd.f32 0.0, %v3030
  %v3032 = vpop.f32.mrb[0].mxu0
  %v3033 = vpop.f32.mrb[0].mxu0
  %v3034 = vpop.f32.mrb[0].mxu0
  %3035 = vdwg.mxu0
  %3037 = vrot.lane.b32.xlu0 %v2809, 8
  %v3038 = vpop.permute.xlu0 %3037
  %3041 = vrot.lane.b32.xlu0 %v2920, 16
  %v3042 = vpop.permute.xlu0 %3041
  %3045 = vrot.lane.b32.xlu0 %v3031, 24
  %v3046 = vpop.permute.xlu0 %3045
  %v3048 = vsel %vm60, %v2698, %v3038
  %v3049 = vsel %vm662, %v3048, %v3042
  %v3050 = vsel %vm664, %v3049, %v3046
  %v3051 = vpack.c.bf16 %v3050, %v3050
  %v3053 = vunpack.c.l.b16 %v3051
  %v3054 = vpack.c.b16 %v3053, %v3053
  %v3056 = vshll.u32 %v3054, 16
  %v3058 = vrot.slane %v3056, 5
  %v3059 = vshrl.u32 %v3054, 16
  %v3061 = vrot.slane %v3059, 4
  %v3062 = vor.u32 %v3061, %v3058
  %v3063 = vrot.slane %v3062, 4
  %vm3066 = vcmask 257027
  %vm3067 = vsmask.f32 7950
  %vm3068 = vmand %vm3066, %vm3067
  %v3069 = vld [vmem:[#allocation2 + $0x4] sm:$0x8]
  %v3070 = vsel %vm3068, %v3058, %v3069
  %3071 = vst [vmem:[#allocation2 + $0x4] sm:$0x8] %v3070
  %vm3072 = vcmask 253952
  %3073 = vst.msk [vmem:[#allocation2 + $0x8] sm:$0x1] %vm3072, %v3063
  %v3074 = vpack.c.bf16 %v194, %v194
  %v3076 = vrot.slane %v3074, 1
  %3077 = vrot.lane.b32.xlu0 %v3076, 96
  %v3078 = vpop.permute.xlu0 %3077
  %v3080 = vsel %vm60, %v3076, 0
  %v3083 = vsel %vm60, %v3078, 0
  %3085 = vmatprep.subr.bf16.mxu0 0
  %3086 = vmatpush1.bf16.xpose.msra.mxu0 %v3083
  %3087 = vmatprep.subr.bf16.mxu0 0
  %3088 = vmatpush1.bf16.xpose.msra.mxu0 0
  %3089 = vmatprep.subr.bf16.mxu0 0
  %3090 = vmatpush1.bf16.xpose.msra.mxu0 0
  %3091 = vmatprep.subr.bf16.mxu0 0
  %3092 = vmatpush1.bf16.xpose.msra.mxu0 0
  %3093 = vmatprep.subr.bf16.mxu0 0
  %3094 = vmatpush1.bf16.xpose.msra.mxu0 0
  %3095 = vmatprep.subr.bf16.mxu0 0
  %3096 = vmatpush1.bf16.xpose.msra.mxu0 0
  %3097 = vmatprep.subr.bf16.mxu0 0
  %3098 = vmatpush1.bf16.xpose.msra.mxu0 0
  %3099 = vmatprep.subr.bf16.mxu0 0
  %3100 = vmatpush1.bf16.xpose.msra.mxu0 0
  %3101 = vmatprep.subr.bf16.mxu0 0
  %3102 = vmatpush1.bf16.xpose.msra.mxu0 0
  %3103 = vmatprep.subr.bf16.mxu0 0
  %3104 = vmatpush1.bf16.xpose.msra.mxu0 0
  %3105 = vmatprep.subr.bf16.mxu0 0
  %3106 = vmatpush1.bf16.xpose.msra.mxu0 0
  %3107 = vmatprep.subr.bf16.mxu0 0
  %3108 = vmatpush1.bf16.xpose.msra.mxu0 0
  %3109 = vmatprep.subr.bf16.mxu0 0
  %3110 = vmatpush1.bf16.xpose.msra.mxu0 0
  %3111 = vmatprep.subr.bf16.mxu0 0
  %3112 = vmatpush1.bf16.xpose.msra.mxu0 0
  %3113 = vmatprep.subr.bf16.mxu0 0
  %3114 = vmatpush1.bf16.xpose.msra.mxu0 0
  %3115 = vmatprep.subr.bf16.mxu0 0
  %3116 = vmatpush1.bf16.xpose.msra.mxu0 0
  %3117 = vmatprep.mubr.bf16.mxu0 0
  %3118 = vmatmul.mubr.bf16.gmra.mrb[0].mxu0 %v3080
  %v3119 = vpop.f32.mrb[0].mxu0
  %v3120 = vadd.f32 0.0, %v3119
  %v3121 = vpop.f32.mrb[0].mxu0
  %v3122 = vpop.f32.mrb[0].mxu0
  %v3123 = vpop.f32.mrb[0].mxu0
  %3124 = vdwg.mxu0
  %v3125 = vmul.f32 %v3120, 0.35355338
  %v3126 = vsel %vm250, %v3125, -inf
  %3127 = vmax.xlane.f32.xlu0 %v3126
  %v3128 = vpop.xlane.xlu0 %3127
  %v3129 = vsub.f32 %v3125, %v3128
  %v3130 = vmul.f32 %v3129, 1.442695
  %v3131 = vpow.pop %v3130
  %v3132 = vsel %vm250, %v3131, 0.0
  %3133 = vadd.xlane.f32.xlu0 %v3132
  %v3134 = vpop.xlane.xlu0 %3133
  %v3135 = vrcp.pop %v3134
  %v3136 = vmul.f32 %v3131, %v3135
  %v3137 = vpack.c.bf16 %v3136, %v3136
  %3138 = vrot.lane.b32.xlu0 %v3076, 64
  %v3139 = vpop.permute.xlu0 %3138
  %v3141 = vsel %vm265, %v3137, 0
  %v3144 = vand.u32 %v3139, %v272
  %3146 = vmatprep.subr.bf16.mxu0 0
  %3147 = vmatpush1.bf16.msra.mxu0 %v3144
  %3148 = vmatprep.subr.bf16.mxu0 0
  %3149 = vmatpush1.bf16.msra.mxu0 0
  %3150 = vmatprep.subr.bf16.mxu0 0
  %3151 = vmatpush1.bf16.msra.mxu0 0
  %3152 = vmatprep.subr.bf16.mxu0 0
  %3153 = vmatpush1.bf16.msra.mxu0 0
  %3154 = vmatprep.subr.bf16.mxu0 0
  %3155 = vmatpush1.bf16.msra.mxu0 0
  %3156 = vmatprep.subr.bf16.mxu0 0
  %3157 = vmatpush1.bf16.msra.mxu0 0
  %3158 = vmatprep.subr.bf16.mxu0 0
  %3159 = vmatpush1.bf16.msra.mxu0 0
  %3160 = vmatprep.subr.bf16.mxu0 0
  %3161 = vmatpush1.bf16.msra.mxu0 0
  %3162 = vmatprep.subr.bf16.mxu0 0
  %3163 = vmatpush1.bf16.msra.mxu0 0
  %3164 = vmatprep.subr.bf16.mxu0 0
  %3165 = vmatpush1.bf16.msra.mxu0 0
  %3166 = vmatprep.subr.bf16.mxu0 0
  %3167 = vmatpush1.bf16.msra.mxu0 0
  %3168 = vmatprep.subr.bf16.mxu0 0
  %3169 = vmatpush1.bf16.msra.mxu0 0
  %3170 = vmatprep.subr.bf16.mxu0 0
  %3171 = vmatpush1.bf16.msra.mxu0 0
  %3172 = vmatprep.subr.bf16.mxu0 0
  %3173 = vmatpush1.bf16.msra.mxu0 0
  %3174 = vmatprep.subr.bf16.mxu0 0
  %3175 = vmatpush1.bf16.msra.mxu0 0
  %3176 = vmatprep.subr.bf16.mxu0 0
  %3177 = vmatpush1.bf16.msra.mxu0 0
  %3178 = vmatprep.mubr.bf16.mxu0 0
  %3179 = vmatmul.mubr.bf16.gmra.mrb[0].mxu0 %v3141
  %v3180 = vpop.f32.mrb[0].mxu0
  %v3181 = vadd.f32 0.0, %v3180
  %v3182 = vpop.f32.mrb[0].mxu0
  %v3183 = vpop.f32.mrb[0].mxu0
  %v3184 = vpop.f32.mrb[0].mxu0
  %3185 = vdwg.mxu0
  %3186 = vrot.lane.b32.xlu0 %v3076, 120
  %v3187 = vpop.permute.xlu0 %3186
  %3188 = vrot.lane.b32.xlu0 %v3076, 88
  %v3189 = vpop.permute.xlu0 %3188
  %v3191 = vsel %vm60, %v3187, 0
  %v3194 = vsel %vm60, %v3189, 0
  %3196 = vmatprep.subr.bf16.mxu0 0
  %3197 = vmatpush1.bf16.xpose.msra.mxu0 %v3194
  %3198 = vmatprep.subr.bf16.mxu0 0
  %3199 = vmatpush1.bf16.xpose.msra.mxu0 0
  %3200 = vmatprep.subr.bf16.mxu0 0
  %3201 = vmatpush1.bf16.xpose.msra.mxu0 0
  %3202 = vmatprep.subr.bf16.mxu0 0
  %3203 = vmatpush1.bf16.xpose.msra.mxu0 0
  %3204 = vmatprep.subr.bf16.mxu0 0
  %3205 = vmatpush1.bf16.xpose.msra.mxu0 0
  %3206 = vmatprep.subr.bf16.mxu0 0
  %3207 = vmatpush1.bf16.xpose.msra.mxu0 0
  %3208 = vmatprep.subr.bf16.mxu0 0
  %3209 = vmatpush1.bf16.xpose.msra.mxu0 0
  %3210 = vmatprep.subr.bf16.mxu0 0
  %3211 = vmatpush1.bf16.xpose.msra.mxu0 0
  %3212 = vmatprep.subr.bf16.mxu0 0
  %3213 = vmatpush1.bf16.xpose.msra.mxu0 0
  %3214 = vmatprep.subr.bf16.mxu0 0
  %3215 = vmatpush1.bf16.xpose.msra.mxu0 0
  %3216 = vmatprep.subr.bf16.mxu0 0
  %3217 = vmatpush1.bf16.xpose.msra.mxu0 0
  %3218 = vmatprep.subr.bf16.mxu0 0
  %3219 = vmatpush1.bf16.xpose.msra.mxu0 0
  %3220 = vmatprep.subr.bf16.mxu0 0
  %3221 = vmatpush1.bf16.xpose.msra.mxu0 0
  %3222 = vmatprep.subr.bf16.mxu0 0
  %3223 = vmatpush1.bf16.xpose.msra.mxu0 0
  %3224 = vmatprep.subr.bf16.mxu0 0
  %3225 = vmatpush1.bf16.xpose.msra.mxu0 0
  %3226 = vmatprep.subr.bf16.mxu0 0
  %3227 = vmatpush1.bf16.xpose.msra.mxu0 0
  %3228 = vmatprep.mubr.bf16.mxu0 0
  %3229 = vmatmul.mubr.bf16.gmra.mrb[0].mxu0 %v3191
  %v3230 = vpop.f32.mrb[0].mxu0
  %v3231 = vadd.f32 0.0, %v3230
  %v3232 = vpop.f32.mrb[0].mxu0
  %v3233 = vpop.f32.mrb[0].mxu0
  %v3234 = vpop.f32.mrb[0].mxu0
  %3235 = vdwg.mxu0
  %v3236 = vmul.f32 %v3231, 0.35355338
  %v3237 = vsel %vm250, %v3236, -inf
  %3238 = vmax.xlane.f32.xlu0 %v3237
  %v3239 = vpop.xlane.xlu0 %3238
  %v3240 = vsub.f32 %v3236, %v3239
  %v3241 = vmul.f32 %v3240, 1.442695
  %v3242 = vpow.pop %v3241
  %v3243 = vsel %vm250, %v3242, 0.0
  %3244 = vadd.xlane.f32.xlu0 %v3243
  %v3245 = vpop.xlane.xlu0 %3244
  %v3246 = vrcp.pop %v3245
  %v3247 = vmul.f32 %v3242, %v3246
  %v3248 = vpack.c.bf16 %v3247, %v3247
  %3249 = vrot.lane.b32.xlu0 %v3076, 56
  %v3250 = vpop.permute.xlu0 %3249
  %v3252 = vsel %vm265, %v3248, 0
  %v3255 = vand.u32 %v3250, %v272
  %3257 = vmatprep.subr.bf16.mxu0 0
  %3258 = vmatpush1.bf16.msra.mxu0 %v3255
  %3259 = vmatprep.subr.bf16.mxu0 0
  %3260 = vmatpush1.bf16.msra.mxu0 0
  %3261 = vmatprep.subr.bf16.mxu0 0
  %3262 = vmatpush1.bf16.msra.mxu0 0
  %3263 = vmatprep.subr.bf16.mxu0 0
  %3264 = vmatpush1.bf16.msra.mxu0 0
  %3265 = vmatprep.subr.bf16.mxu0 0
  %3266 = vmatpush1.bf16.msra.mxu0 0
  %3267 = vmatprep.subr.bf16.mxu0 0
  %3268 = vmatpush1.bf16.msra.mxu0 0
  %3269 = vmatprep.subr.bf16.mxu0 0
  %3270 = vmatpush1.bf16.msra.mxu0 0
  %3271 = vmatprep.subr.bf16.mxu0 0
  %3272 = vmatpush1.bf16.msra.mxu0 0
  %3273 = vmatprep.subr.bf16.mxu0 0
  %3274 = vmatpush1.bf16.msra.mxu0 0
  %3275 = vmatprep.subr.bf16.mxu0 0
  %3276 = vmatpush1.bf16.msra.mxu0 0
  %3277 = vmatprep.subr.bf16.mxu0 0
  %3278 = vmatpush1.bf16.msra.mxu0 0
  %3279 = vmatprep.subr.bf16.mxu0 0
  %3280 = vmatpush1.bf16.msra.mxu0 0
  %3281 = vmatprep.subr.bf16.mxu0 0
  %3282 = vmatpush1.bf16.msra.mxu0 0
  %3283 = vmatprep.subr.bf16.mxu0 0
  %3284 = vmatpush1.bf16.msra.mxu0 0
  %3285 = vmatprep.subr.bf16.mxu0 0
  %3286 = vmatpush1.bf16.msra.mxu0 0
  %3287 = vmatprep.subr.bf16.mxu0 0
  %3288 = vmatpush1.bf16.msra.mxu0 0
  %3289 = vmatprep.mubr.bf16.mxu0 0
  %3290 = vmatmul.mubr.bf16.gmra.mrb[0].mxu0 %v3252
  %v3291 = vpop.f32.mrb[0].mxu0
  %v3292 = vadd.f32 0.0, %v3291
  %v3293 = vpop.f32.mrb[0].mxu0
  %v3294 = vpop.f32.mrb[0].mxu0
  %v3295 = vpop.f32.mrb[0].mxu0
  %3296 = vdwg.mxu0
  %3297 = vrot.lane.b32.xlu0 %v3076, 112
  %v3298 = vpop.permute.xlu0 %3297
  %3299 = vrot.lane.b32.xlu0 %v3076, 80
  %v3300 = vpop.permute.xlu0 %3299
  %v3302 = vsel %vm60, %v3298, 0
  %v3305 = vsel %vm60, %v3300, 0
  %3307 = vmatprep.subr.bf16.mxu0 0
  %3308 = vmatpush1.bf16.xpose.msra.mxu0 %v3305
  %3309 = vmatprep.subr.bf16.mxu0 0
  %3310 = vmatpush1.bf16.xpose.msra.mxu0 0
  %3311 = vmatprep.subr.bf16.mxu0 0
  %3312 = vmatpush1.bf16.xpose.msra.mxu0 0
  %3313 = vmatprep.subr.bf16.mxu0 0
  %3314 = vmatpush1.bf16.xpose.msra.mxu0 0
  %3315 = vmatprep.subr.bf16.mxu0 0
  %3316 = vmatpush1.bf16.xpose.msra.mxu0 0
  %3317 = vmatprep.subr.bf16.mxu0 0
  %3318 = vmatpush1.bf16.xpose.msra.mxu0 0
  %3319 = vmatprep.subr.bf16.mxu0 0
  %3320 = vmatpush1.bf16.xpose.msra.mxu0 0
  %3321 = vmatprep.subr.bf16.mxu0 0
  %3322 = vmatpush1.bf16.xpose.msra.mxu0 0
  %3323 = vmatprep.subr.bf16.mxu0 0
  %3324 = vmatpush1.bf16.xpose.msra.mxu0 0
  %3325 = vmatprep.subr.bf16.mxu0 0
  %3326 = vmatpush1.bf16.xpose.msra.mxu0 0
  %3327 = vmatprep.subr.bf16.mxu0 0
  %3328 = vmatpush1.bf16.xpose.msra.mxu0 0
  %3329 = vmatprep.subr.bf16.mxu0 0
  %3330 = vmatpush1.bf16.xpose.msra.mxu0 0
  %3331 = vmatprep.subr.bf16.mxu0 0
  %3332 = vmatpush1.bf16.xpose.msra.mxu0 0
  %3333 = vmatprep.subr.bf16.mxu0 0
  %3334 = vmatpush1.bf16.xpose.msra.mxu0 0
  %3335 = vmatprep.subr.bf16.mxu0 0
  %3336 = vmatpush1.bf16.xpose.msra.mxu0 0
  %3337 = vmatprep.subr.bf16.mxu0 0
  %3338 = vmatpush1.bf16.xpose.msra.mxu0 0
  %3339 = vmatprep.mubr.bf16.mxu0 0
  %3340 = vmatmul.mubr.bf16.gmra.mrb[0].mxu0 %v3302
  %v3341 = vpop.f32.mrb[0].mxu0
  %v3342 = vadd.f32 0.0, %v3341
  %v3343 = vpop.f32.mrb[0].mxu0
  %v3344 = vpop.f32.mrb[0].mxu0
  %v3345 = vpop.f32.mrb[0].mxu0
  %3346 = vdwg.mxu0
  %v3347 = vmul.f32 %v3342, 0.35355338
  %v3348 = vsel %vm250, %v3347, -inf
  %3349 = vmax.xlane.f32.xlu0 %v3348
  %v3350 = vpop.xlane.xlu0 %3349
  %v3351 = vsub.f32 %v3347, %v3350
  %v3352 = vmul.f32 %v3351, 1.442695
  %v3353 = vpow.pop %v3352
  %v3354 = vsel %vm250, %v3353, 0.0
  %3355 = vadd.xlane.f32.xlu0 %v3354
  %v3356 = vpop.xlane.xlu0 %3355
  %v3357 = vrcp.pop %v3356
  %v3358 = vmul.f32 %v3353, %v3357
  %v3359 = vpack.c.bf16 %v3358, %v3358
  %3360 = vrot.lane.b32.xlu0 %v3076, 48
  %v3361 = vpop.permute.xlu0 %3360
  %v3363 = vsel %vm265, %v3359, 0
  %v3366 = vand.u32 %v3361, %v272
  %3368 = vmatprep.subr.bf16.mxu0 0
  %3369 = vmatpush1.bf16.msra.mxu0 %v3366
  %3370 = vmatprep.subr.bf16.mxu0 0
  %3371 = vmatpush1.bf16.msra.mxu0 0
  %3372 = vmatprep.subr.bf16.mxu0 0
  %3373 = vmatpush1.bf16.msra.mxu0 0
  %3374 = vmatprep.subr.bf16.mxu0 0
  %3375 = vmatpush1.bf16.msra.mxu0 0
  %3376 = vmatprep.subr.bf16.mxu0 0
  %3377 = vmatpush1.bf16.msra.mxu0 0
  %3378 = vmatprep.subr.bf16.mxu0 0
  %3379 = vmatpush1.bf16.msra.mxu0 0
  %3380 = vmatprep.subr.bf16.mxu0 0
  %3381 = vmatpush1.bf16.msra.mxu0 0
  %3382 = vmatprep.subr.bf16.mxu0 0
  %3383 = vmatpush1.bf16.msra.mxu0 0
  %3384 = vmatprep.subr.bf16.mxu0 0
  %3385 = vmatpush1.bf16.msra.mxu0 0
  %3386 = vmatprep.subr.bf16.mxu0 0
  %3387 = vmatpush1.bf16.msra.mxu0 0
  %3388 = vmatprep.subr.bf16.mxu0 0
  %3389 = vmatpush1.bf16.msra.mxu0 0
  %3390 = vmatprep.subr.bf16.mxu0 0
  %3391 = vmatpush1.bf16.msra.mxu0 0
  %3392 = vmatprep.subr.bf16.mxu0 0
  %3393 = vmatpush1.bf16.msra.mxu0 0
  %3394 = vmatprep.subr.bf16.mxu0 0
  %3395 = vmatpush1.bf16.msra.mxu0 0
  %3396 = vmatprep.subr.bf16.mxu0 0
  %3397 = vmatpush1.bf16.msra.mxu0 0
  %3398 = vmatprep.subr.bf16.mxu0 0
  %3399 = vmatpush1.bf16.msra.mxu0 0
  %3400 = vmatprep.mubr.bf16.mxu0 0
  %3401 = vmatmul.mubr.bf16.gmra.mrb[0].mxu0 %v3363
  %v3402 = vpop.f32.mrb[0].mxu0
  %v3403 = vadd.f32 0.0, %v3402
  %v3404 = vpop.f32.mrb[0].mxu0
  %v3405 = vpop.f32.mrb[0].mxu0
  %v3406 = vpop.f32.mrb[0].mxu0
  %3407 = vdwg.mxu0
  %3408 = vrot.lane.b32.xlu0 %v3076, 104
  %v3409 = vpop.permute.xlu0 %3408
  %3410 = vrot.lane.b32.xlu0 %v3076, 72
  %v3411 = vpop.permute.xlu0 %3410
  %v3413 = vsel %vm60, %v3409, 0
  %v3416 = vsel %vm60, %v3411, 0
  %3418 = vmatprep.subr.bf16.mxu0 0
  %3419 = vmatpush1.bf16.xpose.msra.mxu0 %v3416
  %3420 = vmatprep.subr.bf16.mxu0 0
  %3421 = vmatpush1.bf16.xpose.msra.mxu0 0
  %3422 = vmatprep.subr.bf16.mxu0 0
  %3423 = vmatpush1.bf16.xpose.msra.mxu0 0
  %3424 = vmatprep.subr.bf16.mxu0 0
  %3425 = vmatpush1.bf16.xpose.msra.mxu0 0
  %3426 = vmatprep.subr.bf16.mxu0 0
  %3427 = vmatpush1.bf16.xpose.msra.mxu0 0
  %3428 = vmatprep.subr.bf16.mxu0 0
  %3429 = vmatpush1.bf16.xpose.msra.mxu0 0
  %3430 = vmatprep.subr.bf16.mxu0 0
  %3431 = vmatpush1.bf16.xpose.msra.mxu0 0
  %3432 = vmatprep.subr.bf16.mxu0 0
  %3433 = vmatpush1.bf16.xpose.msra.mxu0 0
  %3434 = vmatprep.subr.bf16.mxu0 0
  %3435 = vmatpush1.bf16.xpose.msra.mxu0 0
  %3436 = vmatprep.subr.bf16.mxu0 0
  %3437 = vmatpush1.bf16.xpose.msra.mxu0 0
  %3438 = vmatprep.subr.bf16.mxu0 0
  %3439 = vmatpush1.bf16.xpose.msra.mxu0 0
  %3440 = vmatprep.subr.bf16.mxu0 0
  %3441 = vmatpush1.bf16.xpose.msra.mxu0 0
  %3442 = vmatprep.subr.bf16.mxu0 0
  %3443 = vmatpush1.bf16.xpose.msra.mxu0 0
  %3444 = vmatprep.subr.bf16.mxu0 0
  %3445 = vmatpush1.bf16.xpose.msra.mxu0 0
  %3446 = vmatprep.subr.bf16.mxu0 0
  %3447 = vmatpush1.bf16.xpose.msra.mxu0 0
  %3448 = vmatprep.subr.bf16.mxu0 0
  %3449 = vmatpush1.bf16.xpose.msra.mxu0 0
  %3450 = vmatprep.mubr.bf16.mxu0 0
  %3451 = vmatmul.mubr.bf16.gmra.mrb[0].mxu0 %v3413
  %v3452 = vpop.f32.mrb[0].mxu0
  %v3453 = vadd.f32 0.0, %v3452
  %v3454 = vpop.f32.mrb[0].mxu0
  %v3455 = vpop.f32.mrb[0].mxu0
  %v3456 = vpop.f32.mrb[0].mxu0
  %3457 = vdwg.mxu0
  %v3458 = vmul.f32 %v3453, 0.35355338
  %v3459 = vsel %vm250, %v3458, -inf
  %3460 = vmax.xlane.f32.xlu0 %v3459
  %v3461 = vpop.xlane.xlu0 %3460
  %v3462 = vsub.f32 %v3458, %v3461
  %v3463 = vmul.f32 %v3462, 1.442695
  %v3464 = vpow.pop %v3463
  %v3465 = vsel %vm250, %v3464, 0.0
  %3466 = vadd.xlane.f32.xlu0 %v3465
  %v3467 = vpop.xlane.xlu0 %3466
  %v3468 = vrcp.pop %v3467
  %v3469 = vmul.f32 %v3464, %v3468
  %v3470 = vpack.c.bf16 %v3469, %v3469
  %3471 = vrot.lane.b32.xlu0 %v3076, 40
  %v3472 = vpop.permute.xlu0 %3471
  %v3474 = vsel %vm265, %v3470, 0
  %v3477 = vand.u32 %v3472, %v272
  %3479 = vmatprep.subr.bf16.mxu0 0
  %3480 = vmatpush1.bf16.msra.mxu0 %v3477
  %3481 = vmatprep.subr.bf16.mxu0 0
  %3482 = vmatpush1.bf16.msra.mxu0 0
  %3483 = vmatprep.subr.bf16.mxu0 0
  %3484 = vmatpush1.bf16.msra.mxu0 0
  %3485 = vmatprep.subr.bf16.mxu0 0
  %3486 = vmatpush1.bf16.msra.mxu0 0
  %3487 = vmatprep.subr.bf16.mxu0 0
  %3488 = vmatpush1.bf16.msra.mxu0 0
  %3489 = vmatprep.subr.bf16.mxu0 0
  %3490 = vmatpush1.bf16.msra.mxu0 0
  %3491 = vmatprep.subr.bf16.mxu0 0
  %3492 = vmatpush1.bf16.msra.mxu0 0
  %3493 = vmatprep.subr.bf16.mxu0 0
  %3494 = vmatpush1.bf16.msra.mxu0 0
  %3495 = vmatprep.subr.bf16.mxu0 0
  %3496 = vmatpush1.bf16.msra.mxu0 0
  %3497 = vmatprep.subr.bf16.mxu0 0
  %3498 = vmatpush1.bf16.msra.mxu0 0
  %3499 = vmatprep.subr.bf16.mxu0 0
  %3500 = vmatpush1.bf16.msra.mxu0 0
  %3501 = vmatprep.subr.bf16.mxu0 0
  %3502 = vmatpush1.bf16.msra.mxu0 0
  %3503 = vmatprep.subr.bf16.mxu0 0
  %3504 = vmatpush1.bf16.msra.mxu0 0
  %3505 = vmatprep.subr.bf16.mxu0 0
  %3506 = vmatpush1.bf16.msra.mxu0 0
  %3507 = vmatprep.subr.bf16.mxu0 0
  %3508 = vmatpush1.bf16.msra.mxu0 0
  %3509 = vmatprep.subr.bf16.mxu0 0
  %3510 = vmatpush1.bf16.msra.mxu0 0
  %3511 = vmatprep.mubr.bf16.mxu0 0
  %3512 = vmatmul.mubr.bf16.gmra.mrb[0].mxu0 %v3474
  %v3513 = vpop.f32.mrb[0].mxu0
  %v3514 = vadd.f32 0.0, %v3513
  %v3515 = vpop.f32.mrb[0].mxu0
  %v3516 = vpop.f32.mrb[0].mxu0
  %v3517 = vpop.f32.mrb[0].mxu0
  %3518 = vdwg.mxu0
  %3520 = vrot.lane.b32.xlu0 %v3292, 8
  %v3521 = vpop.permute.xlu0 %3520
  %3524 = vrot.lane.b32.xlu0 %v3403, 16
  %v3525 = vpop.permute.xlu0 %3524
  %3528 = vrot.lane.b32.xlu0 %v3514, 24
  %v3529 = vpop.permute.xlu0 %3528
  %v3531 = vsel %vm60, %v3181, %v3521
  %v3532 = vsel %vm662, %v3531, %v3525
  %v3533 = vsel %vm664, %v3532, %v3529
  %v3534 = vpack.c.bf16 %v3533, %v3533
  %v3536 = vunpack.c.l.b16 %v3534
  %v3537 = vpack.c.b16 %v3536, %v3536
  %v3538 = vrot.slane %v3537, 7
  %vm3540 = vsmask.f32 2304
  %vm3541 = vmand %vm1150, %vm3540
  %v3542 = vld [vmem:[#allocation2 + $0x8] sm:$0x6]
  %v3543 = vsel %vm3541, %v3538, %v3542
  %3544 = vst [vmem:[#allocation2 + $0x8] sm:$0x6] %v3543
  %v3546 = vshrl.u32 %v3074, 16
  %v3548 = vrot.slane %v3546, 2
  %v3549 = vshll.u32 %v3074, 16
  %v3551 = vrot.slane %v3549, 3
  %v3552 = vor.u32 %v3548, %v3551
  %3553 = vrot.lane.b32.xlu0 %v3552, 96
  %v3554 = vpop.permute.xlu0 %3553
  %v3556 = vsel %vm60, %v3552, 0
  %v3559 = vsel %vm60, %v3554, 0
  %3561 = vmatprep.subr.bf16.mxu0 0
  %3562 = vmatpush1.bf16.xpose.msra.mxu0 %v3559
  %3563 = vmatprep.subr.bf16.mxu0 0
  %3564 = vmatpush1.bf16.xpose.msra.mxu0 0
  %3565 = vmatprep.subr.bf16.mxu0 0
  %3566 = vmatpush1.bf16.xpose.msra.mxu0 0
  %3567 = vmatprep.subr.bf16.mxu0 0
  %3568 = vmatpush1.bf16.xpose.msra.mxu0 0
  %3569 = vmatprep.subr.bf16.mxu0 0
  %3570 = vmatpush1.bf16.xpose.msra.mxu0 0
  %3571 = vmatprep.subr.bf16.mxu0 0
  %3572 = vmatpush1.bf16.xpose.msra.mxu0 0
  %3573 = vmatprep.subr.bf16.mxu0 0
  %3574 = vmatpush1.bf16.xpose.msra.mxu0 0
  %3575 = vmatprep.subr.bf16.mxu0 0
  %3576 = vmatpush1.bf16.xpose.msra.mxu0 0
  %3577 = vmatprep.subr.bf16.mxu0 0
  %3578 = vmatpush1.bf16.xpose.msra.mxu0 0
  %3579 = vmatprep.subr.bf16.mxu0 0
  %3580 = vmatpush1.bf16.xpose.msra.mxu0 0
  %3581 = vmatprep.subr.bf16.mxu0 0
  %3582 = vmatpush1.bf16.xpose.msra.mxu0 0
  %3583 = vmatprep.subr.bf16.mxu0 0
  %3584 = vmatpush1.bf16.xpose.msra.mxu0 0
  %3585 = vmatprep.subr.bf16.mxu0 0
  %3586 = vmatpush1.bf16.xpose.msra.mxu0 0
  %3587 = vmatprep.subr.bf16.mxu0 0
  %3588 = vmatpush1.bf16.xpose.msra.mxu0 0
  %3589 = vmatprep.subr.bf16.mxu0 0
  %3590 = vmatpush1.bf16.xpose.msra.mxu0 0
  %3591 = vmatprep.subr.bf16.mxu0 0
  %3592 = vmatpush1.bf16.xpose.msra.mxu0 0
  %3593 = vmatprep.mubr.bf16.mxu0 0
  %3594 = vmatmul.mubr.bf16.gmra.mrb[0].mxu0 %v3556
  %v3595 = vpop.f32.mrb[0].mxu0
  %v3596 = vadd.f32 0.0, %v3595
  %v3597 = vpop.f32.mrb[0].mxu0
  %v3598 = vpop.f32.mrb[0].mxu0
  %v3599 = vpop.f32.mrb[0].mxu0
  %3600 = vdwg.mxu0
  %v3601 = vmul.f32 %v3596, 0.35355338
  %v3602 = vsel %vm250, %v3601, -inf
  %3603 = vmax.xlane.f32.xlu0 %v3602
  %v3604 = vpop.xlane.xlu0 %3603
  %v3605 = vsub.f32 %v3601, %v3604
  %v3606 = vmul.f32 %v3605, 1.442695
  %v3607 = vpow.pop %v3606
  %v3608 = vsel %vm250, %v3607, 0.0
  %3609 = vadd.xlane.f32.xlu0 %v3608
  %v3610 = vpop.xlane.xlu0 %3609
  %v3611 = vrcp.pop %v3610
  %v3612 = vmul.f32 %v3607, %v3611
  %v3613 = vpack.c.bf16 %v3612, %v3612
  %3614 = vrot.lane.b32.xlu0 %v3552, 64
  %v3615 = vpop.permute.xlu0 %3614
  %v3617 = vsel %vm265, %v3613, 0
  %v3620 = vand.u32 %v3615, %v272
  %3622 = vmatprep.subr.bf16.mxu0 0
  %3623 = vmatpush1.bf16.msra.mxu0 %v3620
  %3624 = vmatprep.subr.bf16.mxu0 0
  %3625 = vmatpush1.bf16.msra.mxu0 0
  %3626 = vmatprep.subr.bf16.mxu0 0
  %3627 = vmatpush1.bf16.msra.mxu0 0
  %3628 = vmatprep.subr.bf16.mxu0 0
  %3629 = vmatpush1.bf16.msra.mxu0 0
  %3630 = vmatprep.subr.bf16.mxu0 0
  %3631 = vmatpush1.bf16.msra.mxu0 0
  %3632 = vmatprep.subr.bf16.mxu0 0
  %3633 = vmatpush1.bf16.msra.mxu0 0
  %3634 = vmatprep.subr.bf16.mxu0 0
  %3635 = vmatpush1.bf16.msra.mxu0 0
  %3636 = vmatprep.subr.bf16.mxu0 0
  %3637 = vmatpush1.bf16.msra.mxu0 0
  %3638 = vmatprep.subr.bf16.mxu0 0
  %3639 = vmatpush1.bf16.msra.mxu0 0
  %3640 = vmatprep.subr.bf16.mxu0 0
  %3641 = vmatpush1.bf16.msra.mxu0 0
  %3642 = vmatprep.subr.bf16.mxu0 0
  %3643 = vmatpush1.bf16.msra.mxu0 0
  %3644 = vmatprep.subr.bf16.mxu0 0
  %3645 = vmatpush1.bf16.msra.mxu0 0
  %3646 = vmatprep.subr.bf16.mxu0 0
  %3647 = vmatpush1.bf16.msra.mxu0 0
  %3648 = vmatprep.subr.bf16.mxu0 0
  %3649 = vmatpush1.bf16.msra.mxu0 0
  %3650 = vmatprep.subr.bf16.mxu0 0
  %3651 = vmatpush1.bf16.msra.mxu0 0
  %3652 = vmatprep.subr.bf16.mxu0 0
  %3653 = vmatpush1.bf16.msra.mxu0 0
  %3654 = vmatprep.mubr.bf16.mxu0 0
  %3655 = vmatmul.mubr.bf16.gmra.mrb[0].mxu0 %v3617
  %v3656 = vpop.f32.mrb[0].mxu0
  %v3657 = vadd.f32 0.0, %v3656
  %v3658 = vpop.f32.mrb[0].mxu0
  %v3659 = vpop.f32.mrb[0].mxu0
  %v3660 = vpop.f32.mrb[0].mxu0
  %3661 = vdwg.mxu0
  %3662 = vrot.lane.b32.xlu0 %v3552, 120
  %v3663 = vpop.permute.xlu0 %3662
  %3664 = vrot.lane.b32.xlu0 %v3552, 88
  %v3665 = vpop.permute.xlu0 %3664
  %v3667 = vsel %vm60, %v3663, 0
  %v3670 = vsel %vm60, %v3665, 0
  %3672 = vmatprep.subr.bf16.mxu0 0
  %3673 = vmatpush1.bf16.xpose.msra.mxu0 %v3670
  %3674 = vmatprep.subr.bf16.mxu0 0
  %3675 = vmatpush1.bf16.xpose.msra.mxu0 0
  %3676 = vmatprep.subr.bf16.mxu0 0
  %3677 = vmatpush1.bf16.xpose.msra.mxu0 0
  %3678 = vmatprep.subr.bf16.mxu0 0
  %3679 = vmatpush1.bf16.xpose.msra.mxu0 0
  %3680 = vmatprep.subr.bf16.mxu0 0
  %3681 = vmatpush1.bf16.xpose.msra.mxu0 0
  %3682 = vmatprep.subr.bf16.mxu0 0
  %3683 = vmatpush1.bf16.xpose.msra.mxu0 0
  %3684 = vmatprep.subr.bf16.mxu0 0
  %3685 = vmatpush1.bf16.xpose.msra.mxu0 0
  %3686 = vmatprep.subr.bf16.mxu0 0
  %3687 = vmatpush1.bf16.xpose.msra.mxu0 0
  %3688 = vmatprep.subr.bf16.mxu0 0
  %3689 = vmatpush1.bf16.xpose.msra.mxu0 0
  %3690 = vmatprep.subr.bf16.mxu0 0
  %3691 = vmatpush1.bf16.xpose.msra.mxu0 0
  %3692 = vmatprep.subr.bf16.mxu0 0
  %3693 = vmatpush1.bf16.xpose.msra.mxu0 0
  %3694 = vmatprep.subr.bf16.mxu0 0
  %3695 = vmatpush1.bf16.xpose.msra.mxu0 0
  %3696 = vmatprep.subr.bf16.mxu0 0
  %3697 = vmatpush1.bf16.xpose.msra.mxu0 0
  %3698 = vmatprep.subr.bf16.mxu0 0
  %3699 = vmatpush1.bf16.xpose.msra.mxu0 0
  %3700 = vmatprep.subr.bf16.mxu0 0
  %3701 = vmatpush1.bf16.xpose.msra.mxu0 0
  %3702 = vmatprep.subr.bf16.mxu0 0
  %3703 = vmatpush1.bf16.xpose.msra.mxu0 0
  %3704 = vmatprep.mubr.bf16.mxu0 0
  %3705 = vmatmul.mubr.bf16.gmra.mrb[0].mxu0 %v3667
  %v3706 = vpop.f32.mrb[0].mxu0
  %v3707 = vadd.f32 0.0, %v3706
  %v3708 = vpop.f32.mrb[0].mxu0
  %v3709 = vpop.f32.mrb[0].mxu0
  %v3710 = vpop.f32.mrb[0].mxu0
  %3711 = vdwg.mxu0
  %v3712 = vmul.f32 %v3707, 0.35355338
  %v3713 = vsel %vm250, %v3712, -inf
  %3714 = vmax.xlane.f32.xlu0 %v3713
  %v3715 = vpop.xlane.xlu0 %3714
  %v3716 = vsub.f32 %v3712, %v3715
  %v3717 = vmul.f32 %v3716, 1.442695
  %v3718 = vpow.pop %v3717
  %v3719 = vsel %vm250, %v3718, 0.0
  %3720 = vadd.xlane.f32.xlu0 %v3719
  %v3721 = vpop.xlane.xlu0 %3720
  %v3722 = vrcp.pop %v3721
  %v3723 = vmul.f32 %v3718, %v3722
  %v3724 = vpack.c.bf16 %v3723, %v3723
  %3725 = vrot.lane.b32.xlu0 %v3552, 56
  %v3726 = vpop.permute.xlu0 %3725
  %v3728 = vsel %vm265, %v3724, 0
  %v3731 = vand.u32 %v3726, %v272
  %3733 = vmatprep.subr.bf16.mxu0 0
  %3734 = vmatpush1.bf16.msra.mxu0 %v3731
  %3735 = vmatprep.subr.bf16.mxu0 0
  %3736 = vmatpush1.bf16.msra.mxu0 0
  %3737 = vmatprep.subr.bf16.mxu0 0
  %3738 = vmatpush1.bf16.msra.mxu0 0
  %3739 = vmatprep.subr.bf16.mxu0 0
  %3740 = vmatpush1.bf16.msra.mxu0 0
  %3741 = vmatprep.subr.bf16.mxu0 0
  %3742 = vmatpush1.bf16.msra.mxu0 0
  %3743 = vmatprep.subr.bf16.mxu0 0
  %3744 = vmatpush1.bf16.msra.mxu0 0
  %3745 = vmatprep.subr.bf16.mxu0 0
  %3746 = vmatpush1.bf16.msra.mxu0 0
  %3747 = vmatprep.subr.bf16.mxu0 0
  %3748 = vmatpush1.bf16.msra.mxu0 0
  %3749 = vmatprep.subr.bf16.mxu0 0
  %3750 = vmatpush1.bf16.msra.mxu0 0
  %3751 = vmatprep.subr.bf16.mxu0 0
  %3752 = vmatpush1.bf16.msra.mxu0 0
  %3753 = vmatprep.subr.bf16.mxu0 0
  %3754 = vmatpush1.bf16.msra.mxu0 0
  %3755 = vmatprep.subr.bf16.mxu0 0
  %3756 = vmatpush1.bf16.msra.mxu0 0
  %3757 = vmatprep.subr.bf16.mxu0 0
  %3758 = vmatpush1.bf16.msra.mxu0 0
  %3759 = vmatprep.subr.bf16.mxu0 0
  %3760 = vmatpush1.bf16.msra.mxu0 0
  %3761 = vmatprep.subr.bf16.mxu0 0
  %3762 = vmatpush1.bf16.msra.mxu0 0
  %3763 = vmatprep.subr.bf16.mxu0 0
  %3764 = vmatpush1.bf16.msra.mxu0 0
  %3765 = vmatprep.mubr.bf16.mxu0 0
  %3766 = vmatmul.mubr.bf16.gmra.mrb[0].mxu0 %v3728
  %v3767 = vpop.f32.mrb[0].mxu0
  %v3768 = vadd.f32 0.0, %v3767
  %v3769 = vpop.f32.mrb[0].mxu0
  %v3770 = vpop.f32.mrb[0].mxu0
  %v3771 = vpop.f32.mrb[0].mxu0
  %3772 = vdwg.mxu0
  %3773 = vrot.lane.b32.xlu0 %v3552, 112
  %v3774 = vpop.permute.xlu0 %3773
  %3775 = vrot.lane.b32.xlu0 %v3552, 80
  %v3776 = vpop.permute.xlu0 %3775
  %v3778 = vsel %vm60, %v3774, 0
  %v3781 = vsel %vm60, %v3776, 0
  %3783 = vmatprep.subr.bf16.mxu0 0
  %3784 = vmatpush1.bf16.xpose.msra.mxu0 %v3781
  %3785 = vmatprep.subr.bf16.mxu0 0
  %3786 = vmatpush1.bf16.xpose.msra.mxu0 0
  %3787 = vmatprep.subr.bf16.mxu0 0
  %3788 = vmatpush1.bf16.xpose.msra.mxu0 0
  %3789 = vmatprep.subr.bf16.mxu0 0
  %3790 = vmatpush1.bf16.xpose.msra.mxu0 0
  %3791 = vmatprep.subr.bf16.mxu0 0
  %3792 = vmatpush1.bf16.xpose.msra.mxu0 0
  %3793 = vmatprep.subr.bf16.mxu0 0
  %3794 = vmatpush1.bf16.xpose.msra.mxu0 0
  %3795 = vmatprep.subr.bf16.mxu0 0
  %3796 = vmatpush1.bf16.xpose.msra.mxu0 0
  %3797 = vmatprep.subr.bf16.mxu0 0
  %3798 = vmatpush1.bf16.xpose.msra.mxu0 0
  %3799 = vmatprep.subr.bf16.mxu0 0
  %3800 = vmatpush1.bf16.xpose.msra.mxu0 0
  %3801 = vmatprep.subr.bf16.mxu0 0
  %3802 = vmatpush1.bf16.xpose.msra.mxu0 0
  %3803 = vmatprep.subr.bf16.mxu0 0
  %3804 = vmatpush1.bf16.xpose.msra.mxu0 0
  %3805 = vmatprep.subr.bf16.mxu0 0
  %3806 = vmatpush1.bf16.xpose.msra.mxu0 0
  %3807 = vmatprep.subr.bf16.mxu0 0
  %3808 = vmatpush1.bf16.xpose.msra.mxu0 0
  %3809 = vmatprep.subr.bf16.mxu0 0
  %3810 = vmatpush1.bf16.xpose.msra.mxu0 0
  %3811 = vmatprep.subr.bf16.mxu0 0
  %3812 = vmatpush1.bf16.xpose.msra.mxu0 0
  %3813 = vmatprep.subr.bf16.mxu0 0
  %3814 = vmatpush1.bf16.xpose.msra.mxu0 0
  %3815 = vmatprep.mubr.bf16.mxu0 0
  %3816 = vmatmul.mubr.bf16.gmra.mrb[0].mxu0 %v3778
  %v3817 = vpop.f32.mrb[0].mxu0
  %v3818 = vadd.f32 0.0, %v3817
  %v3819 = vpop.f32.mrb[0].mxu0
  %v3820 = vpop.f32.mrb[0].mxu0
  %v3821 = vpop.f32.mrb[0].mxu0
  %3822 = vdwg.mxu0
  %v3823 = vmul.f32 %v3818, 0.35355338
  %v3824 = vsel %vm250, %v3823, -inf
  %3825 = vmax.xlane.f32.xlu0 %v3824
  %v3826 = vpop.xlane.xlu0 %3825
  %v3827 = vsub.f32 %v3823, %v3826
  %v3828 = vmul.f32 %v3827, 1.442695
  %v3829 = vpow.pop %v3828
  %v3830 = vsel %vm250, %v3829, 0.0
  %3831 = vadd.xlane.f32.xlu0 %v3830
  %v3832 = vpop.xlane.xlu0 %3831
  %v3833 = vrcp.pop %v3832
  %v3834 = vmul.f32 %v3829, %v3833
  %v3835 = vpack.c.bf16 %v3834, %v3834
  %3836 = vrot.lane.b32.xlu0 %v3552, 48
  %v3837 = vpop.permute.xlu0 %3836
  %v3839 = vsel %vm265, %v3835, 0
  %v3842 = vand.u32 %v3837, %v272
  %3844 = vmatprep.subr.bf16.mxu0 0
  %3845 = vmatpush1.bf16.msra.mxu0 %v3842
  %3846 = vmatprep.subr.bf16.mxu0 0
  %3847 = vmatpush1.bf16.msra.mxu0 0
  %3848 = vmatprep.subr.bf16.mxu0 0
  %3849 = vmatpush1.bf16.msra.mxu0 0
  %3850 = vmatprep.subr.bf16.mxu0 0
  %3851 = vmatpush1.bf16.msra.mxu0 0
  %3852 = vmatprep.subr.bf16.mxu0 0
  %3853 = vmatpush1.bf16.msra.mxu0 0
  %3854 = vmatprep.subr.bf16.mxu0 0
  %3855 = vmatpush1.bf16.msra.mxu0 0
  %3856 = vmatprep.subr.bf16.mxu0 0
  %3857 = vmatpush1.bf16.msra.mxu0 0
  %3858 = vmatprep.subr.bf16.mxu0 0
  %3859 = vmatpush1.bf16.msra.mxu0 0
  %3860 = vmatprep.subr.bf16.mxu0 0
  %3861 = vmatpush1.bf16.msra.mxu0 0
  %3862 = vmatprep.subr.bf16.mxu0 0
  %3863 = vmatpush1.bf16.msra.mxu0 0
  %3864 = vmatprep.subr.bf16.mxu0 0
  %3865 = vmatpush1.bf16.msra.mxu0 0
  %3866 = vmatprep.subr.bf16.mxu0 0
  %3867 = vmatpush1.bf16.msra.mxu0 0
  %3868 = vmatprep.subr.bf16.mxu0 0
  %3869 = vmatpush1.bf16.msra.mxu0 0
  %3870 = vmatprep.subr.bf16.mxu0 0
  %3871 = vmatpush1.bf16.msra.mxu0 0
  %3872 = vmatprep.subr.bf16.mxu0 0
  %3873 = vmatpush1.bf16.msra.mxu0 0
  %3874 = vmatprep.subr.bf16.mxu0 0
  %3875 = vmatpush1.bf16.msra.mxu0 0
  %3876 = vmatprep.mubr.bf16.mxu0 0
  %3877 = vmatmul.mubr.bf16.gmra.mrb[0].mxu0 %v3839
  %v3878 = vpop.f32.mrb[0].mxu0
  %v3879 = vadd.f32 0.0, %v3878
  %v3880 = vpop.f32.mrb[0].mxu0
  %v3881 = vpop.f32.mrb[0].mxu0
  %v3882 = vpop.f32.mrb[0].mxu0
  %3883 = vdwg.mxu0
  %3884 = vrot.lane.b32.xlu0 %v3552, 104
  %v3885 = vpop.permute.xlu0 %3884
  %3886 = vrot.lane.b32.xlu0 %v3552, 72
  %v3887 = vpop.permute.xlu0 %3886
  %v3889 = vsel %vm60, %v3885, 0
  %v3892 = vsel %vm60, %v3887, 0
  %3894 = vmatprep.subr.bf16.mxu0 0
  %3895 = vmatpush1.bf16.xpose.msra.mxu0 %v3892
  %3896 = vmatprep.subr.bf16.mxu0 0
  %3897 = vmatpush1.bf16.xpose.msra.mxu0 0
  %3898 = vmatprep.subr.bf16.mxu0 0
  %3899 = vmatpush1.bf16.xpose.msra.mxu0 0
  %3900 = vmatprep.subr.bf16.mxu0 0
  %3901 = vmatpush1.bf16.xpose.msra.mxu0 0
  %3902 = vmatprep.subr.bf16.mxu0 0
  %3903 = vmatpush1.bf16.xpose.msra.mxu0 0
  %3904 = vmatprep.subr.bf16.mxu0 0
  %3905 = vmatpush1.bf16.xpose.msra.mxu0 0
  %3906 = vmatprep.subr.bf16.mxu0 0
  %3907 = vmatpush1.bf16.xpose.msra.mxu0 0
  %3908 = vmatprep.subr.bf16.mxu0 0
  %3909 = vmatpush1.bf16.xpose.msra.mxu0 0
  %3910 = vmatprep.subr.bf16.mxu0 0
  %3911 = vmatpush1.bf16.xpose.msra.mxu0 0
  %3912 = vmatprep.subr.bf16.mxu0 0
  %3913 = vmatpush1.bf16.xpose.msra.mxu0 0
  %3914 = vmatprep.subr.bf16.mxu0 0
  %3915 = vmatpush1.bf16.xpose.msra.mxu0 0
  %3916 = vmatprep.subr.bf16.mxu0 0
  %3917 = vmatpush1.bf16.xpose.msra.mxu0 0
  %3918 = vmatprep.subr.bf16.mxu0 0
  %3919 = vmatpush1.bf16.xpose.msra.mxu0 0
  %3920 = vmatprep.subr.bf16.mxu0 0
  %3921 = vmatpush1.bf16.xpose.msra.mxu0 0
  %3922 = vmatprep.subr.bf16.mxu0 0
  %3923 = vmatpush1.bf16.xpose.msra.mxu0 0
  %3924 = vmatprep.subr.bf16.mxu0 0
  %3925 = vmatpush1.bf16.xpose.msra.mxu0 0
  %3926 = vmatprep.mubr.bf16.mxu0 0
  %3927 = vmatmul.mubr.bf16.gmra.mrb[0].mxu0 %v3889
  %v3928 = vpop.f32.mrb[0].mxu0
  %v3929 = vadd.f32 0.0, %v3928
  %v3930 = vpop.f32.mrb[0].mxu0
  %v3931 = vpop.f32.mrb[0].mxu0
  %v3932 = vpop.f32.mrb[0].mxu0
  %3933 = vdwg.mxu0
  %v3934 = vmul.f32 %v3929, 0.35355338
  %v3935 = vsel %vm250, %v3934, -inf
  %3936 = vmax.xlane.f32.xlu0 %v3935
  %v3937 = vpop.xlane.xlu0 %3936
  %v3938 = vsub.f32 %v3934, %v3937
  %v3939 = vmul.f32 %v3938, 1.442695
  %v3940 = vpow.pop %v3939
  %v3941 = vsel %vm250, %v3940, 0.0
  %3942 = vadd.xlane.f32.xlu0 %v3941
  %v3943 = vpop.xlane.xlu0 %3942
  %v3944 = vrcp.pop %v3943
  %v3945 = vmul.f32 %v3940, %v3944
  %v3946 = vpack.c.bf16 %v3945, %v3945
  %3947 = vrot.lane.b32.xlu0 %v3552, 40
  %v3948 = vpop.permute.xlu0 %3947
  %v3950 = vsel %vm265, %v3946, 0
  %v3953 = vand.u32 %v3948, %v272
  %3955 = vmatprep.subr.bf16.mxu0 0
  %3956 = vmatpush1.bf16.msra.mxu0 %v3953
  %3957 = vmatprep.subr.bf16.mxu0 0
  %3958 = vmatpush1.bf16.msra.mxu0 0
  %3959 = vmatprep.subr.bf16.mxu0 0
  %3960 = vmatpush1.bf16.msra.mxu0 0
  %3961 = vmatprep.subr.bf16.mxu0 0
  %3962 = vmatpush1.bf16.msra.mxu0 0
  %3963 = vmatprep.subr.bf16.mxu0 0
  %3964 = vmatpush1.bf16.msra.mxu0 0
  %3965 = vmatprep.subr.bf16.mxu0 0
  %3966 = vmatpush1.bf16.msra.mxu0 0
  %3967 = vmatprep.subr.bf16.mxu0 0
  %3968 = vmatpush1.bf16.msra.mxu0 0
  %3969 = vmatprep.subr.bf16.mxu0 0
  %3970 = vmatpush1.bf16.msra.mxu0 0
  %3971 = vmatprep.subr.bf16.mxu0 0
  %3972 = vmatpush1.bf16.msra.mxu0 0
  %3973 = vmatprep.subr.bf16.mxu0 0
  %3974 = vmatpush1.bf16.msra.mxu0 0
  %3975 = vmatprep.subr.bf16.mxu0 0
  %3976 = vmatpush1.bf16.msra.mxu0 0
  %3977 = vmatprep.subr.bf16.mxu0 0
  %3978 = vmatpush1.bf16.msra.mxu0 0
  %3979 = vmatprep.subr.bf16.mxu0 0
  %3980 = vmatpush1.bf16.msra.mxu0 0
  %3981 = vmatprep.subr.bf16.mxu0 0
  %3982 = vmatpush1.bf16.msra.mxu0 0
  %3983 = vmatprep.subr.bf16.mxu0 0
  %3984 = vmatpush1.bf16.msra.mxu0 0
  %3985 = vmatprep.subr.bf16.mxu0 0
  %3986 = vmatpush1.bf16.msra.mxu0 0
  %3987 = vmatprep.mubr.bf16.mxu0 0
  %3988 = vmatmul.mubr.bf16.gmra.mrb[0].mxu0 %v3950
  %v3989 = vpop.f32.mrb[0].mxu0
  %v3990 = vadd.f32 0.0, %v3989
  %v3991 = vpop.f32.mrb[0].mxu0
  %v3992 = vpop.f32.mrb[0].mxu0
  %v3993 = vpop.f32.mrb[0].mxu0
  %3994 = vdwg.mxu0
  %3996 = vrot.lane.b32.xlu0 %v3768, 8
  %v3997 = vpop.permute.xlu0 %3996
  %4000 = vrot.lane.b32.xlu0 %v3879, 16
  %v4001 = vpop.permute.xlu0 %4000
  %4004 = vrot.lane.b32.xlu0 %v3990, 24
  %v4005 = vpop.permute.xlu0 %4004
  %v4007 = vsel %vm60, %v3657, %v3997
  %v4008 = vsel %vm662, %v4007, %v4001
  %v4009 = vsel %vm664, %v4008, %v4005
  %v4010 = vpack.c.bf16 %v4009, %v4009
  %v4012 = vunpack.c.l.b16 %v4010
  %v4013 = vpack.c.b16 %v4012, %v4012
  %v4015 = vshrl.u32 %v4013, 16
  %v4017 = vrot.slane %v4015, 5
  %v4018 = vshll.u32 %v4013, 16
  %v4020 = vrot.slane %v4018, 6
  %v4021 = vor.u32 %v4017, %v4020
  %vm4023 = vsmask.f32 7946
  %vm4024 = vmand %vm2579, %vm4023
  %v4025 = vld [vmem:[#allocation2 + $0x8] sm:$0xc]
  %v4026 = vsel %vm4024, %v4021, %v4025
  %4027 = vst [vmem:[#allocation2 + $0x8] sm:$0xc] %v4026
  %v4028 = vld [vmem:[#allocation2] sm:$0xf]
  %v4029 = vld [vmem:[#allocation2 + $0x4] sm:$0xf]
  %v4030 = vld [vmem:[#allocation2 + $0x8] sm:$0xf]
  %v4031 = vld [vmem:[%s5] sm:$0xf]
  %v4032 = vld [vmem:[%s5 + $0x4] sm:$0xf]
  %v4033 = vld [vmem:[%s5 + $0x8] sm:$0xf]
  %v4034 = vld [vmem:[%s5 + $0xc] sm:$0xf]
  %v4035 = vld [vmem:[%s6] sm:$0x1]
  %v4037 = vlaneseq
  %v4038 = vshrl.u32 %v4037, 7
  %v4039 = vsub.s32 0, %v4038
  %v4040 = vrot.slane %v4035, %v4039
  %v4045 = vunpack.c.l.b16 %v4028
  %v4046 = vunpack.c.l.b16 %v4029
  %v4047 = vunpack.c.l.b16 %v4030
  %v4048 = vpack.c.b16 %v4046, %v4045
  %v4049 = vpack.c.b16 %v4047, %v4047
  %v4054 = vunpack.c.l.b16 %v4031
  %v4055 = vunpack.c.l.b16 %v4032
  %v4056 = vunpack.c.l.b16 %v4033
  %v4057 = vunpack.c.l.b16 %v4034
  %v4058 = vpack.c.b16 %v4055, %v4054
  %v4059 = vpack.c.b16 %v4057, %v4056
  %v4063 = vsel %vm144, %v4048, 0
  %v4066 = vsel %vm144, %v4049, 0
  %4068 = vmatprep.subr.bf16.mxu0 0
  %4069 = vmatpush1.bf16.msra.mxu0 %v4058
  %4070 = vmatprep.subr.bf16.mxu0 0
  %4071 = vmatpush1.bf16.msra.mxu0 %v4059
  %4072 = vmatprep.subr.bf16.mxu0 0
  %4073 = vmatpush1.bf16.msra.mxu0 0
  %4074 = vmatprep.subr.bf16.mxu0 0
  %4075 = vmatpush1.bf16.msra.mxu0 0
  %4076 = vmatprep.subr.bf16.mxu0 0
  %4077 = vmatpush1.bf16.msra.mxu0 0
  %4078 = vmatprep.subr.bf16.mxu0 0
  %4079 = vmatpush1.bf16.msra.mxu0 0
  %4080 = vmatprep.subr.bf16.mxu0 0
  %4081 = vmatpush1.bf16.msra.mxu0 0
  %4082 = vmatprep.subr.bf16.mxu0 0
  %4083 = vmatpush1.bf16.msra.mxu0 0
  %4084 = vmatprep.subr.bf16.mxu0 0
  %4085 = vmatpush1.bf16.msra.mxu0 0
  %4086 = vmatprep.subr.bf16.mxu0 0
  %4087 = vmatpush1.bf16.msra.mxu0 0
  %4088 = vmatprep.subr.bf16.mxu0 0
  %4089 = vmatpush1.bf16.msra.mxu0 0
  %4090 = vmatprep.subr.bf16.mxu0 0
  %4091 = vmatpush1.bf16.msra.mxu0 0
  %4092 = vmatprep.subr.bf16.mxu0 0
  %4093 = vmatpush1.bf16.msra.mxu0 0
  %4094 = vmatprep.subr.bf16.mxu0 0
  %4095 = vmatpush1.bf16.msra.mxu0 0
  %4096 = vmatprep.subr.bf16.mxu0 0
  %4097 = vmatpush1.bf16.msra.mxu0 0
  %4098 = vmatprep.subr.bf16.mxu0 0
  %4099 = vmatpush1.bf16.msra.mxu0 0
  %4100 = vmatprep.mubr.bf16.mxu0 0
  %4101 = vmatmul.mubr.bf16.gmra.mrb[0].mxu0 %v4063
  %v4102 = vpop.f32.mrb[0].mxu0
  %v4103 = vadd.f32 %v4040, %v4102
  %v4104 = vpop.f32.mrb[0].mxu0
  %v4105 = vpop.f32.mrb[0].mxu0
  %v4106 = vadd.f32 %v4040, %v4105
  %v4107 = vpop.f32.mrb[0].mxu0
  %4108 = vmatprep.mubr.bf16.mxu0 0
  %4109 = vmatmul.mubr.bf16.gmra.mrb[0].mxu0 %v4066
  %v4110 = vpop.f32.mrb[0].mxu0
  %v4111 = vadd.f32 %v4040, %v4110
  %v4112 = vpop.f32.mrb[0].mxu0
  %v4113 = vpop.f32.mrb[0].mxu0
  %v4114 = vpop.f32.mrb[0].mxu0
  %4115 = vdwg.mxu0
  %v4116 = vadd.f32 %v106, %v4103
  %v4117 = vadd.f32 %v109, %v4106
  %v4118 = vadd.f32 %v114, %v4111
  %v4119 = vld [vmem:[%s7] sm:$0x1]
  %v4120 = vld [vmem:[%s8] sm:$0x1]
  %v4121 = vsel %vm144, %v4116, 0.0
  %v4122 = vsel %vm144, %v4117, 0.0
  %v4123 = vadd.f32 %v4121, %v4122
  %v4124 = vsel %vm144, %v4118, 0.0
  %v4125 = vadd.f32 %v4123, %v4124
  %v4126 = vrot.slane %v4125, 4
  %v4127 = vadd.f32 %v4125, %v4126
  %v4128 = vrot.slane %v4127, 2
  %v4129 = vadd.f32 %v4127, %v4128
  %v4130 = vrot.slane %v4129, 1
  %v4131 = vadd.f32 %v4129, %v4130
  %v4132 = vrcp.pop 24.0
  %v4133 = vmul.f32 %v4131, %v4132
  %v4134 = vmul.f32 %v4116, %v4116
  %v4135 = vmul.f32 %v4117, %v4117
  %v4136 = vmul.f32 %v4118, %v4118
  %v4137 = vsel %vm144, %v4134, 0.0
  %v4138 = vsel %vm144, %v4135, 0.0
  %v4139 = vadd.f32 %v4137, %v4138
  %v4140 = vsel %vm144, %v4136, 0.0
  %v4141 = vadd.f32 %v4139, %v4140
  %v4142 = vrot.slane %v4141, 4
  %v4143 = vadd.f32 %v4141, %v4142
  %v4144 = vrot.slane %v4143, 2
  %v4145 = vadd.f32 %v4143, %v4144
  %v4146 = vrot.slane %v4145, 1
  %v4147 = vadd.f32 %v4145, %v4146
  %v4148 = vmul.f32 %v4147, %v4132
  %v4149 = vmul.f32 %v4133, %v4133
  %v4150 = vsub.f32 %v4148, %v4149
  %v4151 = vmax.f32 %v4150, 0.0
  %v4152 = vsub.f32 %v4116, %v4133
  %v4153 = vsub.f32 %v4117, %v4133
  %v4154 = vsub.f32 %v4118, %v4133
  %v4155 = vadd.f32 %v4151, 1e-05
  %v4156 = vrsqrt.pop %v4155
  %v4157 = vmul.f32 %v4152, %v4156
  %v4158 = vmul.f32 %v4153, %v4156
  %v4159 = vmul.f32 %v4154, %v4156
  %v4161 = vlaneseq
  %v4162 = vshrl.u32 %v4161, 7
  %v4163 = vsub.s32 0, %v4162
  %v4164 = vrot.slane %v4119, %v4163
  %v4166 = vmul.f32 %v4157, %v4164
  %v4167 = vmul.f32 %v4158, %v4164
  %v4168 = vmul.f32 %v4159, %v4164
  %v4170 = vlaneseq
  %v4171 = vshrl.u32 %v4170, 7
  %v4172 = vsub.s32 0, %v4171
  %v4173 = vrot.slane %v4120, %v4172
  %v4175 = vadd.f32 %v4166, %v4173
  %v4176 = vadd.f32 %v4167, %v4173
  %v4177 = vadd.f32 %v4168, %v4173
  %v4178 = vpack.c.bf16 %v4176, %v4175
  %v4179 = vpack.c.bf16 %v4177, %v4177
  %v4180 = vld [vmem:[%s9] sm:$0xf]
  %v4181 = vld [vmem:[%s9 + $0x4] sm:$0xf]
  %v4182 = vld [vmem:[%s9 + $0x8] sm:$0xf]
  %v4183 = vld [vmem:[%s9 + $0xc] sm:$0xf]
  %v4184 = vld [vmem:[%s10] sm:$0x1]
  %v4186 = vlaneseq
  %v4187 = vshrl.u32 %v4186, 7
  %v4188 = vsub.s32 0, %v4187
  %v4189 = vrot.slane %v4184, %v4188
  %v4195 = vunpack.c.l.b16 %v4180
  %v4196 = vunpack.c.l.b16 %v4181
  %v4197 = vunpack.c.l.b16 %v4182
  %v4198 = vunpack.c.l.b16 %v4183
  %v4199 = vpack.c.b16 %v4196, %v4195
  %v4200 = vpack.c.b16 %v4198, %v4197
  %v4204 = vsel %vm144, %v4178, 0
  %v4207 = vsel %vm144, %v4179, 0
  %4209 = vmatprep.subr.bf16.mxu0 0
  %4210 = vmatpush1.bf16.msra.mxu0 %v4199
  %4211 = vmatprep.subr.bf16.mxu0 0
  %4212 = vmatpush1.bf16.msra.mxu0 %v4200
  %4213 = vmatprep.subr.bf16.mxu0 0
  %4214 = vmatpush1.bf16.msra.mxu0 0
  %4215 = vmatprep.subr.bf16.mxu0 0
  %4216 = vmatpush1.bf16.msra.mxu0 0
  %4217 = vmatprep.subr.bf16.mxu0 0
  %4218 = vmatpush1.bf16.msra.mxu0 0
  %4219 = vmatprep.subr.bf16.mxu0 0
  %4220 = vmatpush1.bf16.msra.mxu0 0
  %4221 = vmatprep.subr.bf16.mxu0 0
  %4222 = vmatpush1.bf16.msra.mxu0 0
  %4223 = vmatprep.subr.bf16.mxu0 0
  %4224 = vmatpush1.bf16.msra.mxu0 0
  %4225 = vmatprep.subr.bf16.mxu0 0
  %4226 = vmatpush1.bf16.msra.mxu0 0
  %4227 = vmatprep.subr.bf16.mxu0 0
  %4228 = vmatpush1.bf16.msra.mxu0 0
  %4229 = vmatprep.subr.bf16.mxu0 0
  %4230 = vmatpush1.bf16.msra.mxu0 0
  %4231 = vmatprep.subr.bf16.mxu0 0
  %4232 = vmatpush1.bf16.msra.mxu0 0
  %4233 = vmatprep.subr.bf16.mxu0 0
  %4234 = vmatpush1.bf16.msra.mxu0 0
  %4235 = vmatprep.subr.bf16.mxu0 0
  %4236 = vmatpush1.bf16.msra.mxu0 0
  %4237 = vmatprep.subr.bf16.mxu0 0
  %4238 = vmatpush1.bf16.msra.mxu0 0
  %4239 = vmatprep.subr.bf16.mxu0 0
  %4240 = vmatpush1.bf16.msra.mxu0 0
  %4241 = vmatprep.mubr.bf16.mxu0 0
  %4242 = vmatmul.mubr.bf16.gmra.mrb[0].mxu0 %v4204
  %v4243 = vpop.f32.mrb[0].mxu0
  %v4244 = vadd.f32 %v4189, %v4243
  %v4245 = vpop.f32.mrb[0].mxu0
  %v4246 = vpop.f32.mrb[0].mxu0
  %v4247 = vadd.f32 %v4189, %v4246
  %v4248 = vpop.f32.mrb[0].mxu0
  %4249 = vmatprep.mubr.bf16.mxu0 0
  %4250 = vmatmul.mubr.bf16.gmra.mrb[0].mxu0 %v4207
  %v4251 = vpop.f32.mrb[0].mxu0
  %v4252 = vadd.f32 %v4189, %v4251
  %v4253 = vpop.f32.mrb[0].mxu0
  %v4254 = vpop.f32.mrb[0].mxu0
  %v4255 = vpop.f32.mrb[0].mxu0
  %4256 = vdwg.mxu0
  %v4257 = vmul.f32 %v4244, 0.5
  %v4258 = vmul.f32 %v4247, 0.5
  %v4259 = vmul.f32 %v4252, 0.5
  %v4260 = vmul.f32 %v4244, 0.70710677
  %v4261 = vmul.f32 %v4247, 0.70710677
  %v4262 = vmul.f32 %v4252, 0.70710677
  %vm4263 = vcmp.ge.f32.partialorder %v4260, 0.0
  %vm4264 = vcmp.ge.f32.partialorder %v4261, 0.0
  %vm4265 = vcmp.ge.f32.partialorder %v4262, 0.0
  %v4266 = vsel %vm4263, 1.0, -1.0
  %v4267 = vsel %vm4264, 1.0, -1.0
  %v4268 = vsel %vm4265, 1.0, -1.0
  %v4269 = vand.u32 2147483647, %v4260
  %v4270 = vand.u32 2147483647, %v4261
  %v4271 = vand.u32 2147483647, %v4262
  %v4272 = vmul.f32 %v4269, 0.3275911
  %v4273 = vmul.f32 %v4270, 0.3275911
  %v4274 = vmul.f32 %v4271, 0.3275911
  %v4275 = vadd.f32 %v4272, 1.0
  %v4276 = vadd.f32 %v4273, 1.0
  %v4277 = vadd.f32 %v4274, 1.0
  %v4278 = vrcp.pop %v4275
  %v4279 = vrcp.pop %v4276
  %v4280 = vrcp.pop %v4277
  %v4281 = vmul.f32 %v4275, %v4278
  %v4282 = vmul.f32 %v4276, %v4279
  %v4283 = vmul.f32 %v4277, %v4280
  %v4284 = vsub.f32 2.0, %v4281
  %v4285 = vsub.f32 2.0, %v4282
  %v4286 = vsub.f32 2.0, %v4283
  %v4287 = vmul.f32 %v4278, %v4284
  %v4288 = vmul.f32 %v4279, %v4285
  %v4289 = vmul.f32 %v4280, %v4286
  %v4290 = vmul.f32 %v4287, 1.0614054
  %v4291 = vmul.f32 %v4288, 1.0614054
  %v4292 = vmul.f32 %v4289, 1.0614054
  %v4293 = vadd.f32 %v4290, -1.4531521
  %v4294 = vadd.f32 %v4291, -1.4531521
  %v4295 = vadd.f32 %v4292, -1.4531521
  %v4296 = vmul.f32 %v4293, %v4287
  %v4297 = vmul.f32 %v4294, %v4288
  %v4298 = vmul.f32 %v4295, %v4289
  %v4299 = vadd.f32 %v4296, 1.4214138
  %v4300 = vadd.f32 %v4297, 1.4214138
  %v4301 = vadd.f32 %v4298, 1.4214138
  %v4302 = vmul.f32 %v4299, %v4287
  %v4303 = vmul.f32 %v4300, %v4288
  %v4304 = vmul.f32 %v4301, %v4289
  %v4305 = vadd.f32 %v4302, -0.28449672
  %v4306 = vadd.f32 %v4303, -0.28449672
  %v4307 = vadd.f32 %v4304, -0.28449672
  %v4308 = vmul.f32 %v4305, %v4287
  %v4309 = vmul.f32 %v4306, %v4288
  %v4310 = vmul.f32 %v4307, %v4289
  %v4311 = vadd.f32 %v4308, 0.2548296
  %v4312 = vadd.f32 %v4309, 0.2548296
  %v4313 = vadd.f32 %v4310, 0.2548296
  %v4314 = vmul.f32 %v4311, %v4287
  %v4315 = vmul.f32 %v4312, %v4288
  %v4316 = vmul.f32 %v4313, %v4289
  %v4317 = vsub.f32 0.0, %v4269
  %v4318 = vsub.f32 0.0, %v4270
  %v4319 = vsub.f32 0.0, %v4271
  %v4320 = vmul.f32 %v4317, %v4269
  %v4321 = vmul.f32 %v4318, %v4270
  %v4322 = vmul.f32 %v4319, %v4271
  %v4323 = vmul.f32 %v4320, 1.442695
  %v4324 = vpow.pop %v4323
  %v4325 = vmul.f32 %v4321, 1.442695
  %v4326 = vpow.pop %v4325
  %v4327 = vmul.f32 %v4322, 1.442695
  %v4328 = vpow.pop %v4327
  %v4329 = vmul.f32 %v4314, %v4324
  %v4330 = vmul.f32 %v4315, %v4326
  %v4331 = vmul.f32 %v4316, %v4328
  %v4332 = vsub.f32 1.0, %v4329
  %v4333 = vsub.f32 1.0, %v4330
  %v4334 = vsub.f32 1.0, %v4331
  %v4335 = vmul.f32 %v4266, %v4332
  %v4336 = vmul.f32 %v4267, %v4333
  %v4337 = vmul.f32 %v4268, %v4334
  %v4338 = vadd.f32 %v4335, 1.0
  %v4339 = vadd.f32 %v4336, 1.0
  %v4340 = vadd.f32 %v4337, 1.0
  %v4341 = vmul.f32 %v4257, %v4338
  %v4342 = vmul.f32 %v4258, %v4339
  %v4343 = vmul.f32 %v4259, %v4340
  %v4344 = vpack.c.bf16 %v4342, %v4341
  %v4345 = vpack.c.bf16 %v4343, %v4343
  %v4346 = vld [vmem:[%s11] sm:$0xf]
  %v4347 = vld [vmem:[%s11 + $0x4] sm:$0xf]
  %v4348 = vld [vmem:[%s11 + $0x8] sm:$0xf]
  %v4349 = vld [vmem:[%s11 + $0xc] sm:$0xf]
  %v4350 = vld [vmem:[%s11 + $0x10] sm:$0xf]
  %v4351 = vld [vmem:[%s11 + $0x14] sm:$0xf]
  %v4352 = vld [vmem:[%s11 + $0x18] sm:$0xf]
  %v4353 = vld [vmem:[%s11 + $0x1c] sm:$0xf]
  %v4354 = vld [vmem:[%s12] sm:$0x1]
  %v4356 = vlaneseq
  %v4357 = vshrl.u32 %v4356, 7
  %v4358 = vsub.s32 0, %v4357
  %v4359 = vrot.slane %v4354, %v4358
  %v4369 = vunpack.c.l.b16 %v4346
  %v4370 = vunpack.c.l.b16 %v4347
  %v4371 = vunpack.c.l.b16 %v4348
  %v4372 = vunpack.c.l.b16 %v4349
  %v4373 = vunpack.c.l.b16 %v4350
  %v4374 = vunpack.c.l.b16 %v4351
  %v4375 = vunpack.c.l.b16 %v4352
  %v4376 = vunpack.c.l.b16 %v4353
  %v4377 = vpack.c.b16 %v4370, %v4369
  %v4378 = vpack.c.b16 %v4372, %v4371
  %v4379 = vpack.c.b16 %v4374, %v4373
  %v4380 = vpack.c.b16 %v4376, %v4375
  %vm4385 = vcmask 523264
  %v4387 = vsel %vm4385, %v4344, 0
  %v4390 = vsel %vm4385, %v4345, 0
  %4392 = vmatprep.subr.bf16.mxu0 0
  %4393 = vmatpush1.bf16.msra.mxu0 %v4377
  %4394 = vmatprep.subr.bf16.mxu0 0
  %4395 = vmatpush1.bf16.msra.mxu0 %v4378
  %4396 = vmatprep.subr.bf16.mxu0 0
  %4397 = vmatpush1.bf16.msra.mxu0 %v4379
  %4398 = vmatprep.subr.bf16.mxu0 0
  %4399 = vmatpush1.bf16.msra.mxu0 %v4380
  %4400 = vmatprep.subr.bf16.mxu0 0
  %4401 = vmatpush1.bf16.msra.mxu0 0
  %4402 = vmatprep.subr.bf16.mxu0 0
  %4403 = vmatpush1.bf16.msra.mxu0 0
  %4404 = vmatprep.subr.bf16.mxu0 0
  %4405 = vmatpush1.bf16.msra.mxu0 0
  %4406 = vmatprep.subr.bf16.mxu0 0
  %4407 = vmatpush1.bf16.msra.mxu0 0
  %4408 = vmatprep.subr.bf16.mxu0 0
  %4409 = vmatpush1.bf16.msra.mxu0 0
  %4410 = vmatprep.subr.bf16.mxu0 0
  %4411 = vmatpush1.bf16.msra.mxu0 0
  %4412 = vmatprep.subr.bf16.mxu0 0
  %4413 = vmatpush1.bf16.msra.mxu0 0
  %4414 = vmatprep.subr.bf16.mxu0 0
  %4415 = vmatpush1.bf16.msra.mxu0 0
  %4416 = vmatprep.subr.bf16.mxu0 0
  %4417 = vmatpush1.bf16.msra.mxu0 0
  %4418 = vmatprep.subr.bf16.mxu0 0
  %4419 = vmatpush1.bf16.msra.mxu0 0
  %4420 = vmatprep.subr.bf16.mxu0 0
  %4421 = vmatpush1.bf16.msra.mxu0 0
  %4422 = vmatprep.subr.bf16.mxu0 0
  %4423 = vmatpush1.bf16.msra.mxu0 0
  %4424 = vmatprep.mubr.bf16.mxu0 0
  %4425 = vmatmul.mubr.bf16.gmra.mrb[0].mxu0 %v4387
  %v4426 = vpop.f32.mrb[0].mxu0
  %v4427 = vadd.f32 %v4359, %v4426
  %v4428 = vpop.f32.mrb[0].mxu0
  %v4429 = vpop.f32.mrb[0].mxu0
  %v4430 = vadd.f32 %v4359, %v4429
  %v4431 = vpop.f32.mrb[0].mxu0
  %4432 = vmatprep.mubr.bf16.mxu0 0
  %4433 = vmatmul.mubr.bf16.gmra.mrb[0].mxu0 %v4390
  %v4434 = vpop.f32.mrb[0].mxu0
  %v4435 = vadd.f32 %v4359, %v4434
  %v4436 = vpop.f32.mrb[0].mxu0
  %v4437 = vpop.f32.mrb[0].mxu0
  %v4438 = vpop.f32.mrb[0].mxu0
  %4439 = vdwg.mxu0
  %v4440 = vadd.f32 %v4175, %v4427
  %v4441 = vadd.f32 %v4176, %v4430
  %v4442 = vadd.f32 %v4177, %v4435
  %v4443 = vld [vmem:[%s13] sm:$0x1]
  %v4444 = vld [vmem:[%s14] sm:$0x1]
  %v4445 = vsel %vm144, %v4440, 0.0
  %v4446 = vsel %vm144, %v4441, 0.0
  %v4447 = vadd.f32 %v4445, %v4446
  %v4448 = vsel %vm144, %v4442, 0.0
  %v4449 = vadd.f32 %v4447, %v4448
  %v4450 = vrot.slane %v4449, 4
  %v4451 = vadd.f32 %v4449, %v4450
  %v4452 = vrot.slane %v4451, 2
  %v4453 = vadd.f32 %v4451, %v4452
  %v4454 = vrot.slane %v4453, 1
  %v4455 = vadd.f32 %v4453, %v4454
  %v4456 = vmul.f32 %v4455, %v4132
  %v4457 = vmul.f32 %v4440, %v4440
  %v4458 = vmul.f32 %v4441, %v4441
  %v4459 = vmul.f32 %v4442, %v4442
  %v4460 = vsel %vm144, %v4457, 0.0
  %v4461 = vsel %vm144, %v4458, 0.0
  %v4462 = vadd.f32 %v4460, %v4461
  %v4463 = vsel %vm144, %v4459, 0.0
  %v4464 = vadd.f32 %v4462, %v4463
  %v4465 = vrot.slane %v4464, 4
  %v4466 = vadd.f32 %v4464, %v4465
  %v4467 = vrot.slane %v4466, 2
  %v4468 = vadd.f32 %v4466, %v4467
  %v4469 = vrot.slane %v4468, 1
  %v4470 = vadd.f32 %v4468, %v4469
  %v4471 = vmul.f32 %v4470, %v4132
  %v4472 = vmul.f32 %v4456, %v4456
  %v4473 = vsub.f32 %v4471, %v4472
  %v4474 = vmax.f32 %v4473, 0.0
  %v4475 = vsub.f32 %v4440, %v4456
  %v4476 = vsub.f32 %v4441, %v4456
  %v4477 = vsub.f32 %v4442, %v4456
  %v4478 = vadd.f32 %v4474, 1e-05
  %v4479 = vrsqrt.pop %v4478
  %v4480 = vmul.f32 %v4475, %v4479
  %v4481 = vmul.f32 %v4476, %v4479
  %v4482 = vmul.f32 %v4477, %v4479
  %v4484 = vlaneseq
  %v4485 = vshrl.u32 %v4484, 7
  %v4486 = vsub.s32 0, %v4485
  %v4487 = vrot.slane %v4443, %v4486
  %v4489 = vmul.f32 %v4480, %v4487
  %v4490 = vmul.f32 %v4481, %v4487
  %v4491 = vmul.f32 %v4482, %v4487
  %v4493 = vlaneseq
  %v4494 = vshrl.u32 %v4493, 7
  %v4495 = vsub.s32 0, %v4494
  %v4496 = vrot.slane %v4444, %v4495
  %v4498 = vadd.f32 %v4489, %v4496
  %v4499 = vadd.f32 %v4490, %v4496
  %v4500 = vadd.f32 %v4491, %v4496
  %v4501 = vpack.c.bf16 %v4499, %v4498
  %v4502 = vpack.c.bf16 %v4500, %v4500
  %s4503 = scalar_lea.vmem %s3, 16
  %v4504 = vld [vmem:[%s4503] sm:$0xf]
  %v4505 = vld [vmem:[%s4503 + $0x4] sm:$0xf]
  %v4506 = vld [vmem:[%s4503 + $0x8] sm:$0xf]
  %v4507 = vld [vmem:[%s4503 + $0xc] sm:$0xf]
  %s4508 = scalar_lea.vmem %s4, 1
  %v4509 = vld [vmem:[%s4508] sm:$0x1]
  %v4511 = vlaneseq
  %v4512 = vshrl.u32 %v4511, 7
  %v4513 = vsub.s32 0, %v4512
  %v4514 = vrot.slane %v4509, %v4513
  %v4520 = vunpack.c.l.b16 %v4504
  %v4521 = vunpack.c.l.b16 %v4505
  %v4522 = vunpack.c.l.b16 %v4506
  %v4523 = vunpack.c.l.b16 %v4507
  %v4524 = vpack.c.b16 %v4521, %v4520
  %v4525 = vpack.c.b16 %v4523, %v4522
  %v4529 = vsel %vm144, %v4501, 0
  %v4532 = vsel %vm144, %v4502, 0
  %4534 = vmatprep.subr.bf16.mxu0 0
  %4535 = vmatpush1.bf16.msra.mxu0 %v4524
  %4536 = vmatprep.subr.bf16.mxu0 0
  %4537 = vmatpush1.bf16.msra.mxu0 %v4525
  %4538 = vmatprep.subr.bf16.mxu0 0
  %4539 = vmatpush1.bf16.msra.mxu0 0
  %4540 = vmatprep.subr.bf16.mxu0 0
  %4541 = vmatpush1.bf16.msra.mxu0 0
  %4542 = vmatprep.subr.bf16.mxu0 0
  %4543 = vmatpush1.bf16.msra.mxu0 0
  %4544 = vmatprep.subr.bf16.mxu0 0
  %4545 = vmatpush1.bf16.msra.mxu0 0
  %4546 = vmatprep.subr.bf16.mxu0 0
  %4547 = vmatpush1.bf16.msra.mxu0 0
  %4548 = vmatprep.subr.bf16.mxu0 0
  %4549 = vmatpush1.bf16.msra.mxu0 0
  %4550 = vmatprep.subr.bf16.mxu0 0
  %4551 = vmatpush1.bf16.msra.mxu0 0
  %4552 = vmatprep.subr.bf16.mxu0 0
  %4553 = vmatpush1.bf16.msra.mxu0 0
  %4554 = vmatprep.subr.bf16.mxu0 0
  %4555 = vmatpush1.bf16.msra.mxu0 0
  %4556 = vmatprep.subr.bf16.mxu0 0
  %4557 = vmatpush1.bf16.msra.mxu0 0
  %4558 = vmatprep.subr.bf16.mxu0 0
  %4559 = vmatpush1.bf16.msra.mxu0 0
  %4560 = vmatprep.subr.bf16.mxu0 0
  %4561 = vmatpush1.bf16.msra.mxu0 0
  %4562 = vmatprep.subr.bf16.mxu0 0
  %4563 = vmatpush1.bf16.msra.mxu0 0
  %4564 = vmatprep.subr.bf16.mxu0 0
  %4565 = vmatpush1.bf16.msra.mxu0 0
  %4566 = vmatprep.mubr.bf16.mxu0 0
  %4567 = vmatmul.mubr.bf16.gmra.mrb[0].mxu0 %v4529
  %v4568 = vpop.f32.mrb[0].mxu0
  %v4569 = vadd.f32 %v4514, %v4568
  %v4570 = vpop.f32.mrb[0].mxu0
  %v4571 = vpop.f32.mrb[0].mxu0
  %v4572 = vadd.f32 %v4514, %v4571
  %v4573 = vpop.f32.mrb[0].mxu0
  %4574 = vmatprep.mubr.bf16.mxu0 0
  %4575 = vmatmul.mubr.bf16.gmra.mrb[0].mxu0 %v4532
  %v4576 = vpop.f32.mrb[0].mxu0
  %v4577 = vadd.f32 %v4514, %v4576
  %v4578 = vpop.f32.mrb[0].mxu0
  %v4579 = vpop.f32.mrb[0].mxu0
  %v4580 = vpop.f32.mrb[0].mxu0
  %4581 = vdwg.mxu0
  %v4582 = vpack.c.bf16 %v4569, %v4569
  %4584 = vrot.lane.b32.xlu0 %v4582, 96
  %v4585 = vpop.permute.xlu0 %4584
  %v4587 = vsel %vm60, %v4582, 0
  %v4590 = vsel %vm60, %v4585, 0
  %4592 = vmatprep.subr.bf16.mxu0 0
  %4593 = vmatpush1.bf16.xpose.msra.mxu0 %v4590
  %4594 = vmatprep.subr.bf16.mxu0 0
  %4595 = vmatpush1.bf16.xpose.msra.mxu0 0
  %4596 = vmatprep.subr.bf16.mxu0 0
  %4597 = vmatpush1.bf16.xpose.msra.mxu0 0
  %4598 = vmatprep.subr.bf16.mxu0 0
  %4599 = vmatpush1.bf16.xpose.msra.mxu0 0
  %4600 = vmatprep.subr.bf16.mxu0 0
  %4601 = vmatpush1.bf16.xpose.msra.mxu0 0
  %4602 = vmatprep.subr.bf16.mxu0 0
  %4603 = vmatpush1.bf16.xpose.msra.mxu0 0
  %4604 = vmatprep.subr.bf16.mxu0 0
  %4605 = vmatpush1.bf16.xpose.msra.mxu0 0
  %4606 = vmatprep.subr.bf16.mxu0 0
  %4607 = vmatpush1.bf16.xpose.msra.mxu0 0
  %4608 = vmatprep.subr.bf16.mxu0 0
  %4609 = vmatpush1.bf16.xpose.msra.mxu0 0
  %4610 = vmatprep.subr.bf16.mxu0 0
  %4611 = vmatpush1.bf16.xpose.msra.mxu0 0
  %4612 = vmatprep.subr.bf16.mxu0 0
  %4613 = vmatpush1.bf16.xpose.msra.mxu0 0
  %4614 = vmatprep.subr.bf16.mxu0 0
  %4615 = vmatpush1.bf16.xpose.msra.mxu0 0
  %4616 = vmatprep.subr.bf16.mxu0 0
  %4617 = vmatpush1.bf16.xpose.msra.mxu0 0
  %4618 = vmatprep.subr.bf16.mxu0 0
  %4619 = vmatpush1.bf16.xpose.msra.mxu0 0
  %4620 = vmatprep.subr.bf16.mxu0 0
  %4621 = vmatpush1.bf16.xpose.msra.mxu0 0
  %4622 = vmatprep.subr.bf16.mxu0 0
  %4623 = vmatpush1.bf16.xpose.msra.mxu0 0
  %4624 = vmatprep.mubr.bf16.mxu0 0
  %4625 = vmatmul.mubr.bf16.gmra.mrb[0].mxu0 %v4587
  %v4626 = vpop.f32.mrb[0].mxu0
  %v4627 = vadd.f32 0.0, %v4626
  %v4628 = vpop.f32.mrb[0].mxu0
  %v4629 = vpop.f32.mrb[0].mxu0
  %v4630 = vpop.f32.mrb[0].mxu0
  %4631 = vdwg.mxu0
  %v4632 = vmul.f32 %v4627, 0.35355338
  %v4633 = vadd.f32 %v4632, %v249
  %v4634 = vsel %vm250, %v4633, -inf
  %4635 = vmax.xlane.f32.xlu0 %v4634
  %v4636 = vpop.xlane.xlu0 %4635
  %v4637 = vsub.f32 %v4633, %v4636
  %v4638 = vmul.f32 %v4637, 1.442695
  %v4639 = vpow.pop %v4638
  %v4640 = vsel %vm250, %v4639, 0.0
  %4641 = vadd.xlane.f32.xlu0 %v4640
  %v4642 = vpop.xlane.xlu0 %4641
  %v4643 = vrcp.pop %v4642
  %v4644 = vmul.f32 %v4639, %v4643
  %v4645 = vpack.c.bf16 %v4644, %v4644
  %4646 = vrot.lane.b32.xlu0 %v4582, 64
  %v4647 = vpop.permute.xlu0 %4646
  %v4649 = vsel %vm265, %v4645, 0
  %v4652 = vand.u32 %v4647, %v272
  %4654 = vmatprep.subr.bf16.mxu0 0
  %4655 = vmatpush1.bf16.msra.mxu0 %v4652
  %4656 = vmatprep.subr.bf16.mxu0 0
  %4657 = vmatpush1.bf16.msra.mxu0 0
  %4658 = vmatprep.subr.bf16.mxu0 0
  %4659 = vmatpush1.bf16.msra.mxu0 0
  %4660 = vmatprep.subr.bf16.mxu0 0
  %4661 = vmatpush1.bf16.msra.mxu0 0
  %4662 = vmatprep.subr.bf16.mxu0 0
  %4663 = vmatpush1.bf16.msra.mxu0 0
  %4664 = vmatprep.subr.bf16.mxu0 0
  %4665 = vmatpush1.bf16.msra.mxu0 0
  %4666 = vmatprep.subr.bf16.mxu0 0
  %4667 = vmatpush1.bf16.msra.mxu0 0
  %4668 = vmatprep.subr.bf16.mxu0 0
  %4669 = vmatpush1.bf16.msra.mxu0 0
  %4670 = vmatprep.subr.bf16.mxu0 0
  %4671 = vmatpush1.bf16.msra.mxu0 0
  %4672 = vmatprep.subr.bf16.mxu0 0
  %4673 = vmatpush1.bf16.msra.mxu0 0
  %4674 = vmatprep.subr.bf16.mxu0 0
  %4675 = vmatpush1.bf16.msra.mxu0 0
  %4676 = vmatprep.subr.bf16.mxu0 0
  %4677 = vmatpush1.bf16.msra.mxu0 0
  %4678 = vmatprep.subr.bf16.mxu0 0
  %4679 = vmatpush1.bf16.msra.mxu0 0
  %4680 = vmatprep.subr.bf16.mxu0 0
  %4681 = vmatpush1.bf16.msra.mxu0 0
  %4682 = vmatprep.subr.bf16.mxu0 0
  %4683 = vmatpush1.bf16.msra.mxu0 0
  %4684 = vmatprep.subr.bf16.mxu0 0
  %4685 = vmatpush1.bf16.msra.mxu0 0
  %4686 = vmatprep.mubr.bf16.mxu0 0
  %4687 = vmatmul.mubr.bf16.gmra.mrb[0].mxu0 %v4649
  %v4688 = vpop.f32.mrb[0].mxu0
  %v4689 = vadd.f32 0.0, %v4688
  %v4690 = vpop.f32.mrb[0].mxu0
  %v4691 = vpop.f32.mrb[0].mxu0
  %v4692 = vpop.f32.mrb[0].mxu0
  %4693 = vdwg.mxu0
  %4694 = vrot.lane.b32.xlu0 %v4582, 120
  %v4695 = vpop.permute.xlu0 %4694
  %4696 = vrot.lane.b32.xlu0 %v4582, 88
  %v4697 = vpop.permute.xlu0 %4696
  %v4699 = vsel %vm60, %v4695, 0
  %v4702 = vsel %vm60, %v4697, 0
  %4704 = vmatprep.subr.bf16.mxu0 0
  %4705 = vmatpush1.bf16.xpose.msra.mxu0 %v4702
  %4706 = vmatprep.subr.bf16.mxu0 0
  %4707 = vmatpush1.bf16.xpose.msra.mxu0 0
  %4708 = vmatprep.subr.bf16.mxu0 0
  %4709 = vmatpush1.bf16.xpose.msra.mxu0 0
  %4710 = vmatprep.subr.bf16.mxu0 0
  %4711 = vmatpush1.bf16.xpose.msra.mxu0 0
  %4712 = vmatprep.subr.bf16.mxu0 0
  %4713 = vmatpush1.bf16.xpose.msra.mxu0 0
  %4714 = vmatprep.subr.bf16.mxu0 0
  %4715 = vmatpush1.bf16.xpose.msra.mxu0 0
  %4716 = vmatprep.subr.bf16.mxu0 0
  %4717 = vmatpush1.bf16.xpose.msra.mxu0 0
  %4718 = vmatprep.subr.bf16.mxu0 0
  %4719 = vmatpush1.bf16.xpose.msra.mxu0 0
  %4720 = vmatprep.subr.bf16.mxu0 0
  %4721 = vmatpush1.bf16.xpose.msra.mxu0 0
  %4722 = vmatprep.subr.bf16.mxu0 0
  %4723 = vmatpush1.bf16.xpose.msra.mxu0 0
  %4724 = vmatprep.subr.bf16.mxu0 0
  %4725 = vmatpush1.bf16.xpose.msra.mxu0 0
  %4726 = vmatprep.subr.bf16.mxu0 0
  %4727 = vmatpush1.bf16.xpose.msra.mxu0 0
  %4728 = vmatprep.subr.bf16.mxu0 0
  %4729 = vmatpush1.bf16.xpose.msra.mxu0 0
  %4730 = vmatprep.subr.bf16.mxu0 0
  %4731 = vmatpush1.bf16.xpose.msra.mxu0 0
  %4732 = vmatprep.subr.bf16.mxu0 0
  %4733 = vmatpush1.bf16.xpose.msra.mxu0 0
  %4734 = vmatprep.subr.bf16.mxu0 0
  %4735 = vmatpush1.bf16.xpose.msra.mxu0 0
  %4736 = vmatprep.mubr.bf16.mxu0 0
  %4737 = vmatmul.mubr.bf16.gmra.mrb[0].mxu0 %v4699
  %v4738 = vpop.f32.mrb[0].mxu0
  %v4739 = vadd.f32 0.0, %v4738
  %v4740 = vpop.f32.mrb[0].mxu0
  %v4741 = vpop.f32.mrb[0].mxu0
  %v4742 = vpop.f32.mrb[0].mxu0
  %4743 = vdwg.mxu0
  %v4744 = vmul.f32 %v4739, 0.35355338
  %v4745 = vadd.f32 %v4744, %v366
  %v4746 = vsel %vm250, %v4745, -inf
  %4747 = vmax.xlane.f32.xlu0 %v4746
  %v4748 = vpop.xlane.xlu0 %4747
  %v4749 = vsub.f32 %v4745, %v4748
  %v4750 = vmul.f32 %v4749, 1.442695
  %v4751 = vpow.pop %v4750
  %v4752 = vsel %vm250, %v4751, 0.0
  %4753 = vadd.xlane.f32.xlu0 %v4752
  %v4754 = vpop.xlane.xlu0 %4753
  %v4755 = vrcp.pop %v4754
  %v4756 = vmul.f32 %v4751, %v4755
  %v4757 = vpack.c.bf16 %v4756, %v4756
  %4758 = vrot.lane.b32.xlu0 %v4582, 56
  %v4759 = vpop.permute.xlu0 %4758
  %v4761 = vsel %vm265, %v4757, 0
  %v4764 = vand.u32 %v4759, %v272
  %4766 = vmatprep.subr.bf16.mxu0 0
  %4767 = vmatpush1.bf16.msra.mxu0 %v4764
  %4768 = vmatprep.subr.bf16.mxu0 0
  %4769 = vmatpush1.bf16.msra.mxu0 0
  %4770 = vmatprep.subr.bf16.mxu0 0
  %4771 = vmatpush1.bf16.msra.mxu0 0
  %4772 = vmatprep.subr.bf16.mxu0 0
  %4773 = vmatpush1.bf16.msra.mxu0 0
  %4774 = vmatprep.subr.bf16.mxu0 0
  %4775 = vmatpush1.bf16.msra.mxu0 0
  %4776 = vmatprep.subr.bf16.mxu0 0
  %4777 = vmatpush1.bf16.msra.mxu0 0
  %4778 = vmatprep.subr.bf16.mxu0 0
  %4779 = vmatpush1.bf16.msra.mxu0 0
  %4780 = vmatprep.subr.bf16.mxu0 0
  %4781 = vmatpush1.bf16.msra.mxu0 0
  %4782 = vmatprep.subr.bf16.mxu0 0
  %4783 = vmatpush1.bf16.msra.mxu0 0
  %4784 = vmatprep.subr.bf16.mxu0 0
  %4785 = vmatpush1.bf16.msra.mxu0 0
  %4786 = vmatprep.subr.bf16.mxu0 0
  %4787 = vmatpush1.bf16.msra.mxu0 0
  %4788 = vmatprep.subr.bf16.mxu0 0
  %4789 = vmatpush1.bf16.msra.mxu0 0
  %4790 = vmatprep.subr.bf16.mxu0 0
  %4791 = vmatpush1.bf16.msra.mxu0 0
  %4792 = vmatprep.subr.bf16.mxu0 0
  %4793 = vmatpush1.bf16.msra.mxu0 0
  %4794 = vmatprep.subr.bf16.mxu0 0
  %4795 = vmatpush1.bf16.msra.mxu0 0
  %4796 = vmatprep.subr.bf16.mxu0 0
  %4797 = vmatpush1.bf16.msra.mxu0 0
  %4798 = vmatprep.mubr.bf16.mxu0 0
  %4799 = vmatmul.mubr.bf16.gmra.mrb[0].mxu0 %v4761
  %v4800 = vpop.f32.mrb[0].mxu0
  %v4801 = vadd.f32 0.0, %v4800
  %v4802 = vpop.f32.mrb[0].mxu0
  %v4803 = vpop.f32.mrb[0].mxu0
  %v4804 = vpop.f32.mrb[0].mxu0
  %4805 = vdwg.mxu0
  %4806 = vrot.lane.b32.xlu0 %v4582, 112
  %v4807 = vpop.permute.xlu0 %4806
  %4808 = vrot.lane.b32.xlu0 %v4582, 80
  %v4809 = vpop.permute.xlu0 %4808
  %v4811 = vsel %vm60, %v4807, 0
  %v4814 = vsel %vm60, %v4809, 0
  %4816 = vmatprep.subr.bf16.mxu0 0
  %4817 = vmatpush1.bf16.xpose.msra.mxu0 %v4814
  %4818 = vmatprep.subr.bf16.mxu0 0
  %4819 = vmatpush1.bf16.xpose.msra.mxu0 0
  %4820 = vmatprep.subr.bf16.mxu0 0
  %4821 = vmatpush1.bf16.xpose.msra.mxu0 0
  %4822 = vmatprep.subr.bf16.mxu0 0
  %4823 = vmatpush1.bf16.xpose.msra.mxu0 0
  %4824 = vmatprep.subr.bf16.mxu0 0
  %4825 = vmatpush1.bf16.xpose.msra.mxu0 0
  %4826 = vmatprep.subr.bf16.mxu0 0
  %4827 = vmatpush1.bf16.xpose.msra.mxu0 0
  %4828 = vmatprep.subr.bf16.mxu0 0
  %4829 = vmatpush1.bf16.xpose.msra.mxu0 0
  %4830 = vmatprep.subr.bf16.mxu0 0
  %4831 = vmatpush1.bf16.xpose.msra.mxu0 0
  %4832 = vmatprep.subr.bf16.mxu0 0
  %4833 = vmatpush1.bf16.xpose.msra.mxu0 0
  %4834 = vmatprep.subr.bf16.mxu0 0
  %4835 = vmatpush1.bf16.xpose.msra.mxu0 0
  %4836 = vmatprep.subr.bf16.mxu0 0
  %4837 = vmatpush1.bf16.xpose.msra.mxu0 0
  %4838 = vmatprep.subr.bf16.mxu0 0
  %4839 = vmatpush1.bf16.xpose.msra.mxu0 0
  %4840 = vmatprep.subr.bf16.mxu0 0
  %4841 = vmatpush1.bf16.xpose.msra.mxu0 0
  %4842 = vmatprep.subr.bf16.mxu0 0
  %4843 = vmatpush1.bf16.xpose.msra.mxu0 0
  %4844 = vmatprep.subr.bf16.mxu0 0
  %4845 = vmatpush1.bf16.xpose.msra.mxu0 0
  %4846 = vmatprep.subr.bf16.mxu0 0
  %4847 = vmatpush1.bf16.xpose.msra.mxu0 0
  %4848 = vmatprep.mubr.bf16.mxu0 0
  %4849 = vmatmul.mubr.bf16.gmra.mrb[0].mxu0 %v4811
  %v4850 = vpop.f32.mrb[0].mxu0
  %v4851 = vadd.f32 0.0, %v4850
  %v4852 = vpop.f32.mrb[0].mxu0
  %v4853 = vpop.f32.mrb[0].mxu0
  %v4854 = vpop.f32.mrb[0].mxu0
  %4855 = vdwg.mxu0
  %v4856 = vmul.f32 %v4851, 0.35355338
  %v4857 = vadd.f32 %v4856, %v477
  %v4858 = vsel %vm250, %v4857, -inf
  %4859 = vmax.xlane.f32.xlu0 %v4858
  %v4860 = vpop.xlane.xlu0 %4859
  %v4861 = vsub.f32 %v4857, %v4860
  %v4862 = vmul.f32 %v4861, 1.442695
  %v4863 = vpow.pop %v4862
  %v4864 = vsel %vm250, %v4863, 0.0
  %4865 = vadd.xlane.f32.xlu0 %v4864
  %v4866 = vpop.xlane.xlu0 %4865
  %v4867 = vrcp.pop %v4866
  %v4868 = vmul.f32 %v4863, %v4867
  %v4869 = vpack.c.bf16 %v4868, %v4868
  %4870 = vrot.lane.b32.xlu0 %v4582, 48
  %v4871 = vpop.permute.xlu0 %4870
  %v4873 = vsel %vm265, %v4869, 0
  %v4876 = vand.u32 %v4871, %v272
  %4878 = vmatprep.subr.bf16.mxu0 0
  %4879 = vmatpush1.bf16.msra.mxu0 %v4876
  %4880 = vmatprep.subr.bf16.mxu0 0
  %4881 = vmatpush1.bf16.msra.mxu0 0
  %4882 = vmatprep.subr.bf16.mxu0 0
  %4883 = vmatpush1.bf16.msra.mxu0 0
  %4884 = vmatprep.subr.bf16.mxu0 0
  %4885 = vmatpush1.bf16.msra.mxu0 0
  %4886 = vmatprep.subr.bf16.mxu0 0
  %4887 = vmatpush1.bf16.msra.mxu0 0
  %4888 = vmatprep.subr.bf16.mxu0 0
  %4889 = vmatpush1.bf16.msra.mxu0 0
  %4890 = vmatprep.subr.bf16.mxu0 0
  %4891 = vmatpush1.bf16.msra.mxu0 0
  %4892 = vmatprep.subr.bf16.mxu0 0
  %4893 = vmatpush1.bf16.msra.mxu0 0
  %4894 = vmatprep.subr.bf16.mxu0 0
  %4895 = vmatpush1.bf16.msra.mxu0 0
  %4896 = vmatprep.subr.bf16.mxu0 0
  %4897 = vmatpush1.bf16.msra.mxu0 0
  %4898 = vmatprep.subr.bf16.mxu0 0
  %4899 = vmatpush1.bf16.msra.mxu0 0
  %4900 = vmatprep.subr.bf16.mxu0 0
  %4901 = vmatpush1.bf16.msra.mxu0 0
  %4902 = vmatprep.subr.bf16.mxu0 0
  %4903 = vmatpush1.bf16.msra.mxu0 0
  %4904 = vmatprep.subr.bf16.mxu0 0
  %4905 = vmatpush1.bf16.msra.mxu0 0
  %4906 = vmatprep.subr.bf16.mxu0 0
  %4907 = vmatpush1.bf16.msra.mxu0 0
  %4908 = vmatprep.subr.bf16.mxu0 0
  %4909 = vmatpush1.bf16.msra.mxu0 0
  %4910 = vmatprep.mubr.bf16.mxu0 0
  %4911 = vmatmul.mubr.bf16.gmra.mrb[0].mxu0 %v4873
  %v4912 = vpop.f32.mrb[0].mxu0
  %v4913 = vadd.f32 0.0, %v4912
  %v4914 = vpop.f32.mrb[0].mxu0
  %v4915 = vpop.f32.mrb[0].mxu0
  %v4916 = vpop.f32.mrb[0].mxu0
  %4917 = vdwg.mxu0
  %4918 = vrot.lane.b32.xlu0 %v4582, 104
  %v4919 = vpop.permute.xlu0 %4918
  %4920 = vrot.lane.b32.xlu0 %v4582, 72
  %v4921 = vpop.permute.xlu0 %4920
  %v4923 = vsel %vm60, %v4919, 0
  %v4926 = vsel %vm60, %v4921, 0
  %4928 = vmatprep.subr.bf16.mxu0 0
  %4929 = vmatpush1.bf16.xpose.msra.mxu0 %v4926
  %4930 = vmatprep.subr.bf16.mxu0 0
  %4931 = vmatpush1.bf16.xpose.msra.mxu0 0
  %4932 = vmatprep.subr.bf16.mxu0 0
  %4933 = vmatpush1.bf16.xpose.msra.mxu0 0
  %4934 = vmatprep.subr.bf16.mxu0 0
  %4935 = vmatpush1.bf16.xpose.msra.mxu0 0
  %4936 = vmatprep.subr.bf16.mxu0 0
  %4937 = vmatpush1.bf16.xpose.msra.mxu0 0
  %4938 = vmatprep.subr.bf16.mxu0 0
  %4939 = vmatpush1.bf16.xpose.msra.mxu0 0
  %4940 = vmatprep.subr.bf16.mxu0 0
  %4941 = vmatpush1.bf16.xpose.msra.mxu0 0
  %4942 = vmatprep.subr.bf16.mxu0 0
  %4943 = vmatpush1.bf16.xpose.msra.mxu0 0
  %4944 = vmatprep.subr.bf16.mxu0 0
  %4945 = vmatpush1.bf16.xpose.msra.mxu0 0
  %4946 = vmatprep.subr.bf16.mxu0 0
  %4947 = vmatpush1.bf16.xpose.msra.mxu0 0
  %4948 = vmatprep.subr.bf16.mxu0 0
  %4949 = vmatpush1.bf16.xpose.msra.mxu0 0
  %4950 = vmatprep.subr.bf16.mxu0 0
  %4951 = vmatpush1.bf16.xpose.msra.mxu0 0
  %4952 = vmatprep.subr.bf16.mxu0 0
  %4953 = vmatpush1.bf16.xpose.msra.mxu0 0
  %4954 = vmatprep.subr.bf16.mxu0 0
  %4955 = vmatpush1.bf16.xpose.msra.mxu0 0
  %4956 = vmatprep.subr.bf16.mxu0 0
  %4957 = vmatpush1.bf16.xpose.msra.mxu0 0
  %4958 = vmatprep.subr.bf16.mxu0 0
  %4959 = vmatpush1.bf16.xpose.msra.mxu0 0
  %4960 = vmatprep.mubr.bf16.mxu0 0
  %4961 = vmatmul.mubr.bf16.gmra.mrb[0].mxu0 %v4923
  %v4962 = vpop.f32.mrb[0].mxu0
  %v4963 = vadd.f32 0.0, %v4962
  %v4964 = vpop.f32.mrb[0].mxu0
  %v4965 = vpop.f32.mrb[0].mxu0
  %v4966 = vpop.f32.mrb[0].mxu0
  %4967 = vdwg.mxu0
  %v4968 = vmul.f32 %v4963, 0.35355338
  %v4969 = vadd.f32 %v4968, %v588
  %v4970 = vsel %vm250, %v4969, -inf
  %4971 = vmax.xlane.f32.xlu0 %v4970
  %v4972 = vpop.xlane.xlu0 %4971
  %v4973 = vsub.f32 %v4969, %v4972
  %v4974 = vmul.f32 %v4973, 1.442695
  %v4975 = vpow.pop %v4974
  %v4976 = vsel %vm250, %v4975, 0.0
  %4977 = vadd.xlane.f32.xlu0 %v4976
  %v4978 = vpop.xlane.xlu0 %4977
  %v4979 = vrcp.pop %v4978
  %v4980 = vmul.f32 %v4975, %v4979
  %v4981 = vpack.c.bf16 %v4980, %v4980
  %4982 = vrot.lane.b32.xlu0 %v4582, 40
  %v4983 = vpop.permute.xlu0 %4982
  %v4985 = vsel %vm265, %v4981, 0
  %v4988 = vand.u32 %v4983, %v272
  %4990 = vmatprep.subr.bf16.mxu0 0
  %4991 = vmatpush1.bf16.msra.mxu0 %v4988
  %4992 = vmatprep.subr.bf16.mxu0 0
  %4993 = vmatpush1.bf16.msra.mxu0 0
  %4994 = vmatprep.subr.bf16.mxu0 0
  %4995 = vmatpush1.bf16.msra.mxu0 0
  %4996 = vmatprep.subr.bf16.mxu0 0
  %4997 = vmatpush1.bf16.msra.mxu0 0
  %4998 = vmatprep.subr.bf16.mxu0 0
  %4999 = vmatpush1.bf16.msra.mxu0 0
  %5000 = vmatprep.subr.bf16.mxu0 0
  %5001 = vmatpush1.bf16.msra.mxu0 0
  %5002 = vmatprep.subr.bf16.mxu0 0
  %5003 = vmatpush1.bf16.msra.mxu0 0
  %5004 = vmatprep.subr.bf16.mxu0 0
  %5005 = vmatpush1.bf16.msra.mxu0 0
  %5006 = vmatprep.subr.bf16.mxu0 0
  %5007 = vmatpush1.bf16.msra.mxu0 0
  %5008 = vmatprep.subr.bf16.mxu0 0
  %5009 = vmatpush1.bf16.msra.mxu0 0
  %5010 = vmatprep.subr.bf16.mxu0 0
  %5011 = vmatpush1.bf16.msra.mxu0 0
  %5012 = vmatprep.subr.bf16.mxu0 0
  %5013 = vmatpush1.bf16.msra.mxu0 0
  %5014 = vmatprep.subr.bf16.mxu0 0
  %5015 = vmatpush1.bf16.msra.mxu0 0
  %5016 = vmatprep.subr.bf16.mxu0 0
  %5017 = vmatpush1.bf16.msra.mxu0 0
  %5018 = vmatprep.subr.bf16.mxu0 0
  %5019 = vmatpush1.bf16.msra.mxu0 0
  %5020 = vmatprep.subr.bf16.mxu0 0
  %5021 = vmatpush1.bf16.msra.mxu0 0
  %5022 = vmatprep.mubr.bf16.mxu0 0
  %5023 = vmatmul.mubr.bf16.gmra.mrb[0].mxu0 %v4985
  %v5024 = vpop.f32.mrb[0].mxu0
  %v5025 = vadd.f32 0.0, %v5024
  %v5026 = vpop.f32.mrb[0].mxu0
  %v5027 = vpop.f32.mrb[0].mxu0
  %v5028 = vpop.f32.mrb[0].mxu0
  %5029 = vdwg.mxu0
  %5031 = vrot.lane.b32.xlu0 %v4801, 8
  %v5032 = vpop.permute.xlu0 %5031
  %5035 = vrot.lane.b32.xlu0 %v4913, 16
  %v5036 = vpop.permute.xlu0 %5035
  %5039 = vrot.lane.b32.xlu0 %v5025, 24
  %v5040 = vpop.permute.xlu0 %5039
  %v5042 = vsel %vm60, %v4689, %v5032
  %v5043 = vsel %vm662, %v5042, %v5036
  %v5044 = vsel %vm664, %v5043, %v5040
  %v5045 = vpack.c.bf16 %v5044, %v5044
  %v5046 = vld [vmem:[#allocation2] sm:$0x3]
  %v5047 = vsel %vm669, %v5045, %v5046
  %5048 = vst [vmem:[#allocation2] sm:$0x3] %v5047
  %v5049 = vshrl.u32 %v4582, 16
  %v5051 = vrot.slane %v5049, 1
  %v5052 = vshll.u32 %v4582, 16
  %v5054 = vrot.slane %v5052, 2
  %v5055 = vor.u32 %v5051, %v5054
  %5056 = vrot.lane.b32.xlu0 %v5055, 96
  %v5057 = vpop.permute.xlu0 %5056
  %v5059 = vsel %vm60, %v5055, 0
  %v5062 = vsel %vm60, %v5057, 0
  %5064 = vmatprep.subr.bf16.mxu0 0
  %5065 = vmatpush1.bf16.xpose.msra.mxu0 %v5062
  %5066 = vmatprep.subr.bf16.mxu0 0
  %5067 = vmatpush1.bf16.xpose.msra.mxu0 0
  %5068 = vmatprep.subr.bf16.mxu0 0
  %5069 = vmatpush1.bf16.xpose.msra.mxu0 0
  %5070 = vmatprep.subr.bf16.mxu0 0
  %5071 = vmatpush1.bf16.xpose.msra.mxu0 0
  %5072 = vmatprep.subr.bf16.mxu0 0
  %5073 = vmatpush1.bf16.xpose.msra.mxu0 0
  %5074 = vmatprep.subr.bf16.mxu0 0
  %5075 = vmatpush1.bf16.xpose.msra.mxu0 0
  %5076 = vmatprep.subr.bf16.mxu0 0
  %5077 = vmatpush1.bf16.xpose.msra.mxu0 0
  %5078 = vmatprep.subr.bf16.mxu0 0
  %5079 = vmatpush1.bf16.xpose.msra.mxu0 0
  %5080 = vmatprep.subr.bf16.mxu0 0
  %5081 = vmatpush1.bf16.xpose.msra.mxu0 0
  %5082 = vmatprep.subr.bf16.mxu0 0
  %5083 = vmatpush1.bf16.xpose.msra.mxu0 0
  %5084 = vmatprep.subr.bf16.mxu0 0
  %5085 = vmatpush1.bf16.xpose.msra.mxu0 0
  %5086 = vmatprep.subr.bf16.mxu0 0
  %5087 = vmatpush1.bf16.xpose.msra.mxu0 0
  %5088 = vmatprep.subr.bf16.mxu0 0
  %5089 = vmatpush1.bf16.xpose.msra.mxu0 0
  %5090 = vmatprep.subr.bf16.mxu0 0
  %5091 = vmatpush1.bf16.xpose.msra.mxu0 0
  %5092 = vmatprep.subr.bf16.mxu0 0
  %5093 = vmatpush1.bf16.xpose.msra.mxu0 0
  %5094 = vmatprep.subr.bf16.mxu0 0
  %5095 = vmatpush1.bf16.xpose.msra.mxu0 0
  %5096 = vmatprep.mubr.bf16.mxu0 0
  %5097 = vmatmul.mubr.bf16.gmra.mrb[0].mxu0 %v5059
  %v5098 = vpop.f32.mrb[0].mxu0
  %v5099 = vadd.f32 0.0, %v5098
  %v5100 = vpop.f32.mrb[0].mxu0
  %v5101 = vpop.f32.mrb[0].mxu0
  %v5102 = vpop.f32.mrb[0].mxu0
  %5103 = vdwg.mxu0
  %v5104 = vmul.f32 %v5099, 0.35355338
  %v5105 = vadd.f32 %v5104, %v728
  %v5106 = vsel %vm250, %v5105, -inf
  %5107 = vmax.xlane.f32.xlu0 %v5106
  %v5108 = vpop.xlane.xlu0 %5107
  %v5109 = vsub.f32 %v5105, %v5108
  %v5110 = vmul.f32 %v5109, 1.442695
  %v5111 = vpow.pop %v5110
  %v5112 = vsel %vm250, %v5111, 0.0
  %5113 = vadd.xlane.f32.xlu0 %v5112
  %v5114 = vpop.xlane.xlu0 %5113
  %v5115 = vrcp.pop %v5114
  %v5116 = vmul.f32 %v5111, %v5115
  %v5117 = vpack.c.bf16 %v5116, %v5116
  %5118 = vrot.lane.b32.xlu0 %v5055, 64
  %v5119 = vpop.permute.xlu0 %5118
  %v5121 = vsel %vm265, %v5117, 0
  %v5124 = vand.u32 %v5119, %v272
  %5126 = vmatprep.subr.bf16.mxu0 0
  %5127 = vmatpush1.bf16.msra.mxu0 %v5124
  %5128 = vmatprep.subr.bf16.mxu0 0
  %5129 = vmatpush1.bf16.msra.mxu0 0
  %5130 = vmatprep.subr.bf16.mxu0 0
  %5131 = vmatpush1.bf16.msra.mxu0 0
  %5132 = vmatprep.subr.bf16.mxu0 0
  %5133 = vmatpush1.bf16.msra.mxu0 0
  %5134 = vmatprep.subr.bf16.mxu0 0
  %5135 = vmatpush1.bf16.msra.mxu0 0
  %5136 = vmatprep.subr.bf16.mxu0 0
  %5137 = vmatpush1.bf16.msra.mxu0 0
  %5138 = vmatprep.subr.bf16.mxu0 0
  %5139 = vmatpush1.bf16.msra.mxu0 0
  %5140 = vmatprep.subr.bf16.mxu0 0
  %5141 = vmatpush1.bf16.msra.mxu0 0
  %5142 = vmatprep.subr.bf16.mxu0 0
  %5143 = vmatpush1.bf16.msra.mxu0 0
  %5144 = vmatprep.subr.bf16.mxu0 0
  %5145 = vmatpush1.bf16.msra.mxu0 0
  %5146 = vmatprep.subr.bf16.mxu0 0
  %5147 = vmatpush1.bf16.msra.mxu0 0
  %5148 = vmatprep.subr.bf16.mxu0 0
  %5149 = vmatpush1.bf16.msra.mxu0 0
  %5150 = vmatprep.subr.bf16.mxu0 0
  %5151 = vmatpush1.bf16.msra.mxu0 0
  %5152 = vmatprep.subr.bf16.mxu0 0
  %5153 = vmatpush1.bf16.msra.mxu0 0
  %5154 = vmatprep.subr.bf16.mxu0 0
  %5155 = vmatpush1.bf16.msra.mxu0 0
  %5156 = vmatprep.subr.bf16.mxu0 0
  %5157 = vmatpush1.bf16.msra.mxu0 0
  %5158 = vmatprep.mubr.bf16.mxu0 0
  %5159 = vmatmul.mubr.bf16.gmra.mrb[0].mxu0 %v5121
  %v5160 = vpop.f32.mrb[0].mxu0
  %v5161 = vadd.f32 0.0, %v5160
  %v5162 = vpop.f32.mrb[0].mxu0
  %v5163 = vpop.f32.mrb[0].mxu0
  %v5164 = vpop.f32.mrb[0].mxu0
  %5165 = vdwg.mxu0
  %5166 = vrot.lane.b32.xlu0 %v5055, 120
  %v5167 = vpop.permute.xlu0 %5166
  %5168 = vrot.lane.b32.xlu0 %v5055, 88
  %v5169 = vpop.permute.xlu0 %5168
  %v5171 = vsel %vm60, %v5167, 0
  %v5174 = vsel %vm60, %v5169, 0
  %5176 = vmatprep.subr.bf16.mxu0 0
  %5177 = vmatpush1.bf16.xpose.msra.mxu0 %v5174
  %5178 = vmatprep.subr.bf16.mxu0 0
  %5179 = vmatpush1.bf16.xpose.msra.mxu0 0
  %5180 = vmatprep.subr.bf16.mxu0 0
  %5181 = vmatpush1.bf16.xpose.msra.mxu0 0
  %5182 = vmatprep.subr.bf16.mxu0 0
  %5183 = vmatpush1.bf16.xpose.msra.mxu0 0
  %5184 = vmatprep.subr.bf16.mxu0 0
  %5185 = vmatpush1.bf16.xpose.msra.mxu0 0
  %5186 = vmatprep.subr.bf16.mxu0 0
  %5187 = vmatpush1.bf16.xpose.msra.mxu0 0
  %5188 = vmatprep.subr.bf16.mxu0 0
  %5189 = vmatpush1.bf16.xpose.msra.mxu0 0
  %5190 = vmatprep.subr.bf16.mxu0 0
  %5191 = vmatpush1.bf16.xpose.msra.mxu0 0
  %5192 = vmatprep.subr.bf16.mxu0 0
  %5193 = vmatpush1.bf16.xpose.msra.mxu0 0
  %5194 = vmatprep.subr.bf16.mxu0 0
  %5195 = vmatpush1.bf16.xpose.msra.mxu0 0
  %5196 = vmatprep.subr.bf16.mxu0 0
  %5197 = vmatpush1.bf16.xpose.msra.mxu0 0
  %5198 = vmatprep.subr.bf16.mxu0 0
  %5199 = vmatpush1.bf16.xpose.msra.mxu0 0
  %5200 = vmatprep.subr.bf16.mxu0 0
  %5201 = vmatpush1.bf16.xpose.msra.mxu0 0
  %5202 = vmatprep.subr.bf16.mxu0 0
  %5203 = vmatpush1.bf16.xpose.msra.mxu0 0
  %5204 = vmatprep.subr.bf16.mxu0 0
  %5205 = vmatpush1.bf16.xpose.msra.mxu0 0
  %5206 = vmatprep.subr.bf16.mxu0 0
  %5207 = vmatpush1.bf16.xpose.msra.mxu0 0
  %5208 = vmatprep.mubr.bf16.mxu0 0
  %5209 = vmatmul.mubr.bf16.gmra.mrb[0].mxu0 %v5171
  %v5210 = vpop.f32.mrb[0].mxu0
  %v5211 = vadd.f32 0.0, %v5210
  %v5212 = vpop.f32.mrb[0].mxu0
  %v5213 = vpop.f32.mrb[0].mxu0
  %v5214 = vpop.f32.mrb[0].mxu0
  %5215 = vdwg.mxu0
  %v5216 = vmul.f32 %v5211, 0.35355338
  %v5217 = vadd.f32 %v5216, %v839
  %v5218 = vsel %vm250, %v5217, -inf
  %5219 = vmax.xlane.f32.xlu0 %v5218
  %v5220 = vpop.xlane.xlu0 %5219
  %v5221 = vsub.f32 %v5217, %v5220
  %v5222 = vmul.f32 %v5221, 1.442695
  %v5223 = vpow.pop %v5222
  %v5224 = vsel %vm250, %v5223, 0.0
  %5225 = vadd.xlane.f32.xlu0 %v5224
  %v5226 = vpop.xlane.xlu0 %5225
  %v5227 = vrcp.pop %v5226
  %v5228 = vmul.f32 %v5223, %v5227
  %v5229 = vpack.c.bf16 %v5228, %v5228
  %5230 = vrot.lane.b32.xlu0 %v5055, 56
  %v5231 = vpop.permute.xlu0 %5230
  %v5233 = vsel %vm265, %v5229, 0
  %v5236 = vand.u32 %v5231, %v272
  %5238 = vmatprep.subr.bf16.mxu0 0
  %5239 = vmatpush1.bf16.msra.mxu0 %v5236
  %5240 = vmatprep.subr.bf16.mxu0 0
  %5241 = vmatpush1.bf16.msra.mxu0 0
  %5242 = vmatprep.subr.bf16.mxu0 0
  %5243 = vmatpush1.bf16.msra.mxu0 0
  %5244 = vmatprep.subr.bf16.mxu0 0
  %5245 = vmatpush1.bf16.msra.mxu0 0
  %5246 = vmatprep.subr.bf16.mxu0 0
  %5247 = vmatpush1.bf16.msra.mxu0 0
  %5248 = vmatprep.subr.bf16.mxu0 0
  %5249 = vmatpush1.bf16.msra.mxu0 0
  %5250 = vmatprep.subr.bf16.mxu0 0
  %5251 = vmatpush1.bf16.msra.mxu0 0
  %5252 = vmatprep.subr.bf16.mxu0 0
  %5253 = vmatpush1.bf16.msra.mxu0 0
  %5254 = vmatprep.subr.bf16.mxu0 0
  %5255 = vmatpush1.bf16.msra.mxu0 0
  %5256 = vmatprep.subr.bf16.mxu0 0
  %5257 = vmatpush1.bf16.msra.mxu0 0
  %5258 = vmatprep.subr.bf16.mxu0 0
  %5259 = vmatpush1.bf16.msra.mxu0 0
  %5260 = vmatprep.subr.bf16.mxu0 0
  %5261 = vmatpush1.bf16.msra.mxu0 0
  %5262 = vmatprep.subr.bf16.mxu0 0
  %5263 = vmatpush1.bf16.msra.mxu0 0
  %5264 = vmatprep.subr.bf16.mxu0 0
  %5265 = vmatpush1.bf16.msra.mxu0 0
  %5266 = vmatprep.subr.bf16.mxu0 0
  %5267 = vmatpush1.bf16.msra.mxu0 0
  %5268 = vmatprep.subr.bf16.mxu0 0
  %5269 = vmatpush1.bf16.msra.mxu0 0
  %5270 = vmatprep.mubr.bf16.mxu0 0
  %5271 = vmatmul.mubr.bf16.gmra.mrb[0].mxu0 %v5233
  %v5272 = vpop.f32.mrb[0].mxu0
  %v5273 = vadd.f32 0.0, %v5272
  %v5274 = vpop.f32.mrb[0].mxu0
  %v5275 = vpop.f32.mrb[0].mxu0
  %v5276 = vpop.f32.mrb[0].mxu0
  %5277 = vdwg.mxu0
  %5278 = vrot.lane.b32.xlu0 %v5055, 112
  %v5279 = vpop.permute.xlu0 %5278
  %5280 = vrot.lane.b32.xlu0 %v5055, 80
  %v5281 = vpop.permute.xlu0 %5280
  %v5283 = vsel %vm60, %v5279, 0
  %v5286 = vsel %vm60, %v5281, 0
  %5288 = vmatprep.subr.bf16.mxu0 0
  %5289 = vmatpush1.bf16.xpose.msra.mxu0 %v5286
  %5290 = vmatprep.subr.bf16.mxu0 0
  %5291 = vmatpush1.bf16.xpose.msra.mxu0 0
  %5292 = vmatprep.subr.bf16.mxu0 0
  %5293 = vmatpush1.bf16.xpose.msra.mxu0 0
  %5294 = vmatprep.subr.bf16.mxu0 0
  %5295 = vmatpush1.bf16.xpose.msra.mxu0 0
  %5296 = vmatprep.subr.bf16.mxu0 0
  %5297 = vmatpush1.bf16.xpose.msra.mxu0 0
  %5298 = vmatprep.subr.bf16.mxu0 0
  %5299 = vmatpush1.bf16.xpose.msra.mxu0 0
  %5300 = vmatprep.subr.bf16.mxu0 0
  %5301 = vmatpush1.bf16.xpose.msra.mxu0 0
  %5302 = vmatprep.subr.bf16.mxu0 0
  %5303 = vmatpush1.bf16.xpose.msra.mxu0 0
  %5304 = vmatprep.subr.bf16.mxu0 0
  %5305 = vmatpush1.bf16.xpose.msra.mxu0 0
  %5306 = vmatprep.subr.bf16.mxu0 0
  %5307 = vmatpush1.bf16.xpose.msra.mxu0 0
  %5308 = vmatprep.subr.bf16.mxu0 0
  %5309 = vmatpush1.bf16.xpose.msra.mxu0 0
  %5310 = vmatprep.subr.bf16.mxu0 0
  %5311 = vmatpush1.bf16.xpose.msra.mxu0 0
  %5312 = vmatprep.subr.bf16.mxu0 0
  %5313 = vmatpush1.bf16.xpose.msra.mxu0 0
  %5314 = vmatprep.subr.bf16.mxu0 0
  %5315 = vmatpush1.bf16.xpose.msra.mxu0 0
  %5316 = vmatprep.subr.bf16.mxu0 0
  %5317 = vmatpush1.bf16.xpose.msra.mxu0 0
  %5318 = vmatprep.subr.bf16.mxu0 0
  %5319 = vmatpush1.bf16.xpose.msra.mxu0 0
  %5320 = vmatprep.mubr.bf16.mxu0 0
  %5321 = vmatmul.mubr.bf16.gmra.mrb[0].mxu0 %v5283
  %v5322 = vpop.f32.mrb[0].mxu0
  %v5323 = vadd.f32 0.0, %v5322
  %v5324 = vpop.f32.mrb[0].mxu0
  %v5325 = vpop.f32.mrb[0].mxu0
  %v5326 = vpop.f32.mrb[0].mxu0
  %5327 = vdwg.mxu0
  %v5328 = vmul.f32 %v5323, 0.35355338
  %v5329 = vadd.f32 %v5328, %v950
  %v5330 = vsel %vm250, %v5329, -inf
  %5331 = vmax.xlane.f32.xlu0 %v5330
  %v5332 = vpop.xlane.xlu0 %5331
  %v5333 = vsub.f32 %v5329, %v5332
  %v5334 = vmul.f32 %v5333, 1.442695
  %v5335 = vpow.pop %v5334
  %v5336 = vsel %vm250, %v5335, 0.0
  %5337 = vadd.xlane.f32.xlu0 %v5336
  %v5338 = vpop.xlane.xlu0 %5337
  %v5339 = vrcp.pop %v5338
  %v5340 = vmul.f32 %v5335, %v5339
  %v5341 = vpack.c.bf16 %v5340, %v5340
  %5342 = vrot.lane.b32.xlu0 %v5055, 48
  %v5343 = vpop.permute.xlu0 %5342
  %v5345 = vsel %vm265, %v5341, 0
  %v5348 = vand.u32 %v5343, %v272
  %5350 = vmatprep.subr.bf16.mxu0 0
  %5351 = vmatpush1.bf16.msra.mxu0 %v5348
  %5352 = vmatprep.subr.bf16.mxu0 0
  %5353 = vmatpush1.bf16.msra.mxu0 0
  %5354 = vmatprep.subr.bf16.mxu0 0
  %5355 = vmatpush1.bf16.msra.mxu0 0
  %5356 = vmatprep.subr.bf16.mxu0 0
  %5357 = vmatpush1.bf16.msra.mxu0 0
  %5358 = vmatprep.subr.bf16.mxu0 0
  %5359 = vmatpush1.bf16.msra.mxu0 0
  %5360 = vmatprep.subr.bf16.mxu0 0
  %5361 = vmatpush1.bf16.msra.mxu0 0
  %5362 = vmatprep.subr.bf16.mxu0 0
  %5363 = vmatpush1.bf16.msra.mxu0 0
  %5364 = vmatprep.subr.bf16.mxu0 0
  %5365 = vmatpush1.bf16.msra.mxu0 0
  %5366 = vmatprep.subr.bf16.mxu0 0
  %5367 = vmatpush1.bf16.msra.mxu0 0
  %5368 = vmatprep.subr.bf16.mxu0 0
  %5369 = vmatpush1.bf16.msra.mxu0 0
  %5370 = vmatprep.subr.bf16.mxu0 0
  %5371 = vmatpush1.bf16.msra.mxu0 0
  %5372 = vmatprep.subr.bf16.mxu0 0
  %5373 = vmatpush1.bf16.msra.mxu0 0
  %5374 = vmatprep.subr.bf16.mxu0 0
  %5375 = vmatpush1.bf16.msra.mxu0 0
  %5376 = vmatprep.subr.bf16.mxu0 0
  %5377 = vmatpush1.bf16.msra.mxu0 0
  %5378 = vmatprep.subr.bf16.mxu0 0
  %5379 = vmatpush1.bf16.msra.mxu0 0
  %5380 = vmatprep.subr.bf16.mxu0 0
  %5381 = vmatpush1.bf16.msra.mxu0 0
  %5382 = vmatprep.mubr.bf16.mxu0 0
  %5383 = vmatmul.mubr.bf16.gmra.mrb[0].mxu0 %v5345
  %v5384 = vpop.f32.mrb[0].mxu0
  %v5385 = vadd.f32 0.0, %v5384
  %v5386 = vpop.f32.mrb[0].mxu0
  %v5387 = vpop.f32.mrb[0].mxu0
  %v5388 = vpop.f32.mrb[0].mxu0
  %5389 = vdwg.mxu0
  %5390 = vrot.lane.b32.xlu0 %v5055, 104
  %v5391 = vpop.permute.xlu0 %5390
  %5392 = vrot.lane.b32.xlu0 %v5055, 72
  %v5393 = vpop.permute.xlu0 %5392
  %v5395 = vsel %vm60, %v5391, 0
  %v5398 = vsel %vm60, %v5393, 0
  %5400 = vmatprep.subr.bf16.mxu0 0
  %5401 = vmatpush1.bf16.xpose.msra.mxu0 %v5398
  %5402 = vmatprep.subr.bf16.mxu0 0
  %5403 = vmatpush1.bf16.xpose.msra.mxu0 0
  %5404 = vmatprep.subr.bf16.mxu0 0
  %5405 = vmatpush1.bf16.xpose.msra.mxu0 0
  %5406 = vmatprep.subr.bf16.mxu0 0
  %5407 = vmatpush1.bf16.xpose.msra.mxu0 0
  %5408 = vmatprep.subr.bf16.mxu0 0
  %5409 = vmatpush1.bf16.xpose.msra.mxu0 0
  %5410 = vmatprep.subr.bf16.mxu0 0
  %5411 = vmatpush1.bf16.xpose.msra.mxu0 0
  %5412 = vmatprep.subr.bf16.mxu0 0
  %5413 = vmatpush1.bf16.xpose.msra.mxu0 0
  %5414 = vmatprep.subr.bf16.mxu0 0
  %5415 = vmatpush1.bf16.xpose.msra.mxu0 0
  %5416 = vmatprep.subr.bf16.mxu0 0
  %5417 = vmatpush1.bf16.xpose.msra.mxu0 0
  %5418 = vmatprep.subr.bf16.mxu0 0
  %5419 = vmatpush1.bf16.xpose.msra.mxu0 0
  %5420 = vmatprep.subr.bf16.mxu0 0
  %5421 = vmatpush1.bf16.xpose.msra.mxu0 0
  %5422 = vmatprep.subr.bf16.mxu0 0
  %5423 = vmatpush1.bf16.xpose.msra.mxu0 0
  %5424 = vmatprep.subr.bf16.mxu0 0
  %5425 = vmatpush1.bf16.xpose.msra.mxu0 0
  %5426 = vmatprep.subr.bf16.mxu0 0
  %5427 = vmatpush1.bf16.xpose.msra.mxu0 0
  %5428 = vmatprep.subr.bf16.mxu0 0
  %5429 = vmatpush1.bf16.xpose.msra.mxu0 0
  %5430 = vmatprep.subr.bf16.mxu0 0
  %5431 = vmatpush1.bf16.xpose.msra.mxu0 0
  %5432 = vmatprep.mubr.bf16.mxu0 0
  %5433 = vmatmul.mubr.bf16.gmra.mrb[0].mxu0 %v5395
  %v5434 = vpop.f32.mrb[0].mxu0
  %v5435 = vadd.f32 0.0, %v5434
  %v5436 = vpop.f32.mrb[0].mxu0
  %v5437 = vpop.f32.mrb[0].mxu0
  %v5438 = vpop.f32.mrb[0].mxu0
  %5439 = vdwg.mxu0
  %v5440 = vmul.f32 %v5435, 0.35355338
  %v5441 = vadd.f32 %v5440, %v1061
  %v5442 = vsel %vm250, %v5441, -inf
  %5443 = vmax.xlane.f32.xlu0 %v5442
  %v5444 = vpop.xlane.xlu0 %5443
  %v5445 = vsub.f32 %v5441, %v5444
  %v5446 = vmul.f32 %v5445, 1.442695
  %v5447 = vpow.pop %v5446
  %v5448 = vsel %vm250, %v5447, 0.0
  %5449 = vadd.xlane.f32.xlu0 %v5448
  %v5450 = vpop.xlane.xlu0 %5449
  %v5451 = vrcp.pop %v5450
  %v5452 = vmul.f32 %v5447, %v5451
  %v5453 = vpack.c.bf16 %v5452, %v5452
  %5454 = vrot.lane.b32.xlu0 %v5055, 40
  %v5455 = vpop.permute.xlu0 %5454
  %v5457 = vsel %vm265, %v5453, 0
  %v5460 = vand.u32 %v5455, %v272
  %5462 = vmatprep.subr.bf16.mxu0 0
  %5463 = vmatpush1.bf16.msra.mxu0 %v5460
  %5464 = vmatprep.subr.bf16.mxu0 0
  %5465 = vmatpush1.bf16.msra.mxu0 0
  %5466 = vmatprep.subr.bf16.mxu0 0
  %5467 = vmatpush1.bf16.msra.mxu0 0
  %5468 = vmatprep.subr.bf16.mxu0 0
  %5469 = vmatpush1.bf16.msra.mxu0 0
  %5470 = vmatprep.subr.bf16.mxu0 0
  %5471 = vmatpush1.bf16.msra.mxu0 0
  %5472 = vmatprep.subr.bf16.mxu0 0
  %5473 = vmatpush1.bf16.msra.mxu0 0
  %5474 = vmatprep.subr.bf16.mxu0 0
  %5475 = vmatpush1.bf16.msra.mxu0 0
  %5476 = vmatprep.subr.bf16.mxu0 0
  %5477 = vmatpush1.bf16.msra.mxu0 0
  %5478 = vmatprep.subr.bf16.mxu0 0
  %5479 = vmatpush1.bf16.msra.mxu0 0
  %5480 = vmatprep.subr.bf16.mxu0 0
  %5481 = vmatpush1.bf16.msra.mxu0 0
  %5482 = vmatprep.subr.bf16.mxu0 0
  %5483 = vmatpush1.bf16.msra.mxu0 0
  %5484 = vmatprep.subr.bf16.mxu0 0
  %5485 = vmatpush1.bf16.msra.mxu0 0
  %5486 = vmatprep.subr.bf16.mxu0 0
  %5487 = vmatpush1.bf16.msra.mxu0 0
  %5488 = vmatprep.subr.bf16.mxu0 0
  %5489 = vmatpush1.bf16.msra.mxu0 0
  %5490 = vmatprep.subr.bf16.mxu0 0
  %5491 = vmatpush1.bf16.msra.mxu0 0
  %5492 = vmatprep.subr.bf16.mxu0 0
  %5493 = vmatpush1.bf16.msra.mxu0 0
  %5494 = vmatprep.mubr.bf16.mxu0 0
  %5495 = vmatmul.mubr.bf16.gmra.mrb[0].mxu0 %v5457
  %v5496 = vpop.f32.mrb[0].mxu0
  %v5497 = vadd.f32 0.0, %v5496
  %v5498 = vpop.f32.mrb[0].mxu0
  %v5499 = vpop.f32.mrb[0].mxu0
  %v5500 = vpop.f32.mrb[0].mxu0
  %5501 = vdwg.mxu0
  %5503 = vrot.lane.b32.xlu0 %v5273, 8
  %v5504 = vpop.permute.xlu0 %5503
  %5507 = vrot.lane.b32.xlu0 %v5385, 16
  %v5508 = vpop.permute.xlu0 %5507
  %5511 = vrot.lane.b32.xlu0 %v5497, 24
  %v5512 = vpop.permute.xlu0 %5511
  %v5514 = vsel %vm60, %v5161, %v5504
  %v5515 = vsel %vm662, %v5514, %v5508
  %v5516 = vsel %vm664, %v5515, %v5512
  %v5517 = vpack.c.bf16 %v5516, %v5516
  %v5519 = vunpack.c.l.b16 %v5517
  %v5520 = vpack.c.b16 %v5519, %v5519
  %v5522 = vshrl.u32 %v5520, 16
  %v5524 = vrot.slane %v5522, 6
  %v5525 = vshll.u32 %v5520, 16
  %v5527 = vrot.slane %v5525, 7
  %v5528 = vor.u32 %v5524, %v5527
  %v5530 = vld [vmem:[#allocation2] sm:$0x6]
  %v5531 = vsel %vm1152, %v5528, %v5530
  %5532 = vst [vmem:[#allocation2] sm:$0x6] %v5531
  %v5533 = vpack.c.bf16 %v4572, %v4569
  %v5535 = vrot.slane %v5533, 3
  %5536 = vrot.lane.b32.xlu0 %v5535, 96
  %v5537 = vpop.permute.xlu0 %5536
  %v5539 = vsel %vm60, %v5535, 0
  %v5542 = vsel %vm60, %v5537, 0
  %5544 = vmatprep.subr.bf16.mxu0 0
  %5545 = vmatpush1.bf16.xpose.msra.mxu0 %v5542
  %5546 = vmatprep.subr.bf16.mxu0 0
  %5547 = vmatpush1.bf16.xpose.msra.mxu0 0
  %5548 = vmatprep.subr.bf16.mxu0 0
  %5549 = vmatpush1.bf16.xpose.msra.mxu0 0
  %5550 = vmatprep.subr.bf16.mxu0 0
  %5551 = vmatpush1.bf16.xpose.msra.mxu0 0
  %5552 = vmatprep.subr.bf16.mxu0 0
  %5553 = vmatpush1.bf16.xpose.msra.mxu0 0
  %5554 = vmatprep.subr.bf16.mxu0 0
  %5555 = vmatpush1.bf16.xpose.msra.mxu0 0
  %5556 = vmatprep.subr.bf16.mxu0 0
  %5557 = vmatpush1.bf16.xpose.msra.mxu0 0
  %5558 = vmatprep.subr.bf16.mxu0 0
  %5559 = vmatpush1.bf16.xpose.msra.mxu0 0
  %5560 = vmatprep.subr.bf16.mxu0 0
  %5561 = vmatpush1.bf16.xpose.msra.mxu0 0
  %5562 = vmatprep.subr.bf16.mxu0 0
  %5563 = vmatpush1.bf16.xpose.msra.mxu0 0
  %5564 = vmatprep.subr.bf16.mxu0 0
  %5565 = vmatpush1.bf16.xpose.msra.mxu0 0
  %5566 = vmatprep.subr.bf16.mxu0 0
  %5567 = vmatpush1.bf16.xpose.msra.mxu0 0
  %5568 = vmatprep.subr.bf16.mxu0 0
  %5569 = vmatpush1.bf16.xpose.msra.mxu0 0
  %5570 = vmatprep.subr.bf16.mxu0 0
  %5571 = vmatpush1.bf16.xpose.msra.mxu0 0
  %5572 = vmatprep.subr.bf16.mxu0 0
  %5573 = vmatpush1.bf16.xpose.msra.mxu0 0
  %5574 = vmatprep.subr.bf16.mxu0 0
  %5575 = vmatpush1.bf16.xpose.msra.mxu0 0
  %5576 = vmatprep.mubr.bf16.mxu0 0
  %5577 = vmatmul.mubr.bf16.gmra.mrb[0].mxu0 %v5539
  %v5578 = vpop.f32.mrb[0].mxu0
  %v5579 = vadd.f32 0.0, %v5578
  %v5580 = vpop.f32.mrb[0].mxu0
  %v5581 = vpop.f32.mrb[0].mxu0
  %v5582 = vpop.f32.mrb[0].mxu0
  %5583 = vdwg.mxu0
  %v5584 = vmul.f32 %v5579, 0.35355338
  %v5585 = vadd.f32 %v5584, %v1207
  %v5586 = vsel %vm250, %v5585, -inf
  %5587 = vmax.xlane.f32.xlu0 %v5586
  %v5588 = vpop.xlane.xlu0 %5587
  %v5589 = vsub.f32 %v5585, %v5588
  %v5590 = vmul.f32 %v5589, 1.442695
  %v5591 = vpow.pop %v5590
  %v5592 = vsel %vm250, %v5591, 0.0
  %5593 = vadd.xlane.f32.xlu0 %v5592
  %v5594 = vpop.xlane.xlu0 %5593
  %v5595 = vrcp.pop %v5594
  %v5596 = vmul.f32 %v5591, %v5595
  %v5597 = vpack.c.bf16 %v5596, %v5596
  %5598 = vrot.lane.b32.xlu0 %v5535, 64
  %v5599 = vpop.permute.xlu0 %5598
  %v5601 = vsel %vm265, %v5597, 0
  %v5604 = vand.u32 %v5599, %v272
  %5606 = vmatprep.subr.bf16.mxu0 0
  %5607 = vmatpush1.bf16.msra.mxu0 %v5604
  %5608 = vmatprep.subr.bf16.mxu0 0
  %5609 = vmatpush1.bf16.msra.mxu0 0
  %5610 = vmatprep.subr.bf16.mxu0 0
  %5611 = vmatpush1.bf16.msra.mxu0 0
  %5612 = vmatprep.subr.bf16.mxu0 0
  %5613 = vmatpush1.bf16.msra.mxu0 0
  %5614 = vmatprep.subr.bf16.mxu0 0
  %5615 = vmatpush1.bf16.msra.mxu0 0
  %5616 = vmatprep.subr.bf16.mxu0 0
  %5617 = vmatpush1.bf16.msra.mxu0 0
  %5618 = vmatprep.subr.bf16.mxu0 0
  %5619 = vmatpush1.bf16.msra.mxu0 0
  %5620 = vmatprep.subr.bf16.mxu0 0
  %5621 = vmatpush1.bf16.msra.mxu0 0
  %5622 = vmatprep.subr.bf16.mxu0 0
  %5623 = vmatpush1.bf16.msra.mxu0 0
  %5624 = vmatprep.subr.bf16.mxu0 0
  %5625 = vmatpush1.bf16.msra.mxu0 0
  %5626 = vmatprep.subr.bf16.mxu0 0
  %5627 = vmatpush1.bf16.msra.mxu0 0
  %5628 = vmatprep.subr.bf16.mxu0 0
  %5629 = vmatpush1.bf16.msra.mxu0 0
  %5630 = vmatprep.subr.bf16.mxu0 0
  %5631 = vmatpush1.bf16.msra.mxu0 0
  %5632 = vmatprep.subr.bf16.mxu0 0
  %5633 = vmatpush1.bf16.msra.mxu0 0
  %5634 = vmatprep.subr.bf16.mxu0 0
  %5635 = vmatpush1.bf16.msra.mxu0 0
  %5636 = vmatprep.subr.bf16.mxu0 0
  %5637 = vmatpush1.bf16.msra.mxu0 0
  %5638 = vmatprep.mubr.bf16.mxu0 0
  %5639 = vmatmul.mubr.bf16.gmra.mrb[0].mxu0 %v5601
  %v5640 = vpop.f32.mrb[0].mxu0
  %v5641 = vadd.f32 0.0, %v5640
  %v5642 = vpop.f32.mrb[0].mxu0
  %v5643 = vpop.f32.mrb[0].mxu0
  %v5644 = vpop.f32.mrb[0].mxu0
  %5645 = vdwg.mxu0
  %5646 = vrot.lane.b32.xlu0 %v5535, 120
  %v5647 = vpop.permute.xlu0 %5646
  %5648 = vrot.lane.b32.xlu0 %v5535, 88
  %v5649 = vpop.permute.xlu0 %5648
  %v5651 = vsel %vm60, %v5647, 0
  %v5654 = vsel %vm60, %v5649, 0
  %5656 = vmatprep.subr.bf16.mxu0 0
  %5657 = vmatpush1.bf16.xpose.msra.mxu0 %v5654
  %5658 = vmatprep.subr.bf16.mxu0 0
  %5659 = vmatpush1.bf16.xpose.msra.mxu0 0
  %5660 = vmatprep.subr.bf16.mxu0 0
  %5661 = vmatpush1.bf16.xpose.msra.mxu0 0
  %5662 = vmatprep.subr.bf16.mxu0 0
  %5663 = vmatpush1.bf16.xpose.msra.mxu0 0
  %5664 = vmatprep.subr.bf16.mxu0 0
  %5665 = vmatpush1.bf16.xpose.msra.mxu0 0
  %5666 = vmatprep.subr.bf16.mxu0 0
  %5667 = vmatpush1.bf16.xpose.msra.mxu0 0
  %5668 = vmatprep.subr.bf16.mxu0 0
  %5669 = vmatpush1.bf16.xpose.msra.mxu0 0
  %5670 = vmatprep.subr.bf16.mxu0 0
  %5671 = vmatpush1.bf16.xpose.msra.mxu0 0
  %5672 = vmatprep.subr.bf16.mxu0 0
  %5673 = vmatpush1.bf16.xpose.msra.mxu0 0
  %5674 = vmatprep.subr.bf16.mxu0 0
  %5675 = vmatpush1.bf16.xpose.msra.mxu0 0
  %5676 = vmatprep.subr.bf16.mxu0 0
  %5677 = vmatpush1.bf16.xpose.msra.mxu0 0
  %5678 = vmatprep.subr.bf16.mxu0 0
  %5679 = vmatpush1.bf16.xpose.msra.mxu0 0
  %5680 = vmatprep.subr.bf16.mxu0 0
  %5681 = vmatpush1.bf16.xpose.msra.mxu0 0
  %5682 = vmatprep.subr.bf16.mxu0 0
  %5683 = vmatpush1.bf16.xpose.msra.mxu0 0
  %5684 = vmatprep.subr.bf16.mxu0 0
  %5685 = vmatpush1.bf16.xpose.msra.mxu0 0
  %5686 = vmatprep.subr.bf16.mxu0 0
  %5687 = vmatpush1.bf16.xpose.msra.mxu0 0
  %5688 = vmatprep.mubr.bf16.mxu0 0
  %5689 = vmatmul.mubr.bf16.gmra.mrb[0].mxu0 %v5651
  %v5690 = vpop.f32.mrb[0].mxu0
  %v5691 = vadd.f32 0.0, %v5690
  %v5692 = vpop.f32.mrb[0].mxu0
  %v5693 = vpop.f32.mrb[0].mxu0
  %v5694 = vpop.f32.mrb[0].mxu0
  %5695 = vdwg.mxu0
  %v5696 = vmul.f32 %v5691, 0.35355338
  %v5697 = vadd.f32 %v5696, %v1318
  %v5698 = vsel %vm250, %v5697, -inf
  %5699 = vmax.xlane.f32.xlu0 %v5698
  %v5700 = vpop.xlane.xlu0 %5699
  %v5701 = vsub.f32 %v5697, %v5700
  %v5702 = vmul.f32 %v5701, 1.442695
  %v5703 = vpow.pop %v5702
  %v5704 = vsel %vm250, %v5703, 0.0
  %5705 = vadd.xlane.f32.xlu0 %v5704
  %v5706 = vpop.xlane.xlu0 %5705
  %v5707 = vrcp.pop %v5706
  %v5708 = vmul.f32 %v5703, %v5707
  %v5709 = vpack.c.bf16 %v5708, %v5708
  %5710 = vrot.lane.b32.xlu0 %v5535, 56
  %v5711 = vpop.permute.xlu0 %5710
  %v5713 = vsel %vm265, %v5709, 0
  %v5716 = vand.u32 %v5711, %v272
  %5718 = vmatprep.subr.bf16.mxu0 0
  %5719 = vmatpush1.bf16.msra.mxu0 %v5716
  %5720 = vmatprep.subr.bf16.mxu0 0
  %5721 = vmatpush1.bf16.msra.mxu0 0
  %5722 = vmatprep.subr.bf16.mxu0 0
  %5723 = vmatpush1.bf16.msra.mxu0 0
  %5724 = vmatprep.subr.bf16.mxu0 0
  %5725 = vmatpush1.bf16.msra.mxu0 0
  %5726 = vmatprep.subr.bf16.mxu0 0
  %5727 = vmatpush1.bf16.msra.mxu0 0
  %5728 = vmatprep.subr.bf16.mxu0 0
  %5729 = vmatpush1.bf16.msra.mxu0 0
  %5730 = vmatprep.subr.bf16.mxu0 0
  %5731 = vmatpush1.bf16.msra.mxu0 0
  %5732 = vmatprep.subr.bf16.mxu0 0
  %5733 = vmatpush1.bf16.msra.mxu0 0
  %5734 = vmatprep.subr.bf16.mxu0 0
  %5735 = vmatpush1.bf16.msra.mxu0 0
  %5736 = vmatprep.subr.bf16.mxu0 0
  %5737 = vmatpush1.bf16.msra.mxu0 0
  %5738 = vmatprep.subr.bf16.mxu0 0
  %5739 = vmatpush1.bf16.msra.mxu0 0
  %5740 = vmatprep.subr.bf16.mxu0 0
  %5741 = vmatpush1.bf16.msra.mxu0 0
  %5742 = vmatprep.subr.bf16.mxu0 0
  %5743 = vmatpush1.bf16.msra.mxu0 0
  %5744 = vmatprep.subr.bf16.mxu0 0
  %5745 = vmatpush1.bf16.msra.mxu0 0
  %5746 = vmatprep.subr.bf16.mxu0 0
  %5747 = vmatpush1.bf16.msra.mxu0 0
  %5748 = vmatprep.subr.bf16.mxu0 0
  %5749 = vmatpush1.bf16.msra.mxu0 0
  %5750 = vmatprep.mubr.bf16.mxu0 0
  %5751 = vmatmul.mubr.bf16.gmra.mrb[0].mxu0 %v5713
  %v5752 = vpop.f32.mrb[0].mxu0
  %v5753 = vadd.f32 0.0, %v5752
  %v5754 = vpop.f32.mrb[0].mxu0
  %v5755 = vpop.f32.mrb[0].mxu0
  %v5756 = vpop.f32.mrb[0].mxu0
  %5757 = vdwg.mxu0
  %5758 = vrot.lane.b32.xlu0 %v5535, 112
  %v5759 = vpop.permute.xlu0 %5758
  %5760 = vrot.lane.b32.xlu0 %v5535, 80
  %v5761 = vpop.permute.xlu0 %5760
  %v5763 = vsel %vm60, %v5759, 0
  %v5766 = vsel %vm60, %v5761, 0
  %5768 = vmatprep.subr.bf16.mxu0 0
  %5769 = vmatpush1.bf16.xpose.msra.mxu0 %v5766
  %5770 = vmatprep.subr.bf16.mxu0 0
  %5771 = vmatpush1.bf16.xpose.msra.mxu0 0
  %5772 = vmatprep.subr.bf16.mxu0 0
  %5773 = vmatpush1.bf16.xpose.msra.mxu0 0
  %5774 = vmatprep.subr.bf16.mxu0 0
  %5775 = vmatpush1.bf16.xpose.msra.mxu0 0
  %5776 = vmatprep.subr.bf16.mxu0 0
  %5777 = vmatpush1.bf16.xpose.msra.mxu0 0
  %5778 = vmatprep.subr.bf16.mxu0 0
  %5779 = vmatpush1.bf16.xpose.msra.mxu0 0
  %5780 = vmatprep.subr.bf16.mxu0 0
  %5781 = vmatpush1.bf16.xpose.msra.mxu0 0
  %5782 = vmatprep.subr.bf16.mxu0 0
  %5783 = vmatpush1.bf16.xpose.msra.mxu0 0
  %5784 = vmatprep.subr.bf16.mxu0 0
  %5785 = vmatpush1.bf16.xpose.msra.mxu0 0
  %5786 = vmatprep.subr.bf16.mxu0 0
  %5787 = vmatpush1.bf16.xpose.msra.mxu0 0
  %5788 = vmatprep.subr.bf16.mxu0 0
  %5789 = vmatpush1.bf16.xpose.msra.mxu0 0
  %5790 = vmatprep.subr.bf16.mxu0 0
  %5791 = vmatpush1.bf16.xpose.msra.mxu0 0
  %5792 = vmatprep.subr.bf16.mxu0 0
  %5793 = vmatpush1.bf16.xpose.msra.mxu0 0
  %5794 = vmatprep.subr.bf16.mxu0 0
  %5795 = vmatpush1.bf16.xpose.msra.mxu0 0
  %5796 = vmatprep.subr.bf16.mxu0 0
  %5797 = vmatpush1.bf16.xpose.msra.mxu0 0
  %5798 = vmatprep.subr.bf16.mxu0 0
  %5799 = vmatpush1.bf16.xpose.msra.mxu0 0
  %5800 = vmatprep.mubr.bf16.mxu0 0
  %5801 = vmatmul.mubr.bf16.gmra.mrb[0].mxu0 %v5763
  %v5802 = vpop.f32.mrb[0].mxu0
  %v5803 = vadd.f32 0.0, %v5802
  %v5804 = vpop.f32.mrb[0].mxu0
  %v5805 = vpop.f32.mrb[0].mxu0
  %v5806 = vpop.f32.mrb[0].mxu0
  %5807 = vdwg.mxu0
  %v5808 = vmul.f32 %v5803, 0.35355338
  %v5809 = vadd.f32 %v5808, %v1429
  %v5810 = vsel %vm250, %v5809, -inf
  %5811 = vmax.xlane.f32.xlu0 %v5810
  %v5812 = vpop.xlane.xlu0 %5811
  %v5813 = vsub.f32 %v5809, %v5812
  %v5814 = vmul.f32 %v5813, 1.442695
  %v5815 = vpow.pop %v5814
  %v5816 = vsel %vm250, %v5815, 0.0
  %5817 = vadd.xlane.f32.xlu0 %v5816
  %v5818 = vpop.xlane.xlu0 %5817
  %v5819 = vrcp.pop %v5818
  %v5820 = vmul.f32 %v5815, %v5819
  %v5821 = vpack.c.bf16 %v5820, %v5820
  %5822 = vrot.lane.b32.xlu0 %v5535, 48
  %v5823 = vpop.permute.xlu0 %5822
  %v5825 = vsel %vm265, %v5821, 0
  %v5828 = vand.u32 %v5823, %v272
  %5830 = vmatprep.subr.bf16.mxu0 0
  %5831 = vmatpush1.bf16.msra.mxu0 %v5828
  %5832 = vmatprep.subr.bf16.mxu0 0
  %5833 = vmatpush1.bf16.msra.mxu0 0
  %5834 = vmatprep.subr.bf16.mxu0 0
  %5835 = vmatpush1.bf16.msra.mxu0 0
  %5836 = vmatprep.subr.bf16.mxu0 0
  %5837 = vmatpush1.bf16.msra.mxu0 0
  %5838 = vmatprep.subr.bf16.mxu0 0
  %5839 = vmatpush1.bf16.msra.mxu0 0
  %5840 = vmatprep.subr.bf16.mxu0 0
  %5841 = vmatpush1.bf16.msra.mxu0 0
  %5842 = vmatprep.subr.bf16.mxu0 0
  %5843 = vmatpush1.bf16.msra.mxu0 0
  %5844 = vmatprep.subr.bf16.mxu0 0
  %5845 = vmatpush1.bf16.msra.mxu0 0
  %5846 = vmatprep.subr.bf16.mxu0 0
  %5847 = vmatpush1.bf16.msra.mxu0 0
  %5848 = vmatprep.subr.bf16.mxu0 0
  %5849 = vmatpush1.bf16.msra.mxu0 0
  %5850 = vmatprep.subr.bf16.mxu0 0
  %5851 = vmatpush1.bf16.msra.mxu0 0
  %5852 = vmatprep.subr.bf16.mxu0 0
  %5853 = vmatpush1.bf16.msra.mxu0 0
  %5854 = vmatprep.subr.bf16.mxu0 0
  %5855 = vmatpush1.bf16.msra.mxu0 0
  %5856 = vmatprep.subr.bf16.mxu0 0
  %5857 = vmatpush1.bf16.msra.mxu0 0
  %5858 = vmatprep.subr.bf16.mxu0 0
  %5859 = vmatpush1.bf16.msra.mxu0 0
  %5860 = vmatprep.subr.bf16.mxu0 0
  %5861 = vmatpush1.bf16.msra.mxu0 0
  %5862 = vmatprep.mubr.bf16.mxu0 0
  %5863 = vmatmul.mubr.bf16.gmra.mrb[0].mxu0 %v5825
  %v5864 = vpop.f32.mrb[0].mxu0
  %v5865 = vadd.f32 0.0, %v5864
  %v5866 = vpop.f32.mrb[0].mxu0
  %v5867 = vpop.f32.mrb[0].mxu0
  %v5868 = vpop.f32.mrb[0].mxu0
  %5869 = vdwg.mxu0
  %5870 = vrot.lane.b32.xlu0 %v5535, 104
  %v5871 = vpop.permute.xlu0 %5870
  %5872 = vrot.lane.b32.xlu0 %v5535, 72
  %v5873 = vpop.permute.xlu0 %5872
  %v5875 = vsel %vm60, %v5871, 0
  %v5878 = vsel %vm60, %v5873, 0
  %5880 = vmatprep.subr.bf16.mxu0 0
  %5881 = vmatpush1.bf16.xpose.msra.mxu0 %v5878
  %5882 = vmatprep.subr.bf16.mxu0 0
  %5883 = vmatpush1.bf16.xpose.msra.mxu0 0
  %5884 = vmatprep.subr.bf16.mxu0 0
  %5885 = vmatpush1.bf16.xpose.msra.mxu0 0
  %5886 = vmatprep.subr.bf16.mxu0 0
  %5887 = vmatpush1.bf16.xpose.msra.mxu0 0
  %5888 = vmatprep.subr.bf16.mxu0 0
  %5889 = vmatpush1.bf16.xpose.msra.mxu0 0
  %5890 = vmatprep.subr.bf16.mxu0 0
  %5891 = vmatpush1.bf16.xpose.msra.mxu0 0
  %5892 = vmatprep.subr.bf16.mxu0 0
  %5893 = vmatpush1.bf16.xpose.msra.mxu0 0
  %5894 = vmatprep.subr.bf16.mxu0 0
  %5895 = vmatpush1.bf16.xpose.msra.mxu0 0
  %5896 = vmatprep.subr.bf16.mxu0 0
  %5897 = vmatpush1.bf16.xpose.msra.mxu0 0
  %5898 = vmatprep.subr.bf16.mxu0 0
  %5899 = vmatpush1.bf16.xpose.msra.mxu0 0
  %5900 = vmatprep.subr.bf16.mxu0 0
  %5901 = vmatpush1.bf16.xpose.msra.mxu0 0
  %5902 = vmatprep.subr.bf16.mxu0 0
  %5903 = vmatpush1.bf16.xpose.msra.mxu0 0
  %5904 = vmatprep.subr.bf16.mxu0 0
  %5905 = vmatpush1.bf16.xpose.msra.mxu0 0
  %5906 = vmatprep.subr.bf16.mxu0 0
  %5907 = vmatpush1.bf16.xpose.msra.mxu0 0
  %5908 = vmatprep.subr.bf16.mxu0 0
  %5909 = vmatpush1.bf16.xpose.msra.mxu0 0
  %5910 = vmatprep.subr.bf16.mxu0 0
  %5911 = vmatpush1.bf16.xpose.msra.mxu0 0
  %5912 = vmatprep.mubr.bf16.mxu0 0
  %5913 = vmatmul.mubr.bf16.gmra.mrb[0].mxu0 %v5875
  %v5914 = vpop.f32.mrb[0].mxu0
  %v5915 = vadd.f32 0.0, %v5914
  %v5916 = vpop.f32.mrb[0].mxu0
  %v5917 = vpop.f32.mrb[0].mxu0
  %v5918 = vpop.f32.mrb[0].mxu0
  %5919 = vdwg.mxu0
  %v5920 = vmul.f32 %v5915, 0.35355338
  %v5921 = vadd.f32 %v5920, %v1540
  %v5922 = vsel %vm250, %v5921, -inf
  %5923 = vmax.xlane.f32.xlu0 %v5922
  %v5924 = vpop.xlane.xlu0 %5923
  %v5925 = vsub.f32 %v5921, %v5924
  %v5926 = vmul.f32 %v5925, 1.442695
  %v5927 = vpow.pop %v5926
  %v5928 = vsel %vm250, %v5927, 0.0
  %5929 = vadd.xlane.f32.xlu0 %v5928
  %v5930 = vpop.xlane.xlu0 %5929
  %v5931 = vrcp.pop %v5930
  %v5932 = vmul.f32 %v5927, %v5931
  %v5933 = vpack.c.bf16 %v5932, %v5932
  %5934 = vrot.lane.b32.xlu0 %v5535, 40
  %v5935 = vpop.permute.xlu0 %5934
  %v5937 = vsel %vm265, %v5933, 0
  %v5940 = vand.u32 %v5935, %v272
  %5942 = vmatprep.subr.bf16.mxu0 0
  %5943 = vmatpush1.bf16.msra.mxu0 %v5940
  %5944 = vmatprep.subr.bf16.mxu0 0
  %5945 = vmatpush1.bf16.msra.mxu0 0
  %5946 = vmatprep.subr.bf16.mxu0 0
  %5947 = vmatpush1.bf16.msra.mxu0 0
  %5948 = vmatprep.subr.bf16.mxu0 0
  %5949 = vmatpush1.bf16.msra.mxu0 0
  %5950 = vmatprep.subr.bf16.mxu0 0
  %5951 = vmatpush1.bf16.msra.mxu0 0
  %5952 = vmatprep.subr.bf16.mxu0 0
  %5953 = vmatpush1.bf16.msra.mxu0 0
  %5954 = vmatprep.subr.bf16.mxu0 0
  %5955 = vmatpush1.bf16.msra.mxu0 0
  %5956 = vmatprep.subr.bf16.mxu0 0
  %5957 = vmatpush1.bf16.msra.mxu0 0
  %5958 = vmatprep.subr.bf16.mxu0 0
  %5959 = vmatpush1.bf16.msra.mxu0 0
  %5960 = vmatprep.subr.bf16.mxu0 0
  %5961 = vmatpush1.bf16.msra.mxu0 0
  %5962 = vmatprep.subr.bf16.mxu0 0
  %5963 = vmatpush1.bf16.msra.mxu0 0
  %5964 = vmatprep.subr.bf16.mxu0 0
  %5965 = vmatpush1.bf16.msra.mxu0 0
  %5966 = vmatprep.subr.bf16.mxu0 0
  %5967 = vmatpush1.bf16.msra.mxu0 0
  %5968 = vmatprep.subr.bf16.mxu0 0
  %5969 = vmatpush1.bf16.msra.mxu0 0
  %5970 = vmatprep.subr.bf16.mxu0 0
  %5971 = vmatpush1.bf16.msra.mxu0 0
  %5972 = vmatprep.subr.bf16.mxu0 0
  %5973 = vmatpush1.bf16.msra.mxu0 0
  %5974 = vmatprep.mubr.bf16.mxu0 0
  %5975 = vmatmul.mubr.bf16.gmra.mrb[0].mxu0 %v5937
  %v5976 = vpop.f32.mrb[0].mxu0
  %v5977 = vadd.f32 0.0, %v5976
  %v5978 = vpop.f32.mrb[0].mxu0
  %v5979 = vpop.f32.mrb[0].mxu0
  %v5980 = vpop.f32.mrb[0].mxu0
  %5981 = vdwg.mxu0
  %5983 = vrot.lane.b32.xlu0 %v5753, 8
  %v5984 = vpop.permute.xlu0 %5983
  %5987 = vrot.lane.b32.xlu0 %v5865, 16
  %v5988 = vpop.permute.xlu0 %5987
  %5991 = vrot.lane.b32.xlu0 %v5977, 24
  %v5992 = vpop.permute.xlu0 %5991
  %v5994 = vsel %vm60, %v5641, %v5984
  %v5995 = vsel %vm662, %v5994, %v5988
  %v5996 = vsel %vm664, %v5995, %v5992
  %v5997 = vpack.c.bf16 %v5996, %v5996
  %v5999 = vunpack.c.l.b16 %v5997
  %v6000 = vpack.c.b16 %v5999, %v5999
  %v6001 = vrot.slane %v6000, 5
  %v6002 = vrot.slane %v6001, 4
  %6005 = vst.msk [vmem:[#allocation2] sm:$0x8] %vm1624, %v6001
  %v6006 = vld [vmem:[#allocation2 + $0x4] sm:$0x1]
  %v6007 = vsel %vm1628, %v6002, %v6006
  %6008 = vst [vmem:[#allocation2 + $0x4] sm:$0x1] %v6007
  %v6009 = vpack.c.bf16 %v4572, %v4572
  %v6011 = vshrl.u32 %v6009, 16
  %v6013 = vshll.u32 %v6009, 16
  %v6015 = vrot.slane %v6013, 1
  %v6016 = vor.u32 %v6011, %v6015
  %6017 = vrot.lane.b32.xlu0 %v6016, 96
  %v6018 = vpop.permute.xlu0 %6017
  %v6020 = vsel %vm60, %v6016, 0
  %v6023 = vsel %vm60, %v6018, 0
  %6025 = vmatprep.subr.bf16.mxu0 0
  %6026 = vmatpush1.bf16.xpose.msra.mxu0 %v6023
  %6027 = vmatprep.subr.bf16.mxu0 0
  %6028 = vmatpush1.bf16.xpose.msra.mxu0 0
  %6029 = vmatprep.subr.bf16.mxu0 0
  %6030 = vmatpush1.bf16.xpose.msra.mxu0 0
  %6031 = vmatprep.subr.bf16.mxu0 0
  %6032 = vmatpush1.bf16.xpose.msra.mxu0 0
  %6033 = vmatprep.subr.bf16.mxu0 0
  %6034 = vmatpush1.bf16.xpose.msra.mxu0 0
  %6035 = vmatprep.subr.bf16.mxu0 0
  %6036 = vmatpush1.bf16.xpose.msra.mxu0 0
  %6037 = vmatprep.subr.bf16.mxu0 0
  %6038 = vmatpush1.bf16.xpose.msra.mxu0 0
  %6039 = vmatprep.subr.bf16.mxu0 0
  %6040 = vmatpush1.bf16.xpose.msra.mxu0 0
  %6041 = vmatprep.subr.bf16.mxu0 0
  %6042 = vmatpush1.bf16.xpose.msra.mxu0 0
  %6043 = vmatprep.subr.bf16.mxu0 0
  %6044 = vmatpush1.bf16.xpose.msra.mxu0 0
  %6045 = vmatprep.subr.bf16.mxu0 0
  %6046 = vmatpush1.bf16.xpose.msra.mxu0 0
  %6047 = vmatprep.subr.bf16.mxu0 0
  %6048 = vmatpush1.bf16.xpose.msra.mxu0 0
  %6049 = vmatprep.subr.bf16.mxu0 0
  %6050 = vmatpush1.bf16.xpose.msra.mxu0 0
  %6051 = vmatprep.subr.bf16.mxu0 0
  %6052 = vmatpush1.bf16.xpose.msra.mxu0 0
  %6053 = vmatprep.subr.bf16.mxu0 0
  %6054 = vmatpush1.bf16.xpose.msra.mxu0 0
  %6055 = vmatprep.subr.bf16.mxu0 0
  %6056 = vmatpush1.bf16.xpose.msra.mxu0 0
  %6057 = vmatprep.mubr.bf16.mxu0 0
  %6058 = vmatmul.mubr.bf16.gmra.mrb[0].mxu0 %v6020
  %v6059 = vpop.f32.mrb[0].mxu0
  %v6060 = vadd.f32 0.0, %v6059
  %v6061 = vpop.f32.mrb[0].mxu0
  %v6062 = vpop.f32.mrb[0].mxu0
  %v6063 = vpop.f32.mrb[0].mxu0
  %6064 = vdwg.mxu0
  %v6065 = vmul.f32 %v6060, 0.35355338
  %v6066 = vadd.f32 %v6065, %v1688
  %v6067 = vsel %vm250, %v6066, -inf
  %6068 = vmax.xlane.f32.xlu0 %v6067
  %v6069 = vpop.xlane.xlu0 %6068
  %v6070 = vsub.f32 %v6066, %v6069
  %v6071 = vmul.f32 %v6070, 1.442695
  %v6072 = vpow.pop %v6071
  %v6073 = vsel %vm250, %v6072, 0.0
  %6074 = vadd.xlane.f32.xlu0 %v6073
  %v6075 = vpop.xlane.xlu0 %6074
  %v6076 = vrcp.pop %v6075
  %v6077 = vmul.f32 %v6072, %v6076
  %v6078 = vpack.c.bf16 %v6077, %v6077
  %6079 = vrot.lane.b32.xlu0 %v6016, 64
  %v6080 = vpop.permute.xlu0 %6079
  %v6082 = vsel %vm265, %v6078, 0
  %v6085 = vand.u32 %v6080, %v272
  %6087 = vmatprep.subr.bf16.mxu0 0
  %6088 = vmatpush1.bf16.msra.mxu0 %v6085
  %6089 = vmatprep.subr.bf16.mxu0 0
  %6090 = vmatpush1.bf16.msra.mxu0 0
  %6091 = vmatprep.subr.bf16.mxu0 0
  %6092 = vmatpush1.bf16.msra.mxu0 0
  %6093 = vmatprep.subr.bf16.mxu0 0
  %6094 = vmatpush1.bf16.msra.mxu0 0
  %6095 = vmatprep.subr.bf16.mxu0 0
  %6096 = vmatpush1.bf16.msra.mxu0 0
  %6097 = vmatprep.subr.bf16.mxu0 0
  %6098 = vmatpush1.bf16.msra.mxu0 0
  %6099 = vmatprep.subr.bf16.mxu0 0
  %6100 = vmatpush1.bf16.msra.mxu0 0
  %6101 = vmatprep.subr.bf16.mxu0 0
  %6102 = vmatpush1.bf16.msra.mxu0 0
  %6103 = vmatprep.subr.bf16.mxu0 0
  %6104 = vmatpush1.bf16.msra.mxu0 0
  %6105 = vmatprep.subr.bf16.mxu0 0
  %6106 = vmatpush1.bf16.msra.mxu0 0
  %6107 = vmatprep.subr.bf16.mxu0 0
  %6108 = vmatpush1.bf16.msra.mxu0 0
  %6109 = vmatprep.subr.bf16.mxu0 0
  %6110 = vmatpush1.bf16.msra.mxu0 0
  %6111 = vmatprep.subr.bf16.mxu0 0
  %6112 = vmatpush1.bf16.msra.mxu0 0
  %6113 = vmatprep.subr.bf16.mxu0 0
  %6114 = vmatpush1.bf16.msra.mxu0 0
  %6115 = vmatprep.subr.bf16.mxu0 0
  %6116 = vmatpush1.bf16.msra.mxu0 0
  %6117 = vmatprep.subr.bf16.mxu0 0
  %6118 = vmatpush1.bf16.msra.mxu0 0
  %6119 = vmatprep.mubr.bf16.mxu0 0
  %6120 = vmatmul.mubr.bf16.gmra.mrb[0].mxu0 %v6082
  %v6121 = vpop.f32.mrb[0].mxu0
  %v6122 = vadd.f32 0.0, %v6121
  %v6123 = vpop.f32.mrb[0].mxu0
  %v6124 = vpop.f32.mrb[0].mxu0
  %v6125 = vpop.f32.mrb[0].mxu0
  %6126 = vdwg.mxu0
  %6127 = vrot.lane.b32.xlu0 %v6016, 120
  %v6128 = vpop.permute.xlu0 %6127
  %6129 = vrot.lane.b32.xlu0 %v6016, 88
  %v6130 = vpop.permute.xlu0 %6129
  %v6132 = vsel %vm60, %v6128, 0
  %v6135 = vsel %vm60, %v6130, 0
  %6137 = vmatprep.subr.bf16.mxu0 0
  %6138 = vmatpush1.bf16.xpose.msra.mxu0 %v6135
  %6139 = vmatprep.subr.bf16.mxu0 0
  %6140 = vmatpush1.bf16.xpose.msra.mxu0 0
  %6141 = vmatprep.subr.bf16.mxu0 0
  %6142 = vmatpush1.bf16.xpose.msra.mxu0 0
  %6143 = vmatprep.subr.bf16.mxu0 0
  %6144 = vmatpush1.bf16.xpose.msra.mxu0 0
  %6145 = vmatprep.subr.bf16.mxu0 0
  %6146 = vmatpush1.bf16.xpose.msra.mxu0 0
  %6147 = vmatprep.subr.bf16.mxu0 0
  %6148 = vmatpush1.bf16.xpose.msra.mxu0 0
  %6149 = vmatprep.subr.bf16.mxu0 0
  %6150 = vmatpush1.bf16.xpose.msra.mxu0 0
  %6151 = vmatprep.subr.bf16.mxu0 0
  %6152 = vmatpush1.bf16.xpose.msra.mxu0 0
  %6153 = vmatprep.subr.bf16.mxu0 0
  %6154 = vmatpush1.bf16.xpose.msra.mxu0 0
  %6155 = vmatprep.subr.bf16.mxu0 0
  %6156 = vmatpush1.bf16.xpose.msra.mxu0 0
  %6157 = vmatprep.subr.bf16.mxu0 0
  %6158 = vmatpush1.bf16.xpose.msra.mxu0 0
  %6159 = vmatprep.subr.bf16.mxu0 0
  %6160 = vmatpush1.bf16.xpose.msra.mxu0 0
  %6161 = vmatprep.subr.bf16.mxu0 0
  %6162 = vmatpush1.bf16.xpose.msra.mxu0 0
  %6163 = vmatprep.subr.bf16.mxu0 0
  %6164 = vmatpush1.bf16.xpose.msra.mxu0 0
  %6165 = vmatprep.subr.bf16.mxu0 0
  %6166 = vmatpush1.bf16.xpose.msra.mxu0 0
  %6167 = vmatprep.subr.bf16.mxu0 0
  %6168 = vmatpush1.bf16.xpose.msra.mxu0 0
  %6169 = vmatprep.mubr.bf16.mxu0 0
  %6170 = vmatmul.mubr.bf16.gmra.mrb[0].mxu0 %v6132
  %v6171 = vpop.f32.mrb[0].mxu0
  %v6172 = vadd.f32 0.0, %v6171
  %v6173 = vpop.f32.mrb[0].mxu0
  %v6174 = vpop.f32.mrb[0].mxu0
  %v6175 = vpop.f32.mrb[0].mxu0
  %6176 = vdwg.mxu0
  %v6177 = vmul.f32 %v6172, 0.35355338
  %v6178 = vadd.f32 %v6177, %v1799
  %v6179 = vsel %vm250, %v6178, -inf
  %6180 = vmax.xlane.f32.xlu0 %v6179
  %v6181 = vpop.xlane.xlu0 %6180
  %v6182 = vsub.f32 %v6178, %v6181
  %v6183 = vmul.f32 %v6182, 1.442695
  %v6184 = vpow.pop %v6183
  %v6185 = vsel %vm250, %v6184, 0.0
  %6186 = vadd.xlane.f32.xlu0 %v6185
  %v6187 = vpop.xlane.xlu0 %6186
  %v6188 = vrcp.pop %v6187
  %v6189 = vmul.f32 %v6184, %v6188
  %v6190 = vpack.c.bf16 %v6189, %v6189
  %6191 = vrot.lane.b32.xlu0 %v6016, 56
  %v6192 = vpop.permute.xlu0 %6191
  %v6194 = vsel %vm265, %v6190, 0
  %v6197 = vand.u32 %v6192, %v272
  %6199 = vmatprep.subr.bf16.mxu0 0
  %6200 = vmatpush1.bf16.msra.mxu0 %v6197
  %6201 = vmatprep.subr.bf16.mxu0 0
  %6202 = vmatpush1.bf16.msra.mxu0 0
  %6203 = vmatprep.subr.bf16.mxu0 0
  %6204 = vmatpush1.bf16.msra.mxu0 0
  %6205 = vmatprep.subr.bf16.mxu0 0
  %6206 = vmatpush1.bf16.msra.mxu0 0
  %6207 = vmatprep.subr.bf16.mxu0 0
  %6208 = vmatpush1.bf16.msra.mxu0 0
  %6209 = vmatprep.subr.bf16.mxu0 0
  %6210 = vmatpush1.bf16.msra.mxu0 0
  %6211 = vmatprep.subr.bf16.mxu0 0
  %6212 = vmatpush1.bf16.msra.mxu0 0
  %6213 = vmatprep.subr.bf16.mxu0 0
  %6214 = vmatpush1.bf16.msra.mxu0 0
  %6215 = vmatprep.subr.bf16.mxu0 0
  %6216 = vmatpush1.bf16.msra.mxu0 0
  %6217 = vmatprep.subr.bf16.mxu0 0
  %6218 = vmatpush1.bf16.msra.mxu0 0
  %6219 = vmatprep.subr.bf16.mxu0 0
  %6220 = vmatpush1.bf16.msra.mxu0 0
  %6221 = vmatprep.subr.bf16.mxu0 0
  %6222 = vmatpush1.bf16.msra.mxu0 0
  %6223 = vmatprep.subr.bf16.mxu0 0
  %6224 = vmatpush1.bf16.msra.mxu0 0
  %6225 = vmatprep.subr.bf16.mxu0 0
  %6226 = vmatpush1.bf16.msra.mxu0 0
  %6227 = vmatprep.subr.bf16.mxu0 0
  %6228 = vmatpush1.bf16.msra.mxu0 0
  %6229 = vmatprep.subr.bf16.mxu0 0
  %6230 = vmatpush1.bf16.msra.mxu0 0
  %6231 = vmatprep.mubr.bf16.mxu0 0
  %6232 = vmatmul.mubr.bf16.gmra.mrb[0].mxu0 %v6194
  %v6233 = vpop.f32.mrb[0].mxu0
  %v6234 = vadd.f32 0.0, %v6233
  %v6235 = vpop.f32.mrb[0].mxu0
  %v6236 = vpop.f32.mrb[0].mxu0
  %v6237 = vpop.f32.mrb[0].mxu0
  %6238 = vdwg.mxu0
  %6239 = vrot.lane.b32.xlu0 %v6016, 112
  %v6240 = vpop.permute.xlu0 %6239
  %6241 = vrot.lane.b32.xlu0 %v6016, 80
  %v6242 = vpop.permute.xlu0 %6241
  %v6244 = vsel %vm60, %v6240, 0
  %v6247 = vsel %vm60, %v6242, 0
  %6249 = vmatprep.subr.bf16.mxu0 0
  %6250 = vmatpush1.bf16.xpose.msra.mxu0 %v6247
  %6251 = vmatprep.subr.bf16.mxu0 0
  %6252 = vmatpush1.bf16.xpose.msra.mxu0 0
  %6253 = vmatprep.subr.bf16.mxu0 0
  %6254 = vmatpush1.bf16.xpose.msra.mxu0 0
  %6255 = vmatprep.subr.bf16.mxu0 0
  %6256 = vmatpush1.bf16.xpose.msra.mxu0 0
  %6257 = vmatprep.subr.bf16.mxu0 0
  %6258 = vmatpush1.bf16.xpose.msra.mxu0 0
  %6259 = vmatprep.subr.bf16.mxu0 0
  %6260 = vmatpush1.bf16.xpose.msra.mxu0 0
  %6261 = vmatprep.subr.bf16.mxu0 0
  %6262 = vmatpush1.bf16.xpose.msra.mxu0 0
  %6263 = vmatprep.subr.bf16.mxu0 0
  %6264 = vmatpush1.bf16.xpose.msra.mxu0 0
  %6265 = vmatprep.subr.bf16.mxu0 0
  %6266 = vmatpush1.bf16.xpose.msra.mxu0 0
  %6267 = vmatprep.subr.bf16.mxu0 0
  %6268 = vmatpush1.bf16.xpose.msra.mxu0 0
  %6269 = vmatprep.subr.bf16.mxu0 0
  %6270 = vmatpush1.bf16.xpose.msra.mxu0 0
  %6271 = vmatprep.subr.bf16.mxu0 0
  %6272 = vmatpush1.bf16.xpose.msra.mxu0 0
  %6273 = vmatprep.subr.bf16.mxu0 0
  %6274 = vmatpush1.bf16.xpose.msra.mxu0 0
  %6275 = vmatprep.subr.bf16.mxu0 0
  %6276 = vmatpush1.bf16.xpose.msra.mxu0 0
  %6277 = vmatprep.subr.bf16.mxu0 0
  %6278 = vmatpush1.bf16.xpose.msra.mxu0 0
  %6279 = vmatprep.subr.bf16.mxu0 0
  %6280 = vmatpush1.bf16.xpose.msra.mxu0 0
  %6281 = vmatprep.mubr.bf16.mxu0 0
  %6282 = vmatmul.mubr.bf16.gmra.mrb[0].mxu0 %v6244
  %v6283 = vpop.f32.mrb[0].mxu0
  %v6284 = vadd.f32 0.0, %v6283
  %v6285 = vpop.f32.mrb[0].mxu0
  %v6286 = vpop.f32.mrb[0].mxu0
  %v6287 = vpop.f32.mrb[0].mxu0
  %6288 = vdwg.mxu0
  %v6289 = vmul.f32 %v6284, 0.35355338
  %v6290 = vadd.f32 %v6289, %v1910
  %v6291 = vsel %vm250, %v6290, -inf
  %6292 = vmax.xlane.f32.xlu0 %v6291
  %v6293 = vpop.xlane.xlu0 %6292
  %v6294 = vsub.f32 %v6290, %v6293
  %v6295 = vmul.f32 %v6294, 1.442695
  %v6296 = vpow.pop %v6295
  %v6297 = vsel %vm250, %v6296, 0.0
  %6298 = vadd.xlane.f32.xlu0 %v6297
  %v6299 = vpop.xlane.xlu0 %6298
  %v6300 = vrcp.pop %v6299
  %v6301 = vmul.f32 %v6296, %v6300
  %v6302 = vpack.c.bf16 %v6301, %v6301
  %6303 = vrot.lane.b32.xlu0 %v6016, 48
  %v6304 = vpop.permute.xlu0 %6303
  %v6306 = vsel %vm265, %v6302, 0
  %v6309 = vand.u32 %v6304, %v272
  %6311 = vmatprep.subr.bf16.mxu0 0
  %6312 = vmatpush1.bf16.msra.mxu0 %v6309
  %6313 = vmatprep.subr.bf16.mxu0 0
  %6314 = vmatpush1.bf16.msra.mxu0 0
  %6315 = vmatprep.subr.bf16.mxu0 0
  %6316 = vmatpush1.bf16.msra.mxu0 0
  %6317 = vmatprep.subr.bf16.mxu0 0
  %6318 = vmatpush1.bf16.msra.mxu0 0
  %6319 = vmatprep.subr.bf16.mxu0 0
  %6320 = vmatpush1.bf16.msra.mxu0 0
  %6321 = vmatprep.subr.bf16.mxu0 0
  %6322 = vmatpush1.bf16.msra.mxu0 0
  %6323 = vmatprep.subr.bf16.mxu0 0
  %6324 = vmatpush1.bf16.msra.mxu0 0
  %6325 = vmatprep.subr.bf16.mxu0 0
  %6326 = vmatpush1.bf16.msra.mxu0 0
  %6327 = vmatprep.subr.bf16.mxu0 0
  %6328 = vmatpush1.bf16.msra.mxu0 0
  %6329 = vmatprep.subr.bf16.mxu0 0
  %6330 = vmatpush1.bf16.msra.mxu0 0
  %6331 = vmatprep.subr.bf16.mxu0 0
  %6332 = vmatpush1.bf16.msra.mxu0 0
  %6333 = vmatprep.subr.bf16.mxu0 0
  %6334 = vmatpush1.bf16.msra.mxu0 0
  %6335 = vmatprep.subr.bf16.mxu0 0
  %6336 = vmatpush1.bf16.msra.mxu0 0
  %6337 = vmatprep.subr.bf16.mxu0 0
  %6338 = vmatpush1.bf16.msra.mxu0 0
  %6339 = vmatprep.subr.bf16.mxu0 0
  %6340 = vmatpush1.bf16.msra.mxu0 0
  %6341 = vmatprep.subr.bf16.mxu0 0
  %6342 = vmatpush1.bf16.msra.mxu0 0
  %6343 = vmatprep.mubr.bf16.mxu0 0
  %6344 = vmatmul.mubr.bf16.gmra.mrb[0].mxu0 %v6306
  %v6345 = vpop.f32.mrb[0].mxu0
  %v6346 = vadd.f32 0.0, %v6345
  %v6347 = vpop.f32.mrb[0].mxu0
  %v6348 = vpop.f32.mrb[0].mxu0
  %v6349 = vpop.f32.mrb[0].mxu0
  %6350 = vdwg.mxu0
  %6351 = vrot.lane.b32.xlu0 %v6016, 104
  %v6352 = vpop.permute.xlu0 %6351
  %6353 = vrot.lane.b32.xlu0 %v6016, 72
  %v6354 = vpop.permute.xlu0 %6353
  %v6356 = vsel %vm60, %v6352, 0
  %v6359 = vsel %vm60, %v6354, 0
  %6361 = vmatprep.subr.bf16.mxu0 0
  %6362 = vmatpush1.bf16.xpose.msra.mxu0 %v6359
  %6363 = vmatprep.subr.bf16.mxu0 0
  %6364 = vmatpush1.bf16.xpose.msra.mxu0 0
  %6365 = vmatprep.subr.bf16.mxu0 0
  %6366 = vmatpush1.bf16.xpose.msra.mxu0 0
  %6367 = vmatprep.subr.bf16.mxu0 0
  %6368 = vmatpush1.bf16.xpose.msra.mxu0 0
  %6369 = vmatprep.subr.bf16.mxu0 0
  %6370 = vmatpush1.bf16.xpose.msra.mxu0 0
  %6371 = vmatprep.subr.bf16.mxu0 0
  %6372 = vmatpush1.bf16.xpose.msra.mxu0 0
  %6373 = vmatprep.subr.bf16.mxu0 0
  %6374 = vmatpush1.bf16.xpose.msra.mxu0 0
  %6375 = vmatprep.subr.bf16.mxu0 0
  %6376 = vmatpush1.bf16.xpose.msra.mxu0 0
  %6377 = vmatprep.subr.bf16.mxu0 0
  %6378 = vmatpush1.bf16.xpose.msra.mxu0 0
  %6379 = vmatprep.subr.bf16.mxu0 0
  %6380 = vmatpush1.bf16.xpose.msra.mxu0 0
  %6381 = vmatprep.subr.bf16.mxu0 0
  %6382 = vmatpush1.bf16.xpose.msra.mxu0 0
  %6383 = vmatprep.subr.bf16.mxu0 0
  %6384 = vmatpush1.bf16.xpose.msra.mxu0 0
  %6385 = vmatprep.subr.bf16.mxu0 0
  %6386 = vmatpush1.bf16.xpose.msra.mxu0 0
  %6387 = vmatprep.subr.bf16.mxu0 0
  %6388 = vmatpush1.bf16.xpose.msra.mxu0 0
  %6389 = vmatprep.subr.bf16.mxu0 0
  %6390 = vmatpush1.bf16.xpose.msra.mxu0 0
  %6391 = vmatprep.subr.bf16.mxu0 0
  %6392 = vmatpush1.bf16.xpose.msra.mxu0 0
  %6393 = vmatprep.mubr.bf16.mxu0 0
  %6394 = vmatmul.mubr.bf16.gmra.mrb[0].mxu0 %v6356
  %v6395 = vpop.f32.mrb[0].mxu0
  %v6396 = vadd.f32 0.0, %v6395
  %v6397 = vpop.f32.mrb[0].mxu0
  %v6398 = vpop.f32.mrb[0].mxu0
  %v6399 = vpop.f32.mrb[0].mxu0
  %6400 = vdwg.mxu0
  %v6401 = vmul.f32 %v6396, 0.35355338
  %v6402 = vadd.f32 %v6401, %v2021
  %v6403 = vsel %vm250, %v6402, -inf
  %6404 = vmax.xlane.f32.xlu0 %v6403
  %v6405 = vpop.xlane.xlu0 %6404
  %v6406 = vsub.f32 %v6402, %v6405
  %v6407 = vmul.f32 %v6406, 1.442695
  %v6408 = vpow.pop %v6407
  %v6409 = vsel %vm250, %v6408, 0.0
  %6410 = vadd.xlane.f32.xlu0 %v6409
  %v6411 = vpop.xlane.xlu0 %6410
  %v6412 = vrcp.pop %v6411
  %v6413 = vmul.f32 %v6408, %v6412
  %v6414 = vpack.c.bf16 %v6413, %v6413
  %6415 = vrot.lane.b32.xlu0 %v6016, 40
  %v6416 = vpop.permute.xlu0 %6415
  %v6418 = vsel %vm265, %v6414, 0
  %v6421 = vand.u32 %v6416, %v272
  %6423 = vmatprep.subr.bf16.mxu0 0
  %6424 = vmatpush1.bf16.msra.mxu0 %v6421
  %6425 = vmatprep.subr.bf16.mxu0 0
  %6426 = vmatpush1.bf16.msra.mxu0 0
  %6427 = vmatprep.subr.bf16.mxu0 0
  %6428 = vmatpush1.bf16.msra.mxu0 0
  %6429 = vmatprep.subr.bf16.mxu0 0
  %6430 = vmatpush1.bf16.msra.mxu0 0
  %6431 = vmatprep.subr.bf16.mxu0 0
  %6432 = vmatpush1.bf16.msra.mxu0 0
  %6433 = vmatprep.subr.bf16.mxu0 0
  %6434 = vmatpush1.bf16.msra.mxu0 0
  %6435 = vmatprep.subr.bf16.mxu0 0
  %6436 = vmatpush1.bf16.msra.mxu0 0
  %6437 = vmatprep.subr.bf16.mxu0 0
  %6438 = vmatpush1.bf16.msra.mxu0 0
  %6439 = vmatprep.subr.bf16.mxu0 0
  %6440 = vmatpush1.bf16.msra.mxu0 0
  %6441 = vmatprep.subr.bf16.mxu0 0
  %6442 = vmatpush1.bf16.msra.mxu0 0
  %6443 = vmatprep.subr.bf16.mxu0 0
  %6444 = vmatpush1.bf16.msra.mxu0 0
  %6445 = vmatprep.subr.bf16.mxu0 0
  %6446 = vmatpush1.bf16.msra.mxu0 0
  %6447 = vmatprep.subr.bf16.mxu0 0
  %6448 = vmatpush1.bf16.msra.mxu0 0
  %6449 = vmatprep.subr.bf16.mxu0 0
  %6450 = vmatpush1.bf16.msra.mxu0 0
  %6451 = vmatprep.subr.bf16.mxu0 0
  %6452 = vmatpush1.bf16.msra.mxu0 0
  %6453 = vmatprep.subr.bf16.mxu0 0
  %6454 = vmatpush1.bf16.msra.mxu0 0
  %6455 = vmatprep.mubr.bf16.mxu0 0
  %6456 = vmatmul.mubr.bf16.gmra.mrb[0].mxu0 %v6418
  %v6457 = vpop.f32.mrb[0].mxu0
  %v6458 = vadd.f32 0.0, %v6457
  %v6459 = vpop.f32.mrb[0].mxu0
  %v6460 = vpop.f32.mrb[0].mxu0
  %v6461 = vpop.f32.mrb[0].mxu0
  %6462 = vdwg.mxu0
  %6464 = vrot.lane.b32.xlu0 %v6234, 8
  %v6465 = vpop.permute.xlu0 %6464
  %6468 = vrot.lane.b32.xlu0 %v6346, 16
  %v6469 = vpop.permute.xlu0 %6468
  %6472 = vrot.lane.b32.xlu0 %v6458, 24
  %v6473 = vpop.permute.xlu0 %6472
  %v6475 = vsel %vm60, %v6122, %v6465
  %v6476 = vsel %vm662, %v6475, %v6469
  %v6477 = vsel %vm664, %v6476, %v6473
  %v6478 = vpack.c.bf16 %v6477, %v6477
  %v6480 = vunpack.c.l.b16 %v6478
  %v6481 = vpack.c.b16 %v6480, %v6480
  %v6483 = vshrl.u32 %v6481, 16
  %v6485 = vrot.slane %v6483, 7
  %v6486 = vshll.u32 %v6481, 16
  %v6488 = vor.u32 %v6485, %v6486
  %v6490 = vld [vmem:[#allocation2 + $0x4] sm:$0x3]
  %v6491 = vsel %vm2110, %v6488, %v6490
  %6492 = vst [vmem:[#allocation2 + $0x4] sm:$0x3] %v6491
  %v6494 = vrot.slane %v6009, 2
  %6495 = vrot.lane.b32.xlu0 %v6494, 96
  %v6496 = vpop.permute.xlu0 %6495
  %v6498 = vsel %vm60, %v6494, 0
  %v6501 = vsel %vm60, %v6496, 0
  %6503 = vmatprep.subr.bf16.mxu0 0
  %6504 = vmatpush1.bf16.xpose.msra.mxu0 %v6501
  %6505 = vmatprep.subr.bf16.mxu0 0
  %6506 = vmatpush1.bf16.xpose.msra.mxu0 0
  %6507 = vmatprep.subr.bf16.mxu0 0
  %6508 = vmatpush1.bf16.xpose.msra.mxu0 0
  %6509 = vmatprep.subr.bf16.mxu0 0
  %6510 = vmatpush1.bf16.xpose.msra.mxu0 0
  %6511 = vmatprep.subr.bf16.mxu0 0
  %6512 = vmatpush1.bf16.xpose.msra.mxu0 0
  %6513 = vmatprep.subr.bf16.mxu0 0
  %6514 = vmatpush1.bf16.xpose.msra.mxu0 0
  %6515 = vmatprep.subr.bf16.mxu0 0
  %6516 = vmatpush1.bf16.xpose.msra.mxu0 0
  %6517 = vmatprep.subr.bf16.mxu0 0
  %6518 = vmatpush1.bf16.xpose.msra.mxu0 0
  %6519 = vmatprep.subr.bf16.mxu0 0
  %6520 = vmatpush1.bf16.xpose.msra.mxu0 0
  %6521 = vmatprep.subr.bf16.mxu0 0
  %6522 = vmatpush1.bf16.xpose.msra.mxu0 0
  %6523 = vmatprep.subr.bf16.mxu0 0
  %6524 = vmatpush1.bf16.xpose.msra.mxu0 0
  %6525 = vmatprep.subr.bf16.mxu0 0
  %6526 = vmatpush1.bf16.xpose.msra.mxu0 0
  %6527 = vmatprep.subr.bf16.mxu0 0
  %6528 = vmatpush1.bf16.xpose.msra.mxu0 0
  %6529 = vmatprep.subr.bf16.mxu0 0
  %6530 = vmatpush1.bf16.xpose.msra.mxu0 0
  %6531 = vmatprep.subr.bf16.mxu0 0
  %6532 = vmatpush1.bf16.xpose.msra.mxu0 0
  %6533 = vmatprep.subr.bf16.mxu0 0
  %6534 = vmatpush1.bf16.xpose.msra.mxu0 0
  %6535 = vmatprep.mubr.bf16.mxu0 0
  %6536 = vmatmul.mubr.bf16.gmra.mrb[0].mxu0 %v6498
  %v6537 = vpop.f32.mrb[0].mxu0
  %v6538 = vadd.f32 0.0, %v6537
  %v6539 = vpop.f32.mrb[0].mxu0
  %v6540 = vpop.f32.mrb[0].mxu0
  %v6541 = vpop.f32.mrb[0].mxu0
  %6542 = vdwg.mxu0
  %v6543 = vmul.f32 %v6538, 0.35355338
  %v6544 = vadd.f32 %v6543, %v2164
  %v6545 = vsel %vm250, %v6544, -inf
  %6546 = vmax.xlane.f32.xlu0 %v6545
  %v6547 = vpop.xlane.xlu0 %6546
  %v6548 = vsub.f32 %v6544, %v6547
  %v6549 = vmul.f32 %v6548, 1.442695
  %v6550 = vpow.pop %v6549
  %v6551 = vsel %vm250, %v6550, 0.0
  %6552 = vadd.xlane.f32.xlu0 %v6551
  %v6553 = vpop.xlane.xlu0 %6552
  %v6554 = vrcp.pop %v6553
  %v6555 = vmul.f32 %v6550, %v6554
  %v6556 = vpack.c.bf16 %v6555, %v6555
  %6557 = vrot.lane.b32.xlu0 %v6494, 64
  %v6558 = vpop.permute.xlu0 %6557
  %v6560 = vsel %vm265, %v6556, 0
  %v6563 = vand.u32 %v6558, %v272
  %6565 = vmatprep.subr.bf16.mxu0 0
  %6566 = vmatpush1.bf16.msra.mxu0 %v6563
  %6567 = vmatprep.subr.bf16.mxu0 0
  %6568 = vmatpush1.bf16.msra.mxu0 0
  %6569 = vmatprep.subr.bf16.mxu0 0
  %6570 = vmatpush1.bf16.msra.mxu0 0
  %6571 = vmatprep.subr.bf16.mxu0 0
  %6572 = vmatpush1.bf16.msra.mxu0 0
  %6573 = vmatprep.subr.bf16.mxu0 0
  %6574 = vmatpush1.bf16.msra.mxu0 0
  %6575 = vmatprep.subr.bf16.mxu0 0
  %6576 = vmatpush1.bf16.msra.mxu0 0
  %6577 = vmatprep.subr.bf16.mxu0 0
  %6578 = vmatpush1.bf16.msra.mxu0 0
  %6579 = vmatprep.subr.bf16.mxu0 0
  %6580 = vmatpush1.bf16.msra.mxu0 0
  %6581 = vmatprep.subr.bf16.mxu0 0
  %6582 = vmatpush1.bf16.msra.mxu0 0
  %6583 = vmatprep.subr.bf16.mxu0 0
  %6584 = vmatpush1.bf16.msra.mxu0 0
  %6585 = vmatprep.subr.bf16.mxu0 0
  %6586 = vmatpush1.bf16.msra.mxu0 0
  %6587 = vmatprep.subr.bf16.mxu0 0
  %6588 = vmatpush1.bf16.msra.mxu0 0
  %6589 = vmatprep.subr.bf16.mxu0 0
  %6590 = vmatpush1.bf16.msra.mxu0 0
  %6591 = vmatprep.subr.bf16.mxu0 0
  %6592 = vmatpush1.bf16.msra.mxu0 0
  %6593 = vmatprep.subr.bf16.mxu0 0
  %6594 = vmatpush1.bf16.msra.mxu0 0
  %6595 = vmatprep.subr.bf16.mxu0 0
  %6596 = vmatpush1.bf16.msra.mxu0 0
  %6597 = vmatprep.mubr.bf16.mxu0 0
  %6598 = vmatmul.mubr.bf16.gmra.mrb[0].mxu0 %v6560
  %v6599 = vpop.f32.mrb[0].mxu0
  %v6600 = vadd.f32 0.0, %v6599
  %v6601 = vpop.f32.mrb[0].mxu0
  %v6602 = vpop.f32.mrb[0].mxu0
  %v6603 = vpop.f32.mrb[0].mxu0
  %6604 = vdwg.mxu0
  %6605 = vrot.lane.b32.xlu0 %v6494, 120
  %v6606 = vpop.permute.xlu0 %6605
  %6607 = vrot.lane.b32.xlu0 %v6494, 88
  %v6608 = vpop.permute.xlu0 %6607
  %v6610 = vsel %vm60, %v6606, 0
  %v6613 = vsel %vm60, %v6608, 0
  %6615 = vmatprep.subr.bf16.mxu0 0
  %6616 = vmatpush1.bf16.xpose.msra.mxu0 %v6613
  %6617 = vmatprep.subr.bf16.mxu0 0
  %6618 = vmatpush1.bf16.xpose.msra.mxu0 0
  %6619 = vmatprep.subr.bf16.mxu0 0
  %6620 = vmatpush1.bf16.xpose.msra.mxu0 0
  %6621 = vmatprep.subr.bf16.mxu0 0
  %6622 = vmatpush1.bf16.xpose.msra.mxu0 0
  %6623 = vmatprep.subr.bf16.mxu0 0
  %6624 = vmatpush1.bf16.xpose.msra.mxu0 0
  %6625 = vmatprep.subr.bf16.mxu0 0
  %6626 = vmatpush1.bf16.xpose.msra.mxu0 0
  %6627 = vmatprep.subr.bf16.mxu0 0
  %6628 = vmatpush1.bf16.xpose.msra.mxu0 0
  %6629 = vmatprep.subr.bf16.mxu0 0
  %6630 = vmatpush1.bf16.xpose.msra.mxu0 0
  %6631 = vmatprep.subr.bf16.mxu0 0
  %6632 = vmatpush1.bf16.xpose.msra.mxu0 0
  %6633 = vmatprep.subr.bf16.mxu0 0
  %6634 = vmatpush1.bf16.xpose.msra.mxu0 0
  %6635 = vmatprep.subr.bf16.mxu0 0
  %6636 = vmatpush1.bf16.xpose.msra.mxu0 0
  %6637 = vmatprep.subr.bf16.mxu0 0
  %6638 = vmatpush1.bf16.xpose.msra.mxu0 0
  %6639 = vmatprep.subr.bf16.mxu0 0
  %6640 = vmatpush1.bf16.xpose.msra.mxu0 0
  %6641 = vmatprep.subr.bf16.mxu0 0
  %6642 = vmatpush1.bf16.xpose.msra.mxu0 0
  %6643 = vmatprep.subr.bf16.mxu0 0
  %6644 = vmatpush1.bf16.xpose.msra.mxu0 0
  %6645 = vmatprep.subr.bf16.mxu0 0
  %6646 = vmatpush1.bf16.xpose.msra.mxu0 0
  %6647 = vmatprep.mubr.bf16.mxu0 0
  %6648 = vmatmul.mubr.bf16.gmra.mrb[0].mxu0 %v6610
  %v6649 = vpop.f32.mrb[0].mxu0
  %v6650 = vadd.f32 0.0, %v6649
  %v6651 = vpop.f32.mrb[0].mxu0
  %v6652 = vpop.f32.mrb[0].mxu0
  %v6653 = vpop.f32.mrb[0].mxu0
  %6654 = vdwg.mxu0
  %v6655 = vmul.f32 %v6650, 0.35355338
  %v6656 = vadd.f32 %v6655, %v2275
  %v6657 = vsel %vm250, %v6656, -inf
  %6658 = vmax.xlane.f32.xlu0 %v6657
  %v6659 = vpop.xlane.xlu0 %6658
  %v6660 = vsub.f32 %v6656, %v6659
  %v6661 = vmul.f32 %v6660, 1.442695
  %v6662 = vpow.pop %v6661
  %v6663 = vsel %vm250, %v6662, 0.0
  %6664 = vadd.xlane.f32.xlu0 %v6663
  %v6665 = vpop.xlane.xlu0 %6664
  %v6666 = vrcp.pop %v6665
  %v6667 = vmul.f32 %v6662, %v6666
  %v6668 = vpack.c.bf16 %v6667, %v6667
  %6669 = vrot.lane.b32.xlu0 %v6494, 56
  %v6670 = vpop.permute.xlu0 %6669
  %v6672 = vsel %vm265, %v6668, 0
  %v6675 = vand.u32 %v6670, %v272
  %6677 = vmatprep.subr.bf16.mxu0 0
  %6678 = vmatpush1.bf16.msra.mxu0 %v6675
  %6679 = vmatprep.subr.bf16.mxu0 0
  %6680 = vmatpush1.bf16.msra.mxu0 0
  %6681 = vmatprep.subr.bf16.mxu0 0
  %6682 = vmatpush1.bf16.msra.mxu0 0
  %6683 = vmatprep.subr.bf16.mxu0 0
  %6684 = vmatpush1.bf16.msra.mxu0 0
  %6685 = vmatprep.subr.bf16.mxu0 0
  %6686 = vmatpush1.bf16.msra.mxu0 0
  %6687 = vmatprep.subr.bf16.mxu0 0
  %6688 = vmatpush1.bf16.msra.mxu0 0
  %6689 = vmatprep.subr.bf16.mxu0 0
  %6690 = vmatpush1.bf16.msra.mxu0 0
  %6691 = vmatprep.subr.bf16.mxu0 0
  %6692 = vmatpush1.bf16.msra.mxu0 0
  %6693 = vmatprep.subr.bf16.mxu0 0
  %6694 = vmatpush1.bf16.msra.mxu0 0
  %6695 = vmatprep.subr.bf16.mxu0 0
  %6696 = vmatpush1.bf16.msra.mxu0 0
  %6697 = vmatprep.subr.bf16.mxu0 0
  %6698 = vmatpush1.bf16.msra.mxu0 0
  %6699 = vmatprep.subr.bf16.mxu0 0
  %6700 = vmatpush1.bf16.msra.mxu0 0
  %6701 = vmatprep.subr.bf16.mxu0 0
  %6702 = vmatpush1.bf16.msra.mxu0 0
  %6703 = vmatprep.subr.bf16.mxu0 0
  %6704 = vmatpush1.bf16.msra.mxu0 0
  %6705 = vmatprep.subr.bf16.mxu0 0
  %6706 = vmatpush1.bf16.msra.mxu0 0
  %6707 = vmatprep.subr.bf16.mxu0 0
  %6708 = vmatpush1.bf16.msra.mxu0 0
  %6709 = vmatprep.mubr.bf16.mxu0 0
  %6710 = vmatmul.mubr.bf16.gmra.mrb[0].mxu0 %v6672
  %v6711 = vpop.f32.mrb[0].mxu0
  %v6712 = vadd.f32 0.0, %v6711
  %v6713 = vpop.f32.mrb[0].mxu0
  %v6714 = vpop.f32.mrb[0].mxu0
  %v6715 = vpop.f32.mrb[0].mxu0
  %6716 = vdwg.mxu0
  %6717 = vrot.lane.b32.xlu0 %v6494, 112
  %v6718 = vpop.permute.xlu0 %6717
  %6719 = vrot.lane.b32.xlu0 %v6494, 80
  %v6720 = vpop.permute.xlu0 %6719
  %v6722 = vsel %vm60, %v6718, 0
  %v6725 = vsel %vm60, %v6720, 0
  %6727 = vmatprep.subr.bf16.mxu0 0
  %6728 = vmatpush1.bf16.xpose.msra.mxu0 %v6725
  %6729 = vmatprep.subr.bf16.mxu0 0
  %6730 = vmatpush1.bf16.xpose.msra.mxu0 0
  %6731 = vmatprep.subr.bf16.mxu0 0
  %6732 = vmatpush1.bf16.xpose.msra.mxu0 0
  %6733 = vmatprep.subr.bf16.mxu0 0
  %6734 = vmatpush1.bf16.xpose.msra.mxu0 0
  %6735 = vmatprep.subr.bf16.mxu0 0
  %6736 = vmatpush1.bf16.xpose.msra.mxu0 0
  %6737 = vmatprep.subr.bf16.mxu0 0
  %6738 = vmatpush1.bf16.xpose.msra.mxu0 0
  %6739 = vmatprep.subr.bf16.mxu0 0
  %6740 = vmatpush1.bf16.xpose.msra.mxu0 0
  %6741 = vmatprep.subr.bf16.mxu0 0
  %6742 = vmatpush1.bf16.xpose.msra.mxu0 0
  %6743 = vmatprep.subr.bf16.mxu0 0
  %6744 = vmatpush1.bf16.xpose.msra.mxu0 0
  %6745 = vmatprep.subr.bf16.mxu0 0
  %6746 = vmatpush1.bf16.xpose.msra.mxu0 0
  %6747 = vmatprep.subr.bf16.mxu0 0
  %6748 = vmatpush1.bf16.xpose.msra.mxu0 0
  %6749 = vmatprep.subr.bf16.mxu0 0
  %6750 = vmatpush1.bf16.xpose.msra.mxu0 0
  %6751 = vmatprep.subr.bf16.mxu0 0
  %6752 = vmatpush1.bf16.xpose.msra.mxu0 0
  %6753 = vmatprep.subr.bf16.mxu0 0
  %6754 = vmatpush1.bf16.xpose.msra.mxu0 0
  %6755 = vmatprep.subr.bf16.mxu0 0
  %6756 = vmatpush1.bf16.xpose.msra.mxu0 0
  %6757 = vmatprep.subr.bf16.mxu0 0
  %6758 = vmatpush1.bf16.xpose.msra.mxu0 0
  %6759 = vmatprep.mubr.bf16.mxu0 0
  %6760 = vmatmul.mubr.bf16.gmra.mrb[0].mxu0 %v6722
  %v6761 = vpop.f32.mrb[0].mxu0
  %v6762 = vadd.f32 0.0, %v6761
  %v6763 = vpop.f32.mrb[0].mxu0
  %v6764 = vpop.f32.mrb[0].mxu0
  %v6765 = vpop.f32.mrb[0].mxu0
  %6766 = vdwg.mxu0
  %v6767 = vmul.f32 %v6762, 0.35355338
  %v6768 = vadd.f32 %v6767, %v2386
  %v6769 = vsel %vm250, %v6768, -inf
  %6770 = vmax.xlane.f32.xlu0 %v6769
  %v6771 = vpop.xlane.xlu0 %6770
  %v6772 = vsub.f32 %v6768, %v6771
  %v6773 = vmul.f32 %v6772, 1.442695
  %v6774 = vpow.pop %v6773
  %v6775 = vsel %vm250, %v6774, 0.0
  %6776 = vadd.xlane.f32.xlu0 %v6775
  %v6777 = vpop.xlane.xlu0 %6776
  %v6778 = vrcp.pop %v6777
  %v6779 = vmul.f32 %v6774, %v6778
  %v6780 = vpack.c.bf16 %v6779, %v6779
  %6781 = vrot.lane.b32.xlu0 %v6494, 48
  %v6782 = vpop.permute.xlu0 %6781
  %v6784 = vsel %vm265, %v6780, 0
  %v6787 = vand.u32 %v6782, %v272
  %6789 = vmatprep.subr.bf16.mxu0 0
  %6790 = vmatpush1.bf16.msra.mxu0 %v6787
  %6791 = vmatprep.subr.bf16.mxu0 0
  %6792 = vmatpush1.bf16.msra.mxu0 0
  %6793 = vmatprep.subr.bf16.mxu0 0
  %6794 = vmatpush1.bf16.msra.mxu0 0
  %6795 = vmatprep.subr.bf16.mxu0 0
  %6796 = vmatpush1.bf16.msra.mxu0 0
  %6797 = vmatprep.subr.bf16.mxu0 0
  %6798 = vmatpush1.bf16.msra.mxu0 0
  %6799 = vmatprep.subr.bf16.mxu0 0
  %6800 = vmatpush1.bf16.msra.mxu0 0
  %6801 = vmatprep.subr.bf16.mxu0 0
  %6802 = vmatpush1.bf16.msra.mxu0 0
  %6803 = vmatprep.subr.bf16.mxu0 0
  %6804 = vmatpush1.bf16.msra.mxu0 0
  %6805 = vmatprep.subr.bf16.mxu0 0
  %6806 = vmatpush1.bf16.msra.mxu0 0
  %6807 = vmatprep.subr.bf16.mxu0 0
  %6808 = vmatpush1.bf16.msra.mxu0 0
  %6809 = vmatprep.subr.bf16.mxu0 0
  %6810 = vmatpush1.bf16.msra.mxu0 0
  %6811 = vmatprep.subr.bf16.mxu0 0
  %6812 = vmatpush1.bf16.msra.mxu0 0
  %6813 = vmatprep.subr.bf16.mxu0 0
  %6814 = vmatpush1.bf16.msra.mxu0 0
  %6815 = vmatprep.subr.bf16.mxu0 0
  %6816 = vmatpush1.bf16.msra.mxu0 0
  %6817 = vmatprep.subr.bf16.mxu0 0
  %6818 = vmatpush1.bf16.msra.mxu0 0
  %6819 = vmatprep.subr.bf16.mxu0 0
  %6820 = vmatpush1.bf16.msra.mxu0 0
  %6821 = vmatprep.mubr.bf16.mxu0 0
  %6822 = vmatmul.mubr.bf16.gmra.mrb[0].mxu0 %v6784
  %v6823 = vpop.f32.mrb[0].mxu0
  %v6824 = vadd.f32 0.0, %v6823
  %v6825 = vpop.f32.mrb[0].mxu0
  %v6826 = vpop.f32.mrb[0].mxu0
  %v6827 = vpop.f32.mrb[0].mxu0
  %6828 = vdwg.mxu0
  %6829 = vrot.lane.b32.xlu0 %v6494, 104
  %v6830 = vpop.permute.xlu0 %6829
  %6831 = vrot.lane.b32.xlu0 %v6494, 72
  %v6832 = vpop.permute.xlu0 %6831
  %v6834 = vsel %vm60, %v6830, 0
  %v6837 = vsel %vm60, %v6832, 0
  %6839 = vmatprep.subr.bf16.mxu0 0
  %6840 = vmatpush1.bf16.xpose.msra.mxu0 %v6837
  %6841 = vmatprep.subr.bf16.mxu0 0
  %6842 = vmatpush1.bf16.xpose.msra.mxu0 0
  %6843 = vmatprep.subr.bf16.mxu0 0
  %6844 = vmatpush1.bf16.xpose.msra.mxu0 0
  %6845 = vmatprep.subr.bf16.mxu0 0
  %6846 = vmatpush1.bf16.xpose.msra.mxu0 0
  %6847 = vmatprep.subr.bf16.mxu0 0
  %6848 = vmatpush1.bf16.xpose.msra.mxu0 0
  %6849 = vmatprep.subr.bf16.mxu0 0
  %6850 = vmatpush1.bf16.xpose.msra.mxu0 0
  %6851 = vmatprep.subr.bf16.mxu0 0
  %6852 = vmatpush1.bf16.xpose.msra.mxu0 0
  %6853 = vmatprep.subr.bf16.mxu0 0
  %6854 = vmatpush1.bf16.xpose.msra.mxu0 0
  %6855 = vmatprep.subr.bf16.mxu0 0
  %6856 = vmatpush1.bf16.xpose.msra.mxu0 0
  %6857 = vmatprep.subr.bf16.mxu0 0
  %6858 = vmatpush1.bf16.xpose.msra.mxu0 0
  %6859 = vmatprep.subr.bf16.mxu0 0
  %6860 = vmatpush1.bf16.xpose.msra.mxu0 0
  %6861 = vmatprep.subr.bf16.mxu0 0
  %6862 = vmatpush1.bf16.xpose.msra.mxu0 0
  %6863 = vmatprep.subr.bf16.mxu0 0
  %6864 = vmatpush1.bf16.xpose.msra.mxu0 0
  %6865 = vmatprep.subr.bf16.mxu0 0
  %6866 = vmatpush1.bf16.xpose.msra.mxu0 0
  %6867 = vmatprep.subr.bf16.mxu0 0
  %6868 = vmatpush1.bf16.xpose.msra.mxu0 0
  %6869 = vmatprep.subr.bf16.mxu0 0
  %6870 = vmatpush1.bf16.xpose.msra.mxu0 0
  %6871 = vmatprep.mubr.bf16.mxu0 0
  %6872 = vmatmul.mubr.bf16.gmra.mrb[0].mxu0 %v6834
  %v6873 = vpop.f32.mrb[0].mxu0
  %v6874 = vadd.f32 0.0, %v6873
  %v6875 = vpop.f32.mrb[0].mxu0
  %v6876 = vpop.f32.mrb[0].mxu0
  %v6877 = vpop.f32.mrb[0].mxu0
  %6878 = vdwg.mxu0
  %v6879 = vmul.f32 %v6874, 0.35355338
  %v6880 = vadd.f32 %v6879, %v2497
  %v6881 = vsel %vm250, %v6880, -inf
  %6882 = vmax.xlane.f32.xlu0 %v6881
  %v6883 = vpop.xlane.xlu0 %6882
  %v6884 = vsub.f32 %v6880, %v6883
  %v6885 = vmul.f32 %v6884, 1.442695
  %v6886 = vpow.pop %v6885
  %v6887 = vsel %vm250, %v6886, 0.0
  %6888 = vadd.xlane.f32.xlu0 %v6887
  %v6889 = vpop.xlane.xlu0 %6888
  %v6890 = vrcp.pop %v6889
  %v6891 = vmul.f32 %v6886, %v6890
  %v6892 = vpack.c.bf16 %v6891, %v6891
  %6893 = vrot.lane.b32.xlu0 %v6494, 40
  %v6894 = vpop.permute.xlu0 %6893
  %v6896 = vsel %vm265, %v6892, 0
  %v6899 = vand.u32 %v6894, %v272
  %6901 = vmatprep.subr.bf16.mxu0 0
  %6902 = vmatpush1.bf16.msra.mxu0 %v6899
  %6903 = vmatprep.subr.bf16.mxu0 0
  %6904 = vmatpush1.bf16.msra.mxu0 0
  %6905 = vmatprep.subr.bf16.mxu0 0
  %6906 = vmatpush1.bf16.msra.mxu0 0
  %6907 = vmatprep.subr.bf16.mxu0 0
  %6908 = vmatpush1.bf16.msra.mxu0 0
  %6909 = vmatprep.subr.bf16.mxu0 0
  %6910 = vmatpush1.bf16.msra.mxu0 0
  %6911 = vmatprep.subr.bf16.mxu0 0
  %6912 = vmatpush1.bf16.msra.mxu0 0
  %6913 = vmatprep.subr.bf16.mxu0 0
  %6914 = vmatpush1.bf16.msra.mxu0 0
  %6915 = vmatprep.subr.bf16.mxu0 0
  %6916 = vmatpush1.bf16.msra.mxu0 0
  %6917 = vmatprep.subr.bf16.mxu0 0
  %6918 = vmatpush1.bf16.msra.mxu0 0
  %6919 = vmatprep.subr.bf16.mxu0 0
  %6920 = vmatpush1.bf16.msra.mxu0 0
  %6921 = vmatprep.subr.bf16.mxu0 0
  %6922 = vmatpush1.bf16.msra.mxu0 0
  %6923 = vmatprep.subr.bf16.mxu0 0
  %6924 = vmatpush1.bf16.msra.mxu0 0
  %6925 = vmatprep.subr.bf16.mxu0 0
  %6926 = vmatpush1.bf16.msra.mxu0 0
  %6927 = vmatprep.subr.bf16.mxu0 0
  %6928 = vmatpush1.bf16.msra.mxu0 0
  %6929 = vmatprep.subr.bf16.mxu0 0
  %6930 = vmatpush1.bf16.msra.mxu0 0
  %6931 = vmatprep.subr.bf16.mxu0 0
  %6932 = vmatpush1.bf16.msra.mxu0 0
  %6933 = vmatprep.mubr.bf16.mxu0 0
  %6934 = vmatmul.mubr.bf16.gmra.mrb[0].mxu0 %v6896
  %v6935 = vpop.f32.mrb[0].mxu0
  %v6936 = vadd.f32 0.0, %v6935
  %v6937 = vpop.f32.mrb[0].mxu0
  %v6938 = vpop.f32.mrb[0].mxu0
  %v6939 = vpop.f32.mrb[0].mxu0
  %6940 = vdwg.mxu0
  %6942 = vrot.lane.b32.xlu0 %v6712, 8
  %v6943 = vpop.permute.xlu0 %6942
  %6946 = vrot.lane.b32.xlu0 %v6824, 16
  %v6947 = vpop.permute.xlu0 %6946
  %6950 = vrot.lane.b32.xlu0 %v6936, 24
  %v6951 = vpop.permute.xlu0 %6950
  %v6953 = vsel %vm60, %v6600, %v6943
  %v6954 = vsel %vm662, %v6953, %v6947
  %v6955 = vsel %vm664, %v6954, %v6951
  %v6956 = vpack.c.bf16 %v6955, %v6955
  %v6958 = vunpack.c.l.b16 %v6956
  %v6959 = vpack.c.b16 %v6958, %v6958
  %v6960 = vrot.slane %v6959, 6
  %v6962 = vld [vmem:[#allocation2 + $0x4] sm:$0xc]
  %v6963 = vsel %vm2581, %v6960, %v6962
  %6964 = vst [vmem:[#allocation2 + $0x4] sm:$0xc] %v6963
  %v6965 = vpack.c.bf16 %v4577, %v4572
  %v6967 = vshrl.u32 %v6965, 16
  %v6969 = vrot.slane %v6967, 3
  %v6970 = vshll.u32 %v6965, 16
  %v6972 = vrot.slane %v6970, 4
  %v6973 = vor.u32 %v6969, %v6972
  %6974 = vrot.lane.b32.xlu0 %v6973, 96
  %v6975 = vpop.permute.xlu0 %6974
  %v6977 = vsel %vm60, %v6973, 0
  %v6980 = vsel %vm60, %v6975, 0
  %6982 = vmatprep.subr.bf16.mxu0 0
  %6983 = vmatpush1.bf16.xpose.msra.mxu0 %v6980
  %6984 = vmatprep.subr.bf16.mxu0 0
  %6985 = vmatpush1.bf16.xpose.msra.mxu0 0
  %6986 = vmatprep.subr.bf16.mxu0 0
  %6987 = vmatpush1.bf16.xpose.msra.mxu0 0
  %6988 = vmatprep.subr.bf16.mxu0 0
  %6989 = vmatpush1.bf16.xpose.msra.mxu0 0
  %6990 = vmatprep.subr.bf16.mxu0 0
  %6991 = vmatpush1.bf16.xpose.msra.mxu0 0
  %6992 = vmatprep.subr.bf16.mxu0 0
  %6993 = vmatpush1.bf16.xpose.msra.mxu0 0
  %6994 = vmatprep.subr.bf16.mxu0 0
  %6995 = vmatpush1.bf16.xpose.msra.mxu0 0
  %6996 = vmatprep.subr.bf16.mxu0 0
  %6997 = vmatpush1.bf16.xpose.msra.mxu0 0
  %6998 = vmatprep.subr.bf16.mxu0 0
  %6999 = vmatpush1.bf16.xpose.msra.mxu0 0
  %7000 = vmatprep.subr.bf16.mxu0 0
  %7001 = vmatpush1.bf16.xpose.msra.mxu0 0
  %7002 = vmatprep.subr.bf16.mxu0 0
  %7003 = vmatpush1.bf16.xpose.msra.mxu0 0
  %7004 = vmatprep.subr.bf16.mxu0 0
  %7005 = vmatpush1.bf16.xpose.msra.mxu0 0
  %7006 = vmatprep.subr.bf16.mxu0 0
  %7007 = vmatpush1.bf16.xpose.msra.mxu0 0
  %7008 = vmatprep.subr.bf16.mxu0 0
  %7009 = vmatpush1.bf16.xpose.msra.mxu0 0
  %7010 = vmatprep.subr.bf16.mxu0 0
  %7011 = vmatpush1.bf16.xpose.msra.mxu0 0
  %7012 = vmatprep.subr.bf16.mxu0 0
  %7013 = vmatpush1.bf16.xpose.msra.mxu0 0
  %7014 = vmatprep.mubr.bf16.mxu0 0
  %7015 = vmatmul.mubr.bf16.gmra.mrb[0].mxu0 %v6977
  %v7016 = vpop.f32.mrb[0].mxu0
  %v7017 = vadd.f32 0.0, %v7016
  %v7018 = vpop.f32.mrb[0].mxu0
  %v7019 = vpop.f32.mrb[0].mxu0
  %v7020 = vpop.f32.mrb[0].mxu0
  %7021 = vdwg.mxu0
  %v7022 = vmul.f32 %v7017, 0.35355338
  %v7023 = vadd.f32 %v7022, %v2642
  %v7024 = vsel %vm250, %v7023, -inf
  %7025 = vmax.xlane.f32.xlu0 %v7024
  %v7026 = vpop.xlane.xlu0 %7025
  %v7027 = vsub.f32 %v7023, %v7026
  %v7028 = vmul.f32 %v7027, 1.442695
  %v7029 = vpow.pop %v7028
  %v7030 = vsel %vm250, %v7029, 0.0
  %7031 = vadd.xlane.f32.xlu0 %v7030
  %v7032 = vpop.xlane.xlu0 %7031
  %v7033 = vrcp.pop %v7032
  %v7034 = vmul.f32 %v7029, %v7033
  %v7035 = vpack.c.bf16 %v7034, %v7034
  %7036 = vrot.lane.b32.xlu0 %v6973, 64
  %v7037 = vpop.permute.xlu0 %7036
  %v7039 = vsel %vm265, %v7035, 0
  %v7042 = vand.u32 %v7037, %v272
  %7044 = vmatprep.subr.bf16.mxu0 0
  %7045 = vmatpush1.bf16.msra.mxu0 %v7042
  %7046 = vmatprep.subr.bf16.mxu0 0
  %7047 = vmatpush1.bf16.msra.mxu0 0
  %7048 = vmatprep.subr.bf16.mxu0 0
  %7049 = vmatpush1.bf16.msra.mxu0 0
  %7050 = vmatprep.subr.bf16.mxu0 0
  %7051 = vmatpush1.bf16.msra.mxu0 0
  %7052 = vmatprep.subr.bf16.mxu0 0
  %7053 = vmatpush1.bf16.msra.mxu0 0
  %7054 = vmatprep.subr.bf16.mxu0 0
  %7055 = vmatpush1.bf16.msra.mxu0 0
  %7056 = vmatprep.subr.bf16.mxu0 0
  %7057 = vmatpush1.bf16.msra.mxu0 0
  %7058 = vmatprep.subr.bf16.mxu0 0
  %7059 = vmatpush1.bf16.msra.mxu0 0
  %7060 = vmatprep.subr.bf16.mxu0 0
  %7061 = vmatpush1.bf16.msra.mxu0 0
  %7062 = vmatprep.subr.bf16.mxu0 0
  %7063 = vmatpush1.bf16.msra.mxu0 0
  %7064 = vmatprep.subr.bf16.mxu0 0
  %7065 = vmatpush1.bf16.msra.mxu0 0
  %7066 = vmatprep.subr.bf16.mxu0 0
  %7067 = vmatpush1.bf16.msra.mxu0 0
  %7068 = vmatprep.subr.bf16.mxu0 0
  %7069 = vmatpush1.bf16.msra.mxu0 0
  %7070 = vmatprep.subr.bf16.mxu0 0
  %7071 = vmatpush1.bf16.msra.mxu0 0
  %7072 = vmatprep.subr.bf16.mxu0 0
  %7073 = vmatpush1.bf16.msra.mxu0 0
  %7074 = vmatprep.subr.bf16.mxu0 0
  %7075 = vmatpush1.bf16.msra.mxu0 0
  %7076 = vmatprep.mubr.bf16.mxu0 0
  %7077 = vmatmul.mubr.bf16.gmra.mrb[0].mxu0 %v7039
  %v7078 = vpop.f32.mrb[0].mxu0
  %v7079 = vadd.f32 0.0, %v7078
  %v7080 = vpop.f32.mrb[0].mxu0
  %v7081 = vpop.f32.mrb[0].mxu0
  %v7082 = vpop.f32.mrb[0].mxu0
  %7083 = vdwg.mxu0
  %7084 = vrot.lane.b32.xlu0 %v6973, 120
  %v7085 = vpop.permute.xlu0 %7084
  %7086 = vrot.lane.b32.xlu0 %v6973, 88
  %v7087 = vpop.permute.xlu0 %7086
  %v7089 = vsel %vm60, %v7085, 0
  %v7092 = vsel %vm60, %v7087, 0
  %7094 = vmatprep.subr.bf16.mxu0 0
  %7095 = vmatpush1.bf16.xpose.msra.mxu0 %v7092
  %7096 = vmatprep.subr.bf16.mxu0 0
  %7097 = vmatpush1.bf16.xpose.msra.mxu0 0
  %7098 = vmatprep.subr.bf16.mxu0 0
  %7099 = vmatpush1.bf16.xpose.msra.mxu0 0
  %7100 = vmatprep.subr.bf16.mxu0 0
  %7101 = vmatpush1.bf16.xpose.msra.mxu0 0
  %7102 = vmatprep.subr.bf16.mxu0 0
  %7103 = vmatpush1.bf16.xpose.msra.mxu0 0
  %7104 = vmatprep.subr.bf16.mxu0 0
  %7105 = vmatpush1.bf16.xpose.msra.mxu0 0
  %7106 = vmatprep.subr.bf16.mxu0 0
  %7107 = vmatpush1.bf16.xpose.msra.mxu0 0
  %7108 = vmatprep.subr.bf16.mxu0 0
  %7109 = vmatpush1.bf16.xpose.msra.mxu0 0
  %7110 = vmatprep.subr.bf16.mxu0 0
  %7111 = vmatpush1.bf16.xpose.msra.mxu0 0
  %7112 = vmatprep.subr.bf16.mxu0 0
  %7113 = vmatpush1.bf16.xpose.msra.mxu0 0
  %7114 = vmatprep.subr.bf16.mxu0 0
  %7115 = vmatpush1.bf16.xpose.msra.mxu0 0
  %7116 = vmatprep.subr.bf16.mxu0 0
  %7117 = vmatpush1.bf16.xpose.msra.mxu0 0
  %7118 = vmatprep.subr.bf16.mxu0 0
  %7119 = vmatpush1.bf16.xpose.msra.mxu0 0
  %7120 = vmatprep.subr.bf16.mxu0 0
  %7121 = vmatpush1.bf16.xpose.msra.mxu0 0
  %7122 = vmatprep.subr.bf16.mxu0 0
  %7123 = vmatpush1.bf16.xpose.msra.mxu0 0
  %7124 = vmatprep.subr.bf16.mxu0 0
  %7125 = vmatpush1.bf16.xpose.msra.mxu0 0
  %7126 = vmatprep.mubr.bf16.mxu0 0
  %7127 = vmatmul.mubr.bf16.gmra.mrb[0].mxu0 %v7089
  %v7128 = vpop.f32.mrb[0].mxu0
  %v7129 = vadd.f32 0.0, %v7128
  %v7130 = vpop.f32.mrb[0].mxu0
  %v7131 = vpop.f32.mrb[0].mxu0
  %v7132 = vpop.f32.mrb[0].mxu0
  %7133 = vdwg.mxu0
  %v7134 = vmul.f32 %v7129, 0.35355338
  %v7135 = vadd.f32 %v7134, %v2753
  %v7136 = vsel %vm250, %v7135, -inf
  %7137 = vmax.xlane.f32.xlu0 %v7136
  %v7138 = vpop.xlane.xlu0 %7137
  %v7139 = vsub.f32 %v7135, %v7138
  %v7140 = vmul.f32 %v7139, 1.442695
  %v7141 = vpow.pop %v7140
  %v7142 = vsel %vm250, %v7141, 0.0
  %7143 = vadd.xlane.f32.xlu0 %v7142
  %v7144 = vpop.xlane.xlu0 %7143
  %v7145 = vrcp.pop %v7144
  %v7146 = vmul.f32 %v7141, %v7145
  %v7147 = vpack.c.bf16 %v7146, %v7146
  %7148 = vrot.lane.b32.xlu0 %v6973, 56
  %v7149 = vpop.permute.xlu0 %7148
  %v7151 = vsel %vm265, %v7147, 0
  %v7154 = vand.u32 %v7149, %v272
  %7156 = vmatprep.subr.bf16.mxu0 0
  %7157 = vmatpush1.bf16.msra.mxu0 %v7154
  %7158 = vmatprep.subr.bf16.mxu0 0
  %7159 = vmatpush1.bf16.msra.mxu0 0
  %7160 = vmatprep.subr.bf16.mxu0 0
  %7161 = vmatpush1.bf16.msra.mxu0 0
  %7162 = vmatprep.subr.bf16.mxu0 0
  %7163 = vmatpush1.bf16.msra.mxu0 0
  %7164 = vmatprep.subr.bf16.mxu0 0
  %7165 = vmatpush1.bf16.msra.mxu0 0
  %7166 = vmatprep.subr.bf16.mxu0 0
  %7167 = vmatpush1.bf16.msra.mxu0 0
  %7168 = vmatprep.subr.bf16.mxu0 0
  %7169 = vmatpush1.bf16.msra.mxu0 0
  %7170 = vmatprep.subr.bf16.mxu0 0
  %7171 = vmatpush1.bf16.msra.mxu0 0
  %7172 = vmatprep.subr.bf16.mxu0 0
  %7173 = vmatpush1.bf16.msra.mxu0 0
  %7174 = vmatprep.subr.bf16.mxu0 0
  %7175 = vmatpush1.bf16.msra.mxu0 0
  %7176 = vmatprep.subr.bf16.mxu0 0
  %7177 = vmatpush1.bf16.msra.mxu0 0
  %7178 = vmatprep.subr.bf16.mxu0 0
  %7179 = vmatpush1.bf16.msra.mxu0 0
  %7180 = vmatprep.subr.bf16.mxu0 0
  %7181 = vmatpush1.bf16.msra.mxu0 0
  %7182 = vmatprep.subr.bf16.mxu0 0
  %7183 = vmatpush1.bf16.msra.mxu0 0
  %7184 = vmatprep.subr.bf16.mxu0 0
  %7185 = vmatpush1.bf16.msra.mxu0 0
  %7186 = vmatprep.subr.bf16.mxu0 0
  %7187 = vmatpush1.bf16.msra.mxu0 0
  %7188 = vmatprep.mubr.bf16.mxu0 0
  %7189 = vmatmul.mubr.bf16.gmra.mrb[0].mxu0 %v7151
  %v7190 = vpop.f32.mrb[0].mxu0
  %v7191 = vadd.f32 0.0, %v7190
  %v7192 = vpop.f32.mrb[0].mxu0
  %v7193 = vpop.f32.mrb[0].mxu0
  %v7194 = vpop.f32.mrb[0].mxu0
  %7195 = vdwg.mxu0
  %7196 = vrot.lane.b32.xlu0 %v6973, 112
  %v7197 = vpop.permute.xlu0 %7196
  %7198 = vrot.lane.b32.xlu0 %v6973, 80
  %v7199 = vpop.permute.xlu0 %7198
  %v7201 = vsel %vm60, %v7197, 0
  %v7204 = vsel %vm60, %v7199, 0
  %7206 = vmatprep.subr.bf16.mxu0 0
  %7207 = vmatpush1.bf16.xpose.msra.mxu0 %v7204
  %7208 = vmatprep.subr.bf16.mxu0 0
  %7209 = vmatpush1.bf16.xpose.msra.mxu0 0
  %7210 = vmatprep.subr.bf16.mxu0 0
  %7211 = vmatpush1.bf16.xpose.msra.mxu0 0
  %7212 = vmatprep.subr.bf16.mxu0 0
  %7213 = vmatpush1.bf16.xpose.msra.mxu0 0
  %7214 = vmatprep.subr.bf16.mxu0 0
  %7215 = vmatpush1.bf16.xpose.msra.mxu0 0
  %7216 = vmatprep.subr.bf16.mxu0 0
  %7217 = vmatpush1.bf16.xpose.msra.mxu0 0
  %7218 = vmatprep.subr.bf16.mxu0 0
  %7219 = vmatpush1.bf16.xpose.msra.mxu0 0
  %7220 = vmatprep.subr.bf16.mxu0 0
  %7221 = vmatpush1.bf16.xpose.msra.mxu0 0
  %7222 = vmatprep.subr.bf16.mxu0 0
  %7223 = vmatpush1.bf16.xpose.msra.mxu0 0
  %7224 = vmatprep.subr.bf16.mxu0 0
  %7225 = vmatpush1.bf16.xpose.msra.mxu0 0
  %7226 = vmatprep.subr.bf16.mxu0 0
  %7227 = vmatpush1.bf16.xpose.msra.mxu0 0
  %7228 = vmatprep.subr.bf16.mxu0 0
  %7229 = vmatpush1.bf16.xpose.msra.mxu0 0
  %7230 = vmatprep.subr.bf16.mxu0 0
  %7231 = vmatpush1.bf16.xpose.msra.mxu0 0
  %7232 = vmatprep.subr.bf16.mxu0 0
  %7233 = vmatpush1.bf16.xpose.msra.mxu0 0
  %7234 = vmatprep.subr.bf16.mxu0 0
  %7235 = vmatpush1.bf16.xpose.msra.mxu0 0
  %7236 = vmatprep.subr.bf16.mxu0 0
  %7237 = vmatpush1.bf16.xpose.msra.mxu0 0
  %7238 = vmatprep.mubr.bf16.mxu0 0
  %7239 = vmatmul.mubr.bf16.gmra.mrb[0].mxu0 %v7201
  %v7240 = vpop.f32.mrb[0].mxu0
  %v7241 = vadd.f32 0.0, %v7240
  %v7242 = vpop.f32.mrb[0].mxu0
  %v7243 = vpop.f32.mrb[0].mxu0
  %v7244 = vpop.f32.mrb[0].mxu0
  %7245 = vdwg.mxu0
  %v7246 = vmul.f32 %v7241, 0.35355338
  %v7247 = vadd.f32 %v7246, %v2864
  %v7248 = vsel %vm250, %v7247, -inf
  %7249 = vmax.xlane.f32.xlu0 %v7248
  %v7250 = vpop.xlane.xlu0 %7249
  %v7251 = vsub.f32 %v7247, %v7250
  %v7252 = vmul.f32 %v7251, 1.442695
  %v7253 = vpow.pop %v7252
  %v7254 = vsel %vm250, %v7253, 0.0
  %7255 = vadd.xlane.f32.xlu0 %v7254
  %v7256 = vpop.xlane.xlu0 %7255
  %v7257 = vrcp.pop %v7256
  %v7258 = vmul.f32 %v7253, %v7257
  %v7259 = vpack.c.bf16 %v7258, %v7258
  %7260 = vrot.lane.b32.xlu0 %v6973, 48
  %v7261 = vpop.permute.xlu0 %7260
  %v7263 = vsel %vm265, %v7259, 0
  %v7266 = vand.u32 %v7261, %v272
  %7268 = vmatprep.subr.bf16.mxu0 0
  %7269 = vmatpush1.bf16.msra.mxu0 %v7266
  %7270 = vmatprep.subr.bf16.mxu0 0
  %7271 = vmatpush1.bf16.msra.mxu0 0
  %7272 = vmatprep.subr.bf16.mxu0 0
  %7273 = vmatpush1.bf16.msra.mxu0 0
  %7274 = vmatprep.subr.bf16.mxu0 0
  %7275 = vmatpush1.bf16.msra.mxu0 0
  %7276 = vmatprep.subr.bf16.mxu0 0
  %7277 = vmatpush1.bf16.msra.mxu0 0
  %7278 = vmatprep.subr.bf16.mxu0 0
  %7279 = vmatpush1.bf16.msra.mxu0 0
  %7280 = vmatprep.subr.bf16.mxu0 0
  %7281 = vmatpush1.bf16.msra.mxu0 0
  %7282 = vmatprep.subr.bf16.mxu0 0
  %7283 = vmatpush1.bf16.msra.mxu0 0
  %7284 = vmatprep.subr.bf16.mxu0 0
  %7285 = vmatpush1.bf16.msra.mxu0 0
  %7286 = vmatprep.subr.bf16.mxu0 0
  %7287 = vmatpush1.bf16.msra.mxu0 0
  %7288 = vmatprep.subr.bf16.mxu0 0
  %7289 = vmatpush1.bf16.msra.mxu0 0
  %7290 = vmatprep.subr.bf16.mxu0 0
  %7291 = vmatpush1.bf16.msra.mxu0 0
  %7292 = vmatprep.subr.bf16.mxu0 0
  %7293 = vmatpush1.bf16.msra.mxu0 0
  %7294 = vmatprep.subr.bf16.mxu0 0
  %7295 = vmatpush1.bf16.msra.mxu0 0
  %7296 = vmatprep.subr.bf16.mxu0 0
  %7297 = vmatpush1.bf16.msra.mxu0 0
  %7298 = vmatprep.subr.bf16.mxu0 0
  %7299 = vmatpush1.bf16.msra.mxu0 0
  %7300 = vmatprep.mubr.bf16.mxu0 0
  %7301 = vmatmul.mubr.bf16.gmra.mrb[0].mxu0 %v7263
  %v7302 = vpop.f32.mrb[0].mxu0
  %v7303 = vadd.f32 0.0, %v7302
  %v7304 = vpop.f32.mrb[0].mxu0
  %v7305 = vpop.f32.mrb[0].mxu0
  %v7306 = vpop.f32.mrb[0].mxu0
  %7307 = vdwg.mxu0
  %7308 = vrot.lane.b32.xlu0 %v6973, 104
  %v7309 = vpop.permute.xlu0 %7308
  %7310 = vrot.lane.b32.xlu0 %v6973, 72
  %v7311 = vpop.permute.xlu0 %7310
  %v7313 = vsel %vm60, %v7309, 0
  %v7316 = vsel %vm60, %v7311, 0
  %7318 = vmatprep.subr.bf16.mxu0 0
  %7319 = vmatpush1.bf16.xpose.msra.mxu0 %v7316
  %7320 = vmatprep.subr.bf16.mxu0 0
  %7321 = vmatpush1.bf16.xpose.msra.mxu0 0
  %7322 = vmatprep.subr.bf16.mxu0 0
  %7323 = vmatpush1.bf16.xpose.msra.mxu0 0
  %7324 = vmatprep.subr.bf16.mxu0 0
  %7325 = vmatpush1.bf16.xpose.msra.mxu0 0
  %7326 = vmatprep.subr.bf16.mxu0 0
  %7327 = vmatpush1.bf16.xpose.msra.mxu0 0
  %7328 = vmatprep.subr.bf16.mxu0 0
  %7329 = vmatpush1.bf16.xpose.msra.mxu0 0
  %7330 = vmatprep.subr.bf16.mxu0 0
  %7331 = vmatpush1.bf16.xpose.msra.mxu0 0
  %7332 = vmatprep.subr.bf16.mxu0 0
  %7333 = vmatpush1.bf16.xpose.msra.mxu0 0
  %7334 = vmatprep.subr.bf16.mxu0 0
  %7335 = vmatpush1.bf16.xpose.msra.mxu0 0
  %7336 = vmatprep.subr.bf16.mxu0 0
  %7337 = vmatpush1.bf16.xpose.msra.mxu0 0
  %7338 = vmatprep.subr.bf16.mxu0 0
  %7339 = vmatpush1.bf16.xpose.msra.mxu0 0
  %7340 = vmatprep.subr.bf16.mxu0 0
  %7341 = vmatpush1.bf16.xpose.msra.mxu0 0
  %7342 = vmatprep.subr.bf16.mxu0 0
  %7343 = vmatpush1.bf16.xpose.msra.mxu0 0
  %7344 = vmatprep.subr.bf16.mxu0 0
  %7345 = vmatpush1.bf16.xpose.msra.mxu0 0
  %7346 = vmatprep.subr.bf16.mxu0 0
  %7347 = vmatpush1.bf16.xpose.msra.mxu0 0
  %7348 = vmatprep.subr.bf16.mxu0 0
  %7349 = vmatpush1.bf16.xpose.msra.mxu0 0
  %7350 = vmatprep.mubr.bf16.mxu0 0
  %7351 = vmatmul.mubr.bf16.gmra.mrb[0].mxu0 %v7313
  %v7352 = vpop.f32.mrb[0].mxu0
  %v7353 = vadd.f32 0.0, %v7352
  %v7354 = vpop.f32.mrb[0].mxu0
  %v7355 = vpop.f32.mrb[0].mxu0
  %v7356 = vpop.f32.mrb[0].mxu0
  %7357 = vdwg.mxu0
  %v7358 = vmul.f32 %v7353, 0.35355338
  %v7359 = vadd.f32 %v7358, %v2975
  %v7360 = vsel %vm250, %v7359, -inf
  %7361 = vmax.xlane.f32.xlu0 %v7360
  %v7362 = vpop.xlane.xlu0 %7361
  %v7363 = vsub.f32 %v7359, %v7362
  %v7364 = vmul.f32 %v7363, 1.442695
  %v7365 = vpow.pop %v7364
  %v7366 = vsel %vm250, %v7365, 0.0
  %7367 = vadd.xlane.f32.xlu0 %v7366
  %v7368 = vpop.xlane.xlu0 %7367
  %v7369 = vrcp.pop %v7368
  %v7370 = vmul.f32 %v7365, %v7369
  %v7371 = vpack.c.bf16 %v7370, %v7370
  %7372 = vrot.lane.b32.xlu0 %v6973, 40
  %v7373 = vpop.permute.xlu0 %7372
  %v7375 = vsel %vm265, %v7371, 0
  %v7378 = vand.u32 %v7373, %v272
  %7380 = vmatprep.subr.bf16.mxu0 0
  %7381 = vmatpush1.bf16.msra.mxu0 %v7378
  %7382 = vmatprep.subr.bf16.mxu0 0
  %7383 = vmatpush1.bf16.msra.mxu0 0
  %7384 = vmatprep.subr.bf16.mxu0 0
  %7385 = vmatpush1.bf16.msra.mxu0 0
  %7386 = vmatprep.subr.bf16.mxu0 0
  %7387 = vmatpush1.bf16.msra.mxu0 0
  %7388 = vmatprep.subr.bf16.mxu0 0
  %7389 = vmatpush1.bf16.msra.mxu0 0
  %7390 = vmatprep.subr.bf16.mxu0 0
  %7391 = vmatpush1.bf16.msra.mxu0 0
  %7392 = vmatprep.subr.bf16.mxu0 0
  %7393 = vmatpush1.bf16.msra.mxu0 0
  %7394 = vmatprep.subr.bf16.mxu0 0
  %7395 = vmatpush1.bf16.msra.mxu0 0
  %7396 = vmatprep.subr.bf16.mxu0 0
  %7397 = vmatpush1.bf16.msra.mxu0 0
  %7398 = vmatprep.subr.bf16.mxu0 0
  %7399 = vmatpush1.bf16.msra.mxu0 0
  %7400 = vmatprep.subr.bf16.mxu0 0
  %7401 = vmatpush1.bf16.msra.mxu0 0
  %7402 = vmatprep.subr.bf16.mxu0 0
  %7403 = vmatpush1.bf16.msra.mxu0 0
  %7404 = vmatprep.subr.bf16.mxu0 0
  %7405 = vmatpush1.bf16.msra.mxu0 0
  %7406 = vmatprep.subr.bf16.mxu0 0
  %7407 = vmatpush1.bf16.msra.mxu0 0
  %7408 = vmatprep.subr.bf16.mxu0 0
  %7409 = vmatpush1.bf16.msra.mxu0 0
  %7410 = vmatprep.subr.bf16.mxu0 0
  %7411 = vmatpush1.bf16.msra.mxu0 0
  %7412 = vmatprep.mubr.bf16.mxu0 0
  %7413 = vmatmul.mubr.bf16.gmra.mrb[0].mxu0 %v7375
  %v7414 = vpop.f32.mrb[0].mxu0
  %v7415 = vadd.f32 0.0, %v7414
  %v7416 = vpop.f32.mrb[0].mxu0
  %v7417 = vpop.f32.mrb[0].mxu0
  %v7418 = vpop.f32.mrb[0].mxu0
  %7419 = vdwg.mxu0
  %7421 = vrot.lane.b32.xlu0 %v7191, 8
  %v7422 = vpop.permute.xlu0 %7421
  %7425 = vrot.lane.b32.xlu0 %v7303, 16
  %v7426 = vpop.permute.xlu0 %7425
  %7429 = vrot.lane.b32.xlu0 %v7415, 24
  %v7430 = vpop.permute.xlu0 %7429
  %v7432 = vsel %vm60, %v7079, %v7422
  %v7433 = vsel %vm662, %v7432, %v7426
  %v7434 = vsel %vm664, %v7433, %v7430
  %v7435 = vpack.c.bf16 %v7434, %v7434
  %v7437 = vunpack.c.l.b16 %v7435
  %v7438 = vpack.c.b16 %v7437, %v7437
  %v7440 = vshll.u32 %v7438, 16
  %v7442 = vrot.slane %v7440, 5
  %v7443 = vshrl.u32 %v7438, 16
  %v7445 = vrot.slane %v7443, 4
  %v7446 = vor.u32 %v7445, %v7442
  %v7447 = vrot.slane %v7446, 4
  %v7450 = vld [vmem:[#allocation2 + $0x4] sm:$0x8]
  %v7451 = vsel %vm3068, %v7442, %v7450
  %7452 = vst [vmem:[#allocation2 + $0x4] sm:$0x8] %v7451
  %7453 = vst.msk [vmem:[#allocation2 + $0x8] sm:$0x1] %vm3072, %v7447
  %v7454 = vpack.c.bf16 %v4577, %v4577
  %v7456 = vrot.slane %v7454, 1
  %7457 = vrot.lane.b32.xlu0 %v7456, 96
  %v7458 = vpop.permute.xlu0 %7457
  %v7460 = vsel %vm60, %v7456, 0
  %v7463 = vsel %vm60, %v7458, 0
  %7465 = vmatprep.subr.bf16.mxu0 0
  %7466 = vmatpush1.bf16.xpose.msra.mxu0 %v7463
  %7467 = vmatprep.subr.bf16.mxu0 0
  %7468 = vmatpush1.bf16.xpose.msra.mxu0 0
  %7469 = vmatprep.subr.bf16.mxu0 0
  %7470 = vmatpush1.bf16.xpose.msra.mxu0 0
  %7471 = vmatprep.subr.bf16.mxu0 0
  %7472 = vmatpush1.bf16.xpose.msra.mxu0 0
  %7473 = vmatprep.subr.bf16.mxu0 0
  %7474 = vmatpush1.bf16.xpose.msra.mxu0 0
  %7475 = vmatprep.subr.bf16.mxu0 0
  %7476 = vmatpush1.bf16.xpose.msra.mxu0 0
  %7477 = vmatprep.subr.bf16.mxu0 0
  %7478 = vmatpush1.bf16.xpose.msra.mxu0 0
  %7479 = vmatprep.subr.bf16.mxu0 0
  %7480 = vmatpush1.bf16.xpose.msra.mxu0 0
  %7481 = vmatprep.subr.bf16.mxu0 0
  %7482 = vmatpush1.bf16.xpose.msra.mxu0 0
  %7483 = vmatprep.subr.bf16.mxu0 0
  %7484 = vmatpush1.bf16.xpose.msra.mxu0 0
  %7485 = vmatprep.subr.bf16.mxu0 0
  %7486 = vmatpush1.bf16.xpose.msra.mxu0 0
  %7487 = vmatprep.subr.bf16.mxu0 0
  %7488 = vmatpush1.bf16.xpose.msra.mxu0 0
  %7489 = vmatprep.subr.bf16.mxu0 0
  %7490 = vmatpush1.bf16.xpose.msra.mxu0 0
  %7491 = vmatprep.subr.bf16.mxu0 0
  %7492 = vmatpush1.bf16.xpose.msra.mxu0 0
  %7493 = vmatprep.subr.bf16.mxu0 0
  %7494 = vmatpush1.bf16.xpose.msra.mxu0 0
  %7495 = vmatprep.subr.bf16.mxu0 0
  %7496 = vmatpush1.bf16.xpose.msra.mxu0 0
  %7497 = vmatprep.mubr.bf16.mxu0 0
  %7498 = vmatmul.mubr.bf16.gmra.mrb[0].mxu0 %v7460
  %v7499 = vpop.f32.mrb[0].mxu0
  %v7500 = vadd.f32 0.0, %v7499
  %v7501 = vpop.f32.mrb[0].mxu0
  %v7502 = vpop.f32.mrb[0].mxu0
  %v7503 = vpop.f32.mrb[0].mxu0
  %7504 = vdwg.mxu0
  %v7505 = vmul.f32 %v7500, 0.35355338
  %v7506 = vadd.f32 %v7505, %v3125
  %v7507 = vsel %vm250, %v7506, -inf
  %7508 = vmax.xlane.f32.xlu0 %v7507
  %v7509 = vpop.xlane.xlu0 %7508
  %v7510 = vsub.f32 %v7506, %v7509
  %v7511 = vmul.f32 %v7510, 1.442695
  %v7512 = vpow.pop %v7511
  %v7513 = vsel %vm250, %v7512, 0.0
  %7514 = vadd.xlane.f32.xlu0 %v7513
  %v7515 = vpop.xlane.xlu0 %7514
  %v7516 = vrcp.pop %v7515
  %v7517 = vmul.f32 %v7512, %v7516
  %v7518 = vpack.c.bf16 %v7517, %v7517
  %7519 = vrot.lane.b32.xlu0 %v7456, 64
  %v7520 = vpop.permute.xlu0 %7519
  %v7522 = vsel %vm265, %v7518, 0
  %v7525 = vand.u32 %v7520, %v272
  %7527 = vmatprep.subr.bf16.mxu0 0
  %7528 = vmatpush1.bf16.msra.mxu0 %v7525
  %7529 = vmatprep.subr.bf16.mxu0 0
  %7530 = vmatpush1.bf16.msra.mxu0 0
  %7531 = vmatprep.subr.bf16.mxu0 0
  %7532 = vmatpush1.bf16.msra.mxu0 0
  %7533 = vmatprep.subr.bf16.mxu0 0
  %7534 = vmatpush1.bf16.msra.mxu0 0
  %7535 = vmatprep.subr.bf16.mxu0 0
  %7536 = vmatpush1.bf16.msra.mxu0 0
  %7537 = vmatprep.subr.bf16.mxu0 0
  %7538 = vmatpush1.bf16.msra.mxu0 0
  %7539 = vmatprep.subr.bf16.mxu0 0
  %7540 = vmatpush1.bf16.msra.mxu0 0
  %7541 = vmatprep.subr.bf16.mxu0 0
  %7542 = vmatpush1.bf16.msra.mxu0 0
  %7543 = vmatprep.subr.bf16.mxu0 0
  %7544 = vmatpush1.bf16.msra.mxu0 0
  %7545 = vmatprep.subr.bf16.mxu0 0
  %7546 = vmatpush1.bf16.msra.mxu0 0
  %7547 = vmatprep.subr.bf16.mxu0 0
  %7548 = vmatpush1.bf16.msra.mxu0 0
  %7549 = vmatprep.subr.bf16.mxu0 0
  %7550 = vmatpush1.bf16.msra.mxu0 0
  %7551 = vmatprep.subr.bf16.mxu0 0
  %7552 = vmatpush1.bf16.msra.mxu0 0
  %7553 = vmatprep.subr.bf16.mxu0 0
  %7554 = vmatpush1.bf16.msra.mxu0 0
  %7555 = vmatprep.subr.bf16.mxu0 0
  %7556 = vmatpush1.bf16.msra.mxu0 0
  %7557 = vmatprep.subr.bf16.mxu0 0
  %7558 = vmatpush1.bf16.msra.mxu0 0
  %7559 = vmatprep.mubr.bf16.mxu0 0
  %7560 = vmatmul.mubr.bf16.gmra.mrb[0].mxu0 %v7522
  %v7561 = vpop.f32.mrb[0].mxu0
  %v7562 = vadd.f32 0.0, %v7561
  %v7563 = vpop.f32.mrb[0].mxu0
  %v7564 = vpop.f32.mrb[0].mxu0
  %v7565 = vpop.f32.mrb[0].mxu0
  %7566 = vdwg.mxu0
  %7567 = vrot.lane.b32.xlu0 %v7456, 120
  %v7568 = vpop.permute.xlu0 %7567
  %7569 = vrot.lane.b32.xlu0 %v7456, 88
  %v7570 = vpop.permute.xlu0 %7569
  %v7572 = vsel %vm60, %v7568, 0
  %v7575 = vsel %vm60, %v7570, 0
  %7577 = vmatprep.subr.bf16.mxu0 0
  %7578 = vmatpush1.bf16.xpose.msra.mxu0 %v7575
  %7579 = vmatprep.subr.bf16.mxu0 0
  %7580 = vmatpush1.bf16.xpose.msra.mxu0 0
  %7581 = vmatprep.subr.bf16.mxu0 0
  %7582 = vmatpush1.bf16.xpose.msra.mxu0 0
  %7583 = vmatprep.subr.bf16.mxu0 0
  %7584 = vmatpush1.bf16.xpose.msra.mxu0 0
  %7585 = vmatprep.subr.bf16.mxu0 0
  %7586 = vmatpush1.bf16.xpose.msra.mxu0 0
  %7587 = vmatprep.subr.bf16.mxu0 0
  %7588 = vmatpush1.bf16.xpose.msra.mxu0 0
  %7589 = vmatprep.subr.bf16.mxu0 0
  %7590 = vmatpush1.bf16.xpose.msra.mxu0 0
  %7591 = vmatprep.subr.bf16.mxu0 0
  %7592 = vmatpush1.bf16.xpose.msra.mxu0 0
  %7593 = vmatprep.subr.bf16.mxu0 0
  %7594 = vmatpush1.bf16.xpose.msra.mxu0 0
  %7595 = vmatprep.subr.bf16.mxu0 0
  %7596 = vmatpush1.bf16.xpose.msra.mxu0 0
  %7597 = vmatprep.subr.bf16.mxu0 0
  %7598 = vmatpush1.bf16.xpose.msra.mxu0 0
  %7599 = vmatprep.subr.bf16.mxu0 0
  %7600 = vmatpush1.bf16.xpose.msra.mxu0 0
  %7601 = vmatprep.subr.bf16.mxu0 0
  %7602 = vmatpush1.bf16.xpose.msra.mxu0 0
  %7603 = vmatprep.subr.bf16.mxu0 0
  %7604 = vmatpush1.bf16.xpose.msra.mxu0 0
  %7605 = vmatprep.subr.bf16.mxu0 0
  %7606 = vmatpush1.bf16.xpose.msra.mxu0 0
  %7607 = vmatprep.subr.bf16.mxu0 0
  %7608 = vmatpush1.bf16.xpose.msra.mxu0 0
  %7609 = vmatprep.mubr.bf16.mxu0 0
  %7610 = vmatmul.mubr.bf16.gmra.mrb[0].mxu0 %v7572
  %v7611 = vpop.f32.mrb[0].mxu0
  %v7612 = vadd.f32 0.0, %v7611
  %v7613 = vpop.f32.mrb[0].mxu0
  %v7614 = vpop.f32.mrb[0].mxu0
  %v7615 = vpop.f32.mrb[0].mxu0
  %7616 = vdwg.mxu0
  %v7617 = vmul.f32 %v7612, 0.35355338
  %v7618 = vadd.f32 %v7617, %v3236
  %v7619 = vsel %vm250, %v7618, -inf
  %7620 = vmax.xlane.f32.xlu0 %v7619
  %v7621 = vpop.xlane.xlu0 %7620
  %v7622 = vsub.f32 %v7618, %v7621
  %v7623 = vmul.f32 %v7622, 1.442695
  %v7624 = vpow.pop %v7623
  %v7625 = vsel %vm250, %v7624, 0.0
  %7626 = vadd.xlane.f32.xlu0 %v7625
  %v7627 = vpop.xlane.xlu0 %7626
  %v7628 = vrcp.pop %v7627
  %v7629 = vmul.f32 %v7624, %v7628
  %v7630 = vpack.c.bf16 %v7629, %v7629
  %7631 = vrot.lane.b32.xlu0 %v7456, 56
  %v7632 = vpop.permute.xlu0 %7631
  %v7634 = vsel %vm265, %v7630, 0
  %v7637 = vand.u32 %v7632, %v272
  %7639 = vmatprep.subr.bf16.mxu0 0
  %7640 = vmatpush1.bf16.msra.mxu0 %v7637
  %7641 = vmatprep.subr.bf16.mxu0 0
  %7642 = vmatpush1.bf16.msra.mxu0 0
  %7643 = vmatprep.subr.bf16.mxu0 0
  %7644 = vmatpush1.bf16.msra.mxu0 0
  %7645 = vmatprep.subr.bf16.mxu0 0
  %7646 = vmatpush1.bf16.msra.mxu0 0
  %7647 = vmatprep.subr.bf16.mxu0 0
  %7648 = vmatpush1.bf16.msra.mxu0 0
  %7649 = vmatprep.subr.bf16.mxu0 0
  %7650 = vmatpush1.bf16.msra.mxu0 0
  %7651 = vmatprep.subr.bf16.mxu0 0
  %7652 = vmatpush1.bf16.msra.mxu0 0
  %7653 = vmatprep.subr.bf16.mxu0 0
  %7654 = vmatpush1.bf16.msra.mxu0 0
  %7655 = vmatprep.subr.bf16.mxu0 0
  %7656 = vmatpush1.bf16.msra.mxu0 0
  %7657 = vmatprep.subr.bf16.mxu0 0
  %7658 = vmatpush1.bf16.msra.mxu0 0
  %7659 = vmatprep.subr.bf16.mxu0 0
  %7660 = vmatpush1.bf16.msra.mxu0 0
  %7661 = vmatprep.subr.bf16.mxu0 0
  %7662 = vmatpush1.bf16.msra.mxu0 0
  %7663 = vmatprep.subr.bf16.mxu0 0
  %7664 = vmatpush1.bf16.msra.mxu0 0
  %7665 = vmatprep.subr.bf16.mxu0 0
  %7666 = vmatpush1.bf16.msra.mxu0 0
  %7667 = vmatprep.subr.bf16.mxu0 0
  %7668 = vmatpush1.bf16.msra.mxu0 0
  %7669 = vmatprep.subr.bf16.mxu0 0
  %7670 = vmatpush1.bf16.msra.mxu0 0
  %7671 = vmatprep.mubr.bf16.mxu0 0
  %7672 = vmatmul.mubr.bf16.gmra.mrb[0].mxu0 %v7634
  %v7673 = vpop.f32.mrb[0].mxu0
  %v7674 = vadd.f32 0.0, %v7673
  %v7675 = vpop.f32.mrb[0].mxu0
  %v7676 = vpop.f32.mrb[0].mxu0
  %v7677 = vpop.f32.mrb[0].mxu0
  %7678 = vdwg.mxu0
  %7679 = vrot.lane.b32.xlu0 %v7456, 112
  %v7680 = vpop.permute.xlu0 %7679
  %7681 = vrot.lane.b32.xlu0 %v7456, 80
  %v7682 = vpop.permute.xlu0 %7681
  %v7684 = vsel %vm60, %v7680, 0
  %v7687 = vsel %vm60, %v7682, 0
  %7689 = vmatprep.subr.bf16.mxu0 0
  %7690 = vmatpush1.bf16.xpose.msra.mxu0 %v7687
  %7691 = vmatprep.subr.bf16.mxu0 0
  %7692 = vmatpush1.bf16.xpose.msra.mxu0 0
  %7693 = vmatprep.subr.bf16.mxu0 0
  %7694 = vmatpush1.bf16.xpose.msra.mxu0 0
  %7695 = vmatprep.subr.bf16.mxu0 0
  %7696 = vmatpush1.bf16.xpose.msra.mxu0 0
  %7697 = vmatprep.subr.bf16.mxu0 0
  %7698 = vmatpush1.bf16.xpose.msra.mxu0 0
  %7699 = vmatprep.subr.bf16.mxu0 0
  %7700 = vmatpush1.bf16.xpose.msra.mxu0 0
  %7701 = vmatprep.subr.bf16.mxu0 0
  %7702 = vmatpush1.bf16.xpose.msra.mxu0 0
  %7703 = vmatprep.subr.bf16.mxu0 0
  %7704 = vmatpush1.bf16.xpose.msra.mxu0 0
  %7705 = vmatprep.subr.bf16.mxu0 0
  %7706 = vmatpush1.bf16.xpose.msra.mxu0 0
  %7707 = vmatprep.subr.bf16.mxu0 0
  %7708 = vmatpush1.bf16.xpose.msra.mxu0 0
  %7709 = vmatprep.subr.bf16.mxu0 0
  %7710 = vmatpush1.bf16.xpose.msra.mxu0 0
  %7711 = vmatprep.subr.bf16.mxu0 0
  %7712 = vmatpush1.bf16.xpose.msra.mxu0 0
  %7713 = vmatprep.subr.bf16.mxu0 0
  %7714 = vmatpush1.bf16.xpose.msra.mxu0 0
  %7715 = vmatprep.subr.bf16.mxu0 0
  %7716 = vmatpush1.bf16.xpose.msra.mxu0 0
  %7717 = vmatprep.subr.bf16.mxu0 0
  %7718 = vmatpush1.bf16.xpose.msra.mxu0 0
  %7719 = vmatprep.subr.bf16.mxu0 0
  %7720 = vmatpush1.bf16.xpose.msra.mxu0 0
  %7721 = vmatprep.mubr.bf16.mxu0 0
  %7722 = vmatmul.mubr.bf16.gmra.mrb[0].mxu0 %v7684
  %v7723 = vpop.f32.mrb[0].mxu0
  %v7724 = vadd.f32 0.0, %v7723
  %v7725 = vpop.f32.mrb[0].mxu0
  %v7726 = vpop.f32.mrb[0].mxu0
  %v7727 = vpop.f32.mrb[0].mxu0
  %7728 = vdwg.mxu0
  %v7729 = vmul.f32 %v7724, 0.35355338
  %v7730 = vadd.f32 %v7729, %v3347
  %v7731 = vsel %vm250, %v7730, -inf
  %7732 = vmax.xlane.f32.xlu0 %v7731
  %v7733 = vpop.xlane.xlu0 %7732
  %v7734 = vsub.f32 %v7730, %v7733
  %v7735 = vmul.f32 %v7734, 1.442695
  %v7736 = vpow.pop %v7735
  %v7737 = vsel %vm250, %v7736, 0.0
  %7738 = vadd.xlane.f32.xlu0 %v7737
  %v7739 = vpop.xlane.xlu0 %7738
  %v7740 = vrcp.pop %v7739
  %v7741 = vmul.f32 %v7736, %v7740
  %v7742 = vpack.c.bf16 %v7741, %v7741
  %7743 = vrot.lane.b32.xlu0 %v7456, 48
  %v7744 = vpop.permute.xlu0 %7743
  %v7746 = vsel %vm265, %v7742, 0
  %v7749 = vand.u32 %v7744, %v272
  %7751 = vmatprep.subr.bf16.mxu0 0
  %7752 = vmatpush1.bf16.msra.mxu0 %v7749
  %7753 = vmatprep.subr.bf16.mxu0 0
  %7754 = vmatpush1.bf16.msra.mxu0 0
  %7755 = vmatprep.subr.bf16.mxu0 0
  %7756 = vmatpush1.bf16.msra.mxu0 0
  %7757 = vmatprep.subr.bf16.mxu0 0
  %7758 = vmatpush1.bf16.msra.mxu0 0
  %7759 = vmatprep.subr.bf16.mxu0 0
  %7760 = vmatpush1.bf16.msra.mxu0 0
  %7761 = vmatprep.subr.bf16.mxu0 0
  %7762 = vmatpush1.bf16.msra.mxu0 0
  %7763 = vmatprep.subr.bf16.mxu0 0
  %7764 = vmatpush1.bf16.msra.mxu0 0
  %7765 = vmatprep.subr.bf16.mxu0 0
  %7766 = vmatpush1.bf16.msra.mxu0 0
  %7767 = vmatprep.subr.bf16.mxu0 0
  %7768 = vmatpush1.bf16.msra.mxu0 0
  %7769 = vmatprep.subr.bf16.mxu0 0
  %7770 = vmatpush1.bf16.msra.mxu0 0
  %7771 = vmatprep.subr.bf16.mxu0 0
  %7772 = vmatpush1.bf16.msra.mxu0 0
  %7773 = vmatprep.subr.bf16.mxu0 0
  %7774 = vmatpush1.bf16.msra.mxu0 0
  %7775 = vmatprep.subr.bf16.mxu0 0
  %7776 = vmatpush1.bf16.msra.mxu0 0
  %7777 = vmatprep.subr.bf16.mxu0 0
  %7778 = vmatpush1.bf16.msra.mxu0 0
  %7779 = vmatprep.subr.bf16.mxu0 0
  %7780 = vmatpush1.bf16.msra.mxu0 0
  %7781 = vmatprep.subr.bf16.mxu0 0
  %7782 = vmatpush1.bf16.msra.mxu0 0
  %7783 = vmatprep.mubr.bf16.mxu0 0
  %7784 = vmatmul.mubr.bf16.gmra.mrb[0].mxu0 %v7746
  %v7785 = vpop.f32.mrb[0].mxu0
  %v7786 = vadd.f32 0.0, %v7785
  %v7787 = vpop.f32.mrb[0].mxu0
  %v7788 = vpop.f32.mrb[0].mxu0
  %v7789 = vpop.f32.mrb[0].mxu0
  %7790 = vdwg.mxu0
  %7791 = vrot.lane.b32.xlu0 %v7456, 104
  %v7792 = vpop.permute.xlu0 %7791
  %7793 = vrot.lane.b32.xlu0 %v7456, 72
  %v7794 = vpop.permute.xlu0 %7793
  %v7796 = vsel %vm60, %v7792, 0
  %v7799 = vsel %vm60, %v7794, 0
  %7801 = vmatprep.subr.bf16.mxu0 0
  %7802 = vmatpush1.bf16.xpose.msra.mxu0 %v7799
  %7803 = vmatprep.subr.bf16.mxu0 0
  %7804 = vmatpush1.bf16.xpose.msra.mxu0 0
  %7805 = vmatprep.subr.bf16.mxu0 0
  %7806 = vmatpush1.bf16.xpose.msra.mxu0 0
  %7807 = vmatprep.subr.bf16.mxu0 0
  %7808 = vmatpush1.bf16.xpose.msra.mxu0 0
  %7809 = vmatprep.subr.bf16.mxu0 0
  %7810 = vmatpush1.bf16.xpose.msra.mxu0 0
  %7811 = vmatprep.subr.bf16.mxu0 0
  %7812 = vmatpush1.bf16.xpose.msra.mxu0 0
  %7813 = vmatprep.subr.bf16.mxu0 0
  %7814 = vmatpush1.bf16.xpose.msra.mxu0 0
  %7815 = vmatprep.subr.bf16.mxu0 0
  %7816 = vmatpush1.bf16.xpose.msra.mxu0 0
  %7817 = vmatprep.subr.bf16.mxu0 0
  %7818 = vmatpush1.bf16.xpose.msra.mxu0 0
  %7819 = vmatprep.subr.bf16.mxu0 0
  %7820 = vmatpush1.bf16.xpose.msra.mxu0 0
  %7821 = vmatprep.subr.bf16.mxu0 0
  %7822 = vmatpush1.bf16.xpose.msra.mxu0 0
  %7823 = vmatprep.subr.bf16.mxu0 0
  %7824 = vmatpush1.bf16.xpose.msra.mxu0 0
  %7825 = vmatprep.subr.bf16.mxu0 0
  %7826 = vmatpush1.bf16.xpose.msra.mxu0 0
  %7827 = vmatprep.subr.bf16.mxu0 0
  %7828 = vmatpush1.bf16.xpose.msra.mxu0 0
  %7829 = vmatprep.subr.bf16.mxu0 0
  %7830 = vmatpush1.bf16.xpose.msra.mxu0 0
  %7831 = vmatprep.subr.bf16.mxu0 0
  %7832 = vmatpush1.bf16.xpose.msra.mxu0 0
  %7833 = vmatprep.mubr.bf16.mxu0 0
  %7834 = vmatmul.mubr.bf16.gmra.mrb[0].mxu0 %v7796
  %v7835 = vpop.f32.mrb[0].mxu0
  %v7836 = vadd.f32 0.0, %v7835
  %v7837 = vpop.f32.mrb[0].mxu0
  %v7838 = vpop.f32.mrb[0].mxu0
  %v7839 = vpop.f32.mrb[0].mxu0
  %7840 = vdwg.mxu0
  %v7841 = vmul.f32 %v7836, 0.35355338
  %v7842 = vadd.f32 %v7841, %v3458
  %v7843 = vsel %vm250, %v7842, -inf
  %7844 = vmax.xlane.f32.xlu0 %v7843
  %v7845 = vpop.xlane.xlu0 %7844
  %v7846 = vsub.f32 %v7842, %v7845
  %v7847 = vmul.f32 %v7846, 1.442695
  %v7848 = vpow.pop %v7847
  %v7849 = vsel %vm250, %v7848, 0.0
  %7850 = vadd.xlane.f32.xlu0 %v7849
  %v7851 = vpop.xlane.xlu0 %7850
  %v7852 = vrcp.pop %v7851
  %v7853 = vmul.f32 %v7848, %v7852
  %v7854 = vpack.c.bf16 %v7853, %v7853
  %7855 = vrot.lane.b32.xlu0 %v7456, 40
  %v7856 = vpop.permute.xlu0 %7855
  %v7858 = vsel %vm265, %v7854, 0
  %v7861 = vand.u32 %v7856, %v272
  %7863 = vmatprep.subr.bf16.mxu0 0
  %7864 = vmatpush1.bf16.msra.mxu0 %v7861
  %7865 = vmatprep.subr.bf16.mxu0 0
  %7866 = vmatpush1.bf16.msra.mxu0 0
  %7867 = vmatprep.subr.bf16.mxu0 0
  %7868 = vmatpush1.bf16.msra.mxu0 0
  %7869 = vmatprep.subr.bf16.mxu0 0
  %7870 = vmatpush1.bf16.msra.mxu0 0
  %7871 = vmatprep.subr.bf16.mxu0 0
  %7872 = vmatpush1.bf16.msra.mxu0 0
  %7873 = vmatprep.subr.bf16.mxu0 0
  %7874 = vmatpush1.bf16.msra.mxu0 0
  %7875 = vmatprep.subr.bf16.mxu0 0
  %7876 = vmatpush1.bf16.msra.mxu0 0
  %7877 = vmatprep.subr.bf16.mxu0 0
  %7878 = vmatpush1.bf16.msra.mxu0 0
  %7879 = vmatprep.subr.bf16.mxu0 0
  %7880 = vmatpush1.bf16.msra.mxu0 0
  %7881 = vmatprep.subr.bf16.mxu0 0
  %7882 = vmatpush1.bf16.msra.mxu0 0
  %7883 = vmatprep.subr.bf16.mxu0 0
  %7884 = vmatpush1.bf16.msra.mxu0 0
  %7885 = vmatprep.subr.bf16.mxu0 0
  %7886 = vmatpush1.bf16.msra.mxu0 0
  %7887 = vmatprep.subr.bf16.mxu0 0
  %7888 = vmatpush1.bf16.msra.mxu0 0
  %7889 = vmatprep.subr.bf16.mxu0 0
  %7890 = vmatpush1.bf16.msra.mxu0 0
  %7891 = vmatprep.subr.bf16.mxu0 0
  %7892 = vmatpush1.bf16.msra.mxu0 0
  %7893 = vmatprep.subr.bf16.mxu0 0
  %7894 = vmatpush1.bf16.msra.mxu0 0
  %7895 = vmatprep.mubr.bf16.mxu0 0
  %7896 = vmatmul.mubr.bf16.gmra.mrb[0].mxu0 %v7858
  %v7897 = vpop.f32.mrb[0].mxu0
  %v7898 = vadd.f32 0.0, %v7897
  %v7899 = vpop.f32.mrb[0].mxu0
  %v7900 = vpop.f32.mrb[0].mxu0
  %v7901 = vpop.f32.mrb[0].mxu0
  %7902 = vdwg.mxu0
  %7904 = vrot.lane.b32.xlu0 %v7674, 8
  %v7905 = vpop.permute.xlu0 %7904
  %7908 = vrot.lane.b32.xlu0 %v7786, 16
  %v7909 = vpop.permute.xlu0 %7908
  %7912 = vrot.lane.b32.xlu0 %v7898, 24
  %v7913 = vpop.permute.xlu0 %7912
  %v7915 = vsel %vm60, %v7562, %v7905
  %v7916 = vsel %vm662, %v7915, %v7909
  %v7917 = vsel %vm664, %v7916, %v7913
  %v7918 = vpack.c.bf16 %v7917, %v7917
  %v7920 = vunpack.c.l.b16 %v7918
  %v7921 = vpack.c.b16 %v7920, %v7920
  %v7922 = vrot.slane %v7921, 7
  %v7924 = vld [vmem:[#allocation2 + $0x8] sm:$0x6]
  %v7925 = vsel %vm3541, %v7922, %v7924
  %7926 = vst [vmem:[#allocation2 + $0x8] sm:$0x6] %v7925
  %v7928 = vshrl.u32 %v7454, 16
  %v7930 = vrot.slane %v7928, 2
  %v7931 = vshll.u32 %v7454, 16
  %v7933 = vrot.slane %v7931, 3
  %v7934 = vor.u32 %v7930, %v7933
  %7935 = vrot.lane.b32.xlu0 %v7934, 96
  %v7936 = vpop.permute.xlu0 %7935
  %v7938 = vsel %vm60, %v7934, 0
  %v7941 = vsel %vm60, %v7936, 0
  %7943 = vmatprep.subr.bf16.mxu0 0
  %7944 = vmatpush1.bf16.xpose.msra.mxu0 %v7941
  %7945 = vmatprep.subr.bf16.mxu0 0
  %7946 = vmatpush1.bf16.xpose.msra.mxu0 0
  %7947 = vmatprep.subr.bf16.mxu0 0
  %7948 = vmatpush1.bf16.xpose.msra.mxu0 0
  %7949 = vmatprep.subr.bf16.mxu0 0
  %7950 = vmatpush1.bf16.xpose.msra.mxu0 0
  %7951 = vmatprep.subr.bf16.mxu0 0
  %7952 = vmatpush1.bf16.xpose.msra.mxu0 0
  %7953 = vmatprep.subr.bf16.mxu0 0
  %7954 = vmatpush1.bf16.xpose.msra.mxu0 0
  %7955 = vmatprep.subr.bf16.mxu0 0
  %7956 = vmatpush1.bf16.xpose.msra.mxu0 0
  %7957 = vmatprep.subr.bf16.mxu0 0
  %7958 = vmatpush1.bf16.xpose.msra.mxu0 0
  %7959 = vmatprep.subr.bf16.mxu0 0
  %7960 = vmatpush1.bf16.xpose.msra.mxu0 0
  %7961 = vmatprep.subr.bf16.mxu0 0
  %7962 = vmatpush1.bf16.xpose.msra.mxu0 0
  %7963 = vmatprep.subr.bf16.mxu0 0
  %7964 = vmatpush1.bf16.xpose.msra.mxu0 0
  %7965 = vmatprep.subr.bf16.mxu0 0
  %7966 = vmatpush1.bf16.xpose.msra.mxu0 0
  %7967 = vmatprep.subr.bf16.mxu0 0
  %7968 = vmatpush1.bf16.xpose.msra.mxu0 0
  %7969 = vmatprep.subr.bf16.mxu0 0
  %7970 = vmatpush1.bf16.xpose.msra.mxu0 0
  %7971 = vmatprep.subr.bf16.mxu0 0
  %7972 = vmatpush1.bf16.xpose.msra.mxu0 0
  %7973 = vmatprep.subr.bf16.mxu0 0
  %7974 = vmatpush1.bf16.xpose.msra.mxu0 0
  %7975 = vmatprep.mubr.bf16.mxu0 0
  %7976 = vmatmul.mubr.bf16.gmra.mrb[0].mxu0 %v7938
  %v7977 = vpop.f32.mrb[0].mxu0
  %v7978 = vadd.f32 0.0, %v7977
  %v7979 = vpop.f32.mrb[0].mxu0
  %v7980 = vpop.f32.mrb[0].mxu0
  %v7981 = vpop.f32.mrb[0].mxu0
  %7982 = vdwg.mxu0
  %v7983 = vmul.f32 %v7978, 0.35355338
  %v7984 = vadd.f32 %v7983, %v3601
  %v7985 = vsel %vm250, %v7984, -inf
  %7986 = vmax.xlane.f32.xlu0 %v7985
  %v7987 = vpop.xlane.xlu0 %7986
  %v7988 = vsub.f32 %v7984, %v7987
  %v7989 = vmul.f32 %v7988, 1.442695
  %v7990 = vpow.pop %v7989
  %v7991 = vsel %vm250, %v7990, 0.0
  %7992 = vadd.xlane.f32.xlu0 %v7991
  %v7993 = vpop.xlane.xlu0 %7992
  %v7994 = vrcp.pop %v7993
  %v7995 = vmul.f32 %v7990, %v7994
  %v7996 = vpack.c.bf16 %v7995, %v7995
  %7997 = vrot.lane.b32.xlu0 %v7934, 64
  %v7998 = vpop.permute.xlu0 %7997
  %v8000 = vsel %vm265, %v7996, 0
  %v8003 = vand.u32 %v7998, %v272
  %8005 = vmatprep.subr.bf16.mxu0 0
  %8006 = vmatpush1.bf16.msra.mxu0 %v8003
  %8007 = vmatprep.subr.bf16.mxu0 0
  %8008 = vmatpush1.bf16.msra.mxu0 0
  %8009 = vmatprep.subr.bf16.mxu0 0
  %8010 = vmatpush1.bf16.msra.mxu0 0
  %8011 = vmatprep.subr.bf16.mxu0 0
  %8012 = vmatpush1.bf16.msra.mxu0 0
  %8013 = vmatprep.subr.bf16.mxu0 0
  %8014 = vmatpush1.bf16.msra.mxu0 0
  %8015 = vmatprep.subr.bf16.mxu0 0
  %8016 = vmatpush1.bf16.msra.mxu0 0
  %8017 = vmatprep.subr.bf16.mxu0 0
  %8018 = vmatpush1.bf16.msra.mxu0 0
  %8019 = vmatprep.subr.bf16.mxu0 0
  %8020 = vmatpush1.bf16.msra.mxu0 0
  %8021 = vmatprep.subr.bf16.mxu0 0
  %8022 = vmatpush1.bf16.msra.mxu0 0
  %8023 = vmatprep.subr.bf16.mxu0 0
  %8024 = vmatpush1.bf16.msra.mxu0 0
  %8025 = vmatprep.subr.bf16.mxu0 0
  %8026 = vmatpush1.bf16.msra.mxu0 0
  %8027 = vmatprep.subr.bf16.mxu0 0
  %8028 = vmatpush1.bf16.msra.mxu0 0
  %8029 = vmatprep.subr.bf16.mxu0 0
  %8030 = vmatpush1.bf16.msra.mxu0 0
  %8031 = vmatprep.subr.bf16.mxu0 0
  %8032 = vmatpush1.bf16.msra.mxu0 0
  %8033 = vmatprep.subr.bf16.mxu0 0
  %8034 = vmatpush1.bf16.msra.mxu0 0
  %8035 = vmatprep.subr.bf16.mxu0 0
  %8036 = vmatpush1.bf16.msra.mxu0 0
  %8037 = vmatprep.mubr.bf16.mxu0 0
  %8038 = vmatmul.mubr.bf16.gmra.mrb[0].mxu0 %v8000
  %v8039 = vpop.f32.mrb[0].mxu0
  %v8040 = vadd.f32 0.0, %v8039
  %v8041 = vpop.f32.mrb[0].mxu0
  %v8042 = vpop.f32.mrb[0].mxu0
  %v8043 = vpop.f32.mrb[0].mxu0
  %8044 = vdwg.mxu0
  %8045 = vrot.lane.b32.xlu0 %v7934, 120
  %v8046 = vpop.permute.xlu0 %8045
  %8047 = vrot.lane.b32.xlu0 %v7934, 88
  %v8048 = vpop.permute.xlu0 %8047
  %v8050 = vsel %vm60, %v8046, 0
  %v8053 = vsel %vm60, %v8048, 0
  %8055 = vmatprep.subr.bf16.mxu0 0
  %8056 = vmatpush1.bf16.xpose.msra.mxu0 %v8053
  %8057 = vmatprep.subr.bf16.mxu0 0
  %8058 = vmatpush1.bf16.xpose.msra.mxu0 0
  %8059 = vmatprep.subr.bf16.mxu0 0
  %8060 = vmatpush1.bf16.xpose.msra.mxu0 0
  %8061 = vmatprep.subr.bf16.mxu0 0
  %8062 = vmatpush1.bf16.xpose.msra.mxu0 0
  %8063 = vmatprep.subr.bf16.mxu0 0
  %8064 = vmatpush1.bf16.xpose.msra.mxu0 0
  %8065 = vmatprep.subr.bf16.mxu0 0
  %8066 = vmatpush1.bf16.xpose.msra.mxu0 0
  %8067 = vmatprep.subr.bf16.mxu0 0
  %8068 = vmatpush1.bf16.xpose.msra.mxu0 0
  %8069 = vmatprep.subr.bf16.mxu0 0
  %8070 = vmatpush1.bf16.xpose.msra.mxu0 0
  %8071 = vmatprep.subr.bf16.mxu0 0
  %8072 = vmatpush1.bf16.xpose.msra.mxu0 0
  %8073 = vmatprep.subr.bf16.mxu0 0
  %8074 = vmatpush1.bf16.xpose.msra.mxu0 0
  %8075 = vmatprep.subr.bf16.mxu0 0
  %8076 = vmatpush1.bf16.xpose.msra.mxu0 0
  %8077 = vmatprep.subr.bf16.mxu0 0
  %8078 = vmatpush1.bf16.xpose.msra.mxu0 0
  %8079 = vmatprep.subr.bf16.mxu0 0
  %8080 = vmatpush1.bf16.xpose.msra.mxu0 0
  %8081 = vmatprep.subr.bf16.mxu0 0
  %8082 = vmatpush1.bf16.xpose.msra.mxu0 0
  %8083 = vmatprep.subr.bf16.mxu0 0
  %8084 = vmatpush1.bf16.xpose.msra.mxu0 0
  %8085 = vmatprep.subr.bf16.mxu0 0
  %8086 = vmatpush1.bf16.xpose.msra.mxu0 0
  %8087 = vmatprep.mubr.bf16.mxu0 0
  %8088 = vmatmul.mubr.bf16.gmra.mrb[0].mxu0 %v8050
  %v8089 = vpop.f32.mrb[0].mxu0
  %v8090 = vadd.f32 0.0, %v8089
  %v8091 = vpop.f32.mrb[0].mxu0
  %v8092 = vpop.f32.mrb[0].mxu0
  %v8093 = vpop.f32.mrb[0].mxu0
  %8094 = vdwg.mxu0
  %v8095 = vmul.f32 %v8090, 0.35355338
  %v8096 = vadd.f32 %v8095, %v3712
  %v8097 = vsel %vm250, %v8096, -inf
  %8098 = vmax.xlane.f32.xlu0 %v8097
  %v8099 = vpop.xlane.xlu0 %8098
  %v8100 = vsub.f32 %v8096, %v8099
  %v8101 = vmul.f32 %v8100, 1.442695
  %v8102 = vpow.pop %v8101
  %v8103 = vsel %vm250, %v8102, 0.0
  %8104 = vadd.xlane.f32.xlu0 %v8103
  %v8105 = vpop.xlane.xlu0 %8104
  %v8106 = vrcp.pop %v8105
  %v8107 = vmul.f32 %v8102, %v8106
  %v8108 = vpack.c.bf16 %v8107, %v8107
  %8109 = vrot.lane.b32.xlu0 %v7934, 56
  %v8110 = vpop.permute.xlu0 %8109
  %v8112 = vsel %vm265, %v8108, 0
  %v8115 = vand.u32 %v8110, %v272
  %8117 = vmatprep.subr.bf16.mxu0 0
  %8118 = vmatpush1.bf16.msra.mxu0 %v8115
  %8119 = vmatprep.subr.bf16.mxu0 0
  %8120 = vmatpush1.bf16.msra.mxu0 0
  %8121 = vmatprep.subr.bf16.mxu0 0
  %8122 = vmatpush1.bf16.msra.mxu0 0
  %8123 = vmatprep.subr.bf16.mxu0 0
  %8124 = vmatpush1.bf16.msra.mxu0 0
  %8125 = vmatprep.subr.bf16.mxu0 0
  %8126 = vmatpush1.bf16.msra.mxu0 0
  %8127 = vmatprep.subr.bf16.mxu0 0
  %8128 = vmatpush1.bf16.msra.mxu0 0
  %8129 = vmatprep.subr.bf16.mxu0 0
  %8130 = vmatpush1.bf16.msra.mxu0 0
  %8131 = vmatprep.subr.bf16.mxu0 0
  %8132 = vmatpush1.bf16.msra.mxu0 0
  %8133 = vmatprep.subr.bf16.mxu0 0
  %8134 = vmatpush1.bf16.msra.mxu0 0
  %8135 = vmatprep.subr.bf16.mxu0 0
  %8136 = vmatpush1.bf16.msra.mxu0 0
  %8137 = vmatprep.subr.bf16.mxu0 0
  %8138 = vmatpush1.bf16.msra.mxu0 0
  %8139 = vmatprep.subr.bf16.mxu0 0
  %8140 = vmatpush1.bf16.msra.mxu0 0
  %8141 = vmatprep.subr.bf16.mxu0 0
  %8142 = vmatpush1.bf16.msra.mxu0 0
  %8143 = vmatprep.subr.bf16.mxu0 0
  %8144 = vmatpush1.bf16.msra.mxu0 0
  %8145 = vmatprep.subr.bf16.mxu0 0
  %8146 = vmatpush1.bf16.msra.mxu0 0
  %8147 = vmatprep.subr.bf16.mxu0 0
  %8148 = vmatpush1.bf16.msra.mxu0 0
  %8149 = vmatprep.mubr.bf16.mxu0 0
  %8150 = vmatmul.mubr.bf16.gmra.mrb[0].mxu0 %v8112
  %v8151 = vpop.f32.mrb[0].mxu0
  %v8152 = vadd.f32 0.0, %v8151
  %v8153 = vpop.f32.mrb[0].mxu0
  %v8154 = vpop.f32.mrb[0].mxu0
  %v8155 = vpop.f32.mrb[0].mxu0
  %8156 = vdwg.mxu0
  %8157 = vrot.lane.b32.xlu0 %v7934, 112
  %v8158 = vpop.permute.xlu0 %8157
  %8159 = vrot.lane.b32.xlu0 %v7934, 80
  %v8160 = vpop.permute.xlu0 %8159
  %v8162 = vsel %vm60, %v8158, 0
  %v8165 = vsel %vm60, %v8160, 0
  %8167 = vmatprep.subr.bf16.mxu0 0
  %8168 = vmatpush1.bf16.xpose.msra.mxu0 %v8165
  %8169 = vmatprep.subr.bf16.mxu0 0
  %8170 = vmatpush1.bf16.xpose.msra.mxu0 0
  %8171 = vmatprep.subr.bf16.mxu0 0
  %8172 = vmatpush1.bf16.xpose.msra.mxu0 0
  %8173 = vmatprep.subr.bf16.mxu0 0
  %8174 = vmatpush1.bf16.xpose.msra.mxu0 0
  %8175 = vmatprep.subr.bf16.mxu0 0
  %8176 = vmatpush1.bf16.xpose.msra.mxu0 0
  %8177 = vmatprep.subr.bf16.mxu0 0
  %8178 = vmatpush1.bf16.xpose.msra.mxu0 0
  %8179 = vmatprep.subr.bf16.mxu0 0
  %8180 = vmatpush1.bf16.xpose.msra.mxu0 0
  %8181 = vmatprep.subr.bf16.mxu0 0
  %8182 = vmatpush1.bf16.xpose.msra.mxu0 0
  %8183 = vmatprep.subr.bf16.mxu0 0
  %8184 = vmatpush1.bf16.xpose.msra.mxu0 0
  %8185 = vmatprep.subr.bf16.mxu0 0
  %8186 = vmatpush1.bf16.xpose.msra.mxu0 0
  %8187 = vmatprep.subr.bf16.mxu0 0
  %8188 = vmatpush1.bf16.xpose.msra.mxu0 0
  %8189 = vmatprep.subr.bf16.mxu0 0
  %8190 = vmatpush1.bf16.xpose.msra.mxu0 0
  %8191 = vmatprep.subr.bf16.mxu0 0
  %8192 = vmatpush1.bf16.xpose.msra.mxu0 0
  %8193 = vmatprep.subr.bf16.mxu0 0
  %8194 = vmatpush1.bf16.xpose.msra.mxu0 0
  %8195 = vmatprep.subr.bf16.mxu0 0
  %8196 = vmatpush1.bf16.xpose.msra.mxu0 0
  %8197 = vmatprep.subr.bf16.mxu0 0
  %8198 = vmatpush1.bf16.xpose.msra.mxu0 0
  %8199 = vmatprep.mubr.bf16.mxu0 0
  %8200 = vmatmul.mubr.bf16.gmra.mrb[0].mxu0 %v8162
  %v8201 = vpop.f32.mrb[0].mxu0
  %v8202 = vadd.f32 0.0, %v8201
  %v8203 = vpop.f32.mrb[0].mxu0
  %v8204 = vpop.f32.mrb[0].mxu0
  %v8205 = vpop.f32.mrb[0].mxu0
  %8206 = vdwg.mxu0
  %v8207 = vmul.f32 %v8202, 0.35355338
  %v8208 = vadd.f32 %v8207, %v3823
  %v8209 = vsel %vm250, %v8208, -inf
  %8210 = vmax.xlane.f32.xlu0 %v8209
  %v8211 = vpop.xlane.xlu0 %8210
  %v8212 = vsub.f32 %v8208, %v8211
  %v8213 = vmul.f32 %v8212, 1.442695
  %v8214 = vpow.pop %v8213
  %v8215 = vsel %vm250, %v8214, 0.0
  %8216 = vadd.xlane.f32.xlu0 %v8215
  %v8217 = vpop.xlane.xlu0 %8216
  %v8218 = vrcp.pop %v8217
  %v8219 = vmul.f32 %v8214, %v8218
  %v8220 = vpack.c.bf16 %v8219, %v8219
  %8221 = vrot.lane.b32.xlu0 %v7934, 48
  %v8222 = vpop.permute.xlu0 %8221
  %v8224 = vsel %vm265, %v8220, 0
  %v8227 = vand.u32 %v8222, %v272
  %8229 = vmatprep.subr.bf16.mxu0 0
  %8230 = vmatpush1.bf16.msra.mxu0 %v8227
  %8231 = vmatprep.subr.bf16.mxu0 0
  %8232 = vmatpush1.bf16.msra.mxu0 0
  %8233 = vmatprep.subr.bf16.mxu0 0
  %8234 = vmatpush1.bf16.msra.mxu0 0
  %8235 = vmatprep.subr.bf16.mxu0 0
  %8236 = vmatpush1.bf16.msra.mxu0 0
  %8237 = vmatprep.subr.bf16.mxu0 0
  %8238 = vmatpush1.bf16.msra.mxu0 0
  %8239 = vmatprep.subr.bf16.mxu0 0
  %8240 = vmatpush1.bf16.msra.mxu0 0
  %8241 = vmatprep.subr.bf16.mxu0 0
  %8242 = vmatpush1.bf16.msra.mxu0 0
  %8243 = vmatprep.subr.bf16.mxu0 0
  %8244 = vmatpush1.bf16.msra.mxu0 0
  %8245 = vmatprep.subr.bf16.mxu0 0
  %8246 = vmatpush1.bf16.msra.mxu0 0
  %8247 = vmatprep.subr.bf16.mxu0 0
  %8248 = vmatpush1.bf16.msra.mxu0 0
  %8249 = vmatprep.subr.bf16.mxu0 0
  %8250 = vmatpush1.bf16.msra.mxu0 0
  %8251 = vmatprep.subr.bf16.mxu0 0
  %8252 = vmatpush1.bf16.msra.mxu0 0
  %8253 = vmatprep.subr.bf16.mxu0 0
  %8254 = vmatpush1.bf16.msra.mxu0 0
  %8255 = vmatprep.subr.bf16.mxu0 0
  %8256 = vmatpush1.bf16.msra.mxu0 0
  %8257 = vmatprep.subr.bf16.mxu0 0
  %8258 = vmatpush1.bf16.msra.mxu0 0
  %8259 = vmatprep.subr.bf16.mxu0 0
  %8260 = vmatpush1.bf16.msra.mxu0 0
  %8261 = vmatprep.mubr.bf16.mxu0 0
  %8262 = vmatmul.mubr.bf16.gmra.mrb[0].mxu0 %v8224
  %v8263 = vpop.f32.mrb[0].mxu0
  %v8264 = vadd.f32 0.0, %v8263
  %v8265 = vpop.f32.mrb[0].mxu0
  %v8266 = vpop.f32.mrb[0].mxu0
  %v8267 = vpop.f32.mrb[0].mxu0
  %8268 = vdwg.mxu0
  %8269 = vrot.lane.b32.xlu0 %v7934, 104
  %v8270 = vpop.permute.xlu0 %8269
  %8271 = vrot.lane.b32.xlu0 %v7934, 72
  %v8272 = vpop.permute.xlu0 %8271
  %v8274 = vsel %vm60, %v8270, 0
  %v8277 = vsel %vm60, %v8272, 0
  %8279 = vmatprep.subr.bf16.mxu0 0
  %8280 = vmatpush1.bf16.xpose.msra.mxu0 %v8277
  %8281 = vmatprep.subr.bf16.mxu0 0
  %8282 = vmatpush1.bf16.xpose.msra.mxu0 0
  %8283 = vmatprep.subr.bf16.mxu0 0
  %8284 = vmatpush1.bf16.xpose.msra.mxu0 0
  %8285 = vmatprep.subr.bf16.mxu0 0
  %8286 = vmatpush1.bf16.xpose.msra.mxu0 0
  %8287 = vmatprep.subr.bf16.mxu0 0
  %8288 = vmatpush1.bf16.xpose.msra.mxu0 0
  %8289 = vmatprep.subr.bf16.mxu0 0
  %8290 = vmatpush1.bf16.xpose.msra.mxu0 0
  %8291 = vmatprep.subr.bf16.mxu0 0
  %8292 = vmatpush1.bf16.xpose.msra.mxu0 0
  %8293 = vmatprep.subr.bf16.mxu0 0
  %8294 = vmatpush1.bf16.xpose.msra.mxu0 0
  %8295 = vmatprep.subr.bf16.mxu0 0
  %8296 = vmatpush1.bf16.xpose.msra.mxu0 0
  %8297 = vmatprep.subr.bf16.mxu0 0
  %8298 = vmatpush1.bf16.xpose.msra.mxu0 0
  %8299 = vmatprep.subr.bf16.mxu0 0
  %8300 = vmatpush1.bf16.xpose.msra.mxu0 0
  %8301 = vmatprep.subr.bf16.mxu0 0
  %8302 = vmatpush1.bf16.xpose.msra.mxu0 0
  %8303 = vmatprep.subr.bf16.mxu0 0
  %8304 = vmatpush1.bf16.xpose.msra.mxu0 0
  %8305 = vmatprep.subr.bf16.mxu0 0
  %8306 = vmatpush1.bf16.xpose.msra.mxu0 0
  %8307 = vmatprep.subr.bf16.mxu0 0
  %8308 = vmatpush1.bf16.xpose.msra.mxu0 0
  %8309 = vmatprep.subr.bf16.mxu0 0
  %8310 = vmatpush1.bf16.xpose.msra.mxu0 0
  %8311 = vmatprep.mubr.bf16.mxu0 0
  %8312 = vmatmul.mubr.bf16.gmra.mrb[0].mxu0 %v8274
  %v8313 = vpop.f32.mrb[0].mxu0
  %v8314 = vadd.f32 0.0, %v8313
  %v8315 = vpop.f32.mrb[0].mxu0
  %v8316 = vpop.f32.mrb[0].mxu0
  %v8317 = vpop.f32.mrb[0].mxu0
  %8318 = vdwg.mxu0
  %v8319 = vmul.f32 %v8314, 0.35355338
  %v8320 = vadd.f32 %v8319, %v3934
  %v8321 = vsel %vm250, %v8320, -inf
  %8322 = vmax.xlane.f32.xlu0 %v8321
  %v8323 = vpop.xlane.xlu0 %8322
  %v8324 = vsub.f32 %v8320, %v8323
  %v8325 = vmul.f32 %v8324, 1.442695
  %v8326 = vpow.pop %v8325
  %v8327 = vsel %vm250, %v8326, 0.0
  %8328 = vadd.xlane.f32.xlu0 %v8327
  %v8329 = vpop.xlane.xlu0 %8328
  %v8330 = vrcp.pop %v8329
  %v8331 = vmul.f32 %v8326, %v8330
  %v8332 = vpack.c.bf16 %v8331, %v8331
  %8333 = vrot.lane.b32.xlu0 %v7934, 40
  %v8334 = vpop.permute.xlu0 %8333
  %v8336 = vsel %vm265, %v8332, 0
  %v8339 = vand.u32 %v8334, %v272
  %8341 = vmatprep.subr.bf16.mxu0 0
  %8342 = vmatpush1.bf16.msra.mxu0 %v8339
  %8343 = vmatprep.subr.bf16.mxu0 0
  %8344 = vmatpush1.bf16.msra.mxu0 0
  %8345 = vmatprep.subr.bf16.mxu0 0
  %8346 = vmatpush1.bf16.msra.mxu0 0
  %8347 = vmatprep.subr.bf16.mxu0 0
  %8348 = vmatpush1.bf16.msra.mxu0 0
  %8349 = vmatprep.subr.bf16.mxu0 0
  %8350 = vmatpush1.bf16.msra.mxu0 0
  %8351 = vmatprep.subr.bf16.mxu0 0
  %8352 = vmatpush1.bf16.msra.mxu0 0
  %8353 = vmatprep.subr.bf16.mxu0 0
  %8354 = vmatpush1.bf16.msra.mxu0 0
  %8355 = vmatprep.subr.bf16.mxu0 0
  %8356 = vmatpush1.bf16.msra.mxu0 0
  %8357 = vmatprep.subr.bf16.mxu0 0
  %8358 = vmatpush1.bf16.msra.mxu0 0
  %8359 = vmatprep.subr.bf16.mxu0 0
  %8360 = vmatpush1.bf16.msra.mxu0 0
  %8361 = vmatprep.subr.bf16.mxu0 0
  %8362 = vmatpush1.bf16.msra.mxu0 0
  %8363 = vmatprep.subr.bf16.mxu0 0
  %8364 = vmatpush1.bf16.msra.mxu0 0
  %8365 = vmatprep.subr.bf16.mxu0 0
  %8366 = vmatpush1.bf16.msra.mxu0 0
  %8367 = vmatprep.subr.bf16.mxu0 0
  %8368 = vmatpush1.bf16.msra.mxu0 0
  %8369 = vmatprep.subr.bf16.mxu0 0
  %8370 = vmatpush1.bf16.msra.mxu0 0
  %8371 = vmatprep.subr.bf16.mxu0 0
  %8372 = vmatpush1.bf16.msra.mxu0 0
  %8373 = vmatprep.mubr.bf16.mxu0 0
  %8374 = vmatmul.mubr.bf16.gmra.mrb[0].mxu0 %v8336
  %v8375 = vpop.f32.mrb[0].mxu0
  %v8376 = vadd.f32 0.0, %v8375
  %v8377 = vpop.f32.mrb[0].mxu0
  %v8378 = vpop.f32.mrb[0].mxu0
  %v8379 = vpop.f32.mrb[0].mxu0
  %8380 = vdwg.mxu0
  %8382 = vrot.lane.b32.xlu0 %v8152, 8
  %v8383 = vpop.permute.xlu0 %8382
  %8386 = vrot.lane.b32.xlu0 %v8264, 16
  %v8387 = vpop.permute.xlu0 %8386
  %8390 = vrot.lane.b32.xlu0 %v8376, 24
  %v8391 = vpop.permute.xlu0 %8390
  %v8393 = vsel %vm60, %v8040, %v8383
  %v8394 = vsel %vm662, %v8393, %v8387
  %v8395 = vsel %vm664, %v8394, %v8391
  %v8396 = vpack.c.bf16 %v8395, %v8395
  %v8398 = vunpack.c.l.b16 %v8396
  %v8399 = vpack.c.b16 %v8398, %v8398
  %v8401 = vshrl.u32 %v8399, 16
  %v8403 = vrot.slane %v8401, 5
  %v8404 = vshll.u32 %v8399, 16
  %v8406 = vrot.slane %v8404, 6
  %v8407 = vor.u32 %v8403, %v8406
  %v8409 = vld [vmem:[#allocation2 + $0x8] sm:$0xc]
  %v8410 = vsel %vm4024, %v8407, %v8409
  %8411 = vst [vmem:[#allocation2 + $0x8] sm:$0xc] %v8410
  %v8412 = vld [vmem:[#allocation2] sm:$0xf]
  %v8413 = vld [vmem:[#allocation2 + $0x4] sm:$0xf]
  %v8414 = vld [vmem:[#allocation2 + $0x8] sm:$0xf]
  %s8415 = scalar_lea.vmem %s5, 16
  %v8416 = vld [vmem:[%s8415] sm:$0xf]
  %v8417 = vld [vmem:[%s8415 + $0x4] sm:$0xf]
  %v8418 = vld [vmem:[%s8415 + $0x8] sm:$0xf]
  %v8419 = vld [vmem:[%s8415 + $0xc] sm:$0xf]
  %s8420 = scalar_lea.vmem %s6, 1
  %v8421 = vld [vmem:[%s8420] sm:$0x1]
  %v8423 = vlaneseq
  %v8424 = vshrl.u32 %v8423, 7
  %v8425 = vsub.s32 0, %v8424
  %v8426 = vrot.slane %v8421, %v8425
  %v8431 = vunpack.c.l.b16 %v8412
  %v8432 = vunpack.c.l.b16 %v8413
  %v8433 = vunpack.c.l.b16 %v8414
  %v8434 = vpack.c.b16 %v8432, %v8431
  %v8435 = vpack.c.b16 %v8433, %v8433
  %v8440 = vunpack.c.l.b16 %v8416
  %v8441 = vunpack.c.l.b16 %v8417
  %v8442 = vunpack.c.l.b16 %v8418
  %v8443 = vunpack.c.l.b16 %v8419
  %v8444 = vpack.c.b16 %v8441, %v8440
  %v8445 = vpack.c.b16 %v8443, %v8442
  %v8449 = vsel %vm144, %v8434, 0
  %v8452 = vsel %vm144, %v8435, 0
  %8454 = vmatprep.subr.bf16.mxu0 0
  %8455 = vmatpush1.bf16.msra.mxu0 %v8444
  %8456 = vmatprep.subr.bf16.mxu0 0
  %8457 = vmatpush1.bf16.msra.mxu0 %v8445
  %8458 = vmatprep.subr.bf16.mxu0 0
  %8459 = vmatpush1.bf16.msra.mxu0 0
  %8460 = vmatprep.subr.bf16.mxu0 0
  %8461 = vmatpush1.bf16.msra.mxu0 0
  %8462 = vmatprep.subr.bf16.mxu0 0
  %8463 = vmatpush1.bf16.msra.mxu0 0
  %8464 = vmatprep.subr.bf16.mxu0 0
  %8465 = vmatpush1.bf16.msra.mxu0 0
  %8466 = vmatprep.subr.bf16.mxu0 0
  %8467 = vmatpush1.bf16.msra.mxu0 0
  %8468 = vmatprep.subr.bf16.mxu0 0
  %8469 = vmatpush1.bf16.msra.mxu0 0
  %8470 = vmatprep.subr.bf16.mxu0 0
  %8471 = vmatpush1.bf16.msra.mxu0 0
  %8472 = vmatprep.subr.bf16.mxu0 0
  %8473 = vmatpush1.bf16.msra.mxu0 0
  %8474 = vmatprep.subr.bf16.mxu0 0
  %8475 = vmatpush1.bf16.msra.mxu0 0
  %8476 = vmatprep.subr.bf16.mxu0 0
  %8477 = vmatpush1.bf16.msra.mxu0 0
  %8478 = vmatprep.subr.bf16.mxu0 0
  %8479 = vmatpush1.bf16.msra.mxu0 0
  %8480 = vmatprep.subr.bf16.mxu0 0
  %8481 = vmatpush1.bf16.msra.mxu0 0
  %8482 = vmatprep.subr.bf16.mxu0 0
  %8483 = vmatpush1.bf16.msra.mxu0 0
  %8484 = vmatprep.subr.bf16.mxu0 0
  %8485 = vmatpush1.bf16.msra.mxu0 0
  %8486 = vmatprep.mubr.bf16.mxu0 0
  %8487 = vmatmul.mubr.bf16.gmra.mrb[0].mxu0 %v8449
  %v8488 = vpop.f32.mrb[0].mxu0
  %v8489 = vadd.f32 %v8426, %v8488
  %v8490 = vpop.f32.mrb[0].mxu0
  %v8491 = vpop.f32.mrb[0].mxu0
  %v8492 = vadd.f32 %v8426, %v8491
  %v8493 = vpop.f32.mrb[0].mxu0
  %8494 = vmatprep.mubr.bf16.mxu0 0
  %8495 = vmatmul.mubr.bf16.gmra.mrb[0].mxu0 %v8452
  %v8496 = vpop.f32.mrb[0].mxu0
  %v8497 = vadd.f32 %v8426, %v8496
  %v8498 = vpop.f32.mrb[0].mxu0
  %v8499 = vpop.f32.mrb[0].mxu0
  %v8500 = vpop.f32.mrb[0].mxu0
  %8501 = vdwg.mxu0
  %v8502 = vadd.f32 %v4498, %v8489
  %v8503 = vadd.f32 %v4499, %v8492
  %v8504 = vadd.f32 %v4500, %v8497
  %s8505 = scalar_lea.vmem %s7, 1
  %v8506 = vld [vmem:[%s8505] sm:$0x1]
  %s8507 = scalar_lea.vmem %s8, 1
  %v8508 = vld [vmem:[%s8507] sm:$0x1]
  %v8509 = vsel %vm144, %v8502, 0.0
  %v8510 = vsel %vm144, %v8503, 0.0
  %v8511 = vadd.f32 %v8509, %v8510
  %v8512 = vsel %vm144, %v8504, 0.0
  %v8513 = vadd.f32 %v8511, %v8512
  %v8514 = vrot.slane %v8513, 4
  %v8515 = vadd.f32 %v8513, %v8514
  %v8516 = vrot.slane %v8515, 2
  %v8517 = vadd.f32 %v8515, %v8516
  %v8518 = vrot.slane %v8517, 1
  %v8519 = vadd.f32 %v8517, %v8518
  %v8520 = vmul.f32 %v8519, %v4132
  %v8521 = vmul.f32 %v8502, %v8502
  %v8522 = vmul.f32 %v8503, %v8503
  %v8523 = vmul.f32 %v8504, %v8504
  %v8524 = vsel %vm144, %v8521, 0.0
  %v8525 = vsel %vm144, %v8522, 0.0
  %v8526 = vadd.f32 %v8524, %v8525
  %v8527 = vsel %vm144, %v8523, 0.0
  %v8528 = vadd.f32 %v8526, %v8527
  %v8529 = vrot.slane %v8528, 4
  %v8530 = vadd.f32 %v8528, %v8529
  %v8531 = vrot.slane %v8530, 2
  %v8532 = vadd.f32 %v8530, %v8531
  %v8533 = vrot.slane %v8532, 1
  %v8534 = vadd.f32 %v8532, %v8533
  %v8535 = vmul.f32 %v8534, %v4132
  %v8536 = vmul.f32 %v8520, %v8520
  %v8537 = vsub.f32 %v8535, %v8536
  %v8538 = vmax.f32 %v8537, 0.0
  %v8539 = vsub.f32 %v8502, %v8520
  %v8540 = vsub.f32 %v8503, %v8520
  %v8541 = vsub.f32 %v8504, %v8520
  %v8542 = vadd.f32 %v8538, 1e-05
  %v8543 = vrsqrt.pop %v8542
  %v8544 = vmul.f32 %v8539, %v8543
  %v8545 = vmul.f32 %v8540, %v8543
  %v8546 = vmul.f32 %v8541, %v8543
  %v8548 = vlaneseq
  %v8549 = vshrl.u32 %v8548, 7
  %v8550 = vsub.s32 0, %v8549
  %v8551 = vrot.slane %v8506, %v8550
  %v8553 = vmul.f32 %v8544, %v8551
  %v8554 = vmul.f32 %v8545, %v8551
  %v8555 = vmul.f32 %v8546, %v8551
  %v8557 = vlaneseq
  %v8558 = vshrl.u32 %v8557, 7
  %v8559 = vsub.s32 0, %v8558
  %v8560 = vrot.slane %v8508, %v8559
  %v8562 = vadd.f32 %v8553, %v8560
  %v8563 = vadd.f32 %v8554, %v8560
  %v8564 = vadd.f32 %v8555, %v8560
  %v8565 = vpack.c.bf16 %v8563, %v8562
  %v8566 = vpack.c.bf16 %v8564, %v8564
  %s8567 = scalar_lea.vmem %s9, 16
  %v8568 = vld [vmem:[%s8567] sm:$0xf]
  %v8569 = vld [vmem:[%s8567 + $0x4] sm:$0xf]
  %v8570 = vld [vmem:[%s8567 + $0x8] sm:$0xf]
  %v8571 = vld [vmem:[%s8567 + $0xc] sm:$0xf]
  %s8572 = scalar_lea.vmem %s10, 1
  %v8573 = vld [vmem:[%s8572] sm:$0x1]
  %v8575 = vlaneseq
  %v8576 = vshrl.u32 %v8575, 7
  %v8577 = vsub.s32 0, %v8576
  %v8578 = vrot.slane %v8573, %v8577
  %v8584 = vunpack.c.l.b16 %v8568
  %v8585 = vunpack.c.l.b16 %v8569
  %v8586 = vunpack.c.l.b16 %v8570
  %v8587 = vunpack.c.l.b16 %v8571
  %v8588 = vpack.c.b16 %v8585, %v8584
  %v8589 = vpack.c.b16 %v8587, %v8586
  %v8593 = vsel %vm144, %v8565, 0
  %v8596 = vsel %vm144, %v8566, 0
  %8598 = vmatprep.subr.bf16.mxu0 0
  %8599 = vmatpush1.bf16.msra.mxu0 %v8588
  %8600 = vmatprep.subr.bf16.mxu0 0
  %8601 = vmatpush1.bf16.msra.mxu0 %v8589
  %8602 = vmatprep.subr.bf16.mxu0 0
  %8603 = vmatpush1.bf16.msra.mxu0 0
  %8604 = vmatprep.subr.bf16.mxu0 0
  %8605 = vmatpush1.bf16.msra.mxu0 0
  %8606 = vmatprep.subr.bf16.mxu0 0
  %8607 = vmatpush1.bf16.msra.mxu0 0
  %8608 = vmatprep.subr.bf16.mxu0 0
  %8609 = vmatpush1.bf16.msra.mxu0 0
  %8610 = vmatprep.subr.bf16.mxu0 0
  %8611 = vmatpush1.bf16.msra.mxu0 0
  %8612 = vmatprep.subr.bf16.mxu0 0
  %8613 = vmatpush1.bf16.msra.mxu0 0
  %8614 = vmatprep.subr.bf16.mxu0 0
  %8615 = vmatpush1.bf16.msra.mxu0 0
  %8616 = vmatprep.subr.bf16.mxu0 0
  %8617 = vmatpush1.bf16.msra.mxu0 0
  %8618 = vmatprep.subr.bf16.mxu0 0
  %8619 = vmatpush1.bf16.msra.mxu0 0
  %8620 = vmatprep.subr.bf16.mxu0 0
  %8621 = vmatpush1.bf16.msra.mxu0 0
  %8622 = vmatprep.subr.bf16.mxu0 0
  %8623 = vmatpush1.bf16.msra.mxu0 0
  %8624 = vmatprep.subr.bf16.mxu0 0
  %8625 = vmatpush1.bf16.msra.mxu0 0
  %8626 = vmatprep.subr.bf16.mxu0 0
  %8627 = vmatpush1.bf16.msra.mxu0 0
  %8628 = vmatprep.subr.bf16.mxu0 0
  %8629 = vmatpush1.bf16.msra.mxu0 0
  %8630 = vmatprep.mubr.bf16.mxu0 0
  %8631 = vmatmul.mubr.bf16.gmra.mrb[0].mxu0 %v8593
  %v8632 = vpop.f32.mrb[0].mxu0
  %v8633 = vadd.f32 %v8578, %v8632
  %v8634 = vpop.f32.mrb[0].mxu0
  %v8635 = vpop.f32.mrb[0].mxu0
  %v8636 = vadd.f32 %v8578, %v8635
  %v8637 = vpop.f32.mrb[0].mxu0
  %8638 = vmatprep.mubr.bf16.mxu0 0
  %8639 = vmatmul.mubr.bf16.gmra.mrb[0].mxu0 %v8596
  %v8640 = vpop.f32.mrb[0].mxu0
  %v8641 = vadd.f32 %v8578, %v8640
  %v8642 = vpop.f32.mrb[0].mxu0
  %v8643 = vpop.f32.mrb[0].mxu0
  %v8644 = vpop.f32.mrb[0].mxu0
  %8645 = vdwg.mxu0
  %v8646 = vmul.f32 %v8633, 0.5
  %v8647 = vmul.f32 %v8636, 0.5
  %v8648 = vmul.f32 %v8641, 0.5
  %v8649 = vmul.f32 %v8633, 0.70710677
  %v8650 = vmul.f32 %v8636, 0.70710677
  %v8651 = vmul.f32 %v8641, 0.70710677
  %vm8652 = vcmp.ge.f32.partialorder %v8649, 0.0
  %vm8653 = vcmp.ge.f32.partialorder %v8650, 0.0
  %vm8654 = vcmp.ge.f32.partialorder %v8651, 0.0
  %v8655 = vsel %vm8652, 1.0, -1.0
  %v8656 = vsel %vm8653, 1.0, -1.0
  %v8657 = vsel %vm8654, 1.0, -1.0
  %v8658 = vand.u32 2147483647, %v8649
  %v8659 = vand.u32 2147483647, %v8650
  %v8660 = vand.u32 2147483647, %v8651
  %v8661 = vmul.f32 %v8658, 0.3275911
  %v8662 = vmul.f32 %v8659, 0.3275911
  %v8663 = vmul.f32 %v8660, 0.3275911
  %v8664 = vadd.f32 %v8661, 1.0
  %v8665 = vadd.f32 %v8662, 1.0
  %v8666 = vadd.f32 %v8663, 1.0
  %v8667 = vrcp.pop %v8664
  %v8668 = vrcp.pop %v8665
  %v8669 = vrcp.pop %v8666
  %v8670 = vmul.f32 %v8664, %v8667
  %v8671 = vmul.f32 %v8665, %v8668
  %v8672 = vmul.f32 %v8666, %v8669
  %v8673 = vsub.f32 2.0, %v8670
  %v8674 = vsub.f32 2.0, %v8671
  %v8675 = vsub.f32 2.0, %v8672
  %v8676 = vmul.f32 %v8667, %v8673
  %v8677 = vmul.f32 %v8668, %v8674
  %v8678 = vmul.f32 %v8669, %v8675
  %v8679 = vmul.f32 %v8676, 1.0614054
  %v8680 = vmul.f32 %v8677, 1.0614054
  %v8681 = vmul.f32 %v8678, 1.0614054
  %v8682 = vadd.f32 %v8679, -1.4531521
  %v8683 = vadd.f32 %v8680, -1.4531521
  %v8684 = vadd.f32 %v8681, -1.4531521
  %v8685 = vmul.f32 %v8682, %v8676
  %v8686 = vmul.f32 %v8683, %v8677
  %v8687 = vmul.f32 %v8684, %v8678
  %v8688 = vadd.f32 %v8685, 1.4214138
  %v8689 = vadd.f32 %v8686, 1.4214138
  %v8690 = vadd.f32 %v8687, 1.4214138
  %v8691 = vmul.f32 %v8688, %v8676
  %v8692 = vmul.f32 %v8689, %v8677
  %v8693 = vmul.f32 %v8690, %v8678
  %v8694 = vadd.f32 %v8691, -0.28449672
  %v8695 = vadd.f32 %v8692, -0.28449672
  %v8696 = vadd.f32 %v8693, -0.28449672
  %v8697 = vmul.f32 %v8694, %v8676
  %v8698 = vmul.f32 %v8695, %v8677
  %v8699 = vmul.f32 %v8696, %v8678
  %v8700 = vadd.f32 %v8697, 0.2548296
  %v8701 = vadd.f32 %v8698, 0.2548296
  %v8702 = vadd.f32 %v8699, 0.2548296
  %v8703 = vmul.f32 %v8700, %v8676
  %v8704 = vmul.f32 %v8701, %v8677
  %v8705 = vmul.f32 %v8702, %v8678
  %v8706 = vsub.f32 0.0, %v8658
  %v8707 = vsub.f32 0.0, %v8659
  %v8708 = vsub.f32 0.0, %v8660
  %v8709 = vmul.f32 %v8706, %v8658
  %v8710 = vmul.f32 %v8707, %v8659
  %v8711 = vmul.f32 %v8708, %v8660
  %v8712 = vmul.f32 %v8709, 1.442695
  %v8713 = vpow.pop %v8712
  %v8714 = vmul.f32 %v8710, 1.442695
  %v8715 = vpow.pop %v8714
  %v8716 = vmul.f32 %v8711, 1.442695
  %v8717 = vpow.pop %v8716
  %v8718 = vmul.f32 %v8703, %v8713
  %v8719 = vmul.f32 %v8704, %v8715
  %v8720 = vmul.f32 %v8705, %v8717
  %v8721 = vsub.f32 1.0, %v8718
  %v8722 = vsub.f32 1.0, %v8719
  %v8723 = vsub.f32 1.0, %v8720
  %v8724 = vmul.f32 %v8655, %v8721
  %v8725 = vmul.f32 %v8656, %v8722
  %v8726 = vmul.f32 %v8657, %v8723
  %v8727 = vadd.f32 %v8724, 1.0
  %v8728 = vadd.f32 %v8725, 1.0
  %v8729 = vadd.f32 %v8726, 1.0
  %v8730 = vmul.f32 %v8646, %v8727
  %v8731 = vmul.f32 %v8647, %v8728
  %v8732 = vmul.f32 %v8648, %v8729
  %v8733 = vpack.c.bf16 %v8731, %v8730
  %v8734 = vpack.c.bf16 %v8732, %v8732
  %s8735 = scalar_lea.vmem %s11, 32
  %v8736 = vld [vmem:[%s8735] sm:$0xf]
  %v8737 = vld [vmem:[%s8735 + $0x4] sm:$0xf]
  %v8738 = vld [vmem:[%s8735 + $0x8] sm:$0xf]
  %v8739 = vld [vmem:[%s8735 + $0xc] sm:$0xf]
  %v8740 = vld [vmem:[%s8735 + $0x10] sm:$0xf]
  %v8741 = vld [vmem:[%s8735 + $0x14] sm:$0xf]
  %v8742 = vld [vmem:[%s8735 + $0x18] sm:$0xf]
  %v8743 = vld [vmem:[%s8735 + $0x1c] sm:$0xf]
  %s8744 = scalar_lea.vmem %s12, 1
  %v8745 = vld [vmem:[%s8744] sm:$0x1]
  %v8747 = vlaneseq
  %v8748 = vshrl.u32 %v8747, 7
  %v8749 = vsub.s32 0, %v8748
  %v8750 = vrot.slane %v8745, %v8749
  %v8760 = vunpack.c.l.b16 %v8736
  %v8761 = vunpack.c.l.b16 %v8737
  %v8762 = vunpack.c.l.b16 %v8738
  %v8763 = vunpack.c.l.b16 %v8739
  %v8764 = vunpack.c.l.b16 %v8740
  %v8765 = vunpack.c.l.b16 %v8741
  %v8766 = vunpack.c.l.b16 %v8742
  %v8767 = vunpack.c.l.b16 %v8743
  %v8768 = vpack.c.b16 %v8761, %v8760
  %v8769 = vpack.c.b16 %v8763, %v8762
  %v8770 = vpack.c.b16 %v8765, %v8764
  %v8771 = vpack.c.b16 %v8767, %v8766
  %v8777 = vsel %vm4385, %v8733, 0
  %v8780 = vsel %vm4385, %v8734, 0
  %8782 = vmatprep.subr.bf16.mxu0 0
  %8783 = vmatpush1.bf16.msra.mxu0 %v8768
  %8784 = vmatprep.subr.bf16.mxu0 0
  %8785 = vmatpush1.bf16.msra.mxu0 %v8769
  %8786 = vmatprep.subr.bf16.mxu0 0
  %8787 = vmatpush1.bf16.msra.mxu0 %v8770
  %8788 = vmatprep.subr.bf16.mxu0 0
  %8789 = vmatpush1.bf16.msra.mxu0 %v8771
  %8790 = vmatprep.subr.bf16.mxu0 0
  %8791 = vmatpush1.bf16.msra.mxu0 0
  %8792 = vmatprep.subr.bf16.mxu0 0
  %8793 = vmatpush1.bf16.msra.mxu0 0
  %8794 = vmatprep.subr.bf16.mxu0 0
  %8795 = vmatpush1.bf16.msra.mxu0 0
  %8796 = vmatprep.subr.bf16.mxu0 0
  %8797 = vmatpush1.bf16.msra.mxu0 0
  %8798 = vmatprep.subr.bf16.mxu0 0
  %8799 = vmatpush1.bf16.msra.mxu0 0
  %8800 = vmatprep.subr.bf16.mxu0 0
  %8801 = vmatpush1.bf16.msra.mxu0 0
  %8802 = vmatprep.subr.bf16.mxu0 0
  %8803 = vmatpush1.bf16.msra.mxu0 0
  %8804 = vmatprep.subr.bf16.mxu0 0
  %8805 = vmatpush1.bf16.msra.mxu0 0
  %8806 = vmatprep.subr.bf16.mxu0 0
  %8807 = vmatpush1.bf16.msra.mxu0 0
  %8808 = vmatprep.subr.bf16.mxu0 0
  %8809 = vmatpush1.bf16.msra.mxu0 0
  %8810 = vmatprep.subr.bf16.mxu0 0
  %8811 = vmatpush1.bf16.msra.mxu0 0
  %8812 = vmatprep.subr.bf16.mxu0 0
  %8813 = vmatpush1.bf16.msra.mxu0 0
  %8814 = vmatprep.mubr.bf16.mxu0 0
  %8815 = vmatmul.mubr.bf16.gmra.mrb[0].mxu0 %v8777
  %v8816 = vpop.f32.mrb[0].mxu0
  %v8817 = vadd.f32 %v8750, %v8816
  %v8818 = vpop.f32.mrb[0].mxu0
  %v8819 = vpop.f32.mrb[0].mxu0
  %v8820 = vadd.f32 %v8750, %v8819
  %v8821 = vpop.f32.mrb[0].mxu0
  %8822 = vmatprep.mubr.bf16.mxu0 0
  %8823 = vmatmul.mubr.bf16.gmra.mrb[0].mxu0 %v8780
  %v8824 = vpop.f32.mrb[0].mxu0
  %v8825 = vadd.f32 %v8750, %v8824
  %v8826 = vpop.f32.mrb[0].mxu0
  %v8827 = vpop.f32.mrb[0].mxu0
  %v8828 = vpop.f32.mrb[0].mxu0
  %8829 = vdwg.mxu0
  %v8830 = vadd.f32 %v8562, %v8817
  %v8831 = vadd.f32 %v8563, %v8820
  %v8832 = vadd.f32 %v8564, %v8825
  %s8833 = scalar_lea.vmem %s13, 1
  %v8834 = vld [vmem:[%s8833] sm:$0x1]
  %s8835 = scalar_lea.vmem %s14, 1
  %v8836 = vld [vmem:[%s8835] sm:$0x1]
  %v8837 = vsel %vm144, %v8830, 0.0
  %v8838 = vsel %vm144, %v8831, 0.0
  %v8839 = vadd.f32 %v8837, %v8838
  %v8840 = vsel %vm144, %v8832, 0.0
  %v8841 = vadd.f32 %v8839, %v8840
  %v8842 = vrot.slane %v8841, 4
  %v8843 = vadd.f32 %v8841, %v8842
  %v8844 = vrot.slane %v8843, 2
  %v8845 = vadd.f32 %v8843, %v8844
  %v8846 = vrot.slane %v8845, 1
  %v8847 = vadd.f32 %v8845, %v8846
  %v8848 = vmul.f32 %v8847, %v4132
  %v8849 = vmul.f32 %v8830, %v8830
  %v8850 = vmul.f32 %v8831, %v8831
  %v8851 = vmul.f32 %v8832, %v8832
  %v8852 = vsel %vm144, %v8849, 0.0
  %v8853 = vsel %vm144, %v8850, 0.0
  %v8854 = vadd.f32 %v8852, %v8853
  %v8855 = vsel %vm144, %v8851, 0.0
  %v8856 = vadd.f32 %v8854, %v8855
  %v8857 = vrot.slane %v8856, 4
  %v8858 = vadd.f32 %v8856, %v8857
  %v8859 = vrot.slane %v8858, 2
  %v8860 = vadd.f32 %v8858, %v8859
  %v8861 = vrot.slane %v8860, 1
  %v8862 = vadd.f32 %v8860, %v8861
  %v8863 = vmul.f32 %v8862, %v4132
  %v8864 = vmul.f32 %v8848, %v8848
  %v8865 = vsub.f32 %v8863, %v8864
  %v8866 = vmax.f32 %v8865, 0.0
  %v8867 = vsub.f32 %v8830, %v8848
  %v8868 = vsub.f32 %v8831, %v8848
  %v8869 = vsub.f32 %v8832, %v8848
  %v8870 = vadd.f32 %v8866, 1e-05
  %v8871 = vrsqrt.pop %v8870
  %v8872 = vmul.f32 %v8867, %v8871
  %v8873 = vmul.f32 %v8868, %v8871
  %v8874 = vmul.f32 %v8869, %v8871
  %v8876 = vlaneseq
  %v8877 = vshrl.u32 %v8876, 7
  %v8878 = vsub.s32 0, %v8877
  %v8879 = vrot.slane %v8834, %v8878
  %v8881 = vmul.f32 %v8872, %v8879
  %v8882 = vmul.f32 %v8873, %v8879
  %v8883 = vmul.f32 %v8874, %v8879
  %v8885 = vlaneseq
  %v8886 = vshrl.u32 %v8885, 7
  %v8887 = vsub.s32 0, %v8886
  %v8888 = vrot.slane %v8836, %v8887
  %v8890 = vadd.f32 %v8881, %v8888
  %v8891 = vadd.f32 %v8882, %v8888
  %v8892 = vadd.f32 %v8883, %v8888
  %8893 = vst.msk [vmem:[%s15] sm:$0xff] %vm144, %v8890
  %8894 = vst.msk [vmem:[%s15 + $0x8] sm:$0xff] %vm144, %v8891
  %8895 = vst.msk [vmem:[%s15 + $0x10] sm:$0xff] %vm144, %v8892
  // Predicated region
  $region62: #{_lambda_.1} parent=0 // pred_check
    _
  $region63: #{_lambda_.1} parent=0 // pred_check_branch
    %8897 = sbr.rel (0) target = $region65
  $region64: #{_lambda_.1} parent=0 // pred_region
    _
  $region65: #{_lambda_.1} parent=0 // pred_fallthru
    _
  // Predicated region
  $region66: #{_lambda_.1} parent=0 // pred_check
    _
  $region67: #{_lambda_.1} parent=0 // pred_check_branch
    %8899 = sbr.rel (0) target = $region69
  $region68: #{_lambda_.1} parent=0 // pred_region
    _
  $region69: #{_lambda_.1} parent=0 // pred_fallthru
    _

</llo_original>
